<compile_context>
chip_gen: v7x
topology: tpu7x:2x2x1
jax: 0.10.0
libtpu: 0.0.40
codegen_flags: <defaults>
</compile_context>

<pallas_src>
import functools

import jax
import jax.numpy as jnp
from jax.experimental import pallas as pl
from jax.experimental.pallas import tpu as pltpu


# ----------------------------- in-kernel helpers -----------------------------

def _erf(x):
    # Abramowitz & Stegun 7.1.26 polynomial (|err| < 1.5e-7 ~= f32 eps).  Used instead of
    # lax.erf so the exact-GELU path is guaranteed to lower in Mosaic.
    a1, a2, a3, a4, a5 = 0.254829592, -0.284496736, 1.421413741, -1.453152027, 1.061405429
    p = 0.3275911
    sgn = jnp.where(x >= 0.0, 1.0, -1.0)
    ax = jnp.abs(x)
    t = 1.0 / (1.0 + p * ax)
    poly = ((((a5 * t + a4) * t + a3) * t + a2) * t + a1) * t
    return sgn * (1.0 - poly * jnp.exp(-ax * ax))


def _gelu_exact(x):
    # PyTorch nn.GELU default (erf form), not the tanh approximation.
    return 0.5 * x * (1.0 + _erf(x * 0.7071067811865475))


def _ln(x, g_ref, b_ref):
    # x: [S, D] float32; g/b refs: [1, D]
    mu = jnp.mean(x, axis=-1, keepdims=True)
    var = jnp.mean((x - mu) * (x - mu), axis=-1, keepdims=True)
    return (x - mu) * jax.lax.rsqrt(var + 1e-5) * g_ref[...] + b_ref[...]


# ----------------------------- Pallas kernels -----------------------------

def _layernorm_kernel(x_ref, g_ref, b_ref, o_ref):
    # per-batch block: x [1, S, D]
    o_ref[0] = _ln(x_ref[0].astype(jnp.float32), g_ref, b_ref).astype(o_ref.dtype)


def _decoder_layer_kernel(num_heads, hid_ref, enc_ref, dpad_ref, epad_ref, *rest):
    (wqkv_s, bqkv_s, wo_s, bo_s, g_s, b_s,              # self-attention
     wq_c, bq_c, wkv_c, bkv_c, wo_c, bo_c, g_c, b_c,    # cross-attention
     w1, b1, w2, b2, g_f, b_f,                          # feed-forward
     out_ref) = rest

    f32, bf16 = jnp.float32, jnp.bfloat16
    NEG = jnp.float32(-1e9)

    h = hid_ref[0].astype(f32)      # [S, D]
    enc = enc_ref[0].astype(f32)    # [Sk, D]
    S, D = h.shape
    Sk = enc.shape[0]
    H = num_heads
    Dh = D // H

    def attention(q2d, k2d, v2d, mask2d):
        # q2d: [S, D] (scaling already folded into weights), k2d/v2d: [L, D],
        # mask2d: additive, broadcastable to [S, L].  Heads handled via static lane slices;
        # merged context returned as a lane-dense [S, D] slab.
        ctx_heads = []
        for hd in range(H):
            sl = slice(hd * Dh, (hd + 1) * Dh)
            qh = q2d[:, sl].astype(bf16)                 # [S, Dh]
            kh = k2d[:, sl].astype(bf16)                 # [L, Dh]
            vh = v2d[:, sl].astype(bf16)                 # [L, Dh]
            s = jax.lax.dot_general(qh, kh, (((1,), (1,)), ((), ())),
                                    preferred_element_type=f32)          # [S, L]
            s = s + mask2d
            s = s - jnp.max(s, axis=-1, keepdims=True)
            p = jnp.exp(s)
            p = p * pl.reciprocal(jnp.sum(p, axis=-1, keepdims=True), approx=True)
            ctx_heads.append(jnp.dot(p.astype(bf16), vh,
                                     preferred_element_type=f32))        # [S, Dh]
        return jnp.concatenate(ctx_heads, axis=1)                         # [S, D]

    # ---------------- self attention (fused QKV, causal + pad mask built in-kernel) -------
    qkv = jnp.dot(h.astype(bf16), wqkv_s[...], preferred_element_type=f32) + bqkv_s[...]
    q, k, v = qkv[:, :D], qkv[:, D:2 * D], qkv[:, 2 * D:]

    row = jax.lax.broadcasted_iota(jnp.int32, (S, S), 0)
    col = jax.lax.broadcasted_iota(jnp.int32, (S, S), 1)
    causal = jnp.where(row >= col, 0.0, NEG)             # [S, S]
    self_mask = causal + dpad_ref[0]                     # [S, S] + [1, S] -> [S, S]

    ctx = attention(q, k, v, self_mask)
    attn_out = jnp.dot(ctx.astype(bf16), wo_s[...], preferred_element_type=f32) + bo_s[...]
    h = _ln(h + attn_out, g_s, b_s)

    # ---------------- cross attention over encoder hidden states --------------------------
    qc = jnp.dot(h.astype(bf16), wq_c[...], preferred_element_type=f32) + bq_c[...]
    kvc = jnp.dot(enc.astype(bf16), wkv_c[...], preferred_element_type=f32) + bkv_c[...]
    kc, vc = kvc[:, :D], kvc[:, D:]

    cross_mask = epad_ref[0]                             # [1, Sk], broadcasts over queries

    ctx = attention(qc, kc, vc, cross_mask)
    attn_out = jnp.dot(ctx.astype(bf16), wo_c[...], preferred_element_type=f32) + bo_c[...]
    h = _ln(h + attn_out, g_c, b_c)

    # ---------------- feed-forward ---------------------------------------------------------
    h1 = jnp.dot(h.astype(bf16), w1[...], preferred_element_type=f32) + b1[...]
    h1 = _gelu_exact(h1)
    h2 = jnp.dot(h1.astype(bf16), w2[...], preferred_element_type=f32) + b2[...]
    h = _ln(h + h2, g_f, b_f)

    out_ref[0] = h.astype(out_ref.dtype)


# ----------------------------- wrappers -----------------------------

def pallas_layernorm(x, gamma2d, beta2d):
    """x: [B, S, D]; gamma/beta: [1, D]."""
    B, S, D = x.shape
    blk = pl.BlockSpec((1, S, D), lambda b: (b, 0, 0))
    return pl.pallas_call(
        _layernorm_kernel,
        out_shape=jax.ShapeDtypeStruct((B, S, D), x.dtype),
        grid=(B,),
        in_specs=[blk,
                  pl.BlockSpec((1, D), lambda b: (0, 0)),
                  pl.BlockSpec((1, D), lambda b: (0, 0))],
        out_specs=blk,
        compiler_params=pltpu.CompilerParams(dimension_semantics=("parallel",)),
    )(x, gamma2d, beta2d)


def fused_decoder_layer(hidden, enc_hidden, dec_pad, enc_pad, layer_weights, cfg):
    """hidden: [B, S, D], enc_hidden: [B, Sk, D], dec_pad: [B, 1, S], enc_pad: [B, 1, Sk]."""
    B, S, D = hidden.shape
    Sk = enc_hidden.shape[1]
    H, F = cfg.num_heads, cfg.ffn_dim

    kernel = functools.partial(_decoder_layer_kernel, H)

    data_specs = [
        pl.BlockSpec((1, S, D), lambda b: (b, 0, 0)),   # hidden
        pl.BlockSpec((1, Sk, D), lambda b: (b, 0, 0)),  # encoder hidden
        pl.BlockSpec((1, 1, S), lambda b: (b, 0, 0)),   # decoder additive pad mask
        pl.BlockSpec((1, 1, Sk), lambda b: (b, 0, 0)),  # encoder additive pad mask
    ]
    weight_specs = [pl.BlockSpec(w.shape, lambda b: (0, 0)) for w in layer_weights]

    flops = 2 * B * (
        S * D * (3 * D)            # fused self QKV projection
        + 2 * S * S * D            # self-attn scores + context (all heads)
        + S * D * D                # self-attn output projection
        + S * D * D                # cross-attn Q projection
        + Sk * D * (2 * D)         # fused cross KV projection
        + 2 * S * Sk * D           # cross-attn scores + context
        + S * D * D                # cross-attn output projection
        + S * D * F + S * F * D    # FFN
    )
    transcendentals = B * (H * S * S + H * S * Sk + 2 * S * F)
    all_inputs = (hidden, enc_hidden, dec_pad, enc_pad) + tuple(layer_weights)
    bytes_accessed = int(sum(a.size * a.dtype.itemsize for a in all_inputs) + B * S * D * 4)

    return pl.pallas_call(
        kernel,
        out_shape=jax.ShapeDtypeStruct((B, S, D), jnp.float32),
        grid=(B,),
        in_specs=data_specs + weight_specs,
        out_specs=pl.BlockSpec((1, S, D), lambda b: (b, 0, 0)),
        compiler_params=pltpu.CompilerParams(dimension_semantics=("parallel",)),
        cost_estimate=pl.CostEstimate(flops=flops, transcendentals=transcendentals,
                                      bytes_accessed=bytes_accessed),
    )(hidden, enc_hidden, dec_pad, enc_pad, *layer_weights)


# ----------------------------- config / params -----------------------------

class Config:
    vocab_size = 64
    max_position_embeddings = 64
    d_model = 32
    num_heads = 4
    ffn_dim = 64
    num_layers = 2
    pos_offset = 2  # BART-style learned positional-embedding offset


def init_params(cfg, key):
    """PyTorch-style (unfused, float32) parameters."""
    std = 0.02
    keys = iter(jax.random.split(key, 256))

    def nrm(shape):
        return (std * jax.random.normal(next(keys), shape)).astype(jnp.float32)

    params = {
        "embed_tokens": nrm((cfg.vocab_size, cfg.d_model)),
        "embed_positions": nrm((cfg.max_position_embeddings + cfg.pos_offset, cfg.d_model)),
        "ln_emb_g": jnp.ones((cfg.d_model,), jnp.float32),
        "ln_emb_b": jnp.zeros((cfg.d_model,), jnp.float32),
        "layers": [],
    }
    D, F = cfg.d_model, cfg.ffn_dim
    for _ in range(cfg.num_layers):
        def attn_params():
            return {
                "wq": nrm((D, D)), "bq": jnp.zeros((D,), jnp.float32),
                "wk": nrm((D, D)), "bk": jnp.zeros((D,), jnp.float32),
                "wv": nrm((D, D)), "bv": jnp.zeros((D,), jnp.float32),
                "wo": nrm((D, D)), "bo": jnp.zeros((D,), jnp.float32),
            }
        params["layers"].append({
            "self_attn": attn_params(),
            "ln_self_g": jnp.ones((D,), jnp.float32), "ln_self_b": jnp.zeros((D,), jnp.float32),
            "cross_attn": attn_params(),
            "ln_cross_g": jnp.ones((D,), jnp.float32), "ln_cross_b": jnp.zeros((D,), jnp.float32),
            "fc1_w": nrm((D, F)), "fc1_b": jnp.zeros((F,), jnp.float32),
            "fc2_w": nrm((F, D)), "fc2_b": jnp.zeros((D,), jnp.float32),
            "ln_final_g": jnp.ones((D,), jnp.float32), "ln_final_b": jnp.zeros((D,), jnp.float32),
        })
    return params


def prepare_kernel_params(params, cfg):
    """Fuse QKV / KV weights, fold the 1/sqrt(Dh) scaling into q, cast matmul weights to bf16."""
    D, H, F = cfg.d_model, cfg.num_heads, cfg.ffn_dim
    scaling = (D // H) ** -0.5
    bf16 = jnp.bfloat16

    def prep_layer(lp):
        sa, ca = lp["self_attn"], lp["cross_attn"]
        wqkv = jnp.concatenate([sa["wq"] * scaling, sa["wk"], sa["wv"]], axis=1).astype(bf16)
        bqkv = jnp.concatenate([sa["bq"] * scaling, sa["bk"], sa["bv"]]).reshape(1, 3 * D)
        wkv_c = jnp.concatenate([ca["wk"], ca["wv"]], axis=1).astype(bf16)
        bkv_c = jnp.concatenate([ca["bk"], ca["bv"]]).reshape(1, 2 * D)
        return (
            # self attention
            wqkv, bqkv, sa["wo"].astype(bf16), sa["bo"].reshape(1, D),
            lp["ln_self_g"].reshape(1, D), lp["ln_self_b"].reshape(1, D),
            # cross attention
            (ca["wq"] * scaling).astype(bf16), (ca["bq"] * scaling).reshape(1, D),
            wkv_c, bkv_c, ca["wo"].astype(bf16), ca["bo"].reshape(1, D),
            lp["ln_cross_g"].reshape(1, D), lp["ln_cross_b"].reshape(1, D),
            # feed-forward
            lp["fc1_w"].astype(bf16), lp["fc1_b"].reshape(1, F),
            lp["fc2_w"].astype(bf16), lp["fc2_b"].reshape(1, D),
            lp["ln_final_g"].reshape(1, D), lp["ln_final_b"].reshape(1, D),
        )

    return {
        "embed_tokens": params["embed_tokens"],
        "embed_positions": params["embed_positions"],
        "ln_emb_g": params["ln_emb_g"].reshape(1, D),
        "ln_emb_b": params["ln_emb_b"].reshape(1, D),
        "layers": [prep_layer(lp) for lp in params["layers"]],
    }


# ----------------------------- forward -----------------------------

def cptg_dec_forward(kparams, cfg,
                     decoder_input_ids,
                     decoder_attention_mask,
                     encoder_hidden_states,
                     encoder_attention_mask):
    """Mirrors CPTGDec.forward -> decoder last_hidden_state (eval mode, dropout omitted)."""
    B, S = decoder_input_ids.shape
    Sk = encoder_hidden_states.shape[1]
    NEG = jnp.float32(-1e9)

    # token + learned positional embeddings (BART offset 2), then embedding layernorm
    tok = kparams["embed_tokens"][decoder_input_ids]                    # [B, S, D]
    pos = kparams["embed_positions"][jnp.arange(S) + cfg.pos_offset]    # [S, D]
    hidden = (tok + pos[None, :, :]).astype(jnp.float32)
    hidden = pallas_layernorm(hidden, kparams["ln_emb_g"], kparams["ln_emb_b"])

    # tiny additive padding vectors only; causal mask is rebuilt inside the kernel
    dec_pad = jnp.where(decoder_attention_mask.astype(jnp.bool_), 0.0, NEG)
    dec_pad = dec_pad.astype(jnp.float32).reshape(B, 1, S)
    enc_pad = jnp.where(encoder_attention_mask.astype(jnp.bool_), 0.0, NEG)
    enc_pad = enc_pad.astype(jnp.float32).reshape(B, 1, Sk)

    enc_hidden = encoder_hidden_states.astype(jnp.float32)
    for lw in kparams["layers"]:
        hidden = fused_decoder_layer(hidden, enc_hidden, dec_pad, enc_pad, lw, cfg)

    # TODO(synk): past_key_values / use_cache and the attention / hidden-state collection of
    # the HF decoder output tuple are not reproduced; only last_hidden_state is returned.
    return hidden


# ----------------------------- main -----------------------------

if __name__ == "__main__":
    cfg = Config()
    key = jax.random.PRNGKey(0)
    pkey, ikey, ekey = jax.random.split(key, 3)

    params = init_params(cfg, pkey)
    kparams = prepare_kernel_params(params, cfg)

    B, S, Sk = 2, 8, 8
    decoder_input_ids = jax.random.randint(ikey, (B, S), 0, cfg.vocab_size)
    decoder_attention_mask = jnp.ones((B, S), jnp.int32)
    encoder_hidden_states = (0.02 * jax.random.normal(ekey, (B, Sk, cfg.d_model))).astype(jnp.float32)
    encoder_attention_mask = jnp.ones((B, Sk), jnp.int32)

    fwd = jax.jit(functools.partial(cptg_dec_forward, kparams, cfg))
    out = fwd(decoder_input_ids, decoder_attention_mask,
              encoder_hidden_states, encoder_attention_mask)
    out = jax.block_until_ready(out)

    assert out.shape == (B, S, cfg.d_model)
    assert bool(jnp.all(jnp.isfinite(out)))
    print("KERNEL_OK")
</pallas_src>

<mosaic_0001>
module attributes {stable_mosaic.version = 11 : i64} {
  func.func @_layernorm_kernel(%arg0: i32, %arg1: memref<1x8x32xf32, #tpu.memory_space<vmem>>, %arg2: memref<1x32xf32, #tpu.memory_space<vmem>>, %arg3: memref<1x32xf32, #tpu.memory_space<vmem>>, %arg4: memref<1x8x32xf32, #tpu.memory_space<vmem>>) attributes {dimension_semantics = [#tpu.dimension_semantics<parallel>], iteration_bounds = array<i64: 2>, scalar_prefetch = 0 : i64, scratch_operands = 0 : i64, tpu.core_type = #tpu.core_type<tc>, window_params = [{transform_indices = @transform_0, window_bounds = array<i64: 1, 8, 32>}, {pipeline_mode = #tpu.pipeline_mode<synchronous>, transform_indices = @transform_1, window_bounds = array<i64: 1, 32>}, {pipeline_mode = #tpu.pipeline_mode<synchronous>, transform_indices = @transform_2, window_bounds = array<i64: 1, 32>}, {transform_indices = @transform_3, window_bounds = array<i64: 1, 8, 32>}]} {
    %c0 = arith.constant 0 : index
    %c0_0 = arith.constant 0 : index
    %c0_1 = arith.constant 0 : index
    %0 = vector.load %arg1[%c0, %c0_0, %c0_1] : memref<1x8x32xf32, #tpu.memory_space<vmem>>, vector<1x8x32xf32>
    %1 = vector.shape_cast %0 : vector<1x8x32xf32> to vector<8x32xf32>
    %cst = arith.constant dense<0.000000e+00> : vector<8xf32>
    %2 = vector.multi_reduction <add>, %1, %cst [1] : vector<8x32xf32> to vector<8xf32>
    %3 = vector.shape_cast %2 : vector<8xf32> to vector<8x1xf32>
    %cst_2 = arith.constant 3.200000e+01 : f32
    %4 = vector.broadcast %cst_2 : f32 to vector<8x1xf32>
    %5 = arith.divf %3, %4 : vector<8x1xf32>
    %6 = vector.broadcast %5 : vector<8x1xf32> to vector<8x32xf32>
    %7 = arith.subf %1, %6 : vector<8x32xf32>
    %8 = vector.broadcast %5 : vector<8x1xf32> to vector<8x32xf32>
    %9 = arith.subf %1, %8 : vector<8x32xf32>
    %10 = arith.mulf %7, %9 : vector<8x32xf32>
    %cst_3 = arith.constant dense<0.000000e+00> : vector<8xf32>
    %11 = vector.multi_reduction <add>, %10, %cst_3 [1] : vector<8x32xf32> to vector<8xf32>
    %12 = vector.shape_cast %11 : vector<8xf32> to vector<8x1xf32>
    %cst_4 = arith.constant 3.200000e+01 : f32
    %13 = vector.broadcast %cst_4 : f32 to vector<8x1xf32>
    %14 = arith.divf %12, %13 : vector<8x1xf32>
    %15 = vector.broadcast %5 : vector<8x1xf32> to vector<8x32xf32>
    %16 = arith.subf %1, %15 : vector<8x32xf32>
    %cst_5 = arith.constant 9.99999974E-6 : f32
    %17 = vector.broadcast %cst_5 : f32 to vector<8x1xf32>
    %18 = arith.addf %14, %17 : vector<8x1xf32>
    %19 = math.rsqrt %18 : vector<8x1xf32>
    %20 = vector.broadcast %19 : vector<8x1xf32> to vector<8x32xf32>
    %21 = arith.mulf %16, %20 : vector<8x32xf32>
    %c0_6 = arith.constant 0 : index
    %c0_7 = arith.constant 0 : index
    %22 = vector.load %arg2[%c0_6, %c0_7] : memref<1x32xf32, #tpu.memory_space<vmem>>, vector<1x32xf32>
    %23 = vector.broadcast %22 : vector<1x32xf32> to vector<8x32xf32>
    %24 = arith.mulf %21, %23 : vector<8x32xf32>
    %c0_8 = arith.constant 0 : index
    %c0_9 = arith.constant 0 : index
    %25 = vector.load %arg3[%c0_8, %c0_9] : memref<1x32xf32, #tpu.memory_space<vmem>>, vector<1x32xf32>
    %26 = vector.broadcast %25 : vector<1x32xf32> to vector<8x32xf32>
    %27 = arith.addf %24, %26 : vector<8x32xf32>
    %c0_10 = arith.constant 0 : index
    %c0_11 = arith.constant 0 : index
    %c0_12 = arith.constant 0 : index
    %28 = vector.load %arg4[%c0_10, %c0_11, %c0_12] : memref<1x8x32xf32, #tpu.memory_space<vmem>>, vector<1x8x32xf32>
    %29 = vector.shape_cast %28 : vector<1x8x32xf32> to vector<8x32xf32>
    %30 = vector.shape_cast %27 : vector<8x32xf32> to vector<1x8x32xf32>
    tpu.vector_store %arg4[%c0_10, %c0_11, %c0_12], %30 {strides = array<i32>} : memref<1x8x32xf32, #tpu.memory_space<vmem>>, vector<1x8x32xf32>,
    return
  }
  func.func @transform_0(%arg0: i32) -> (i32, i32, i32) {
    %c0_i32 = arith.constant 0 : i32
    %c0_i32_0 = arith.constant 0 : i32
    %c0_i32_1 = arith.constant 0 : i32
    return %arg0, %c0_i32, %c0_i32_0 : i32, i32, i32
  }
  func.func @transform_1(%arg0: i32) -> (i32, i32) {
    %c0_i32 = arith.constant 0 : i32
    %c0_i32_0 = arith.constant 0 : i32
    %c0_i32_1 = arith.constant 0 : i32
    return %c0_i32, %c0_i32_0 : i32, i32
  }
  func.func @transform_2(%arg0: i32) -> (i32, i32) {
    %c0_i32 = arith.constant 0 : i32
    %c0_i32_0 = arith.constant 0 : i32
    %c0_i32_1 = arith.constant 0 : i32
    return %c0_i32, %c0_i32_0 : i32, i32
  }
  func.func @transform_3(%arg0: i32) -> (i32, i32, i32) {
    %c0_i32 = arith.constant 0 : i32
    %c0_i32_0 = arith.constant 0 : i32
    %c0_i32_1 = arith.constant 0 : i32
    return %arg0, %c0_i32, %c0_i32_0 : i32, i32, i32
  }
}

module attributes {stable_mosaic.version = 11 : i64} {
  func.func @_decoder_layer_kernel(%arg0: i32, %arg1: memref<1x8x32xf32, #tpu.memory_space<vmem>>, %arg2: memref<1x8x32xf32, #tpu.memory_space<vmem>>, %arg3: memref<1x1x8xf32, #tpu.memory_space<vmem>>, %arg4: memref<1x1x8xf32, #tpu.memory_space<vmem>>, %arg5: memref<32x96xbf16, #tpu.memory_space<vmem>>, %arg6: memref<1x96xf32, #tpu.memory_space<vmem>>, %arg7: memref<32x32xbf16, #tpu.memory_space<vmem>>, %arg8: memref<1x32xf32, #tpu.memory_space<vmem>>, %arg9: memref<1x32xf32, #tpu.memory_space<vmem>>, %arg10: memref<1x32xf32, #tpu.memory_space<vmem>>, %arg11: memref<32x32xbf16, #tpu.memory_space<vmem>>, %arg12: memref<1x32xf32, #tpu.memory_space<vmem>>, %arg13: memref<32x64xbf16, #tpu.memory_space<vmem>>, %arg14: memref<1x64xf32, #tpu.memory_space<vmem>>, %arg15: memref<32x32xbf16, #tpu.memory_space<vmem>>, %arg16: memref<1x32xf32, #tpu.memory_space<vmem>>, %arg17: memref<1x32xf32, #tpu.memory_space<vmem>>, %arg18: memref<1x32xf32, #tpu.memory_space<vmem>>, %arg19: memref<32x64xbf16, #tpu.memory_space<vmem>>, %arg20: memref<1x64xf32, #tpu.memory_space<vmem>>, %arg21: memref<64x32xbf16, #tpu.memory_space<vmem>>, %arg22: memref<1x32xf32, #tpu.memory_space<vmem>>, %arg23: memref<1x32xf32, #tpu.memory_space<vmem>>, %arg24: memref<1x32xf32, #tpu.memory_space<vmem>>, %arg25: memref<1x8x32xf32, #tpu.memory_space<vmem>>) attributes {dimension_semantics = [#tpu.dimension_semantics<parallel>], iteration_bounds = array<i64: 2>, scalar_prefetch = 0 : i64, scratch_operands = 0 : i64, tpu.core_type = #tpu.core_type<tc>, window_params = [{transform_indices = @transform_0, window_bounds = array<i64: 1, 8, 32>}, {transform_indices = @transform_1, window_bounds = array<i64: 1, 8, 32>}, {transform_indices = @transform_2, window_bounds = array<i64: 1, 1, 8>}, {transform_indices = @transform_3, window_bounds = array<i64: 1, 1, 8>}, {pipeline_mode = #tpu.pipeline_mode<synchronous>, transform_indices = @transform_4, window_bounds = array<i64: 32, 96>}, {pipeline_mode = #tpu.pipeline_mode<synchronous>, transform_indices = @transform_5, window_bounds = array<i64: 1, 96>}, {pipeline_mode = #tpu.pipeline_mode<synchronous>, transform_indices = @transform_6, window_bounds = array<i64: 32, 32>}, {pipeline_mode = #tpu.pipeline_mode<synchronous>, transform_indices = @transform_7, window_bounds = array<i64: 1, 32>}, {pipeline_mode = #tpu.pipeline_mode<synchronous>, transform_indices = @transform_8, window_bounds = array<i64: 1, 32>}, {pipeline_mode = #tpu.pipeline_mode<synchronous>, transform_indices = @transform_9, window_bounds = array<i64: 1, 32>}, {pipeline_mode = #tpu.pipeline_mode<synchronous>, transform_indices = @transform_10, window_bounds = array<i64: 32, 32>}, {pipeline_mode = #tpu.pipeline_mode<synchronous>, transform_indices = @transform_11, window_bounds = array<i64: 1, 32>}, {pipeline_mode = #tpu.pipeline_mode<synchronous>, transform_indices = @transform_12, window_bounds = array<i64: 32, 64>}, {pipeline_mode = #tpu.pipeline_mode<synchronous>, transform_indices = @transform_13, window_bounds = array<i64: 1, 64>}, {pipeline_mode = #tpu.pipeline_mode<synchronous>, transform_indices = @transform_14, window_bounds = array<i64: 32, 32>}, {pipeline_mode = #tpu.pipeline_mode<synchronous>, transform_indices = @transform_15, window_bounds = array<i64: 1, 32>}, {pipeline_mode = #tpu.pipeline_mode<synchronous>, transform_indices = @transform_16, window_bounds = array<i64: 1, 32>}, {pipeline_mode = #tpu.pipeline_mode<synchronous>, transform_indices = @transform_17, window_bounds = array<i64: 1, 32>}, {pipeline_mode = #tpu.pipeline_mode<synchronous>, transform_indices = @transform_18, window_bounds = array<i64: 32, 64>}, {pipeline_mode = #tpu.pipeline_mode<synchronous>, transform_indices = @transform_19, window_bounds = array<i64: 1, 64>}, {pipeline_mode = #tpu.pipeline_mode<synchronous>, transform_indices = @transform_20, window_bounds = array<i64: 64, 32>}, {pipeline_mode = #tpu.pipeline_mode<synchronous>, transform_indices = @transform_21, window_bounds = array<i64: 1, 32>}, {pipeline_mode = #tpu.pipeline_mode<synchronous>, transform_indices = @transform_22, window_bounds = array<i64: 1, 32>}, {pipeline_mode = #tpu.pipeline_mode<synchronous>, transform_indices = @transform_23, window_bounds = array<i64: 1, 32>}, {transform_indices = @transform_24, window_bounds = array<i64: 1, 8, 32>}]} {
    %c0 = arith.constant 0 : index
    %c0_0 = arith.constant 0 : index
    %c0_1 = arith.constant 0 : index
    %0 = vector.load %arg1[%c0, %c0_0, %c0_1] : memref<1x8x32xf32, #tpu.memory_space<vmem>>, vector<1x8x32xf32>
    %1 = vector.shape_cast %0 : vector<1x8x32xf32> to vector<8x32xf32>
    %c0_2 = arith.constant 0 : index
    %c0_3 = arith.constant 0 : index
    %c0_4 = arith.constant 0 : index
    %2 = vector.load %arg2[%c0_2, %c0_3, %c0_4] : memref<1x8x32xf32, #tpu.memory_space<vmem>>, vector<1x8x32xf32>
    %3 = vector.shape_cast %2 : vector<1x8x32xf32> to vector<8x32xf32>
    %4 = arith.truncf %1 : vector<8x32xf32> to vector<8x32xbf16>
    %c0_5 = arith.constant 0 : index
    %c0_6 = arith.constant 0 : index
    %5 = vector.load %arg5[%c0_5, %c0_6] : memref<32x96xbf16, #tpu.memory_space<vmem>>, vector<32x96xbf16>
    %cst = arith.constant dense<0.000000e+00> : vector<8x96xf32>
    %6 = tpu.matmul %4, %5, %cst {dimension_numbers = #tpu.dot_dimension_numbers<[1], [0], [0], [1], [0, 0, 1, 1], [], []>} : vector<8x32xbf16>, vector<32x96xbf16>, vector<8x96xf32> -> vector<8x96xf32>
    %c0_7 = arith.constant 0 : index
    %c0_8 = arith.constant 0 : index
    %7 = vector.load %arg6[%c0_7, %c0_8] : memref<1x96xf32, #tpu.memory_space<vmem>>, vector<1x96xf32>
    %8 = vector.broadcast %7 : vector<1x96xf32> to vector<8x96xf32>
    %9 = arith.addf %6, %8 : vector<8x96xf32>
    %10 = vector.extract_strided_slice %9 {offsets = [0, 0], sizes = [8, 32], strides = [1, 1]} : vector<8x96xf32> to vector<8x32xf32>
    %11 = vector.extract_strided_slice %9 {offsets = [0, 32], sizes = [8, 32], strides = [1, 1]} : vector<8x96xf32> to vector<8x32xf32>
    %12 = vector.extract_strided_slice %9 {offsets = [0, 64], sizes = [8, 32], strides = [1, 1]} : vector<8x96xf32> to vector<8x32xf32>
    %13 = tpu.iota {dimensions = array<i32: 0>} : vector<8x8xi32>
    %14 = tpu.iota {dimensions = array<i32: 1>} : vector<8x8xi32>
    %15 = arith.cmpi sge, %13, %14 : vector<8x8xi32>
    %cst_9 = arith.constant 0.000000e+00 : f32
    %cst_10 = arith.constant -1.000000e+09 : f32
    %16 = vector.broadcast %cst_9 : f32 to vector<8x8xf32>
    %17 = vector.broadcast %cst_10 : f32 to vector<8x8xf32>
    %18 = arith.select %15, %16, %17 : vector<8x8xi1>, vector<8x8xf32>
    %c0_11 = arith.constant 0 : index
    %c0_12 = arith.constant 0 : index
    %c0_13 = arith.constant 0 : index
    %19 = vector.load %arg3[%c0_11, %c0_12, %c0_13] : memref<1x1x8xf32, #tpu.memory_space<vmem>>, vector<1x1x8xf32>
    %20 = vector.shape_cast %19 : vector<1x1x8xf32> to vector<1x8xf32>
    %21 = vector.broadcast %20 : vector<1x8xf32> to vector<8x8xf32>
    %22 = arith.addf %18, %21 : vector<8x8xf32>
    %23 = vector.extract_strided_slice %10 {offsets = [0, 0], sizes = [8, 8], strides = [1, 1]} : vector<8x32xf32> to vector<8x8xf32>
    %24 = arith.truncf %23 : vector<8x8xf32> to vector<8x8xbf16>
    %25 = vector.extract_strided_slice %11 {offsets = [0, 0], sizes = [8, 8], strides = [1, 1]} : vector<8x32xf32> to vector<8x8xf32>
    %26 = arith.truncf %25 : vector<8x8xf32> to vector<8x8xbf16>
    %27 = vector.extract_strided_slice %12 {offsets = [0, 0], sizes = [8, 8], strides = [1, 1]} : vector<8x32xf32> to vector<8x8xf32>
    %28 = arith.truncf %27 : vector<8x8xf32> to vector<8x8xbf16>
    %cst_14 = arith.constant dense<0.000000e+00> : vector<8x8xf32>
    %29 = tpu.matmul %24, %26, %cst_14 {dimension_numbers = #tpu.dot_dimension_numbers<[1], [1], [0], [0], [0, 0, 1, 0], [], []>} : vector<8x8xbf16>, vector<8x8xbf16>, vector<8x8xf32> -> vector<8x8xf32>
    %30 = arith.addf %29, %22 : vector<8x8xf32>
    %cst_15 = arith.constant dense<0xFF800000> : vector<8xf32>
    %31 = vector.multi_reduction <maximumf>, %30, %cst_15 [1] : vector<8x8xf32> to vector<8xf32>
    %32 = vector.shape_cast %31 : vector<8xf32> to vector<8x1xf32>
    %33 = vector.broadcast %32 : vector<8x1xf32> to vector<8x8xf32>
    %34 = arith.subf %30, %33 : vector<8x8xf32>
    %35 = math.exp %34 : vector<8x8xf32>
    %cst_16 = arith.constant dense<0.000000e+00> : vector<8xf32>
    %36 = vector.multi_reduction <add>, %35, %cst_16 [1] : vector<8x8xf32> to vector<8xf32>
    %37 = vector.shape_cast %36 : vector<8xf32> to vector<8x1xf32>
    %38 = tpu.reciprocal %37 {approx = true} : vector<8x1xf32> -> vector<8x1xf32>
    %39 = vector.broadcast %38 : vector<8x1xf32> to vector<8x8xf32>
    %40 = arith.mulf %35, %39 : vector<8x8xf32>
    %41 = arith.truncf %40 : vector<8x8xf32> to vector<8x8xbf16>
    %cst_17 = arith.constant dense<0.000000e+00> : vector<8x8xf32>
    %42 = tpu.matmul %41, %28, %cst_17 {dimension_numbers = #tpu.dot_dimension_numbers<[1], [0], [0], [1], [0, 0, 1, 1], [], []>} : vector<8x8xbf16>, vector<8x8xbf16>, vector<8x8xf32> -> vector<8x8xf32>
    %43 = vector.extract_strided_slice %10 {offsets = [0, 8], sizes = [8, 8], strides = [1, 1]} : vector<8x32xf32> to vector<8x8xf32>
    %44 = arith.truncf %43 : vector<8x8xf32> to vector<8x8xbf16>
    %45 = vector.extract_strided_slice %11 {offsets = [0, 8], sizes = [8, 8], strides = [1, 1]} : vector<8x32xf32> to vector<8x8xf32>
    %46 = arith.truncf %45 : vector<8x8xf32> to vector<8x8xbf16>
    %47 = vector.extract_strided_slice %12 {offsets = [0, 8], sizes = [8, 8], strides = [1, 1]} : vector<8x32xf32> to vector<8x8xf32>
    %48 = arith.truncf %47 : vector<8x8xf32> to vector<8x8xbf16>
    %cst_18 = arith.constant dense<0.000000e+00> : vector<8x8xf32>
    %49 = tpu.matmul %44, %46, %cst_18 {dimension_numbers = #tpu.dot_dimension_numbers<[1], [1], [0], [0], [0, 0, 1, 0], [], []>} : vector<8x8xbf16>, vector<8x8xbf16>, vector<8x8xf32> -> vector<8x8xf32>
    %50 = arith.addf %49, %22 : vector<8x8xf32>
    %cst_19 = arith.constant dense<0xFF800000> : vector<8xf32>
    %51 = vector.multi_reduction <maximumf>, %50, %cst_19 [1] : vector<8x8xf32> to vector<8xf32>
    %52 = vector.shape_cast %51 : vector<8xf32> to vector<8x1xf32>
    %53 = vector.broadcast %52 : vector<8x1xf32> to vector<8x8xf32>
    %54 = arith.subf %50, %53 : vector<8x8xf32>
    %55 = math.exp %54 : vector<8x8xf32>
    %cst_20 = arith.constant dense<0.000000e+00> : vector<8xf32>
    %56 = vector.multi_reduction <add>, %55, %cst_20 [1] : vector<8x8xf32> to vector<8xf32>
    %57 = vector.shape_cast %56 : vector<8xf32> to vector<8x1xf32>
    %58 = tpu.reciprocal %57 {approx = true} : vector<8x1xf32> -> vector<8x1xf32>
    %59 = vector.broadcast %58 : vector<8x1xf32> to vector<8x8xf32>
    %60 = arith.mulf %55, %59 : vector<8x8xf32>
    %61 = arith.truncf %60 : vector<8x8xf32> to vector<8x8xbf16>
    %cst_21 = arith.constant dense<0.000000e+00> : vector<8x8xf32>
    %62 = tpu.matmul %61, %48, %cst_21 {dimension_numbers = #tpu.dot_dimension_numbers<[1], [0], [0], [1], [0, 0, 1, 1], [], []>} : vector<8x8xbf16>, vector<8x8xbf16>, vector<8x8xf32> -> vector<8x8xf32>
    %63 = vector.extract_strided_slice %10 {offsets = [0, 16], sizes = [8, 8], strides = [1, 1]} : vector<8x32xf32> to vector<8x8xf32>
    %64 = arith.truncf %63 : vector<8x8xf32> to vector<8x8xbf16>
    %65 = vector.extract_strided_slice %11 {offsets = [0, 16], sizes = [8, 8], strides = [1, 1]} : vector<8x32xf32> to vector<8x8xf32>
    %66 = arith.truncf %65 : vector<8x8xf32> to vector<8x8xbf16>
    %67 = vector.extract_strided_slice %12 {offsets = [0, 16], sizes = [8, 8], strides = [1, 1]} : vector<8x32xf32> to vector<8x8xf32>
    %68 = arith.truncf %67 : vector<8x8xf32> to vector<8x8xbf16>
    %cst_22 = arith.constant dense<0.000000e+00> : vector<8x8xf32>
    %69 = tpu.matmul %64, %66, %cst_22 {dimension_numbers = #tpu.dot_dimension_numbers<[1], [1], [0], [0], [0, 0, 1, 0], [], []>} : vector<8x8xbf16>, vector<8x8xbf16>, vector<8x8xf32> -> vector<8x8xf32>
    %70 = arith.addf %69, %22 : vector<8x8xf32>
    %cst_23 = arith.constant dense<0xFF800000> : vector<8xf32>
    %71 = vector.multi_reduction <maximumf>, %70, %cst_23 [1] : vector<8x8xf32> to vector<8xf32>
    %72 = vector.shape_cast %71 : vector<8xf32> to vector<8x1xf32>
    %73 = vector.broadcast %72 : vector<8x1xf32> to vector<8x8xf32>
    %74 = arith.subf %70, %73 : vector<8x8xf32>
    %75 = math.exp %74 : vector<8x8xf32>
    %cst_24 = arith.constant dense<0.000000e+00> : vector<8xf32>
    %76 = vector.multi_reduction <add>, %75, %cst_24 [1] : vector<8x8xf32> to vector<8xf32>
    %77 = vector.shape_cast %76 : vector<8xf32> to vector<8x1xf32>
    %78 = tpu.reciprocal %77 {approx = true} : vector<8x1xf32> -> vector<8x1xf32>
    %79 = vector.broadcast %78 : vector<8x1xf32> to vector<8x8xf32>
    %80 = arith.mulf %75, %79 : vector<8x8xf32>
    %81 = arith.truncf %80 : vector<8x8xf32> to vector<8x8xbf16>
    %cst_25 = arith.constant dense<0.000000e+00> : vector<8x8xf32>
    %82 = tpu.matmul %81, %68, %cst_25 {dimension_numbers = #tpu.dot_dimension_numbers<[1], [0], [0], [1], [0, 0, 1, 1], [], []>} : vector<8x8xbf16>, vector<8x8xbf16>, vector<8x8xf32> -> vector<8x8xf32>
    %83 = vector.extract_strided_slice %10 {offsets = [0, 24], sizes = [8, 8], strides = [1, 1]} : vector<8x32xf32> to vector<8x8xf32>
    %84 = arith.truncf %83 : vector<8x8xf32> to vector<8x8xbf16>
    %85 = vector.extract_strided_slice %11 {offsets = [0, 24], sizes = [8, 8], strides = [1, 1]} : vector<8x32xf32> to vector<8x8xf32>
    %86 = arith.truncf %85 : vector<8x8xf32> to vector<8x8xbf16>
    %87 = vector.extract_strided_slice %12 {offsets = [0, 24], sizes = [8, 8], strides = [1, 1]} : vector<8x32xf32> to vector<8x8xf32>
    %88 = arith.truncf %87 : vector<8x8xf32> to vector<8x8xbf16>
    %cst_26 = arith.constant dense<0.000000e+00> : vector<8x8xf32>
    %89 = tpu.matmul %84, %86, %cst_26 {dimension_numbers = #tpu.dot_dimension_numbers<[1], [1], [0], [0], [0, 0, 1, 0], [], []>} : vector<8x8xbf16>, vector<8x8xbf16>, vector<8x8xf32> -> vector<8x8xf32>
    %90 = arith.addf %89, %22 : vector<8x8xf32>
    %cst_27 = arith.constant dense<0xFF800000> : vector<8xf32>
    %91 = vector.multi_reduction <maximumf>, %90, %cst_27 [1] : vector<8x8xf32> to vector<8xf32>
    %92 = vector.shape_cast %91 : vector<8xf32> to vector<8x1xf32>
    %93 = vector.broadcast %92 : vector<8x1xf32> to vector<8x8xf32>
    %94 = arith.subf %90, %93 : vector<8x8xf32>
    %95 = math.exp %94 : vector<8x8xf32>
    %cst_28 = arith.constant dense<0.000000e+00> : vector<8xf32>
    %96 = vector.multi_reduction <add>, %95, %cst_28 [1] : vector<8x8xf32> to vector<8xf32>
    %97 = vector.shape_cast %96 : vector<8xf32> to vector<8x1xf32>
    %98 = tpu.reciprocal %97 {approx = true} : vector<8x1xf32> -> vector<8x1xf32>
    %99 = vector.broadcast %98 : vector<8x1xf32> to vector<8x8xf32>
    %100 = arith.mulf %95, %99 : vector<8x8xf32>
    %101 = arith.truncf %100 : vector<8x8xf32> to vector<8x8xbf16>
    %cst_29 = arith.constant dense<0.000000e+00> : vector<8x8xf32>
    %102 = tpu.matmul %101, %88, %cst_29 {dimension_numbers = #tpu.dot_dimension_numbers<[1], [0], [0], [1], [0, 0, 1, 1], [], []>} : vector<8x8xbf16>, vector<8x8xbf16>, vector<8x8xf32> -> vector<8x8xf32>
    %103 = tpu.concatenate %42, %62, %82, %102 in 1 : vector<8x8xf32>, vector<8x8xf32>, vector<8x8xf32>, vector<8x8xf32> -> vector<8x32xf32>
    %104 = arith.truncf %103 : vector<8x32xf32> to vector<8x32xbf16>
    %c0_30 = arith.constant 0 : index
    %c0_31 = arith.constant 0 : index
    %105 = vector.load %arg7[%c0_30, %c0_31] : memref<32x32xbf16, #tpu.memory_space<vmem>>, vector<32x32xbf16>
    %cst_32 = arith.constant dense<0.000000e+00> : vector<8x32xf32>
    %106 = tpu.matmul %104, %105, %cst_32 {dimension_numbers = #tpu.dot_dimension_numbers<[1], [0], [0], [1], [0, 0, 1, 1], [], []>} : vector<8x32xbf16>, vector<32x32xbf16>, vector<8x32xf32> -> vector<8x32xf32>
    %c0_33 = arith.constant 0 : index
    %c0_34 = arith.constant 0 : index
    %107 = vector.load %arg8[%c0_33, %c0_34] : memref<1x32xf32, #tpu.memory_space<vmem>>, vector<1x32xf32>
    %108 = vector.broadcast %107 : vector<1x32xf32> to vector<8x32xf32>
    %109 = arith.addf %106, %108 : vector<8x32xf32>
    %110 = arith.addf %1, %109 : vector<8x32xf32>
    %cst_35 = arith.constant dense<0.000000e+00> : vector<8xf32>
    %111 = vector.multi_reduction <add>, %110, %cst_35 [1] : vector<8x32xf32> to vector<8xf32>
    %112 = vector.shape_cast %111 : vector<8xf32> to vector<8x1xf32>
    %cst_36 = arith.constant 3.200000e+01 : f32
    %113 = vector.broadcast %cst_36 : f32 to vector<8x1xf32>
    %114 = arith.divf %112, %113 : vector<8x1xf32>
    %115 = vector.broadcast %114 : vector<8x1xf32> to vector<8x32xf32>
    %116 = arith.subf %110, %115 : vector<8x32xf32>
    %117 = vector.broadcast %114 : vector<8x1xf32> to vector<8x32xf32>
    %118 = arith.subf %110, %117 : vector<8x32xf32>
    %119 = arith.mulf %116, %118 : vector<8x32xf32>
    %cst_37 = arith.constant dense<0.000000e+00> : vector<8xf32>
    %120 = vector.multi_reduction <add>, %119, %cst_37 [1] : vector<8x32xf32> to vector<8xf32>
    %121 = vector.shape_cast %120 : vector<8xf32> to vector<8x1xf32>
    %cst_38 = arith.constant 3.200000e+01 : f32
    %122 = vector.broadcast %cst_38 : f32 to vector<8x1xf32>
    %123 = arith.divf %121, %122 : vector<8x1xf32>
    %124 = vector.broadcast %114 : vector<8x1xf32> to vector<8x32xf32>
    %125 = arith.subf %110, %124 : vector<8x32xf32>
    %cst_39 = arith.constant 9.99999974E-6 : f32
    %126 = vector.broadcast %cst_39 : f32 to vector<8x1xf32>
    %127 = arith.addf %123, %126 : vector<8x1xf32>
    %128 = math.rsqrt %127 : vector<8x1xf32>
    %129 = vector.broadcast %128 : vector<8x1xf32> to vector<8x32xf32>
    %130 = arith.mulf %125, %129 : vector<8x32xf32>
    %c0_40 = arith.constant 0 : index
    %c0_41 = arith.constant 0 : index
    %131 = vector.load %arg9[%c0_40, %c0_41] : memref<1x32xf32, #tpu.memory_space<vmem>>, vector<1x32xf32>
    %132 = vector.broadcast %131 : vector<1x32xf32> to vector<8x32xf32>
    %133 = arith.mulf %130, %132 : vector<8x32xf32>
    %c0_42 = arith.constant 0 : index
    %c0_43 = arith.constant 0 : index
    %134 = vector.load %arg10[%c0_42, %c0_43] : memref<1x32xf32, #tpu.memory_space<vmem>>, vector<1x32xf32>
    %135 = vector.broadcast %134 : vector<1x32xf32> to vector<8x32xf32>
    %136 = arith.addf %133, %135 : vector<8x32xf32>
    %137 = arith.truncf %136 : vector<8x32xf32> to vector<8x32xbf16>
    %c0_44 = arith.constant 0 : index
    %c0_45 = arith.constant 0 : index
    %138 = vector.load %arg11[%c0_44, %c0_45] : memref<32x32xbf16, #tpu.memory_space<vmem>>, vector<32x32xbf16>
    %cst_46 = arith.constant dense<0.000000e+00> : vector<8x32xf32>
    %139 = tpu.matmul %137, %138, %cst_46 {dimension_numbers = #tpu.dot_dimension_numbers<[1], [0], [0], [1], [0, 0, 1, 1], [], []>} : vector<8x32xbf16>, vector<32x32xbf16>, vector<8x32xf32> -> vector<8x32xf32>
    %c0_47 = arith.constant 0 : index
    %c0_48 = arith.constant 0 : index
    %140 = vector.load %arg12[%c0_47, %c0_48] : memref<1x32xf32, #tpu.memory_space<vmem>>, vector<1x32xf32>
    %141 = vector.broadcast %140 : vector<1x32xf32> to vector<8x32xf32>
    %142 = arith.addf %139, %141 : vector<8x32xf32>
    %143 = arith.truncf %3 : vector<8x32xf32> to vector<8x32xbf16>
    %c0_49 = arith.constant 0 : index
    %c0_50 = arith.constant 0 : index
    %144 = vector.load %arg13[%c0_49, %c0_50] : memref<32x64xbf16, #tpu.memory_space<vmem>>, vector<32x64xbf16>
    %cst_51 = arith.constant dense<0.000000e+00> : vector<8x64xf32>
    %145 = tpu.matmul %143, %144, %cst_51 {dimension_numbers = #tpu.dot_dimension_numbers<[1], [0], [0], [1], [0, 0, 1, 1], [], []>} : vector<8x32xbf16>, vector<32x64xbf16>, vector<8x64xf32> -> vector<8x64xf32>
    %c0_52 = arith.constant 0 : index
    %c0_53 = arith.constant 0 : index
    %146 = vector.load %arg14[%c0_52, %c0_53] : memref<1x64xf32, #tpu.memory_space<vmem>>, vector<1x64xf32>
    %147 = vector.broadcast %146 : vector<1x64xf32> to vector<8x64xf32>
    %148 = arith.addf %145, %147 : vector<8x64xf32>
    %149 = vector.extract_strided_slice %148 {offsets = [0, 0], sizes = [8, 32], strides = [1, 1]} : vector<8x64xf32> to vector<8x32xf32>
    %150 = vector.extract_strided_slice %148 {offsets = [0, 32], sizes = [8, 32], strides = [1, 1]} : vector<8x64xf32> to vector<8x32xf32>
    %c0_54 = arith.constant 0 : index
    %c0_55 = arith.constant 0 : index
    %c0_56 = arith.constant 0 : index
    %151 = vector.load %arg4[%c0_54, %c0_55, %c0_56] : memref<1x1x8xf32, #tpu.memory_space<vmem>>, vector<1x1x8xf32>
    %152 = vector.shape_cast %151 : vector<1x1x8xf32> to vector<1x8xf32>
    %153 = vector.extract_strided_slice %142 {offsets = [0, 0], sizes = [8, 8], strides = [1, 1]} : vector<8x32xf32> to vector<8x8xf32>
    %154 = arith.truncf %153 : vector<8x8xf32> to vector<8x8xbf16>
    %155 = vector.extract_strided_slice %149 {offsets = [0, 0], sizes = [8, 8], strides = [1, 1]} : vector<8x32xf32> to vector<8x8xf32>
    %156 = arith.truncf %155 : vector<8x8xf32> to vector<8x8xbf16>
    %157 = vector.extract_strided_slice %150 {offsets = [0, 0], sizes = [8, 8], strides = [1, 1]} : vector<8x32xf32> to vector<8x8xf32>
    %158 = arith.truncf %157 : vector<8x8xf32> to vector<8x8xbf16>
    %cst_57 = arith.constant dense<0.000000e+00> : vector<8x8xf32>
    %159 = tpu.matmul %154, %156, %cst_57 {dimension_numbers = #tpu.dot_dimension_numbers<[1], [1], [0], [0], [0, 0, 1, 0], [], []>} : vector<8x8xbf16>, vector<8x8xbf16>, vector<8x8xf32> -> vector<8x8xf32>
    %160 = vector.broadcast %152 : vector<1x8xf32> to vector<8x8xf32>
    %161 = arith.addf %159, %160 : vector<8x8xf32>
    %cst_58 = arith.constant dense<0xFF800000> : vector<8xf32>
    %162 = vector.multi_reduction <maximumf>, %161, %cst_58 [1] : vector<8x8xf32> to vector<8xf32>
    %163 = vector.shape_cast %162 : vector<8xf32> to vector<8x1xf32>
    %164 = vector.broadcast %163 : vector<8x1xf32> to vector<8x8xf32>
    %165 = arith.subf %161, %164 : vector<8x8xf32>
    %166 = math.exp %165 : vector<8x8xf32>
    %cst_59 = arith.constant dense<0.000000e+00> : vector<8xf32>
    %167 = vector.multi_reduction <add>, %166, %cst_59 [1] : vector<8x8xf32> to vector<8xf32>
    %168 = vector.shape_cast %167 : vector<8xf32> to vector<8x1xf32>
    %169 = tpu.reciprocal %168 {approx = true} : vector<8x1xf32> -> vector<8x1xf32>
    %170 = vector.broadcast %169 : vector<8x1xf32> to vector<8x8xf32>
    %171 = arith.mulf %166, %170 : vector<8x8xf32>
    %172 = arith.truncf %171 : vector<8x8xf32> to vector<8x8xbf16>
    %cst_60 = arith.constant dense<0.000000e+00> : vector<8x8xf32>
    %173 = tpu.matmul %172, %158, %cst_60 {dimension_numbers = #tpu.dot_dimension_numbers<[1], [0], [0], [1], [0, 0, 1, 1], [], []>} : vector<8x8xbf16>, vector<8x8xbf16>, vector<8x8xf32> -> vector<8x8xf32>
    %174 = vector.extract_strided_slice %142 {offsets = [0, 8], sizes = [8, 8], strides = [1, 1]} : vector<8x32xf32> to vector<8x8xf32>
    %175 = arith.truncf %174 : vector<8x8xf32> to vector<8x8xbf16>
    %176 = vector.extract_strided_slice %149 {offsets = [0, 8], sizes = [8, 8], strides = [1, 1]} : vector<8x32xf32> to vector<8x8xf32>
    %177 = arith.truncf %176 : vector<8x8xf32> to vector<8x8xbf16>
    %178 = vector.extract_strided_slice %150 {offsets = [0, 8], sizes = [8, 8], strides = [1, 1]} : vector<8x32xf32> to vector<8x8xf32>
    %179 = arith.truncf %178 : vector<8x8xf32> to vector<8x8xbf16>
    %cst_61 = arith.constant dense<0.000000e+00> : vector<8x8xf32>
    %180 = tpu.matmul %175, %177, %cst_61 {dimension_numbers = #tpu.dot_dimension_numbers<[1], [1], [0], [0], [0, 0, 1, 0], [], []>} : vector<8x8xbf16>, vector<8x8xbf16>, vector<8x8xf32> -> vector<8x8xf32>
    %181 = vector.broadcast %152 : vector<1x8xf32> to vector<8x8xf32>
    %182 = arith.addf %180, %181 : vector<8x8xf32>
    %cst_62 = arith.constant dense<0xFF800000> : vector<8xf32>
    %183 = vector.multi_reduction <maximumf>, %182, %cst_62 [1] : vector<8x8xf32> to vector<8xf32>
    %184 = vector.shape_cast %183 : vector<8xf32> to vector<8x1xf32>
    %185 = vector.broadcast %184 : vector<8x1xf32> to vector<8x8xf32>
    %186 = arith.subf %182, %185 : vector<8x8xf32>
    %187 = math.exp %186 : vector<8x8xf32>
    %cst_63 = arith.constant dense<0.000000e+00> : vector<8xf32>
    %188 = vector.multi_reduction <add>, %187, %cst_63 [1] : vector<8x8xf32> to vector<8xf32>
    %189 = vector.shape_cast %188 : vector<8xf32> to vector<8x1xf32>
    %190 = tpu.reciprocal %189 {approx = true} : vector<8x1xf32> -> vector<8x1xf32>
    %191 = vector.broadcast %190 : vector<8x1xf32> to vector<8x8xf32>
    %192 = arith.mulf %187, %191 : vector<8x8xf32>
    %193 = arith.truncf %192 : vector<8x8xf32> to vector<8x8xbf16>
    %cst_64 = arith.constant dense<0.000000e+00> : vector<8x8xf32>
    %194 = tpu.matmul %193, %179, %cst_64 {dimension_numbers = #tpu.dot_dimension_numbers<[1], [0], [0], [1], [0, 0, 1, 1], [], []>} : vector<8x8xbf16>, vector<8x8xbf16>, vector<8x8xf32> -> vector<8x8xf32>
    %195 = vector.extract_strided_slice %142 {offsets = [0, 16], sizes = [8, 8], strides = [1, 1]} : vector<8x32xf32> to vector<8x8xf32>
    %196 = arith.truncf %195 : vector<8x8xf32> to vector<8x8xbf16>
    %197 = vector.extract_strided_slice %149 {offsets = [0, 16], sizes = [8, 8], strides = [1, 1]} : vector<8x32xf32> to vector<8x8xf32>
    %198 = arith.truncf %197 : vector<8x8xf32> to vector<8x8xbf16>
    %199 = vector.extract_strided_slice %150 {offsets = [0, 16], sizes = [8, 8], strides = [1, 1]} : vector<8x32xf32> to vector<8x8xf32>
    %200 = arith.truncf %199 : vector<8x8xf32> to vector<8x8xbf16>
    %cst_65 = arith.constant dense<0.000000e+00> : vector<8x8xf32>
    %201 = tpu.matmul %196, %198, %cst_65 {dimension_numbers = #tpu.dot_dimension_numbers<[1], [1], [0], [0], [0, 0, 1, 0], [], []>} : vector<8x8xbf16>, vector<8x8xbf16>, vector<8x8xf32> -> vector<8x8xf32>
    %202 = vector.broadcast %152 : vector<1x8xf32> to vector<8x8xf32>
    %203 = arith.addf %201, %202 : vector<8x8xf32>
    %cst_66 = arith.constant dense<0xFF800000> : vector<8xf32>
    %204 = vector.multi_reduction <maximumf>, %203, %cst_66 [1] : vector<8x8xf32> to vector<8xf32>
    %205 = vector.shape_cast %204 : vector<8xf32> to vector<8x1xf32>
    %206 = vector.broadcast %205 : vector<8x1xf32> to vector<8x8xf32>
    %207 = arith.subf %203, %206 : vector<8x8xf32>
    %208 = math.exp %207 : vector<8x8xf32>
    %cst_67 = arith.constant dense<0.000000e+00> : vector<8xf32>
    %209 = vector.multi_reduction <add>, %208, %cst_67 [1] : vector<8x8xf32> to vector<8xf32>
    %210 = vector.shape_cast %209 : vector<8xf32> to vector<8x1xf32>
    %211 = tpu.reciprocal %210 {approx = true} : vector<8x1xf32> -> vector<8x1xf32>
    %212 = vector.broadcast %211 : vector<8x1xf32> to vector<8x8xf32>
    %213 = arith.mulf %208, %212 : vector<8x8xf32>
    %214 = arith.truncf %213 : vector<8x8xf32> to vector<8x8xbf16>
    %cst_68 = arith.constant dense<0.000000e+00> : vector<8x8xf32>
    %215 = tpu.matmul %214, %200, %cst_68 {dimension_numbers = #tpu.dot_dimension_numbers<[1], [0], [0], [1], [0, 0, 1, 1], [], []>} : vector<8x8xbf16>, vector<8x8xbf16>, vector<8x8xf32> -> vector<8x8xf32>
    %216 = vector.extract_strided_slice %142 {offsets = [0, 24], sizes = [8, 8], strides = [1, 1]} : vector<8x32xf32> to vector<8x8xf32>
    %217 = arith.truncf %216 : vector<8x8xf32> to vector<8x8xbf16>
    %218 = vector.extract_strided_slice %149 {offsets = [0, 24], sizes = [8, 8], strides = [1, 1]} : vector<8x32xf32> to vector<8x8xf32>
    %219 = arith.truncf %218 : vector<8x8xf32> to vector<8x8xbf16>
    %220 = vector.extract_strided_slice %150 {offsets = [0, 24], sizes = [8, 8], strides = [1, 1]} : vector<8x32xf32> to vector<8x8xf32>
    %221 = arith.truncf %220 : vector<8x8xf32> to vector<8x8xbf16>
    %cst_69 = arith.constant dense<0.000000e+00> : vector<8x8xf32>
    %222 = tpu.matmul %217, %219, %cst_69 {dimension_numbers = #tpu.dot_dimension_numbers<[1], [1], [0], [0], [0, 0, 1, 0], [], []>} : vector<8x8xbf16>, vector<8x8xbf16>, vector<8x8xf32> -> vector<8x8xf32>
    %223 = vector.broadcast %152 : vector<1x8xf32> to vector<8x8xf32>
    %224 = arith.addf %222, %223 : vector<8x8xf32>
    %cst_70 = arith.constant dense<0xFF800000> : vector<8xf32>
    %225 = vector.multi_reduction <maximumf>, %224, %cst_70 [1] : vector<8x8xf32> to vector<8xf32>
    %226 = vector.shape_cast %225 : vector<8xf32> to vector<8x1xf32>
    %227 = vector.broadcast %226 : vector<8x1xf32> to vector<8x8xf32>
    %228 = arith.subf %224, %227 : vector<8x8xf32>
    %229 = math.exp %228 : vector<8x8xf32>
    %cst_71 = arith.constant dense<0.000000e+00> : vector<8xf32>
    %230 = vector.multi_reduction <add>, %229, %cst_71 [1] : vector<8x8xf32> to vector<8xf32>
    %231 = vector.shape_cast %230 : vector<8xf32> to vector<8x1xf32>
    %232 = tpu.reciprocal %231 {approx = true} : vector<8x1xf32> -> vector<8x1xf32>
    %233 = vector.broadcast %232 : vector<8x1xf32> to vector<8x8xf32>
    %234 = arith.mulf %229, %233 : vector<8x8xf32>
    %235 = arith.truncf %234 : vector<8x8xf32> to vector<8x8xbf16>
    %cst_72 = arith.constant dense<0.000000e+00> : vector<8x8xf32>
    %236 = tpu.matmul %235, %221, %cst_72 {dimension_numbers = #tpu.dot_dimension_numbers<[1], [0], [0], [1], [0, 0, 1, 1], [], []>} : vector<8x8xbf16>, vector<8x8xbf16>, vector<8x8xf32> -> vector<8x8xf32>
    %237 = tpu.concatenate %173, %194, %215, %236 in 1 : vector<8x8xf32>, vector<8x8xf32>, vector<8x8xf32>, vector<8x8xf32> -> vector<8x32xf32>
    %238 = arith.truncf %237 : vector<8x32xf32> to vector<8x32xbf16>
    %c0_73 = arith.constant 0 : index
    %c0_74 = arith.constant 0 : index
    %239 = vector.load %arg15[%c0_73, %c0_74] : memref<32x32xbf16, #tpu.memory_space<vmem>>, vector<32x32xbf16>
    %cst_75 = arith.constant dense<0.000000e+00> : vector<8x32xf32>
    %240 = tpu.matmul %238, %239, %cst_75 {dimension_numbers = #tpu.dot_dimension_numbers<[1], [0], [0], [1], [0, 0, 1, 1], [], []>} : vector<8x32xbf16>, vector<32x32xbf16>, vector<8x32xf32> -> vector<8x32xf32>
    %c0_76 = arith.constant 0 : index
    %c0_77 = arith.constant 0 : index
    %241 = vector.load %arg16[%c0_76, %c0_77] : memref<1x32xf32, #tpu.memory_space<vmem>>, vector<1x32xf32>
    %242 = vector.broadcast %241 : vector<1x32xf32> to vector<8x32xf32>
    %243 = arith.addf %240, %242 : vector<8x32xf32>
    %244 = arith.addf %136, %243 : vector<8x32xf32>
    %cst_78 = arith.constant dense<0.000000e+00> : vector<8xf32>
    %245 = vector.multi_reduction <add>, %244, %cst_78 [1] : vector<8x32xf32> to vector<8xf32>
    %246 = vector.shape_cast %245 : vector<8xf32> to vector<8x1xf32>
    %cst_79 = arith.constant 3.200000e+01 : f32
    %247 = vector.broadcast %cst_79 : f32 to vector<8x1xf32>
    %248 = arith.divf %246, %247 : vector<8x1xf32>
    %249 = vector.broadcast %248 : vector<8x1xf32> to vector<8x32xf32>
    %250 = arith.subf %244, %249 : vector<8x32xf32>
    %251 = vector.broadcast %248 : vector<8x1xf32> to vector<8x32xf32>
    %252 = arith.subf %244, %251 : vector<8x32xf32>
    %253 = arith.mulf %250, %252 : vector<8x32xf32>
    %cst_80 = arith.constant dense<0.000000e+00> : vector<8xf32>
    %254 = vector.multi_reduction <add>, %253, %cst_80 [1] : vector<8x32xf32> to vector<8xf32>
    %255 = vector.shape_cast %254 : vector<8xf32> to vector<8x1xf32>
    %cst_81 = arith.constant 3.200000e+01 : f32
    %256 = vector.broadcast %cst_81 : f32 to vector<8x1xf32>
    %257 = arith.divf %255, %256 : vector<8x1xf32>
    %258 = vector.broadcast %248 : vector<8x1xf32> to vector<8x32xf32>
    %259 = arith.subf %244, %258 : vector<8x32xf32>
    %cst_82 = arith.constant 9.99999974E-6 : f32
    %260 = vector.broadcast %cst_82 : f32 to vector<8x1xf32>
    %261 = arith.addf %257, %260 : vector<8x1xf32>
    %262 = math.rsqrt %261 : vector<8x1xf32>
    %263 = vector.broadcast %262 : vector<8x1xf32> to vector<8x32xf32>
    %264 = arith.mulf %259, %263 : vector<8x32xf32>
    %c0_83 = arith.constant 0 : index
    %c0_84 = arith.constant 0 : index
    %265 = vector.load %arg17[%c0_83, %c0_84] : memref<1x32xf32, #tpu.memory_space<vmem>>, vector<1x32xf32>
    %266 = vector.broadcast %265 : vector<1x32xf32> to vector<8x32xf32>
    %267 = arith.mulf %264, %266 : vector<8x32xf32>
    %c0_85 = arith.constant 0 : index
    %c0_86 = arith.constant 0 : index
    %268 = vector.load %arg18[%c0_85, %c0_86] : memref<1x32xf32, #tpu.memory_space<vmem>>, vector<1x32xf32>
    %269 = vector.broadcast %268 : vector<1x32xf32> to vector<8x32xf32>
    %270 = arith.addf %267, %269 : vector<8x32xf32>
    %271 = arith.truncf %270 : vector<8x32xf32> to vector<8x32xbf16>
    %c0_87 = arith.constant 0 : index
    %c0_88 = arith.constant 0 : index
    %272 = vector.load %arg19[%c0_87, %c0_88] : memref<32x64xbf16, #tpu.memory_space<vmem>>, vector<32x64xbf16>
    %cst_89 = arith.constant dense<0.000000e+00> : vector<8x64xf32>
    %273 = tpu.matmul %271, %272, %cst_89 {dimension_numbers = #tpu.dot_dimension_numbers<[1], [0], [0], [1], [0, 0, 1, 1], [], []>} : vector<8x32xbf16>, vector<32x64xbf16>, vector<8x64xf32> -> vector<8x64xf32>
    %c0_90 = arith.constant 0 : index
    %c0_91 = arith.constant 0 : index
    %274 = vector.load %arg20[%c0_90, %c0_91] : memref<1x64xf32, #tpu.memory_space<vmem>>, vector<1x64xf32>
    %275 = vector.broadcast %274 : vector<1x64xf32> to vector<8x64xf32>
    %276 = arith.addf %273, %275 : vector<8x64xf32>
    %cst_92 = arith.constant 5.000000e-01 : f32
    %277 = vector.broadcast %cst_92 : f32 to vector<8x64xf32>
    %278 = arith.mulf %277, %276 : vector<8x64xf32>
    %cst_93 = arith.constant 0.707106769 : f32
    %279 = vector.broadcast %cst_93 : f32 to vector<8x64xf32>
    %280 = arith.mulf %276, %279 : vector<8x64xf32>
    %cst_94 = arith.constant 0.000000e+00 : f32
    %281 = vector.broadcast %cst_94 : f32 to vector<8x64xf32>
    %282 = arith.cmpf oge, %280, %281 : vector<8x64xf32>
    %cst_95 = arith.constant 1.000000e+00 : f32
    %cst_96 = arith.constant -1.000000e+00 : f32
    %283 = vector.broadcast %cst_95 : f32 to vector<8x64xf32>
    %284 = vector.broadcast %cst_96 : f32 to vector<8x64xf32>
    %285 = arith.select %282, %283, %284 : vector<8x64xi1>, vector<8x64xf32>
    %286 = math.absf %280 : vector<8x64xf32>
    %cst_97 = arith.constant 0.327591091 : f32
    %287 = vector.broadcast %cst_97 : f32 to vector<8x64xf32>
    %288 = arith.mulf %287, %286 : vector<8x64xf32>
    %cst_98 = arith.constant 1.000000e+00 : f32
    %289 = vector.broadcast %cst_98 : f32 to vector<8x64xf32>
    %290 = arith.addf %289, %288 : vector<8x64xf32>
    %cst_99 = arith.constant 1.000000e+00 : f32
    %291 = vector.broadcast %cst_99 : f32 to vector<8x64xf32>
    %292 = arith.divf %291, %290 : vector<8x64xf32>
    %cst_100 = arith.constant 1.06140542 : f32
    %293 = vector.broadcast %cst_100 : f32 to vector<8x64xf32>
    %294 = arith.mulf %293, %292 : vector<8x64xf32>
    %cst_101 = arith.constant -1.45315206 : f32
    %295 = vector.broadcast %cst_101 : f32 to vector<8x64xf32>
    %296 = arith.addf %294, %295 : vector<8x64xf32>
    %297 = arith.mulf %296, %292 : vector<8x64xf32>
    %cst_102 = arith.constant 1.42141378 : f32
    %298 = vector.broadcast %cst_102 : f32 to vector<8x64xf32>
    %299 = arith.addf %297, %298 : vector<8x64xf32>
    %300 = arith.mulf %299, %292 : vector<8x64xf32>
    %cst_103 = arith.constant -0.284496725 : f32
    %301 = vector.broadcast %cst_103 : f32 to vector<8x64xf32>
    %302 = arith.addf %300, %301 : vector<8x64xf32>
    %303 = arith.mulf %302, %292 : vector<8x64xf32>
    %cst_104 = arith.constant 0.254829586 : f32
    %304 = vector.broadcast %cst_104 : f32 to vector<8x64xf32>
    %305 = arith.addf %303, %304 : vector<8x64xf32>
    %306 = arith.mulf %305, %292 : vector<8x64xf32>
    %cst_105 = arith.constant 0.000000e+00 : f32
    %307 = vector.broadcast %cst_105 : f32 to vector<8x64xf32>
    %308 = arith.subf %307, %286 : vector<8x64xf32>
    %309 = arith.mulf %308, %286 : vector<8x64xf32>
    %310 = math.exp %309 : vector<8x64xf32>
    %311 = arith.mulf %306, %310 : vector<8x64xf32>
    %cst_106 = arith.constant 1.000000e+00 : f32
    %312 = vector.broadcast %cst_106 : f32 to vector<8x64xf32>
    %313 = arith.subf %312, %311 : vector<8x64xf32>
    %314 = arith.mulf %285, %313 : vector<8x64xf32>
    %cst_107 = arith.constant 1.000000e+00 : f32
    %315 = vector.broadcast %cst_107 : f32 to vector<8x64xf32>
    %316 = arith.addf %315, %314 : vector<8x64xf32>
    %317 = arith.mulf %278, %316 : vector<8x64xf32>
    %318 = arith.truncf %317 : vector<8x64xf32> to vector<8x64xbf16>
    %c0_108 = arith.constant 0 : index
    %c0_109 = arith.constant 0 : index
    %319 = vector.load %arg21[%c0_108, %c0_109] : memref<64x32xbf16, #tpu.memory_space<vmem>>, vector<64x32xbf16>
    %cst_110 = arith.constant dense<0.000000e+00> : vector<8x32xf32>
    %320 = tpu.matmul %318, %319, %cst_110 {dimension_numbers = #tpu.dot_dimension_numbers<[1], [0], [0], [1], [0, 0, 1, 1], [], []>} : vector<8x64xbf16>, vector<64x32xbf16>, vector<8x32xf32> -> vector<8x32xf32>
    %c0_111 = arith.constant 0 : index
    %c0_112 = arith.constant 0 : index
    %321 = vector.load %arg22[%c0_111, %c0_112] : memref<1x32xf32, #tpu.memory_space<vmem>>, vector<1x32xf32>
    %322 = vector.broadcast %321 : vector<1x32xf32> to vector<8x32xf32>
    %323 = arith.addf %320, %322 : vector<8x32xf32>
    %324 = arith.addf %270, %323 : vector<8x32xf32>
    %cst_113 = arith.constant dense<0.000000e+00> : vector<8xf32>
    %325 = vector.multi_reduction <add>, %324, %cst_113 [1] : vector<8x32xf32> to vector<8xf32>
    %326 = vector.shape_cast %325 : vector<8xf32> to vector<8x1xf32>
    %cst_114 = arith.constant 3.200000e+01 : f32
    %327 = vector.broadcast %cst_114 : f32 to vector<8x1xf32>
    %328 = arith.divf %326, %327 : vector<8x1xf32>
    %329 = vector.broadcast %328 : vector<8x1xf32> to vector<8x32xf32>
    %330 = arith.subf %324, %329 : vector<8x32xf32>
    %331 = vector.broadcast %328 : vector<8x1xf32> to vector<8x32xf32>
    %332 = arith.subf %324, %331 : vector<8x32xf32>
    %333 = arith.mulf %330, %332 : vector<8x32xf32>
    %cst_115 = arith.constant dense<0.000000e+00> : vector<8xf32>
    %334 = vector.multi_reduction <add>, %333, %cst_115 [1] : vector<8x32xf32> to vector<8xf32>
    %335 = vector.shape_cast %334 : vector<8xf32> to vector<8x1xf32>
    %cst_116 = arith.constant 3.200000e+01 : f32
    %336 = vector.broadcast %cst_116 : f32 to vector<8x1xf32>
    %337 = arith.divf %335, %336 : vector<8x1xf32>
    %338 = vector.broadcast %328 : vector<8x1xf32> to vector<8x32xf32>
    %339 = arith.subf %324, %338 : vector<8x32xf32>
    %cst_117 = arith.constant 9.99999974E-6 : f32
    %340 = vector.broadcast %cst_117 : f32 to vector<8x1xf32>
    %341 = arith.addf %337, %340 : vector<8x1xf32>
    %342 = math.rsqrt %341 : vector<8x1xf32>
    %343 = vector.broadcast %342 : vector<8x1xf32> to vector<8x32xf32>
    %344 = arith.mulf %339, %343 : vector<8x32xf32>
    %c0_118 = arith.constant 0 : index
    %c0_119 = arith.constant 0 : index
    %345 = vector.load %arg23[%c0_118, %c0_119] : memref<1x32xf32, #tpu.memory_space<vmem>>, vector<1x32xf32>
    %346 = vector.broadcast %345 : vector<1x32xf32> to vector<8x32xf32>
    %347 = arith.mulf %344, %346 : vector<8x32xf32>
    %c0_120 = arith.constant 0 : index
    %c0_121 = arith.constant 0 : index
    %348 = vector.load %arg24[%c0_120, %c0_121] : memref<1x32xf32, #tpu.memory_space<vmem>>, vector<1x32xf32>
    %349 = vector.broadcast %348 : vector<1x32xf32> to vector<8x32xf32>
    %350 = arith.addf %347, %349 : vector<8x32xf32>
    %c0_122 = arith.constant 0 : index
    %c0_123 = arith.constant 0 : index
    %c0_124 = arith.constant 0 : index
    %351 = vector.load %arg25[%c0_122, %c0_123, %c0_124] : memref<1x8x32xf32, #tpu.memory_space<vmem>>, vector<1x8x32xf32>
    %352 = vector.shape_cast %351 : vector<1x8x32xf32> to vector<8x32xf32>
    %353 = vector.shape_cast %350 : vector<8x32xf32> to vector<1x8x32xf32>
    tpu.vector_store %arg25[%c0_122, %c0_123, %c0_124], %353 {strides = array<i32>} : memref<1x8x32xf32, #tpu.memory_space<vmem>>, vector<1x8x32xf32>,
    return
  }
  func.func @transform_0(%arg0: i32) -> (i32, i32, i32) {
    %c0_i32 = arith.constant 0 : i32
    %c0_i32_0 = arith.constant 0 : i32
    %c0_i32_1 = arith.constant 0 : i32
    return %arg0, %c0_i32, %c0_i32_0 : i32, i32, i32
  }
  func.func @transform_1(%arg0: i32) -> (i32, i32, i32) {
    %c0_i32 = arith.constant 0 : i32
    %c0_i32_0 = arith.constant 0 : i32
    %c0_i32_1 = arith.constant 0 : i32
    return %arg0, %c0_i32, %c0_i32_0 : i32, i32, i32
  }
  func.func @transform_2(%arg0: i32) -> (i32, i32, i32) {
    %c0_i32 = arith.constant 0 : i32
    %c0_i32_0 = arith.constant 0 : i32
    %c0_i32_1 = arith.constant 0 : i32
    return %arg0, %c0_i32, %c0_i32_0 : i32, i32, i32
  }
  func.func @transform_3(%arg0: i32) -> (i32, i32, i32) {
    %c0_i32 = arith.constant 0 : i32
    %c0_i32_0 = arith.constant 0 : i32
    %c0_i32_1 = arith.constant 0 : i32
    return %arg0, %c0_i32, %c0_i32_0 : i32, i32, i32
  }
  func.func @transform_4(%arg0: i32) -> (i32, i32) {
    %c0_i32 = arith.constant 0 : i32
    %c0_i32_0 = arith.constant 0 : i32
    %c0_i32_1 = arith.constant 0 : i32
    return %c0_i32, %c0_i32_0 : i32, i32
  }
  func.func @transform_5(%arg0: i32) -> (i32, i32) {
    %c0_i32 = arith.constant 0 : i32
    %c0_i32_0 = arith.constant 0 : i32
    %c0_i32_1 = arith.constant 0 : i32
    return %c0_i32, %c0_i32_0 : i32, i32
  }
  func.func @transform_6(%arg0: i32) -> (i32, i32) {
    %c0_i32 = arith.constant 0 : i32
    %c0_i32_0 = arith.constant 0 : i32
    %c0_i32_1 = arith.constant 0 : i32
    return %c0_i32, %c0_i32_0 : i32, i32
  }
  func.func @transform_7(%arg0: i32) -> (i32, i32) {
    %c0_i32 = arith.constant 0 : i32
    %c0_i32_0 = arith.constant 0 : i32
    %c0_i32_1 = arith.constant 0 : i32
    return %c0_i32, %c0_i32_0 : i32, i32
  }
  func.func @transform_8(%arg0: i32) -> (i32, i32) {
    %c0_i32 = arith.constant 0 : i32
    %c0_i32_0 = arith.constant 0 : i32
    %c0_i32_1 = arith.constant 0 : i32
    return %c0_i32, %c0_i32_0 : i32, i32
  }
  func.func @transform_9(%arg0: i32) -> (i32, i32) {
    %c0_i32 = arith.constant 0 : i32
    %c0_i32_0 = arith.constant 0 : i32
    %c0_i32_1 = arith.constant 0 : i32
    return %c0_i32, %c0_i32_0 : i32, i32
  }
  func.func @transform_10(%arg0: i32) -> (i32, i32) {
    %c0_i32 = arith.constant 0 : i32
    %c0_i32_0 = arith.constant 0 : i32
    %c0_i32_1 = arith.constant 0 : i32
    return %c0_i32, %c0_i32_0 : i32, i32
  }
  func.func @transform_11(%arg0: i32) -> (i32, i32) {
    %c0_i32 = arith.constant 0 : i32
    %c0_i32_0 = arith.constant 0 : i32
    %c0_i32_1 = arith.constant 0 : i32
    return %c0_i32, %c0_i32_0 : i32, i32
  }
  func.func @transform_12(%arg0: i32) -> (i32, i32) {
    %c0_i32 = arith.constant 0 : i32
    %c0_i32_0 = arith.constant 0 : i32
    %c0_i32_1 = arith.constant 0 : i32
    return %c0_i32, %c0_i32_0 : i32, i32
  }
  func.func @transform_13(%arg0: i32) -> (i32, i32) {
    %c0_i32 = arith.constant 0 : i32
    %c0_i32_0 = arith.constant 0 : i32
    %c0_i32_1 = arith.constant 0 : i32
    return %c0_i32, %c0_i32_0 : i32, i32
  }
  func.func @transform_14(%arg0: i32) -> (i32, i32) {
    %c0_i32 = arith.constant 0 : i32
    %c0_i32_0 = arith.constant 0 : i32
    %c0_i32_1 = arith.constant 0 : i32
    return %c0_i32, %c0_i32_0 : i32, i32
  }
  func.func @transform_15(%arg0: i32) -> (i32, i32) {
    %c0_i32 = arith.constant 0 : i32
    %c0_i32_0 = arith.constant 0 : i32
    %c0_i32_1 = arith.constant 0 : i32
    return %c0_i32, %c0_i32_0 : i32, i32
  }
  func.func @transform_16(%arg0: i32) -> (i32, i32) {
    %c0_i32 = arith.constant 0 : i32
    %c0_i32_0 = arith.constant 0 : i32
    %c0_i32_1 = arith.constant 0 : i32
    return %c0_i32, %c0_i32_0 : i32, i32
  }
  func.func @transform_17(%arg0: i32) -> (i32, i32) {
    %c0_i32 = arith.constant 0 : i32
    %c0_i32_0 = arith.constant 0 : i32
    %c0_i32_1 = arith.constant 0 : i32
    return %c0_i32, %c0_i32_0 : i32, i32
  }
  func.func @transform_18(%arg0: i32) -> (i32, i32) {
    %c0_i32 = arith.constant 0 : i32
    %c0_i32_0 = arith.constant 0 : i32
    %c0_i32_1 = arith.constant 0 : i32
    return %c0_i32, %c0_i32_0 : i32, i32
  }
  func.func @transform_19(%arg0: i32) -> (i32, i32) {
    %c0_i32 = arith.constant 0 : i32
    %c0_i32_0 = arith.constant 0 : i32
    %c0_i32_1 = arith.constant 0 : i32
    return %c0_i32, %c0_i32_0 : i32, i32
  }
  func.func @transform_20(%arg0: i32) -> (i32, i32) {
    %c0_i32 = arith.constant 0 : i32
    %c0_i32_0 = arith.constant 0 : i32
    %c0_i32_1 = arith.constant 0 : i32
    return %c0_i32, %c0_i32_0 : i32, i32
  }
  func.func @transform_21(%arg0: i32) -> (i32, i32) {
    %c0_i32 = arith.constant 0 : i32
    %c0_i32_0 = arith.constant 0 : i32
    %c0_i32_1 = arith.constant 0 : i32
    return %c0_i32, %c0_i32_0 : i32, i32
  }
  func.func @transform_22(%arg0: i32) -> (i32, i32) {
    %c0_i32 = arith.constant 0 : i32
    %c0_i32_0 = arith.constant 0 : i32
    %c0_i32_1 = arith.constant 0 : i32
    return %c0_i32, %c0_i32_0 : i32, i32
  }
  func.func @transform_23(%arg0: i32) -> (i32, i32) {
    %c0_i32 = arith.constant 0 : i32
    %c0_i32_0 = arith.constant 0 : i32
    %c0_i32_1 = arith.constant 0 : i32
    return %c0_i32, %c0_i32_0 : i32, i32
  }
  func.func @transform_24(%arg0: i32) -> (i32, i32, i32) {
    %c0_i32 = arith.constant 0 : i32
    %c0_i32_0 = arith.constant 0 : i32
    %c0_i32_1 = arith.constant 0 : i32
    return %arg0, %c0_i32, %c0_i32_0 : i32, i32, i32
  }
}

module attributes {stable_mosaic.version = 11 : i64} {
  func.func @_decoder_layer_kernel(%arg0: i32, %arg1: memref<1x8x32xf32, #tpu.memory_space<vmem>>, %arg2: memref<1x8x32xf32, #tpu.memory_space<vmem>>, %arg3: memref<1x1x8xf32, #tpu.memory_space<vmem>>, %arg4: memref<1x1x8xf32, #tpu.memory_space<vmem>>, %arg5: memref<32x96xbf16, #tpu.memory_space<vmem>>, %arg6: memref<1x96xf32, #tpu.memory_space<vmem>>, %arg7: memref<32x32xbf16, #tpu.memory_space<vmem>>, %arg8: memref<1x32xf32, #tpu.memory_space<vmem>>, %arg9: memref<1x32xf32, #tpu.memory_space<vmem>>, %arg10: memref<1x32xf32, #tpu.memory_space<vmem>>, %arg11: memref<32x32xbf16, #tpu.memory_space<vmem>>, %arg12: memref<1x32xf32, #tpu.memory_space<vmem>>, %arg13: memref<32x64xbf16, #tpu.memory_space<vmem>>, %arg14: memref<1x64xf32, #tpu.memory_space<vmem>>, %arg15: memref<32x32xbf16, #tpu.memory_space<vmem>>, %arg16: memref<1x32xf32, #tpu.memory_space<vmem>>, %arg17: memref<1x32xf32, #tpu.memory_space<vmem>>, %arg18: memref<1x32xf32, #tpu.memory_space<vmem>>, %arg19: memref<32x64xbf16, #tpu.memory_space<vmem>>, %arg20: memref<1x64xf32, #tpu.memory_space<vmem>>, %arg21: memref<64x32xbf16, #tpu.memory_space<vmem>>, %arg22: memref<1x32xf32, #tpu.memory_space<vmem>>, %arg23: memref<1x32xf32, #tpu.memory_space<vmem>>, %arg24: memref<1x32xf32, #tpu.memory_space<vmem>>, %arg25: memref<1x8x32xf32, #tpu.memory_space<vmem>>) attributes {dimension_semantics = [#tpu.dimension_semantics<parallel>], iteration_bounds = array<i64: 2>, scalar_prefetch = 0 : i64, scratch_operands = 0 : i64, tpu.core_type = #tpu.core_type<tc>, window_params = [{transform_indices = @transform_0, window_bounds = array<i64: 1, 8, 32>}, {transform_indices = @transform_1, window_bounds = array<i64: 1, 8, 32>}, {transform_indices = @transform_2, window_bounds = array<i64: 1, 1, 8>}, {transform_indices = @transform_3, window_bounds = array<i64: 1, 1, 8>}, {pipeline_mode = #tpu.pipeline_mode<synchronous>, transform_indices = @transform_4, window_bounds = array<i64: 32, 96>}, {pipeline_mode = #tpu.pipeline_mode<synchronous>, transform_indices = @transform_5, window_bounds = array<i64: 1, 96>}, {pipeline_mode = #tpu.pipeline_mode<synchronous>, transform_indices = @transform_6, window_bounds = array<i64: 32, 32>}, {pipeline_mode = #tpu.pipeline_mode<synchronous>, transform_indices = @transform_7, window_bounds = array<i64: 1, 32>}, {pipeline_mode = #tpu.pipeline_mode<synchronous>, transform_indices = @transform_8, window_bounds = array<i64: 1, 32>}, {pipeline_mode = #tpu.pipeline_mode<synchronous>, transform_indices = @transform_9, window_bounds = array<i64: 1, 32>}, {pipeline_mode = #tpu.pipeline_mode<synchronous>, transform_indices = @transform_10, window_bounds = array<i64: 32, 32>}, {pipeline_mode = #tpu.pipeline_mode<synchronous>, transform_indices = @transform_11, window_bounds = array<i64: 1, 32>}, {pipeline_mode = #tpu.pipeline_mode<synchronous>, transform_indices = @transform_12, window_bounds = array<i64: 32, 64>}, {pipeline_mode = #tpu.pipeline_mode<synchronous>, transform_indices = @transform_13, window_bounds = array<i64: 1, 64>}, {pipeline_mode = #tpu.pipeline_mode<synchronous>, transform_indices = @transform_14, window_bounds = array<i64: 32, 32>}, {pipeline_mode = #tpu.pipeline_mode<synchronous>, transform_indices = @transform_15, window_bounds = array<i64: 1, 32>}, {pipeline_mode = #tpu.pipeline_mode<synchronous>, transform_indices = @transform_16, window_bounds = array<i64: 1, 32>}, {pipeline_mode = #tpu.pipeline_mode<synchronous>, transform_indices = @transform_17, window_bounds = array<i64: 1, 32>}, {pipeline_mode = #tpu.pipeline_mode<synchronous>, transform_indices = @transform_18, window_bounds = array<i64: 32, 64>}, {pipeline_mode = #tpu.pipeline_mode<synchronous>, transform_indices = @transform_19, window_bounds = array<i64: 1, 64>}, {pipeline_mode = #tpu.pipeline_mode<synchronous>, transform_indices = @transform_20, window_bounds = array<i64: 64, 32>}, {pipeline_mode = #tpu.pipeline_mode<synchronous>, transform_indices = @transform_21, window_bounds = array<i64: 1, 32>}, {pipeline_mode = #tpu.pipeline_mode<synchronous>, transform_indices = @transform_22, window_bounds = array<i64: 1, 32>}, {pipeline_mode = #tpu.pipeline_mode<synchronous>, transform_indices = @transform_23, window_bounds = array<i64: 1, 32>}, {transform_indices = @transform_24, window_bounds = array<i64: 1, 8, 32>}]} {
    %c0 = arith.constant 0 : index
    %c0_0 = arith.constant 0 : index
    %c0_1 = arith.constant 0 : index
    %0 = vector.load %arg1[%c0, %c0_0, %c0_1] : memref<1x8x32xf32, #tpu.memory_space<vmem>>, vector<1x8x32xf32>
    %1 = vector.shape_cast %0 : vector<1x8x32xf32> to vector<8x32xf32>
    %c0_2 = arith.constant 0 : index
    %c0_3 = arith.constant 0 : index
    %c0_4 = arith.constant 0 : index
    %2 = vector.load %arg2[%c0_2, %c0_3, %c0_4] : memref<1x8x32xf32, #tpu.memory_space<vmem>>, vector<1x8x32xf32>
    %3 = vector.shape_cast %2 : vector<1x8x32xf32> to vector<8x32xf32>
    %4 = arith.truncf %1 : vector<8x32xf32> to vector<8x32xbf16>
    %c0_5 = arith.constant 0 : index
    %c0_6 = arith.constant 0 : index
    %5 = vector.load %arg5[%c0_5, %c0_6] : memref<32x96xbf16, #tpu.memory_space<vmem>>, vector<32x96xbf16>
    %cst = arith.constant dense<0.000000e+00> : vector<8x96xf32>
    %6 = tpu.matmul %4, %5, %cst {dimension_numbers = #tpu.dot_dimension_numbers<[1], [0], [0], [1], [0, 0, 1, 1], [], []>} : vector<8x32xbf16>, vector<32x96xbf16>, vector<8x96xf32> -> vector<8x96xf32>
    %c0_7 = arith.constant 0 : index
    %c0_8 = arith.constant 0 : index
    %7 = vector.load %arg6[%c0_7, %c0_8] : memref<1x96xf32, #tpu.memory_space<vmem>>, vector<1x96xf32>
    %8 = vector.broadcast %7 : vector<1x96xf32> to vector<8x96xf32>
    %9 = arith.addf %6, %8 : vector<8x96xf32>
    %10 = vector.extract_strided_slice %9 {offsets = [0, 0], sizes = [8, 32], strides = [1, 1]} : vector<8x96xf32> to vector<8x32xf32>
    %11 = vector.extract_strided_slice %9 {offsets = [0, 32], sizes = [8, 32], strides = [1, 1]} : vector<8x96xf32> to vector<8x32xf32>
    %12 = vector.extract_strided_slice %9 {offsets = [0, 64], sizes = [8, 32], strides = [1, 1]} : vector<8x96xf32> to vector<8x32xf32>
    %13 = tpu.iota {dimensions = array<i32: 0>} : vector<8x8xi32>
    %14 = tpu.iota {dimensions = array<i32: 1>} : vector<8x8xi32>
    %15 = arith.cmpi sge, %13, %14 : vector<8x8xi32>
    %cst_9 = arith.constant 0.000000e+00 : f32
    %cst_10 = arith.constant -1.000000e+09 : f32
    %16 = vector.broadcast %cst_9 : f32 to vector<8x8xf32>
    %17 = vector.broadcast %cst_10 : f32 to vector<8x8xf32>
    %18 = arith.select %15, %16, %17 : vector<8x8xi1>, vector<8x8xf32>
    %c0_11 = arith.constant 0 : index
    %c0_12 = arith.constant 0 : index
    %c0_13 = arith.constant 0 : index
    %19 = vector.load %arg3[%c0_11, %c0_12, %c0_13] : memref<1x1x8xf32, #tpu.memory_space<vmem>>, vector<1x1x8xf32>
    %20 = vector.shape_cast %19 : vector<1x1x8xf32> to vector<1x8xf32>
    %21 = vector.broadcast %20 : vector<1x8xf32> to vector<8x8xf32>
    %22 = arith.addf %18, %21 : vector<8x8xf32>
    %23 = vector.extract_strided_slice %10 {offsets = [0, 0], sizes = [8, 8], strides = [1, 1]} : vector<8x32xf32> to vector<8x8xf32>
    %24 = arith.truncf %23 : vector<8x8xf32> to vector<8x8xbf16>
    %25 = vector.extract_strided_slice %11 {offsets = [0, 0], sizes = [8, 8], strides = [1, 1]} : vector<8x32xf32> to vector<8x8xf32>
    %26 = arith.truncf %25 : vector<8x8xf32> to vector<8x8xbf16>
    %27 = vector.extract_strided_slice %12 {offsets = [0, 0], sizes = [8, 8], strides = [1, 1]} : vector<8x32xf32> to vector<8x8xf32>
    %28 = arith.truncf %27 : vector<8x8xf32> to vector<8x8xbf16>
    %cst_14 = arith.constant dense<0.000000e+00> : vector<8x8xf32>
    %29 = tpu.matmul %24, %26, %cst_14 {dimension_numbers = #tpu.dot_dimension_numbers<[1], [1], [0], [0], [0, 0, 1, 0], [], []>} : vector<8x8xbf16>, vector<8x8xbf16>, vector<8x8xf32> -> vector<8x8xf32>
    %30 = arith.addf %29, %22 : vector<8x8xf32>
    %cst_15 = arith.constant dense<0xFF800000> : vector<8xf32>
    %31 = vector.multi_reduction <maximumf>, %30, %cst_15 [1] : vector<8x8xf32> to vector<8xf32>
    %32 = vector.shape_cast %31 : vector<8xf32> to vector<8x1xf32>
    %33 = vector.broadcast %32 : vector<8x1xf32> to vector<8x8xf32>
    %34 = arith.subf %30, %33 : vector<8x8xf32>
    %35 = math.exp %34 : vector<8x8xf32>
    %cst_16 = arith.constant dense<0.000000e+00> : vector<8xf32>
    %36 = vector.multi_reduction <add>, %35, %cst_16 [1] : vector<8x8xf32> to vector<8xf32>
    %37 = vector.shape_cast %36 : vector<8xf32> to vector<8x1xf32>
    %38 = tpu.reciprocal %37 {approx = true} : vector<8x1xf32> -> vector<8x1xf32>
    %39 = vector.broadcast %38 : vector<8x1xf32> to vector<8x8xf32>
    %40 = arith.mulf %35, %39 : vector<8x8xf32>
    %41 = arith.truncf %40 : vector<8x8xf32> to vector<8x8xbf16>
    %cst_17 = arith.constant dense<0.000000e+00> : vector<8x8xf32>
    %42 = tpu.matmul %41, %28, %cst_17 {dimension_numbers = #tpu.dot_dimension_numbers<[1], [0], [0], [1], [0, 0, 1, 1], [], []>} : vector<8x8xbf16>, vector<8x8xbf16>, vector<8x8xf32> -> vector<8x8xf32>
    %43 = vector.extract_strided_slice %10 {offsets = [0, 8], sizes = [8, 8], strides = [1, 1]} : vector<8x32xf32> to vector<8x8xf32>
    %44 = arith.truncf %43 : vector<8x8xf32> to vector<8x8xbf16>
    %45 = vector.extract_strided_slice %11 {offsets = [0, 8], sizes = [8, 8], strides = [1, 1]} : vector<8x32xf32> to vector<8x8xf32>
    %46 = arith.truncf %45 : vector<8x8xf32> to vector<8x8xbf16>
    %47 = vector.extract_strided_slice %12 {offsets = [0, 8], sizes = [8, 8], strides = [1, 1]} : vector<8x32xf32> to vector<8x8xf32>
    %48 = arith.truncf %47 : vector<8x8xf32> to vector<8x8xbf16>
    %cst_18 = arith.constant dense<0.000000e+00> : vector<8x8xf32>
    %49 = tpu.matmul %44, %46, %cst_18 {dimension_numbers = #tpu.dot_dimension_numbers<[1], [1], [0], [0], [0, 0, 1, 0], [], []>} : vector<8x8xbf16>, vector<8x8xbf16>, vector<8x8xf32> -> vector<8x8xf32>
    %50 = arith.addf %49, %22 : vector<8x8xf32>
    %cst_19 = arith.constant dense<0xFF800000> : vector<8xf32>
    %51 = vector.multi_reduction <maximumf>, %50, %cst_19 [1] : vector<8x8xf32> to vector<8xf32>
    %52 = vector.shape_cast %51 : vector<8xf32> to vector<8x1xf32>
    %53 = vector.broadcast %52 : vector<8x1xf32> to vector<8x8xf32>
    %54 = arith.subf %50, %53 : vector<8x8xf32>
    %55 = math.exp %54 : vector<8x8xf32>
    %cst_20 = arith.constant dense<0.000000e+00> : vector<8xf32>
    %56 = vector.multi_reduction <add>, %55, %cst_20 [1] : vector<8x8xf32> to vector<8xf32>
    %57 = vector.shape_cast %56 : vector<8xf32> to vector<8x1xf32>
    %58 = tpu.reciprocal %57 {approx = true} : vector<8x1xf32> -> vector<8x1xf32>
    %59 = vector.broadcast %58 : vector<8x1xf32> to vector<8x8xf32>
    %60 = arith.mulf %55, %59 : vector<8x8xf32>
    %61 = arith.truncf %60 : vector<8x8xf32> to vector<8x8xbf16>
    %cst_21 = arith.constant dense<0.000000e+00> : vector<8x8xf32>
    %62 = tpu.matmul %61, %48, %cst_21 {dimension_numbers = #tpu.dot_dimension_numbers<[1], [0], [0], [1], [0, 0, 1, 1], [], []>} : vector<8x8xbf16>, vector<8x8xbf16>, vector<8x8xf32> -> vector<8x8xf32>
    %63 = vector.extract_strided_slice %10 {offsets = [0, 16], sizes = [8, 8], strides = [1, 1]} : vector<8x32xf32> to vector<8x8xf32>
    %64 = arith.truncf %63 : vector<8x8xf32> to vector<8x8xbf16>
    %65 = vector.extract_strided_slice %11 {offsets = [0, 16], sizes = [8, 8], strides = [1, 1]} : vector<8x32xf32> to vector<8x8xf32>
    %66 = arith.truncf %65 : vector<8x8xf32> to vector<8x8xbf16>
    %67 = vector.extract_strided_slice %12 {offsets = [0, 16], sizes = [8, 8], strides = [1, 1]} : vector<8x32xf32> to vector<8x8xf32>
    %68 = arith.truncf %67 : vector<8x8xf32> to vector<8x8xbf16>
    %cst_22 = arith.constant dense<0.000000e+00> : vector<8x8xf32>
    %69 = tpu.matmul %64, %66, %cst_22 {dimension_numbers = #tpu.dot_dimension_numbers<[1], [1], [0], [0], [0, 0, 1, 0], [], []>} : vector<8x8xbf16>, vector<8x8xbf16>, vector<8x8xf32> -> vector<8x8xf32>
    %70 = arith.addf %69, %22 : vector<8x8xf32>
    %cst_23 = arith.constant dense<0xFF800000> : vector<8xf32>
    %71 = vector.multi_reduction <maximumf>, %70, %cst_23 [1] : vector<8x8xf32> to vector<8xf32>
    %72 = vector.shape_cast %71 : vector<8xf32> to vector<8x1xf32>
    %73 = vector.broadcast %72 : vector<8x1xf32> to vector<8x8xf32>
    %74 = arith.subf %70, %73 : vector<8x8xf32>
    %75 = math.exp %74 : vector<8x8xf32>
    %cst_24 = arith.constant dense<0.000000e+00> : vector<8xf32>
    %76 = vector.multi_reduction <add>, %75, %cst_24 [1] : vector<8x8xf32> to vector<8xf32>
    %77 = vector.shape_cast %76 : vector<8xf32> to vector<8x1xf32>
    %78 = tpu.reciprocal %77 {approx = true} : vector<8x1xf32> -> vector<8x1xf32>
    %79 = vector.broadcast %78 : vector<8x1xf32> to vector<8x8xf32>
    %80 = arith.mulf %75, %79 : vector<8x8xf32>
    %81 = arith.truncf %80 : vector<8x8xf32> to vector<8x8xbf16>
    %cst_25 = arith.constant dense<0.000000e+00> : vector<8x8xf32>
    %82 = tpu.matmul %81, %68, %cst_25 {dimension_numbers = #tpu.dot_dimension_numbers<[1], [0], [0], [1], [0, 0, 1, 1], [], []>} : vector<8x8xbf16>, vector<8x8xbf16>, vector<8x8xf32> -> vector<8x8xf32>
    %83 = vector.extract_strided_slice %10 {offsets = [0, 24], sizes = [8, 8], strides = [1, 1]} : vector<8x32xf32> to vector<8x8xf32>
    %84 = arith.truncf %83 : vector<8x8xf32> to vector<8x8xbf16>
    %85 = vector.extract_strided_slice %11 {offsets = [0, 24], sizes = [8, 8], strides = [1, 1]} : vector<8x32xf32> to vector<8x8xf32>
    %86 = arith.truncf %85 : vector<8x8xf32> to vector<8x8xbf16>
    %87 = vector.extract_strided_slice %12 {offsets = [0, 24], sizes = [8, 8], strides = [1, 1]} : vector<8x32xf32> to vector<8x8xf32>
    %88 = arith.truncf %87 : vector<8x8xf32> to vector<8x8xbf16>
    %cst_26 = arith.constant dense<0.000000e+00> : vector<8x8xf32>
    %89 = tpu.matmul %84, %86, %cst_26 {dimension_numbers = #tpu.dot_dimension_numbers<[1], [1], [0], [0], [0, 0, 1, 0], [], []>} : vector<8x8xbf16>, vector<8x8xbf16>, vector<8x8xf32> -> vector<8x8xf32>
    %90 = arith.addf %89, %22 : vector<8x8xf32>
    %cst_27 = arith.constant dense<0xFF800000> : vector<8xf32>
    %91 = vector.multi_reduction <maximumf>, %90, %cst_27 [1] : vector<8x8xf32> to vector<8xf32>
    %92 = vector.shape_cast %91 : vector<8xf32> to vector<8x1xf32>
    %93 = vector.broadcast %92 : vector<8x1xf32> to vector<8x8xf32>
    %94 = arith.subf %90, %93 : vector<8x8xf32>
    %95 = math.exp %94 : vector<8x8xf32>
    %cst_28 = arith.constant dense<0.000000e+00> : vector<8xf32>
    %96 = vector.multi_reduction <add>, %95, %cst_28 [1] : vector<8x8xf32> to vector<8xf32>
    %97 = vector.shape_cast %96 : vector<8xf32> to vector<8x1xf32>
    %98 = tpu.reciprocal %97 {approx = true} : vector<8x1xf32> -> vector<8x1xf32>
    %99 = vector.broadcast %98 : vector<8x1xf32> to vector<8x8xf32>
    %100 = arith.mulf %95, %99 : vector<8x8xf32>
    %101 = arith.truncf %100 : vector<8x8xf32> to vector<8x8xbf16>
    %cst_29 = arith.constant dense<0.000000e+00> : vector<8x8xf32>
    %102 = tpu.matmul %101, %88, %cst_29 {dimension_numbers = #tpu.dot_dimension_numbers<[1], [0], [0], [1], [0, 0, 1, 1], [], []>} : vector<8x8xbf16>, vector<8x8xbf16>, vector<8x8xf32> -> vector<8x8xf32>
    %103 = tpu.concatenate %42, %62, %82, %102 in 1 : vector<8x8xf32>, vector<8x8xf32>, vector<8x8xf32>, vector<8x8xf32> -> vector<8x32xf32>
    %104 = arith.truncf %103 : vector<8x32xf32> to vector<8x32xbf16>
    %c0_30 = arith.constant 0 : index
    %c0_31 = arith.constant 0 : index
    %105 = vector.load %arg7[%c0_30, %c0_31] : memref<32x32xbf16, #tpu.memory_space<vmem>>, vector<32x32xbf16>
    %cst_32 = arith.constant dense<0.000000e+00> : vector<8x32xf32>
    %106 = tpu.matmul %104, %105, %cst_32 {dimension_numbers = #tpu.dot_dimension_numbers<[1], [0], [0], [1], [0, 0, 1, 1], [], []>} : vector<8x32xbf16>, vector<32x32xbf16>, vector<8x32xf32> -> vector<8x32xf32>
    %c0_33 = arith.constant 0 : index
    %c0_34 = arith.constant 0 : index
    %107 = vector.load %arg8[%c0_33, %c0_34] : memref<1x32xf32, #tpu.memory_space<vmem>>, vector<1x32xf32>
    %108 = vector.broadcast %107 : vector<1x32xf32> to vector<8x32xf32>
    %109 = arith.addf %106, %108 : vector<8x32xf32>
    %110 = arith.addf %1, %109 : vector<8x32xf32>
    %cst_35 = arith.constant dense<0.000000e+00> : vector<8xf32>
    %111 = vector.multi_reduction <add>, %110, %cst_35 [1] : vector<8x32xf32> to vector<8xf32>
    %112 = vector.shape_cast %111 : vector<8xf32> to vector<8x1xf32>
    %cst_36 = arith.constant 3.200000e+01 : f32
    %113 = vector.broadcast %cst_36 : f32 to vector<8x1xf32>
    %114 = arith.divf %112, %113 : vector<8x1xf32>
    %115 = vector.broadcast %114 : vector<8x1xf32> to vector<8x32xf32>
    %116 = arith.subf %110, %115 : vector<8x32xf32>
    %117 = vector.broadcast %114 : vector<8x1xf32> to vector<8x32xf32>
    %118 = arith.subf %110, %117 : vector<8x32xf32>
    %119 = arith.mulf %116, %118 : vector<8x32xf32>
    %cst_37 = arith.constant dense<0.000000e+00> : vector<8xf32>
    %120 = vector.multi_reduction <add>, %119, %cst_37 [1] : vector<8x32xf32> to vector<8xf32>
    %121 = vector.shape_cast %120 : vector<8xf32> to vector<8x1xf32>
    %cst_38 = arith.constant 3.200000e+01 : f32
    %122 = vector.broadcast %cst_38 : f32 to vector<8x1xf32>
    %123 = arith.divf %121, %122 : vector<8x1xf32>
    %124 = vector.broadcast %114 : vector<8x1xf32> to vector<8x32xf32>
    %125 = arith.subf %110, %124 : vector<8x32xf32>
    %cst_39 = arith.constant 9.99999974E-6 : f32
    %126 = vector.broadcast %cst_39 : f32 to vector<8x1xf32>
    %127 = arith.addf %123, %126 : vector<8x1xf32>
    %128 = math.rsqrt %127 : vector<8x1xf32>
    %129 = vector.broadcast %128 : vector<8x1xf32> to vector<8x32xf32>
    %130 = arith.mulf %125, %129 : vector<8x32xf32>
    %c0_40 = arith.constant 0 : index
    %c0_41 = arith.constant 0 : index
    %131 = vector.load %arg9[%c0_40, %c0_41] : memref<1x32xf32, #tpu.memory_space<vmem>>, vector<1x32xf32>
    %132 = vector.broadcast %131 : vector<1x32xf32> to vector<8x32xf32>
    %133 = arith.mulf %130, %132 : vector<8x32xf32>
    %c0_42 = arith.constant 0 : index
    %c0_43 = arith.constant 0 : index
    %134 = vector.load %arg10[%c0_42, %c0_43] : memref<1x32xf32, #tpu.memory_space<vmem>>, vector<1x32xf32>
    %135 = vector.broadcast %134 : vector<1x32xf32> to vector<8x32xf32>
    %136 = arith.addf %133, %135 : vector<8x32xf32>
    %137 = arith.truncf %136 : vector<8x32xf32> to vector<8x32xbf16>
    %c0_44 = arith.constant 0 : index
    %c0_45 = arith.constant 0 : index
    %138 = vector.load %arg11[%c0_44, %c0_45] : memref<32x32xbf16, #tpu.memory_space<vmem>>, vector<32x32xbf16>
    %cst_46 = arith.constant dense<0.000000e+00> : vector<8x32xf32>
    %139 = tpu.matmul %137, %138, %cst_46 {dimension_numbers = #tpu.dot_dimension_numbers<[1], [0], [0], [1], [0, 0, 1, 1], [], []>} : vector<8x32xbf16>, vector<32x32xbf16>, vector<8x32xf32> -> vector<8x32xf32>
    %c0_47 = arith.constant 0 : index
    %c0_48 = arith.constant 0 : index
    %140 = vector.load %arg12[%c0_47, %c0_48] : memref<1x32xf32, #tpu.memory_space<vmem>>, vector<1x32xf32>
    %141 = vector.broadcast %140 : vector<1x32xf32> to vector<8x32xf32>
    %142 = arith.addf %139, %141 : vector<8x32xf32>
    %143 = arith.truncf %3 : vector<8x32xf32> to vector<8x32xbf16>
    %c0_49 = arith.constant 0 : index
    %c0_50 = arith.constant 0 : index
    %144 = vector.load %arg13[%c0_49, %c0_50] : memref<32x64xbf16, #tpu.memory_space<vmem>>, vector<32x64xbf16>
    %cst_51 = arith.constant dense<0.000000e+00> : vector<8x64xf32>
    %145 = tpu.matmul %143, %144, %cst_51 {dimension_numbers = #tpu.dot_dimension_numbers<[1], [0], [0], [1], [0, 0, 1, 1], [], []>} : vector<8x32xbf16>, vector<32x64xbf16>, vector<8x64xf32> -> vector<8x64xf32>
    %c0_52 = arith.constant 0 : index
    %c0_53 = arith.constant 0 : index
    %146 = vector.load %arg14[%c0_52, %c0_53] : memref<1x64xf32, #tpu.memory_space<vmem>>, vector<1x64xf32>
    %147 = vector.broadcast %146 : vector<1x64xf32> to vector<8x64xf32>
    %148 = arith.addf %145, %147 : vector<8x64xf32>
    %149 = vector.extract_strided_slice %148 {offsets = [0, 0], sizes = [8, 32], strides = [1, 1]} : vector<8x64xf32> to vector<8x32xf32>
    %150 = vector.extract_strided_slice %148 {offsets = [0, 32], sizes = [8, 32], strides = [1, 1]} : vector<8x64xf32> to vector<8x32xf32>
    %c0_54 = arith.constant 0 : index
    %c0_55 = arith.constant 0 : index
    %c0_56 = arith.constant 0 : index
    %151 = vector.load %arg4[%c0_54, %c0_55, %c0_56] : memref<1x1x8xf32, #tpu.memory_space<vmem>>, vector<1x1x8xf32>
    %152 = vector.shape_cast %151 : vector<1x1x8xf32> to vector<1x8xf32>
    %153 = vector.extract_strided_slice %142 {offsets = [0, 0], sizes = [8, 8], strides = [1, 1]} : vector<8x32xf32> to vector<8x8xf32>
    %154 = arith.truncf %153 : vector<8x8xf32> to vector<8x8xbf16>
    %155 = vector.extract_strided_slice %149 {offsets = [0, 0], sizes = [8, 8], strides = [1, 1]} : vector<8x32xf32> to vector<8x8xf32>
    %156 = arith.truncf %155 : vector<8x8xf32> to vector<8x8xbf16>
    %157 = vector.extract_strided_slice %150 {offsets = [0, 0], sizes = [8, 8], strides = [1, 1]} : vector<8x32xf32> to vector<8x8xf32>
    %158 = arith.truncf %157 : vector<8x8xf32> to vector<8x8xbf16>
    %cst_57 = arith.constant dense<0.000000e+00> : vector<8x8xf32>
    %159 = tpu.matmul %154, %156, %cst_57 {dimension_numbers = #tpu.dot_dimension_numbers<[1], [1], [0], [0], [0, 0, 1, 0], [], []>} : vector<8x8xbf16>, vector<8x8xbf16>, vector<8x8xf32> -> vector<8x8xf32>
    %160 = vector.broadcast %152 : vector<1x8xf32> to vector<8x8xf32>
    %161 = arith.addf %159, %160 : vector<8x8xf32>
    %cst_58 = arith.constant dense<0xFF800000> : vector<8xf32>
    %162 = vector.multi_reduction <maximumf>, %161, %cst_58 [1] : vector<8x8xf32> to vector<8xf32>
    %163 = vector.shape_cast %162 : vector<8xf32> to vector<8x1xf32>
    %164 = vector.broadcast %163 : vector<8x1xf32> to vector<8x8xf32>
    %165 = arith.subf %161, %164 : vector<8x8xf32>
    %166 = math.exp %165 : vector<8x8xf32>
    %cst_59 = arith.constant dense<0.000000e+00> : vector<8xf32>
    %167 = vector.multi_reduction <add>, %166, %cst_59 [1] : vector<8x8xf32> to vector<8xf32>
    %168 = vector.shape_cast %167 : vector<8xf32> to vector<8x1xf32>
    %169 = tpu.reciprocal %168 {approx = true} : vector<8x1xf32> -> vector<8x1xf32>
    %170 = vector.broadcast %169 : vector<8x1xf32> to vector<8x8xf32>
    %171 = arith.mulf %166, %170 : vector<8x8xf32>
    %172 = arith.truncf %171 : vector<8x8xf32> to vector<8x8xbf16>
    %cst_60 = arith.constant dense<0.000000e+00> : vector<8x8xf32>
    %173 = tpu.matmul %172, %158, %cst_60 {dimension_numbers = #tpu.dot_dimension_numbers<[1], [0], [0], [1], [0, 0, 1, 1], [], []>} : vector<8x8xbf16>, vector<8x8xbf16>, vector<8x8xf32> -> vector<8x8xf32>
    %174 = vector.extract_strided_slice %142 {offsets = [0, 8], sizes = [8, 8], strides = [1, 1]} : vector<8x32xf32> to vector<8x8xf32>
    %175 = arith.truncf %174 : vector<8x8xf32> to vector<8x8xbf16>
    %176 = vector.extract_strided_slice %149 {offsets = [0, 8], sizes = [8, 8], strides = [1, 1]} : vector<8x32xf32> to vector<8x8xf32>
    %177 = arith.truncf %176 : vector<8x8xf32> to vector<8x8xbf16>
    %178 = vector.extract_strided_slice %150 {offsets = [0, 8], sizes = [8, 8], strides = [1, 1]} : vector<8x32xf32> to vector<8x8xf32>
    %179 = arith.truncf %178 : vector<8x8xf32> to vector<8x8xbf16>
    %cst_61 = arith.constant dense<0.000000e+00> : vector<8x8xf32>
    %180 = tpu.matmul %175, %177, %cst_61 {dimension_numbers = #tpu.dot_dimension_numbers<[1], [1], [0], [0], [0, 0, 1, 0], [], []>} : vector<8x8xbf16>, vector<8x8xbf16>, vector<8x8xf32> -> vector<8x8xf32>
    %181 = vector.broadcast %152 : vector<1x8xf32> to vector<8x8xf32>
    %182 = arith.addf %180, %181 : vector<8x8xf32>
    %cst_62 = arith.constant dense<0xFF800000> : vector<8xf32>
    %183 = vector.multi_reduction <maximumf>, %182, %cst_62 [1] : vector<8x8xf32> to vector<8xf32>
    %184 = vector.shape_cast %183 : vector<8xf32> to vector<8x1xf32>
    %185 = vector.broadcast %184 : vector<8x1xf32> to vector<8x8xf32>
    %186 = arith.subf %182, %185 : vector<8x8xf32>
    %187 = math.exp %186 : vector<8x8xf32>
    %cst_63 = arith.constant dense<0.000000e+00> : vector<8xf32>
    %188 = vector.multi_reduction <add>, %187, %cst_63 [1] : vector<8x8xf32> to vector<8xf32>
    %189 = vector.shape_cast %188 : vector<8xf32> to vector<8x1xf32>
    %190 = tpu.reciprocal %189 {approx = true} : vector<8x1xf32> -> vector<8x1xf32>
    %191 = vector.broadcast %190 : vector<8x1xf32> to vector<8x8xf32>
    %192 = arith.mulf %187, %191 : vector<8x8xf32>
    %193 = arith.truncf %192 : vector<8x8xf32> to vector<8x8xbf16>
    %cst_64 = arith.constant dense<0.000000e+00> : vector<8x8xf32>
    %194 = tpu.matmul %193, %179, %cst_64 {dimension_numbers = #tpu.dot_dimension_numbers<[1], [0], [0], [1], [0, 0, 1, 1], [], []>} : vector<8x8xbf16>, vector<8x8xbf16>, vector<8x8xf32> -> vector<8x8xf32>
    %195 = vector.extract_strided_slice %142 {offsets = [0, 16], sizes = [8, 8], strides = [1, 1]} : vector<8x32xf32> to vector<8x8xf32>
    %196 = arith.truncf %195 : vector<8x8xf32> to vector<8x8xbf16>
    %197 = vector.extract_strided_slice %149 {offsets = [0, 16], sizes = [8, 8], strides = [1, 1]} : vector<8x32xf32> to vector<8x8xf32>
    %198 = arith.truncf %197 : vector<8x8xf32> to vector<8x8xbf16>
    %199 = vector.extract_strided_slice %150 {offsets = [0, 16], sizes = [8, 8], strides = [1, 1]} : vector<8x32xf32> to vector<8x8xf32>
    %200 = arith.truncf %199 : vector<8x8xf32> to vector<8x8xbf16>
    %cst_65 = arith.constant dense<0.000000e+00> : vector<8x8xf32>
    %201 = tpu.matmul %196, %198, %cst_65 {dimension_numbers = #tpu.dot_dimension_numbers<[1], [1], [0], [0], [0, 0, 1, 0], [], []>} : vector<8x8xbf16>, vector<8x8xbf16>, vector<8x8xf32> -> vector<8x8xf32>
    %202 = vector.broadcast %152 : vector<1x8xf32> to vector<8x8xf32>
    %203 = arith.addf %201, %202 : vector<8x8xf32>
    %cst_66 = arith.constant dense<0xFF800000> : vector<8xf32>
    %204 = vector.multi_reduction <maximumf>, %203, %cst_66 [1] : vector<8x8xf32> to vector<8xf32>
    %205 = vector.shape_cast %204 : vector<8xf32> to vector<8x1xf32>
    %206 = vector.broadcast %205 : vector<8x1xf32> to vector<8x8xf32>
    %207 = arith.subf %203, %206 : vector<8x8xf32>
    %208 = math.exp %207 : vector<8x8xf32>
    %cst_67 = arith.constant dense<0.000000e+00> : vector<8xf32>
    %209 = vector.multi_reduction <add>, %208, %cst_67 [1] : vector<8x8xf32> to vector<8xf32>
    %210 = vector.shape_cast %209 : vector<8xf32> to vector<8x1xf32>
    %211 = tpu.reciprocal %210 {approx = true} : vector<8x1xf32> -> vector<8x1xf32>
    %212 = vector.broadcast %211 : vector<8x1xf32> to vector<8x8xf32>
    %213 = arith.mulf %208, %212 : vector<8x8xf32>
    %214 = arith.truncf %213 : vector<8x8xf32> to vector<8x8xbf16>
    %cst_68 = arith.constant dense<0.000000e+00> : vector<8x8xf32>
    %215 = tpu.matmul %214, %200, %cst_68 {dimension_numbers = #tpu.dot_dimension_numbers<[1], [0], [0], [1], [0, 0, 1, 1], [], []>} : vector<8x8xbf16>, vector<8x8xbf16>, vector<8x8xf32> -> vector<8x8xf32>
    %216 = vector.extract_strided_slice %142 {offsets = [0, 24], sizes = [8, 8], strides = [1, 1]} : vector<8x32xf32> to vector<8x8xf32>
    %217 = arith.truncf %216 : vector<8x8xf32> to vector<8x8xbf16>
    %218 = vector.extract_strided_slice %149 {offsets = [0, 24], sizes = [8, 8], strides = [1, 1]} : vector<8x32xf32> to vector<8x8xf32>
    %219 = arith.truncf %218 : vector<8x8xf32> to vector<8x8xbf16>
    %220 = vector.extract_strided_slice %150 {offsets = [0, 24], sizes = [8, 8], strides = [1, 1]} : vector<8x32xf32> to vector<8x8xf32>
    %221 = arith.truncf %220 : vector<8x8xf32> to vector<8x8xbf16>
    %cst_69 = arith.constant dense<0.000000e+00> : vector<8x8xf32>
    %222 = tpu.matmul %217, %219, %cst_69 {dimension_numbers = #tpu.dot_dimension_numbers<[1], [1], [0], [0], [0, 0, 1, 0], [], []>} : vector<8x8xbf16>, vector<8x8xbf16>, vector<8x8xf32> -> vector<8x8xf32>
    %223 = vector.broadcast %152 : vector<1x8xf32> to vector<8x8xf32>
    %224 = arith.addf %222, %223 : vector<8x8xf32>
    %cst_70 = arith.constant dense<0xFF800000> : vector<8xf32>
    %225 = vector.multi_reduction <maximumf>, %224, %cst_70 [1] : vector<8x8xf32> to vector<8xf32>
    %226 = vector.shape_cast %225 : vector<8xf32> to vector<8x1xf32>
    %227 = vector.broadcast %226 : vector<8x1xf32> to vector<8x8xf32>
    %228 = arith.subf %224, %227 : vector<8x8xf32>
    %229 = math.exp %228 : vector<8x8xf32>
    %cst_71 = arith.constant dense<0.000000e+00> : vector<8xf32>
    %230 = vector.multi_reduction <add>, %229, %cst_71 [1] : vector<8x8xf32> to vector<8xf32>
    %231 = vector.shape_cast %230 : vector<8xf32> to vector<8x1xf32>
    %232 = tpu.reciprocal %231 {approx = true} : vector<8x1xf32> -> vector<8x1xf32>
    %233 = vector.broadcast %232 : vector<8x1xf32> to vector<8x8xf32>
    %234 = arith.mulf %229, %233 : vector<8x8xf32>
    %235 = arith.truncf %234 : vector<8x8xf32> to vector<8x8xbf16>
    %cst_72 = arith.constant dense<0.000000e+00> : vector<8x8xf32>
    %236 = tpu.matmul %235, %221, %cst_72 {dimension_numbers = #tpu.dot_dimension_numbers<[1], [0], [0], [1], [0, 0, 1, 1], [], []>} : vector<8x8xbf16>, vector<8x8xbf16>, vector<8x8xf32> -> vector<8x8xf32>
    %237 = tpu.concatenate %173, %194, %215, %236 in 1 : vector<8x8xf32>, vector<8x8xf32>, vector<8x8xf32>, vector<8x8xf32> -> vector<8x32xf32>
    %238 = arith.truncf %237 : vector<8x32xf32> to vector<8x32xbf16>
    %c0_73 = arith.constant 0 : index
    %c0_74 = arith.constant 0 : index
    %239 = vector.load %arg15[%c0_73, %c0_74] : memref<32x32xbf16, #tpu.memory_space<vmem>>, vector<32x32xbf16>
    %cst_75 = arith.constant dense<0.000000e+00> : vector<8x32xf32>
    %240 = tpu.matmul %238, %239, %cst_75 {dimension_numbers = #tpu.dot_dimension_numbers<[1], [0], [0], [1], [0, 0, 1, 1], [], []>} : vector<8x32xbf16>, vector<32x32xbf16>, vector<8x32xf32> -> vector<8x32xf32>
    %c0_76 = arith.constant 0 : index
    %c0_77 = arith.constant 0 : index
    %241 = vector.load %arg16[%c0_76, %c0_77] : memref<1x32xf32, #tpu.memory_space<vmem>>, vector<1x32xf32>
    %242 = vector.broadcast %241 : vector<1x32xf32> to vector<8x32xf32>
    %243 = arith.addf %240, %242 : vector<8x32xf32>
    %244 = arith.addf %136, %243 : vector<8x32xf32>
    %cst_78 = arith.constant dense<0.000000e+00> : vector<8xf32>
    %245 = vector.multi_reduction <add>, %244, %cst_78 [1] : vector<8x32xf32> to vector<8xf32>
    %246 = vector.shape_cast %245 : vector<8xf32> to vector<8x1xf32>
    %cst_79 = arith.constant 3.200000e+01 : f32
    %247 = vector.broadcast %cst_79 : f32 to vector<8x1xf32>
    %248 = arith.divf %246, %247 : vector<8x1xf32>
    %249 = vector.broadcast %248 : vector<8x1xf32> to vector<8x32xf32>
    %250 = arith.subf %244, %249 : vector<8x32xf32>
    %251 = vector.broadcast %248 : vector<8x1xf32> to vector<8x32xf32>
    %252 = arith.subf %244, %251 : vector<8x32xf32>
    %253 = arith.mulf %250, %252 : vector<8x32xf32>
    %cst_80 = arith.constant dense<0.000000e+00> : vector<8xf32>
    %254 = vector.multi_reduction <add>, %253, %cst_80 [1] : vector<8x32xf32> to vector<8xf32>
    %255 = vector.shape_cast %254 : vector<8xf32> to vector<8x1xf32>
    %cst_81 = arith.constant 3.200000e+01 : f32
    %256 = vector.broadcast %cst_81 : f32 to vector<8x1xf32>
    %257 = arith.divf %255, %256 : vector<8x1xf32>
    %258 = vector.broadcast %248 : vector<8x1xf32> to vector<8x32xf32>
    %259 = arith.subf %244, %258 : vector<8x32xf32>
    %cst_82 = arith.constant 9.99999974E-6 : f32
    %260 = vector.broadcast %cst_82 : f32 to vector<8x1xf32>
    %261 = arith.addf %257, %260 : vector<8x1xf32>
    %262 = math.rsqrt %261 : vector<8x1xf32>
    %263 = vector.broadcast %262 : vector<8x1xf32> to vector<8x32xf32>
    %264 = arith.mulf %259, %263 : vector<8x32xf32>
    %c0_83 = arith.constant 0 : index
    %c0_84 = arith.constant 0 : index
    %265 = vector.load %arg17[%c0_83, %c0_84] : memref<1x32xf32, #tpu.memory_space<vmem>>, vector<1x32xf32>
    %266 = vector.broadcast %265 : vector<1x32xf32> to vector<8x32xf32>
    %267 = arith.mulf %264, %266 : vector<8x32xf32>
    %c0_85 = arith.constant 0 : index
    %c0_86 = arith.constant 0 : index
    %268 = vector.load %arg18[%c0_85, %c0_86] : memref<1x32xf32, #tpu.memory_space<vmem>>, vector<1x32xf32>
    %269 = vector.broadcast %268 : vector<1x32xf32> to vector<8x32xf32>
    %270 = arith.addf %267, %269 : vector<8x32xf32>
    %271 = arith.truncf %270 : vector<8x32xf32> to vector<8x32xbf16>
    %c0_87 = arith.constant 0 : index
    %c0_88 = arith.constant 0 : index
    %272 = vector.load %arg19[%c0_87, %c0_88] : memref<32x64xbf16, #tpu.memory_space<vmem>>, vector<32x64xbf16>
    %cst_89 = arith.constant dense<0.000000e+00> : vector<8x64xf32>
    %273 = tpu.matmul %271, %272, %cst_89 {dimension_numbers = #tpu.dot_dimension_numbers<[1], [0], [0], [1], [0, 0, 1, 1], [], []>} : vector<8x32xbf16>, vector<32x64xbf16>, vector<8x64xf32> -> vector<8x64xf32>
    %c0_90 = arith.constant 0 : index
    %c0_91 = arith.constant 0 : index
    %274 = vector.load %arg20[%c0_90, %c0_91] : memref<1x64xf32, #tpu.memory_space<vmem>>, vector<1x64xf32>
    %275 = vector.broadcast %274 : vector<1x64xf32> to vector<8x64xf32>
    %276 = arith.addf %273, %275 : vector<8x64xf32>
    %cst_92 = arith.constant 5.000000e-01 : f32
    %277 = vector.broadcast %cst_92 : f32 to vector<8x64xf32>
    %278 = arith.mulf %277, %276 : vector<8x64xf32>
    %cst_93 = arith.constant 0.707106769 : f32
    %279 = vector.broadcast %cst_93 : f32 to vector<8x64xf32>
    %280 = arith.mulf %276, %279 : vector<8x64xf32>
    %cst_94 = arith.constant 0.000000e+00 : f32
    %281 = vector.broadcast %cst_94 : f32 to vector<8x64xf32>
    %282 = arith.cmpf oge, %280, %281 : vector<8x64xf32>
    %cst_95 = arith.constant 1.000000e+00 : f32
    %cst_96 = arith.constant -1.000000e+00 : f32
    %283 = vector.broadcast %cst_95 : f32 to vector<8x64xf32>
    %284 = vector.broadcast %cst_96 : f32 to vector<8x64xf32>
    %285 = arith.select %282, %283, %284 : vector<8x64xi1>, vector<8x64xf32>
    %286 = math.absf %280 : vector<8x64xf32>
    %cst_97 = arith.constant 0.327591091 : f32
    %287 = vector.broadcast %cst_97 : f32 to vector<8x64xf32>
    %288 = arith.mulf %287, %286 : vector<8x64xf32>
    %cst_98 = arith.constant 1.000000e+00 : f32
    %289 = vector.broadcast %cst_98 : f32 to vector<8x64xf32>
    %290 = arith.addf %289, %288 : vector<8x64xf32>
    %cst_99 = arith.constant 1.000000e+00 : f32
    %291 = vector.broadcast %cst_99 : f32 to vector<8x64xf32>
    %292 = arith.divf %291, %290 : vector<8x64xf32>
    %cst_100 = arith.constant 1.06140542 : f32
    %293 = vector.broadcast %cst_100 : f32 to vector<8x64xf32>
    %294 = arith.mulf %293, %292 : vector<8x64xf32>
    %cst_101 = arith.constant -1.45315206 : f32
    %295 = vector.broadcast %cst_101 : f32 to vector<8x64xf32>
    %296 = arith.addf %294, %295 : vector<8x64xf32>
    %297 = arith.mulf %296, %292 : vector<8x64xf32>
    %cst_102 = arith.constant 1.42141378 : f32
    %298 = vector.broadcast %cst_102 : f32 to vector<8x64xf32>
    %299 = arith.addf %297, %298 : vector<8x64xf32>
    %300 = arith.mulf %299, %292 : vector<8x64xf32>
    %cst_103 = arith.constant -0.284496725 : f32
    %301 = vector.broadcast %cst_103 : f32 to vector<8x64xf32>
    %302 = arith.addf %300, %301 : vector<8x64xf32>
    %303 = arith.mulf %302, %292 : vector<8x64xf32>
    %cst_104 = arith.constant 0.254829586 : f32
    %304 = vector.broadcast %cst_104 : f32 to vector<8x64xf32>
    %305 = arith.addf %303, %304 : vector<8x64xf32>
    %306 = arith.mulf %305, %292 : vector<8x64xf32>
    %cst_105 = arith.constant 0.000000e+00 : f32
    %307 = vector.broadcast %cst_105 : f32 to vector<8x64xf32>
    %308 = arith.subf %307, %286 : vector<8x64xf32>
    %309 = arith.mulf %308, %286 : vector<8x64xf32>
    %310 = math.exp %309 : vector<8x64xf32>
    %311 = arith.mulf %306, %310 : vector<8x64xf32>
    %cst_106 = arith.constant 1.000000e+00 : f32
    %312 = vector.broadcast %cst_106 : f32 to vector<8x64xf32>
    %313 = arith.subf %312, %311 : vector<8x64xf32>
    %314 = arith.mulf %285, %313 : vector<8x64xf32>
    %cst_107 = arith.constant 1.000000e+00 : f32
    %315 = vector.broadcast %cst_107 : f32 to vector<8x64xf32>
    %316 = arith.addf %315, %314 : vector<8x64xf32>
    %317 = arith.mulf %278, %316 : vector<8x64xf32>
    %318 = arith.truncf %317 : vector<8x64xf32> to vector<8x64xbf16>
    %c0_108 = arith.constant 0 : index
    %c0_109 = arith.constant 0 : index
    %319 = vector.load %arg21[%c0_108, %c0_109] : memref<64x32xbf16, #tpu.memory_space<vmem>>, vector<64x32xbf16>
    %cst_110 = arith.constant dense<0.000000e+00> : vector<8x32xf32>
    %320 = tpu.matmul %318, %319, %cst_110 {dimension_numbers = #tpu.dot_dimension_numbers<[1], [0], [0], [1], [0, 0, 1, 1], [], []>} : vector<8x64xbf16>, vector<64x32xbf16>, vector<8x32xf32> -> vector<8x32xf32>
    %c0_111 = arith.constant 0 : index
    %c0_112 = arith.constant 0 : index
    %321 = vector.load %arg22[%c0_111, %c0_112] : memref<1x32xf32, #tpu.memory_space<vmem>>, vector<1x32xf32>
    %322 = vector.broadcast %321 : vector<1x32xf32> to vector<8x32xf32>
    %323 = arith.addf %320, %322 : vector<8x32xf32>
    %324 = arith.addf %270, %323 : vector<8x32xf32>
    %cst_113 = arith.constant dense<0.000000e+00> : vector<8xf32>
    %325 = vector.multi_reduction <add>, %324, %cst_113 [1] : vector<8x32xf32> to vector<8xf32>
    %326 = vector.shape_cast %325 : vector<8xf32> to vector<8x1xf32>
    %cst_114 = arith.constant 3.200000e+01 : f32
    %327 = vector.broadcast %cst_114 : f32 to vector<8x1xf32>
    %328 = arith.divf %326, %327 : vector<8x1xf32>
    %329 = vector.broadcast %328 : vector<8x1xf32> to vector<8x32xf32>
    %330 = arith.subf %324, %329 : vector<8x32xf32>
    %331 = vector.broadcast %328 : vector<8x1xf32> to vector<8x32xf32>
    %332 = arith.subf %324, %331 : vector<8x32xf32>
    %333 = arith.mulf %330, %332 : vector<8x32xf32>
    %cst_115 = arith.constant dense<0.000000e+00> : vector<8xf32>
    %334 = vector.multi_reduction <add>, %333, %cst_115 [1] : vector<8x32xf32> to vector<8xf32>
    %335 = vector.shape_cast %334 : vector<8xf32> to vector<8x1xf32>
    %cst_116 = arith.constant 3.200000e+01 : f32
    %336 = vector.broadcast %cst_116 : f32 to vector<8x1xf32>
    %337 = arith.divf %335, %336 : vector<8x1xf32>
    %338 = vector.broadcast %328 : vector<8x1xf32> to vector<8x32xf32>
    %339 = arith.subf %324, %338 : vector<8x32xf32>
    %cst_117 = arith.constant 9.99999974E-6 : f32
    %340 = vector.broadcast %cst_117 : f32 to vector<8x1xf32>
    %341 = arith.addf %337, %340 : vector<8x1xf32>
    %342 = math.rsqrt %341 : vector<8x1xf32>
    %343 = vector.broadcast %342 : vector<8x1xf32> to vector<8x32xf32>
    %344 = arith.mulf %339, %343 : vector<8x32xf32>
    %c0_118 = arith.constant 0 : index
    %c0_119 = arith.constant 0 : index
    %345 = vector.load %arg23[%c0_118, %c0_119] : memref<1x32xf32, #tpu.memory_space<vmem>>, vector<1x32xf32>
    %346 = vector.broadcast %345 : vector<1x32xf32> to vector<8x32xf32>
    %347 = arith.mulf %344, %346 : vector<8x32xf32>
    %c0_120 = arith.constant 0 : index
    %c0_121 = arith.constant 0 : index
    %348 = vector.load %arg24[%c0_120, %c0_121] : memref<1x32xf32, #tpu.memory_space<vmem>>, vector<1x32xf32>
    %349 = vector.broadcast %348 : vector<1x32xf32> to vector<8x32xf32>
    %350 = arith.addf %347, %349 : vector<8x32xf32>
    %c0_122 = arith.constant 0 : index
    %c0_123 = arith.constant 0 : index
    %c0_124 = arith.constant 0 : index
    %351 = vector.load %arg25[%c0_122, %c0_123, %c0_124] : memref<1x8x32xf32, #tpu.memory_space<vmem>>, vector<1x8x32xf32>
    %352 = vector.shape_cast %351 : vector<1x8x32xf32> to vector<8x32xf32>
    %353 = vector.shape_cast %350 : vector<8x32xf32> to vector<1x8x32xf32>
    tpu.vector_store %arg25[%c0_122, %c0_123, %c0_124], %353 {strides = array<i32>} : memref<1x8x32xf32, #tpu.memory_space<vmem>>, vector<1x8x32xf32>,
    return
  }
  func.func @transform_0(%arg0: i32) -> (i32, i32, i32) {
    %c0_i32 = arith.constant 0 : i32
    %c0_i32_0 = arith.constant 0 : i32
    %c0_i32_1 = arith.constant 0 : i32
    return %arg0, %c0_i32, %c0_i32_0 : i32, i32, i32
  }
  func.func @transform_1(%arg0: i32) -> (i32, i32, i32) {
    %c0_i32 = arith.constant 0 : i32
    %c0_i32_0 = arith.constant 0 : i32
    %c0_i32_1 = arith.constant 0 : i32
    return %arg0, %c0_i32, %c0_i32_0 : i32, i32, i32
  }
  func.func @transform_2(%arg0: i32) -> (i32, i32, i32) {
    %c0_i32 = arith.constant 0 : i32
    %c0_i32_0 = arith.constant 0 : i32
    %c0_i32_1 = arith.constant 0 : i32
    return %arg0, %c0_i32, %c0_i32_0 : i32, i32, i32
  }
  func.func @transform_3(%arg0: i32) -> (i32, i32, i32) {
    %c0_i32 = arith.constant 0 : i32
    %c0_i32_0 = arith.constant 0 : i32
    %c0_i32_1 = arith.constant 0 : i32
    return %arg0, %c0_i32, %c0_i32_0 : i32, i32, i32
  }
  func.func @transform_4(%arg0: i32) -> (i32, i32) {
    %c0_i32 = arith.constant 0 : i32
    %c0_i32_0 = arith.constant 0 : i32
    %c0_i32_1 = arith.constant 0 : i32
    return %c0_i32, %c0_i32_0 : i32, i32
  }
  func.func @transform_5(%arg0: i32) -> (i32, i32) {
    %c0_i32 = arith.constant 0 : i32
    %c0_i32_0 = arith.constant 0 : i32
    %c0_i32_1 = arith.constant 0 : i32
    return %c0_i32, %c0_i32_0 : i32, i32
  }
  func.func @transform_6(%arg0: i32) -> (i32, i32) {
    %c0_i32 = arith.constant 0 : i32
    %c0_i32_0 = arith.constant 0 : i32
    %c0_i32_1 = arith.constant 0 : i32
    return %c0_i32, %c0_i32_0 : i32, i32
  }
  func.func @transform_7(%arg0: i32) -> (i32, i32) {
    %c0_i32 = arith.constant 0 : i32
    %c0_i32_0 = arith.constant 0 : i32
    %c0_i32_1 = arith.constant 0 : i32
    return %c0_i32, %c0_i32_0 : i32, i32
  }
  func.func @transform_8(%arg0: i32) -> (i32, i32) {
    %c0_i32 = arith.constant 0 : i32
    %c0_i32_0 = arith.constant 0 : i32
    %c0_i32_1 = arith.constant 0 : i32
    return %c0_i32, %c0_i32_0 : i32, i32
  }
  func.func @transform_9(%arg0: i32) -> (i32, i32) {
    %c0_i32 = arith.constant 0 : i32
    %c0_i32_0 = arith.constant 0 : i32
    %c0_i32_1 = arith.constant 0 : i32
    return %c0_i32, %c0_i32_0 : i32, i32
  }
  func.func @transform_10(%arg0: i32) -> (i32, i32) {
    %c0_i32 = arith.constant 0 : i32
    %c0_i32_0 = arith.constant 0 : i32
    %c0_i32_1 = arith.constant 0 : i32
    return %c0_i32, %c0_i32_0 : i32, i32
  }
  func.func @transform_11(%arg0: i32) -> (i32, i32) {
    %c0_i32 = arith.constant 0 : i32
    %c0_i32_0 = arith.constant 0 : i32
    %c0_i32_1 = arith.constant 0 : i32
    return %c0_i32, %c0_i32_0 : i32, i32
  }
  func.func @transform_12(%arg0: i32) -> (i32, i32) {
    %c0_i32 = arith.constant 0 : i32
    %c0_i32_0 = arith.constant 0 : i32
    %c0_i32_1 = arith.constant 0 : i32
    return %c0_i32, %c0_i32_0 : i32, i32
  }
  func.func @transform_13(%arg0: i32) -> (i32, i32) {
    %c0_i32 = arith.constant 0 : i32
    %c0_i32_0 = arith.constant 0 : i32
    %c0_i32_1 = arith.constant 0 : i32
    return %c0_i32, %c0_i32_0 : i32, i32
  }
  func.func @transform_14(%arg0: i32) -> (i32, i32) {
    %c0_i32 = arith.constant 0 : i32
    %c0_i32_0 = arith.constant 0 : i32
    %c0_i32_1 = arith.constant 0 : i32
    return %c0_i32, %c0_i32_0 : i32, i32
  }
  func.func @transform_15(%arg0: i32) -> (i32, i32) {
    %c0_i32 = arith.constant 0 : i32
    %c0_i32_0 = arith.constant 0 : i32
    %c0_i32_1 = arith.constant 0 : i32
    return %c0_i32, %c0_i32_0 : i32, i32
  }
  func.func @transform_16(%arg0: i32) -> (i32, i32) {
    %c0_i32 = arith.constant 0 : i32
    %c0_i32_0 = arith.constant 0 : i32
    %c0_i32_1 = arith.constant 0 : i32
    return %c0_i32, %c0_i32_0 : i32, i32
  }
  func.func @transform_17(%arg0: i32) -> (i32, i32) {
    %c0_i32 = arith.constant 0 : i32
    %c0_i32_0 = arith.constant 0 : i32
    %c0_i32_1 = arith.constant 0 : i32
    return %c0_i32, %c0_i32_0 : i32, i32
  }
  func.func @transform_18(%arg0: i32) -> (i32, i32) {
    %c0_i32 = arith.constant 0 : i32
    %c0_i32_0 = arith.constant 0 : i32
    %c0_i32_1 = arith.constant 0 : i32
    return %c0_i32, %c0_i32_0 : i32, i32
  }
  func.func @transform_19(%arg0: i32) -> (i32, i32) {
    %c0_i32 = arith.constant 0 : i32
    %c0_i32_0 = arith.constant 0 : i32
    %c0_i32_1 = arith.constant 0 : i32
    return %c0_i32, %c0_i32_0 : i32, i32
  }
  func.func @transform_20(%arg0: i32) -> (i32, i32) {
    %c0_i32 = arith.constant 0 : i32
    %c0_i32_0 = arith.constant 0 : i32
    %c0_i32_1 = arith.constant 0 : i32
    return %c0_i32, %c0_i32_0 : i32, i32
  }
  func.func @transform_21(%arg0: i32) -> (i32, i32) {
    %c0_i32 = arith.constant 0 : i32
    %c0_i32_0 = arith.constant 0 : i32
    %c0_i32_1 = arith.constant 0 : i32
    return %c0_i32, %c0_i32_0 : i32, i32
  }
  func.func @transform_22(%arg0: i32) -> (i32, i32) {
    %c0_i32 = arith.constant 0 : i32
    %c0_i32_0 = arith.constant 0 : i32
    %c0_i32_1 = arith.constant 0 : i32
    return %c0_i32, %c0_i32_0 : i32, i32
  }
  func.func @transform_23(%arg0: i32) -> (i32, i32) {
    %c0_i32 = arith.constant 0 : i32
    %c0_i32_0 = arith.constant 0 : i32
    %c0_i32_1 = arith.constant 0 : i32
    return %c0_i32, %c0_i32_0 : i32, i32
  }
  func.func @transform_24(%arg0: i32) -> (i32, i32, i32) {
    %c0_i32 = arith.constant 0 : i32
    %c0_i32_0 = arith.constant 0 : i32
    %c0_i32_1 = arith.constant 0 : i32
    return %arg0, %c0_i32, %c0_i32_0 : i32, i32, i32
  }
}

</mosaic_0001>

<llo_original>
// kernel: cptg_dec_forward.3
$region0: #{cptg_dec_forward.3}
  #allocation0 [shape = 'u32[]', space=smem, size = 0x4, offset = 0x4, fixed_abs, tag = 'smem constant byte address 0x4 - core index']
  #allocation1 [shape = 'u32[144,128]{1,0:T(1,128)}', space=vmem, size = 0x12000, scoped, tag = 'internal scratch']
  %s0 = inlined_call_operand.vmem [shape: f32[2,8,32], index: 0, kind: input, shape index: {}]
  %s1 = inlined_call_operand.vmem [shape: f32[1,32], index: 1, kind: input, shape index: {}]
  %s2 = inlined_call_operand.vmem [shape: f32[1,32], index: 2, kind: input, shape index: {}]
  %s3 = inlined_call_operand.vmem [shape: f32[2,8,32], index: 3, kind: output, shape index: {}]
  %s4 = sld [smem:[#allocation0]]
  $region45: #{cptg_dec_forward.3} parent=0
    _
  %s6 = ssub.s32 1, %s4
  %s7 = scalar_select 0, %s6, %s4
  loop: start=0, step=1, limit=4
  $region2: #{cptg_dec_forward.3} parent=0 // loop_pre_header
    _
  $region3: #{cptg_dec_forward.3} parent=0 // loop_header
    %s9 = sphi 0, %s13
    %p10 = scmp.ge.s32.totalorder %s9, 4
    %s19 = sphi 0, %s21
    %s22 = sphi 0, %s19
    %s23 = sphi 0, %s22
    %s39 = sphi 0, %s23
    %s43 = sphi 0, %s43
    %s45 = sphi 0, %s43
    %s46 = sphi 0, %s45
    %s60 = sphi 0, %s46
    %s64 = sphi 0, %s64
    %s66 = sphi 0, %s64
    %s67 = sphi 0, %s66
    %s81 = sphi 0, %s67
    %s87 = sphi 0, %s89
    %s90 = sphi 0, %s87
    %s91 = sphi 0, %s90
    %s107 = sphi 0, %s91
  $region4: #{cptg_dec_forward.3} parent=0 // loop_header_branch
    %12 = sbr.rel (%p10) target = $region8
  $region5: #{cptg_dec_forward.3} parent=0 // loop_body
    %s14 = ssub.s32 %s9, 1
    %s15 = ssub.s32 %s9, 2
    %s16 = sadd.s32 %s9, 1
    %s17 = ssub.s32 %s9, %s16
    %p18 = scmp.eq.s32.totalorder %s17, 0
    %s20 = sadd.s32 %s19, 1
    %s21 = scalar_select %p18, %s19, %s20
    %p24 = pneg %p18
    %p25 = scmp.eq.s32.totalorder %s9, 1
    %p26 = por %p24, %p25
    %p27 = scmp.ne.s32.totalorder %s19, %s22
    %p28 = scmp.eq.s32.totalorder %s9, 0
    %p29 = por %p27, %p28
    %p30 = scmp.ne.s32.totalorder %s19, %s22
    %p31 = scmp.eq.s32.totalorder %s14, 1
    %p32 = por %p30, %p31
    %p33 = scmp.ne.s32.totalorder %s22, %s23
    %p34 = scmp.eq.s32.totalorder %s14, 0
    %p35 = por %p33, %p34
    %p36 = scmp.ne.s32.totalorder %s22, %s23
    %p37 = scmp.eq.s32.totalorder %s15, 1
    %p38 = por %p36, %p37
    %p40 = scmp.ne.s32.totalorder %s23, %s39
    %p41 = scmp.eq.s32.totalorder %s15, 0
    %p42 = por %p40, %p41
    %s44 = sadd.s32 %s43, 1
    %p47 = scmp.eq.s32.totalorder %s9, 1
    %p48 = scmp.ne.s32.totalorder %s43, %s45
    %p49 = scmp.eq.s32.totalorder %s9, 0
    %p50 = por %p48, %p49
    %p51 = scmp.ne.s32.totalorder %s43, %s45
    %p52 = scmp.eq.s32.totalorder %s14, 1
    %p53 = por %p51, %p52
    %p54 = scmp.ne.s32.totalorder %s45, %s46
    %p55 = scmp.eq.s32.totalorder %s14, 0
    %p56 = por %p54, %p55
    %p57 = scmp.ne.s32.totalorder %s45, %s46
    %p58 = scmp.eq.s32.totalorder %s15, 1
    %p59 = por %p57, %p58
    %p61 = scmp.ne.s32.totalorder %s46, %s60
    %p62 = scmp.eq.s32.totalorder %s15, 0
    %p63 = por %p61, %p62
    %s65 = sadd.s32 %s64, 1
    %p68 = scmp.eq.s32.totalorder %s9, 1
    %p69 = scmp.ne.s32.totalorder %s64, %s66
    %p70 = scmp.eq.s32.totalorder %s9, 0
    %p71 = por %p69, %p70
    %p72 = scmp.ne.s32.totalorder %s64, %s66
    %p73 = scmp.eq.s32.totalorder %s14, 1
    %p74 = por %p72, %p73
    %p75 = scmp.ne.s32.totalorder %s66, %s67
    %p76 = scmp.eq.s32.totalorder %s14, 0
    %p77 = por %p75, %p76
    %p78 = scmp.ne.s32.totalorder %s66, %s67
    %p79 = scmp.eq.s32.totalorder %s15, 1
    %p80 = por %p78, %p79
    %p82 = scmp.ne.s32.totalorder %s67, %s81
    %p83 = scmp.eq.s32.totalorder %s15, 0
    %p84 = por %p82, %p83
    %s85 = ssub.s32 %s9, %s16
    %p86 = scmp.eq.s32.totalorder %s85, 0
    %s88 = sadd.s32 %s87, 1
    %s89 = scalar_select %p86, %s87, %s88
    %p92 = pneg %p86
    %p93 = scmp.eq.s32.totalorder %s9, 1
    %p94 = por %p92, %p93
    %p95 = scmp.ne.s32.totalorder %s87, %s90
    %p96 = scmp.eq.s32.totalorder %s9, 0
    %p97 = por %p95, %p96
    %p98 = scmp.ne.s32.totalorder %s87, %s90
    %p99 = scmp.eq.s32.totalorder %s14, 1
    %p100 = por %p98, %p99
    %p101 = scmp.ne.s32.totalorder %s90, %s91
    %p102 = scmp.eq.s32.totalorder %s14, 0
    %p103 = por %p101, %p102
    %p104 = scmp.ne.s32.totalorder %s90, %s91
    %p105 = scmp.eq.s32.totalorder %s15, 1
    %p106 = por %p104, %p105
    %p108 = scmp.ne.s32.totalorder %s91, %s107
    %p109 = scmp.eq.s32.totalorder %s15, 0
    %p110 = por %p108, %p109
    %p111 = scmp.le.s32.totalorder 1, %s9
    %p112 = scmp.lt.s32.totalorder %s9, 3
    %p113 = pnand %p111, %p112
    %p114 = pneg %p113
    // Predicated region
    $region9: #{cptg_dec_forward.3} parent=5 // pred_check
      _
    $region10: #{cptg_dec_forward.3} parent=5 // pred_check_branch
      %116 = sbr.rel (%p113) target = $region12
    $region11: #{cptg_dec_forward.3} parent=5 // pred_region
      %s117 = ssub.s32 %s9, 1
      // Predicated region
      $region13: #{cptg_dec_forward.3} parent=11 // pred_check
        %p118 = pneg %p56
      $region14: #{cptg_dec_forward.3} parent=11 // pred_check_branch
        %120 = sbr.rel (%p118) target = $region16
      $region15: #{cptg_dec_forward.3} parent=11 // pred_region
        _
      $region16: #{cptg_dec_forward.3} parent=11 // pred_fallthru
        _
      // Predicated region
      $region17: #{cptg_dec_forward.3} parent=11 // pred_check
        %p121 = pneg %p77
      $region18: #{cptg_dec_forward.3} parent=11 // pred_check_branch
        %123 = sbr.rel (%p121) target = $region20
      $region19: #{cptg_dec_forward.3} parent=11 // pred_region
        _
      $region20: #{cptg_dec_forward.3} parent=11 // pred_fallthru
        _
    $region12: #{cptg_dec_forward.3} parent=5 // pred_fallthru
      _
    %p124 = scmp.lt.s32.totalorder %s9, 2
    // Predicated region
    $region21: #{cptg_dec_forward.3} parent=5 // pred_check
      %p125 = pneg %p124
    $region22: #{cptg_dec_forward.3} parent=5 // pred_check_branch
      %127 = sbr.rel (%p125) target = $region24
    $region23: #{cptg_dec_forward.3} parent=5 // pred_region
      // Predicated region
      $region25: #{cptg_dec_forward.3} parent=23 // pred_check
        %p128 = pneg %p29
      $region26: #{cptg_dec_forward.3} parent=23 // pred_check_branch
        %130 = sbr.rel (%p128) target = $region28
      $region27: #{cptg_dec_forward.3} parent=23 // pred_region
        %p131 = scmp.lt.s32.totalorder %s9, 1
        %s132 = scalar_select %p131, %s9, 1
        %s133 = smul.addr %s132, 8
        %s134 = scalar_lea.vmem %s0, %s133
      $region28: #{cptg_dec_forward.3} parent=23 // pred_fallthru
        _
    $region24: #{cptg_dec_forward.3} parent=5 // pred_fallthru
      _
    %p135 = scmp.le.s32.totalorder 1, %s9
    %p136 = scmp.lt.s32.totalorder %s9, 3
    %p137 = pnand %p135, %p136
    %p138 = pneg %p137
    // Predicated region
    $region29: #{cptg_dec_forward.3} parent=5 // pred_check
      _
    $region30: #{cptg_dec_forward.3} parent=5 // pred_check_branch
      %140 = sbr.rel (%p137) target = $region32
    $region31: #{cptg_dec_forward.3} parent=5 // pred_region
      %s141 = ssub.s32 %s9, 1
      %p142 = scmp.lt.s32.totalorder %s14, 1
      %s143 = scalar_select %p142, %s14, 1
      %s144 = smul.addr %s143, 8
      %s145 = scalar_lea.vmem %s0, %s144
      %p146 = pneg %p35
      %p147 = pneg %p32
      %p148 = pneg %p56
      %p149 = pneg %p53
      %p150 = pneg %p77
      %p151 = pneg %p74
      %p152 = pneg %p103
      %p153 = pneg %p100
      %p154 = scmp.lt.s32.totalorder %s14, 1
      %s155 = scalar_select %p154, %s14, 1
      %s156 = smul.addr %s155, 8
      %s157 = scalar_lea.vmem %s3, %s156
      %p158 = scmp.lt.s32.totalorder %s14, 1
      %s159 = scalar_select %p158, %s14, 1
      %s160 = smul.addr %s159, 8
      %s161 = scalar_lea.vmem %s0, %s160
      %p162 = scmp.lt.s32.totalorder %s14, 1
      %s163 = scalar_select %p162, %s14, 1
      %s164 = smul.addr %s163, 8
      %s165 = scalar_lea.vmem %s3, %s164
      %v166 = vld [vmem:[%s161] sm:$0xff]
      %vm167 = vcmask 261120
      %v168 = vsel %vm167, %v166, 0.0
      %169 = vadd.xlane.f32.xlu0 %v168
      %v170 = vpop.xlane.xlu0 %169
      %v171 = vrcp.pop 32.0
      %v172 = vmul.f32 %v170, %v171
      %v173 = vsub.f32 %v166, %v172
      %v174 = vmul.f32 %v173, %v173
      %v175 = vsel %vm167, %v174, 0.0
      %176 = vadd.xlane.f32.xlu0 %v175
      %v177 = vpop.xlane.xlu0 %176
      %v178 = vmul.f32 %v177, %v171
      %v179 = vadd.f32 %v178, 1e-05
      %v180 = vrsqrt.pop %v179
      %v181 = vmul.f32 %v173, %v180
      %v182 = vld [vmem:[%s1] sm:$0x1]
      %v184 = vlaneseq
      %v185 = vshrl.u32 %v184, 7
      %v186 = vsub.s32 0, %v185
      %v187 = vrot.slane %v182, %v186
      %v189 = vmul.f32 %v181, %v187
      %v190 = vld [vmem:[%s2] sm:$0x1]
      %v192 = vlaneseq
      %v193 = vshrl.u32 %v192, 7
      %v194 = vsub.s32 0, %v193
      %v195 = vrot.slane %v190, %v194
      %v197 = vadd.f32 %v189, %v195
      %198 = vst.msk [vmem:[%s165] sm:$0xff] %vm167, %v197
      %p199 = scmp.lt.s32.totalorder %s14, 1
      %s200 = scalar_select %p199, %s14, 1
      %s201 = smul.addr %s200, 8
      %s202 = scalar_lea.vmem %s3, %s201
      // Predicated region
      $region33: #{cptg_dec_forward.3} parent=31 // pred_check
        %p203 = pneg %p100
      $region34: #{cptg_dec_forward.3} parent=31 // pred_check_branch
        %205 = sbr.rel (%p203) target = $region36
      $region35: #{cptg_dec_forward.3} parent=31 // pred_region
        _
      $region36: #{cptg_dec_forward.3} parent=31 // pred_fallthru
        _
    $region32: #{cptg_dec_forward.3} parent=5 // pred_fallthru
      _
    %p206 = scmp.le.s32.totalorder 2, %s9
    // Predicated region
    $region37: #{cptg_dec_forward.3} parent=5 // pred_check
      %p207 = pneg %p206
    $region38: #{cptg_dec_forward.3} parent=5 // pred_check_branch
      %209 = sbr.rel (%p207) target = $region40
    $region39: #{cptg_dec_forward.3} parent=5 // pred_region
      %s210 = ssub.s32 %s9, 2
      // Predicated region
      $region41: #{cptg_dec_forward.3} parent=39 // pred_check
        %p211 = pneg %p106
      $region42: #{cptg_dec_forward.3} parent=39 // pred_check_branch
        %213 = sbr.rel (%p211) target = $region44
      $region43: #{cptg_dec_forward.3} parent=39 // pred_region
        %p214 = scmp.lt.s32.totalorder %s15, 1
        %s215 = scalar_select %p214, %s15, 1
        %s216 = smul.addr %s215, 8
        %s217 = scalar_lea.vmem %s3, %s216
      $region44: #{cptg_dec_forward.3} parent=39 // pred_fallthru
        _
    $region40: #{cptg_dec_forward.3} parent=5 // pred_fallthru
      _
  $region6: #{cptg_dec_forward.3} parent=0 // loop_footer
    %s13 = sadd.s32 1, %s9
  $region7: #{cptg_dec_forward.3} parent=0 // loop_footer_branch
    %8 = sbr.rel target = $region3
  $region8: #{cptg_dec_forward.3} parent=0 // loop_exit
    _

// kernel: cptg_dec_forward.5
$region0: #{cptg_dec_forward.5}
  #allocation0 [shape = 'u32[]', space=smem, size = 0x4, offset = 0x4, fixed_abs, tag = 'smem constant byte address 0x4 - core index']
  #allocation1 [shape = 'u32[144,128]{1,0:T(1,128)}', space=vmem, size = 0x12000, scoped, tag = 'internal scratch']
  %s0 = inlined_call_operand.vmem [shape: f32[2,8,32], index: 0, kind: input, shape index: {}]
  %s1 = inlined_call_operand.vmem [shape: f32[2,8,32], index: 1, kind: input, shape index: {}]
  %s2 = inlined_call_operand.vmem [shape: f32[2,1,8], index: 2, kind: input, shape index: {}]
  %s3 = inlined_call_operand.vmem [shape: f32[2,1,8], index: 3, kind: input, shape index: {}]
  %s4 = inlined_call_operand.vmem [shape: bf16[32,96], index: 4, kind: input, shape index: {}]
  %s5 = inlined_call_operand.vmem [shape: f32[1,96], index: 5, kind: input, shape index: {}]
  %s6 = inlined_call_operand.vmem [shape: bf16[32,32], index: 6, kind: input, shape index: {}]
  %s7 = inlined_call_operand.vmem [shape: f32[1,32], index: 7, kind: input, shape index: {}, may-alias: {7,9,11,15,17,21,23}]
  %s8 = inlined_call_operand.vmem [shape: f32[1,32], index: 8, kind: input, shape index: {}, may-alias: {8,16,22}]
  %s9 = inlined_call_operand.vmem [shape: f32[1,32], index: 9, kind: input, shape index: {}, may-alias: {7,9,11,15,17,21,23}]
  %s10 = inlined_call_operand.vmem [shape: bf16[32,32], index: 10, kind: input, shape index: {}]
  %s11 = inlined_call_operand.vmem [shape: f32[1,32], index: 11, kind: input, shape index: {}, may-alias: {7,9,11,15,17,21,23}]
  %s12 = inlined_call_operand.vmem [shape: bf16[32,64], index: 12, kind: input, shape index: {}]
  %s13 = inlined_call_operand.vmem [shape: f32[1,64], index: 13, kind: input, shape index: {}, may-alias: {13,19}]
  %s14 = inlined_call_operand.vmem [shape: bf16[32,32], index: 14, kind: input, shape index: {}]
  %s15 = inlined_call_operand.vmem [shape: f32[1,32], index: 15, kind: input, shape index: {}, may-alias: {7,9,11,15,17,21,23}]
  %s16 = inlined_call_operand.vmem [shape: f32[1,32], index: 16, kind: input, shape index: {}, may-alias: {8,16,22}]
  %s17 = inlined_call_operand.vmem [shape: f32[1,32], index: 17, kind: input, shape index: {}, may-alias: {7,9,11,15,17,21,23}]
  %s18 = inlined_call_operand.vmem [shape: bf16[32,64], index: 18, kind: input, shape index: {}]
  %s19 = inlined_call_operand.vmem [shape: f32[1,64], index: 19, kind: input, shape index: {}, may-alias: {13,19}]
  %s20 = inlined_call_operand.vmem [shape: bf16[64,32], index: 20, kind: input, shape index: {}]
  %s21 = inlined_call_operand.vmem [shape: f32[1,32], index: 21, kind: input, shape index: {}, may-alias: {7,9,11,15,17,21,23}]
  %s22 = inlined_call_operand.vmem [shape: f32[1,32], index: 22, kind: input, shape index: {}, may-alias: {8,16,22}]
  %s23 = inlined_call_operand.vmem [shape: f32[1,32], index: 23, kind: input, shape index: {}, may-alias: {7,9,11,15,17,21,23}]
  %s24 = inlined_call_operand.hbm [shape: f32[2,8,32], index: 24, kind: output, shape index: {}]
  %s25 = sld [smem:[#allocation0]]
  $region129: #{cptg_dec_forward.5} parent=0
    _
  %s27 = ssub.s32 1, %s25
  %s28 = scalar_select 0, %s27, %s25
  $region1: #{cptg_dec_forward.5} parent=0
    #allocation2 [shape = 'u8[8192]{0}', space=vmem, size = 0x2000, scoped, tag = 'output window, operand 0']
    #allocation3 [shape = 's32[2]{0}', space=sflag, size = 0x8, scoped, tag = 'scoped memory for cptg_dec_forward.5']
    %29 = vsyncpa [#allocation3], 0
    %s30 = scalar_lea.sflag [#allocation3], 1
    %31 = vsyncpa %s30, 0
    loop: start=0, step=1, limit=4
    $region2: #{cptg_dec_forward.5} parent=1 // loop_pre_header
      _
    $region3: #{cptg_dec_forward.5} parent=1 // loop_header
      %s33 = sphi 0, %s37
      %p34 = scmp.ge.s32.totalorder %s33, 4
      %s43 = sphi 0, %s45
      %s46 = sphi 0, %s43
      %s47 = sphi 0, %s46
      %s63 = sphi 0, %s47
      %s69 = sphi 0, %s71
      %s72 = sphi 0, %s69
      %s73 = sphi 0, %s72
      %s89 = sphi 0, %s73
      %s95 = sphi 0, %s97
      %s98 = sphi 0, %s95
      %s99 = sphi 0, %s98
      %s115 = sphi 0, %s99
      %s121 = sphi 0, %s123
      %s124 = sphi 0, %s121
      %s125 = sphi 0, %s124
      %s141 = sphi 0, %s125
      %s145 = sphi 0, %s145
      %s147 = sphi 0, %s145
      %s148 = sphi 0, %s147
      %s162 = sphi 0, %s148
      %s166 = sphi 0, %s166
      %s168 = sphi 0, %s166
      %s169 = sphi 0, %s168
      %s183 = sphi 0, %s169
      %s187 = sphi 0, %s187
      %s189 = sphi 0, %s187
      %s190 = sphi 0, %s189
      %s204 = sphi 0, %s190
      %s208 = sphi 0, %s208
      %s210 = sphi 0, %s208
      %s211 = sphi 0, %s210
      %s225 = sphi 0, %s211
      %s229 = sphi 0, %s229
      %s231 = sphi 0, %s229
      %s232 = sphi 0, %s231
      %s246 = sphi 0, %s232
      %s250 = sphi 0, %s250
      %s252 = sphi 0, %s250
      %s253 = sphi 0, %s252
      %s267 = sphi 0, %s253
      %s271 = sphi 0, %s271
      %s273 = sphi 0, %s271
      %s274 = sphi 0, %s273
      %s288 = sphi 0, %s274
      %s292 = sphi 0, %s292
      %s294 = sphi 0, %s292
      %s295 = sphi 0, %s294
      %s309 = sphi 0, %s295
      %s313 = sphi 0, %s313
      %s315 = sphi 0, %s313
      %s316 = sphi 0, %s315
      %s330 = sphi 0, %s316
      %s334 = sphi 0, %s334
      %s336 = sphi 0, %s334
      %s337 = sphi 0, %s336
      %s351 = sphi 0, %s337
      %s355 = sphi 0, %s355
      %s357 = sphi 0, %s355
      %s358 = sphi 0, %s357
      %s372 = sphi 0, %s358
      %s376 = sphi 0, %s376
      %s378 = sphi 0, %s376
      %s379 = sphi 0, %s378
      %s393 = sphi 0, %s379
      %s397 = sphi 0, %s397
      %s399 = sphi 0, %s397
      %s400 = sphi 0, %s399
      %s414 = sphi 0, %s400
      %s418 = sphi 0, %s418
      %s420 = sphi 0, %s418
      %s421 = sphi 0, %s420
      %s435 = sphi 0, %s421
      %s439 = sphi 0, %s439
      %s441 = sphi 0, %s439
      %s442 = sphi 0, %s441
      %s456 = sphi 0, %s442
      %s460 = sphi 0, %s460
      %s462 = sphi 0, %s460
      %s463 = sphi 0, %s462
      %s477 = sphi 0, %s463
      %s481 = sphi 0, %s481
      %s483 = sphi 0, %s481
      %s484 = sphi 0, %s483
      %s498 = sphi 0, %s484
      %s502 = sphi 0, %s502
      %s504 = sphi 0, %s502
      %s505 = sphi 0, %s504
      %s519 = sphi 0, %s505
      %s523 = sphi 0, %s523
      %s525 = sphi 0, %s523
      %s526 = sphi 0, %s525
      %s540 = sphi 0, %s526
      %s544 = sphi 0, %s544
      %s546 = sphi 0, %s544
      %s547 = sphi 0, %s546
      %s561 = sphi 0, %s547
      %s567 = sphi 0, %s569
      %s570 = sphi 0, %s567
      %s571 = sphi 0, %s570
      %s587 = sphi 0, %s571
    $region4: #{cptg_dec_forward.5} parent=1 // loop_header_branch
      %36 = sbr.rel (%p34) target = $region8
    $region5: #{cptg_dec_forward.5} parent=1 // loop_body
      %s38 = ssub.s32 %s33, 1
      %s39 = ssub.s32 %s33, 2
      %s40 = sadd.s32 %s33, 1
      %s41 = ssub.s32 %s33, %s40
      %p42 = scmp.eq.s32.totalorder %s41, 0
      %s44 = sadd.s32 %s43, 1
      %s45 = scalar_select %p42, %s43, %s44
      %p48 = pneg %p42
      %p49 = scmp.eq.s32.totalorder %s33, 1
      %p50 = por %p48, %p49
      %p51 = scmp.ne.s32.totalorder %s43, %s46
      %p52 = scmp.eq.s32.totalorder %s33, 0
      %p53 = por %p51, %p52
      %p54 = scmp.ne.s32.totalorder %s43, %s46
      %p55 = scmp.eq.s32.totalorder %s38, 1
      %p56 = por %p54, %p55
      %p57 = scmp.ne.s32.totalorder %s46, %s47
      %p58 = scmp.eq.s32.totalorder %s38, 0
      %p59 = por %p57, %p58
      %p60 = scmp.ne.s32.totalorder %s46, %s47
      %p61 = scmp.eq.s32.totalorder %s39, 1
      %p62 = por %p60, %p61
      %p64 = scmp.ne.s32.totalorder %s47, %s63
      %p65 = scmp.eq.s32.totalorder %s39, 0
      %p66 = por %p64, %p65
      %s67 = ssub.s32 %s33, %s40
      %p68 = scmp.eq.s32.totalorder %s67, 0
      %s70 = sadd.s32 %s69, 1
      %s71 = scalar_select %p68, %s69, %s70
      %p74 = pneg %p68
      %p75 = scmp.eq.s32.totalorder %s33, 1
      %p76 = por %p74, %p75
      %p77 = scmp.ne.s32.totalorder %s69, %s72
      %p78 = scmp.eq.s32.totalorder %s33, 0
      %p79 = por %p77, %p78
      %p80 = scmp.ne.s32.totalorder %s69, %s72
      %p81 = scmp.eq.s32.totalorder %s38, 1
      %p82 = por %p80, %p81
      %p83 = scmp.ne.s32.totalorder %s72, %s73
      %p84 = scmp.eq.s32.totalorder %s38, 0
      %p85 = por %p83, %p84
      %p86 = scmp.ne.s32.totalorder %s72, %s73
      %p87 = scmp.eq.s32.totalorder %s39, 1
      %p88 = por %p86, %p87
      %p90 = scmp.ne.s32.totalorder %s73, %s89
      %p91 = scmp.eq.s32.totalorder %s39, 0
      %p92 = por %p90, %p91
      %s93 = ssub.s32 %s33, %s40
      %p94 = scmp.eq.s32.totalorder %s93, 0
      %s96 = sadd.s32 %s95, 1
      %s97 = scalar_select %p94, %s95, %s96
      %p100 = pneg %p94
      %p101 = scmp.eq.s32.totalorder %s33, 1
      %p102 = por %p100, %p101
      %p103 = scmp.ne.s32.totalorder %s95, %s98
      %p104 = scmp.eq.s32.totalorder %s33, 0
      %p105 = por %p103, %p104
      %p106 = scmp.ne.s32.totalorder %s95, %s98
      %p107 = scmp.eq.s32.totalorder %s38, 1
      %p108 = por %p106, %p107
      %p109 = scmp.ne.s32.totalorder %s98, %s99
      %p110 = scmp.eq.s32.totalorder %s38, 0
      %p111 = por %p109, %p110
      %p112 = scmp.ne.s32.totalorder %s98, %s99
      %p113 = scmp.eq.s32.totalorder %s39, 1
      %p114 = por %p112, %p113
      %p116 = scmp.ne.s32.totalorder %s99, %s115
      %p117 = scmp.eq.s32.totalorder %s39, 0
      %p118 = por %p116, %p117
      %s119 = ssub.s32 %s33, %s40
      %p120 = scmp.eq.s32.totalorder %s119, 0
      %s122 = sadd.s32 %s121, 1
      %s123 = scalar_select %p120, %s121, %s122
      %p126 = pneg %p120
      %p127 = scmp.eq.s32.totalorder %s33, 1
      %p128 = por %p126, %p127
      %p129 = scmp.ne.s32.totalorder %s121, %s124
      %p130 = scmp.eq.s32.totalorder %s33, 0
      %p131 = por %p129, %p130
      %p132 = scmp.ne.s32.totalorder %s121, %s124
      %p133 = scmp.eq.s32.totalorder %s38, 1
      %p134 = por %p132, %p133
      %p135 = scmp.ne.s32.totalorder %s124, %s125
      %p136 = scmp.eq.s32.totalorder %s38, 0
      %p137 = por %p135, %p136
      %p138 = scmp.ne.s32.totalorder %s124, %s125
      %p139 = scmp.eq.s32.totalorder %s39, 1
      %p140 = por %p138, %p139
      %p142 = scmp.ne.s32.totalorder %s125, %s141
      %p143 = scmp.eq.s32.totalorder %s39, 0
      %p144 = por %p142, %p143
      %s146 = sadd.s32 %s145, 1
      %p149 = scmp.eq.s32.totalorder %s33, 1
      %p150 = scmp.ne.s32.totalorder %s145, %s147
      %p151 = scmp.eq.s32.totalorder %s33, 0
      %p152 = por %p150, %p151
      %p153 = scmp.ne.s32.totalorder %s145, %s147
      %p154 = scmp.eq.s32.totalorder %s38, 1
      %p155 = por %p153, %p154
      %p156 = scmp.ne.s32.totalorder %s147, %s148
      %p157 = scmp.eq.s32.totalorder %s38, 0
      %p158 = por %p156, %p157
      %p159 = scmp.ne.s32.totalorder %s147, %s148
      %p160 = scmp.eq.s32.totalorder %s39, 1
      %p161 = por %p159, %p160
      %p163 = scmp.ne.s32.totalorder %s148, %s162
      %p164 = scmp.eq.s32.totalorder %s39, 0
      %p165 = por %p163, %p164
      %s167 = sadd.s32 %s166, 1
      %p170 = scmp.eq.s32.totalorder %s33, 1
      %p171 = scmp.ne.s32.totalorder %s166, %s168
      %p172 = scmp.eq.s32.totalorder %s33, 0
      %p173 = por %p171, %p172
      %p174 = scmp.ne.s32.totalorder %s166, %s168
      %p175 = scmp.eq.s32.totalorder %s38, 1
      %p176 = por %p174, %p175
      %p177 = scmp.ne.s32.totalorder %s168, %s169
      %p178 = scmp.eq.s32.totalorder %s38, 0
      %p179 = por %p177, %p178
      %p180 = scmp.ne.s32.totalorder %s168, %s169
      %p181 = scmp.eq.s32.totalorder %s39, 1
      %p182 = por %p180, %p181
      %p184 = scmp.ne.s32.totalorder %s169, %s183
      %p185 = scmp.eq.s32.totalorder %s39, 0
      %p186 = por %p184, %p185
      %s188 = sadd.s32 %s187, 1
      %p191 = scmp.eq.s32.totalorder %s33, 1
      %p192 = scmp.ne.s32.totalorder %s187, %s189
      %p193 = scmp.eq.s32.totalorder %s33, 0
      %p194 = por %p192, %p193
      %p195 = scmp.ne.s32.totalorder %s187, %s189
      %p196 = scmp.eq.s32.totalorder %s38, 1
      %p197 = por %p195, %p196
      %p198 = scmp.ne.s32.totalorder %s189, %s190
      %p199 = scmp.eq.s32.totalorder %s38, 0
      %p200 = por %p198, %p199
      %p201 = scmp.ne.s32.totalorder %s189, %s190
      %p202 = scmp.eq.s32.totalorder %s39, 1
      %p203 = por %p201, %p202
      %p205 = scmp.ne.s32.totalorder %s190, %s204
      %p206 = scmp.eq.s32.totalorder %s39, 0
      %p207 = por %p205, %p206
      %s209 = sadd.s32 %s208, 1
      %p212 = scmp.eq.s32.totalorder %s33, 1
      %p213 = scmp.ne.s32.totalorder %s208, %s210
      %p214 = scmp.eq.s32.totalorder %s33, 0
      %p215 = por %p213, %p214
      %p216 = scmp.ne.s32.totalorder %s208, %s210
      %p217 = scmp.eq.s32.totalorder %s38, 1
      %p218 = por %p216, %p217
      %p219 = scmp.ne.s32.totalorder %s210, %s211
      %p220 = scmp.eq.s32.totalorder %s38, 0
      %p221 = por %p219, %p220
      %p222 = scmp.ne.s32.totalorder %s210, %s211
      %p223 = scmp.eq.s32.totalorder %s39, 1
      %p224 = por %p222, %p223
      %p226 = scmp.ne.s32.totalorder %s211, %s225
      %p227 = scmp.eq.s32.totalorder %s39, 0
      %p228 = por %p226, %p227
      %s230 = sadd.s32 %s229, 1
      %p233 = scmp.eq.s32.totalorder %s33, 1
      %p234 = scmp.ne.s32.totalorder %s229, %s231
      %p235 = scmp.eq.s32.totalorder %s33, 0
      %p236 = por %p234, %p235
      %p237 = scmp.ne.s32.totalorder %s229, %s231
      %p238 = scmp.eq.s32.totalorder %s38, 1
      %p239 = por %p237, %p238
      %p240 = scmp.ne.s32.totalorder %s231, %s232
      %p241 = scmp.eq.s32.totalorder %s38, 0
      %p242 = por %p240, %p241
      %p243 = scmp.ne.s32.totalorder %s231, %s232
      %p244 = scmp.eq.s32.totalorder %s39, 1
      %p245 = por %p243, %p244
      %p247 = scmp.ne.s32.totalorder %s232, %s246
      %p248 = scmp.eq.s32.totalorder %s39, 0
      %p249 = por %p247, %p248
      %s251 = sadd.s32 %s250, 1
      %p254 = scmp.eq.s32.totalorder %s33, 1
      %p255 = scmp.ne.s32.totalorder %s250, %s252
      %p256 = scmp.eq.s32.totalorder %s33, 0
      %p257 = por %p255, %p256
      %p258 = scmp.ne.s32.totalorder %s250, %s252
      %p259 = scmp.eq.s32.totalorder %s38, 1
      %p260 = por %p258, %p259
      %p261 = scmp.ne.s32.totalorder %s252, %s253
      %p262 = scmp.eq.s32.totalorder %s38, 0
      %p263 = por %p261, %p262
      %p264 = scmp.ne.s32.totalorder %s252, %s253
      %p265 = scmp.eq.s32.totalorder %s39, 1
      %p266 = por %p264, %p265
      %p268 = scmp.ne.s32.totalorder %s253, %s267
      %p269 = scmp.eq.s32.totalorder %s39, 0
      %p270 = por %p268, %p269
      %s272 = sadd.s32 %s271, 1
      %p275 = scmp.eq.s32.totalorder %s33, 1
      %p276 = scmp.ne.s32.totalorder %s271, %s273
      %p277 = scmp.eq.s32.totalorder %s33, 0
      %p278 = por %p276, %p277
      %p279 = scmp.ne.s32.totalorder %s271, %s273
      %p280 = scmp.eq.s32.totalorder %s38, 1
      %p281 = por %p279, %p280
      %p282 = scmp.ne.s32.totalorder %s273, %s274
      %p283 = scmp.eq.s32.totalorder %s38, 0
      %p284 = por %p282, %p283
      %p285 = scmp.ne.s32.totalorder %s273, %s274
      %p286 = scmp.eq.s32.totalorder %s39, 1
      %p287 = por %p285, %p286
      %p289 = scmp.ne.s32.totalorder %s274, %s288
      %p290 = scmp.eq.s32.totalorder %s39, 0
      %p291 = por %p289, %p290
      %s293 = sadd.s32 %s292, 1
      %p296 = scmp.eq.s32.totalorder %s33, 1
      %p297 = scmp.ne.s32.totalorder %s292, %s294
      %p298 = scmp.eq.s32.totalorder %s33, 0
      %p299 = por %p297, %p298
      %p300 = scmp.ne.s32.totalorder %s292, %s294
      %p301 = scmp.eq.s32.totalorder %s38, 1
      %p302 = por %p300, %p301
      %p303 = scmp.ne.s32.totalorder %s294, %s295
      %p304 = scmp.eq.s32.totalorder %s38, 0
      %p305 = por %p303, %p304
      %p306 = scmp.ne.s32.totalorder %s294, %s295
      %p307 = scmp.eq.s32.totalorder %s39, 1
      %p308 = por %p306, %p307
      %p310 = scmp.ne.s32.totalorder %s295, %s309
      %p311 = scmp.eq.s32.totalorder %s39, 0
      %p312 = por %p310, %p311
      %s314 = sadd.s32 %s313, 1
      %p317 = scmp.eq.s32.totalorder %s33, 1
      %p318 = scmp.ne.s32.totalorder %s313, %s315
      %p319 = scmp.eq.s32.totalorder %s33, 0
      %p320 = por %p318, %p319
      %p321 = scmp.ne.s32.totalorder %s313, %s315
      %p322 = scmp.eq.s32.totalorder %s38, 1
      %p323 = por %p321, %p322
      %p324 = scmp.ne.s32.totalorder %s315, %s316
      %p325 = scmp.eq.s32.totalorder %s38, 0
      %p326 = por %p324, %p325
      %p327 = scmp.ne.s32.totalorder %s315, %s316
      %p328 = scmp.eq.s32.totalorder %s39, 1
      %p329 = por %p327, %p328
      %p331 = scmp.ne.s32.totalorder %s316, %s330
      %p332 = scmp.eq.s32.totalorder %s39, 0
      %p333 = por %p331, %p332
      %s335 = sadd.s32 %s334, 1
      %p338 = scmp.eq.s32.totalorder %s33, 1
      %p339 = scmp.ne.s32.totalorder %s334, %s336
      %p340 = scmp.eq.s32.totalorder %s33, 0
      %p341 = por %p339, %p340
      %p342 = scmp.ne.s32.totalorder %s334, %s336
      %p343 = scmp.eq.s32.totalorder %s38, 1
      %p344 = por %p342, %p343
      %p345 = scmp.ne.s32.totalorder %s336, %s337
      %p346 = scmp.eq.s32.totalorder %s38, 0
      %p347 = por %p345, %p346
      %p348 = scmp.ne.s32.totalorder %s336, %s337
      %p349 = scmp.eq.s32.totalorder %s39, 1
      %p350 = por %p348, %p349
      %p352 = scmp.ne.s32.totalorder %s337, %s351
      %p353 = scmp.eq.s32.totalorder %s39, 0
      %p354 = por %p352, %p353
      %s356 = sadd.s32 %s355, 1
      %p359 = scmp.eq.s32.totalorder %s33, 1
      %p360 = scmp.ne.s32.totalorder %s355, %s357
      %p361 = scmp.eq.s32.totalorder %s33, 0
      %p362 = por %p360, %p361
      %p363 = scmp.ne.s32.totalorder %s355, %s357
      %p364 = scmp.eq.s32.totalorder %s38, 1
      %p365 = por %p363, %p364
      %p366 = scmp.ne.s32.totalorder %s357, %s358
      %p367 = scmp.eq.s32.totalorder %s38, 0
      %p368 = por %p366, %p367
      %p369 = scmp.ne.s32.totalorder %s357, %s358
      %p370 = scmp.eq.s32.totalorder %s39, 1
      %p371 = por %p369, %p370
      %p373 = scmp.ne.s32.totalorder %s358, %s372
      %p374 = scmp.eq.s32.totalorder %s39, 0
      %p375 = por %p373, %p374
      %s377 = sadd.s32 %s376, 1
      %p380 = scmp.eq.s32.totalorder %s33, 1
      %p381 = scmp.ne.s32.totalorder %s376, %s378
      %p382 = scmp.eq.s32.totalorder %s33, 0
      %p383 = por %p381, %p382
      %p384 = scmp.ne.s32.totalorder %s376, %s378
      %p385 = scmp.eq.s32.totalorder %s38, 1
      %p386 = por %p384, %p385
      %p387 = scmp.ne.s32.totalorder %s378, %s379
      %p388 = scmp.eq.s32.totalorder %s38, 0
      %p389 = por %p387, %p388
      %p390 = scmp.ne.s32.totalorder %s378, %s379
      %p391 = scmp.eq.s32.totalorder %s39, 1
      %p392 = por %p390, %p391
      %p394 = scmp.ne.s32.totalorder %s379, %s393
      %p395 = scmp.eq.s32.totalorder %s39, 0
      %p396 = por %p394, %p395
      %s398 = sadd.s32 %s397, 1
      %p401 = scmp.eq.s32.totalorder %s33, 1
      %p402 = scmp.ne.s32.totalorder %s397, %s399
      %p403 = scmp.eq.s32.totalorder %s33, 0
      %p404 = por %p402, %p403
      %p405 = scmp.ne.s32.totalorder %s397, %s399
      %p406 = scmp.eq.s32.totalorder %s38, 1
      %p407 = por %p405, %p406
      %p408 = scmp.ne.s32.totalorder %s399, %s400
      %p409 = scmp.eq.s32.totalorder %s38, 0
      %p410 = por %p408, %p409
      %p411 = scmp.ne.s32.totalorder %s399, %s400
      %p412 = scmp.eq.s32.totalorder %s39, 1
      %p413 = por %p411, %p412
      %p415 = scmp.ne.s32.totalorder %s400, %s414
      %p416 = scmp.eq.s32.totalorder %s39, 0
      %p417 = por %p415, %p416
      %s419 = sadd.s32 %s418, 1
      %p422 = scmp.eq.s32.totalorder %s33, 1
      %p423 = scmp.ne.s32.totalorder %s418, %s420
      %p424 = scmp.eq.s32.totalorder %s33, 0
      %p425 = por %p423, %p424
      %p426 = scmp.ne.s32.totalorder %s418, %s420
      %p427 = scmp.eq.s32.totalorder %s38, 1
      %p428 = por %p426, %p427
      %p429 = scmp.ne.s32.totalorder %s420, %s421
      %p430 = scmp.eq.s32.totalorder %s38, 0
      %p431 = por %p429, %p430
      %p432 = scmp.ne.s32.totalorder %s420, %s421
      %p433 = scmp.eq.s32.totalorder %s39, 1
      %p434 = por %p432, %p433
      %p436 = scmp.ne.s32.totalorder %s421, %s435
      %p437 = scmp.eq.s32.totalorder %s39, 0
      %p438 = por %p436, %p437
      %s440 = sadd.s32 %s439, 1
      %p443 = scmp.eq.s32.totalorder %s33, 1
      %p444 = scmp.ne.s32.totalorder %s439, %s441
      %p445 = scmp.eq.s32.totalorder %s33, 0
      %p446 = por %p444, %p445
      %p447 = scmp.ne.s32.totalorder %s439, %s441
      %p448 = scmp.eq.s32.totalorder %s38, 1
      %p449 = por %p447, %p448
      %p450 = scmp.ne.s32.totalorder %s441, %s442
      %p451 = scmp.eq.s32.totalorder %s38, 0
      %p452 = por %p450, %p451
      %p453 = scmp.ne.s32.totalorder %s441, %s442
      %p454 = scmp.eq.s32.totalorder %s39, 1
      %p455 = por %p453, %p454
      %p457 = scmp.ne.s32.totalorder %s442, %s456
      %p458 = scmp.eq.s32.totalorder %s39, 0
      %p459 = por %p457, %p458
      %s461 = sadd.s32 %s460, 1
      %p464 = scmp.eq.s32.totalorder %s33, 1
      %p465 = scmp.ne.s32.totalorder %s460, %s462
      %p466 = scmp.eq.s32.totalorder %s33, 0
      %p467 = por %p465, %p466
      %p468 = scmp.ne.s32.totalorder %s460, %s462
      %p469 = scmp.eq.s32.totalorder %s38, 1
      %p470 = por %p468, %p469
      %p471 = scmp.ne.s32.totalorder %s462, %s463
      %p472 = scmp.eq.s32.totalorder %s38, 0
      %p473 = por %p471, %p472
      %p474 = scmp.ne.s32.totalorder %s462, %s463
      %p475 = scmp.eq.s32.totalorder %s39, 1
      %p476 = por %p474, %p475
      %p478 = scmp.ne.s32.totalorder %s463, %s477
      %p479 = scmp.eq.s32.totalorder %s39, 0
      %p480 = por %p478, %p479
      %s482 = sadd.s32 %s481, 1
      %p485 = scmp.eq.s32.totalorder %s33, 1
      %p486 = scmp.ne.s32.totalorder %s481, %s483
      %p487 = scmp.eq.s32.totalorder %s33, 0
      %p488 = por %p486, %p487
      %p489 = scmp.ne.s32.totalorder %s481, %s483
      %p490 = scmp.eq.s32.totalorder %s38, 1
      %p491 = por %p489, %p490
      %p492 = scmp.ne.s32.totalorder %s483, %s484
      %p493 = scmp.eq.s32.totalorder %s38, 0
      %p494 = por %p492, %p493
      %p495 = scmp.ne.s32.totalorder %s483, %s484
      %p496 = scmp.eq.s32.totalorder %s39, 1
      %p497 = por %p495, %p496
      %p499 = scmp.ne.s32.totalorder %s484, %s498
      %p500 = scmp.eq.s32.totalorder %s39, 0
      %p501 = por %p499, %p500
      %s503 = sadd.s32 %s502, 1
      %p506 = scmp.eq.s32.totalorder %s33, 1
      %p507 = scmp.ne.s32.totalorder %s502, %s504
      %p508 = scmp.eq.s32.totalorder %s33, 0
      %p509 = por %p507, %p508
      %p510 = scmp.ne.s32.totalorder %s502, %s504
      %p511 = scmp.eq.s32.totalorder %s38, 1
      %p512 = por %p510, %p511
      %p513 = scmp.ne.s32.totalorder %s504, %s505
      %p514 = scmp.eq.s32.totalorder %s38, 0
      %p515 = por %p513, %p514
      %p516 = scmp.ne.s32.totalorder %s504, %s505
      %p517 = scmp.eq.s32.totalorder %s39, 1
      %p518 = por %p516, %p517
      %p520 = scmp.ne.s32.totalorder %s505, %s519
      %p521 = scmp.eq.s32.totalorder %s39, 0
      %p522 = por %p520, %p521
      %s524 = sadd.s32 %s523, 1
      %p527 = scmp.eq.s32.totalorder %s33, 1
      %p528 = scmp.ne.s32.totalorder %s523, %s525
      %p529 = scmp.eq.s32.totalorder %s33, 0
      %p530 = por %p528, %p529
      %p531 = scmp.ne.s32.totalorder %s523, %s525
      %p532 = scmp.eq.s32.totalorder %s38, 1
      %p533 = por %p531, %p532
      %p534 = scmp.ne.s32.totalorder %s525, %s526
      %p535 = scmp.eq.s32.totalorder %s38, 0
      %p536 = por %p534, %p535
      %p537 = scmp.ne.s32.totalorder %s525, %s526
      %p538 = scmp.eq.s32.totalorder %s39, 1
      %p539 = por %p537, %p538
      %p541 = scmp.ne.s32.totalorder %s526, %s540
      %p542 = scmp.eq.s32.totalorder %s39, 0
      %p543 = por %p541, %p542
      %s545 = sadd.s32 %s544, 1
      %p548 = scmp.eq.s32.totalorder %s33, 1
      %p549 = scmp.ne.s32.totalorder %s544, %s546
      %p550 = scmp.eq.s32.totalorder %s33, 0
      %p551 = por %p549, %p550
      %p552 = scmp.ne.s32.totalorder %s544, %s546
      %p553 = scmp.eq.s32.totalorder %s38, 1
      %p554 = por %p552, %p553
      %p555 = scmp.ne.s32.totalorder %s546, %s547
      %p556 = scmp.eq.s32.totalorder %s38, 0
      %p557 = por %p555, %p556
      %p558 = scmp.ne.s32.totalorder %s546, %s547
      %p559 = scmp.eq.s32.totalorder %s39, 1
      %p560 = por %p558, %p559
      %p562 = scmp.ne.s32.totalorder %s547, %s561
      %p563 = scmp.eq.s32.totalorder %s39, 0
      %p564 = por %p562, %p563
      %s565 = ssub.s32 %s33, %s40
      %p566 = scmp.eq.s32.totalorder %s565, 0
      %s568 = sadd.s32 %s567, 1
      %s569 = scalar_select %p566, %s567, %s568
      %p572 = pneg %p566
      %p573 = scmp.eq.s32.totalorder %s33, 1
      %p574 = por %p572, %p573
      %p575 = scmp.ne.s32.totalorder %s567, %s570
      %p576 = scmp.eq.s32.totalorder %s33, 0
      %p577 = por %p575, %p576
      %p578 = scmp.ne.s32.totalorder %s567, %s570
      %p579 = scmp.eq.s32.totalorder %s38, 1
      %p580 = por %p578, %p579
      %p581 = scmp.ne.s32.totalorder %s570, %s571
      %p582 = scmp.eq.s32.totalorder %s38, 0
      %p583 = por %p581, %p582
      %p584 = scmp.ne.s32.totalorder %s570, %s571
      %p585 = scmp.eq.s32.totalorder %s39, 1
      %p586 = por %p584, %p585
      %p588 = scmp.ne.s32.totalorder %s571, %s587
      %p589 = scmp.eq.s32.totalorder %s39, 0
      %p590 = por %p588, %p589
      %p591 = scmp.le.s32.totalorder 1, %s33
      %p592 = scmp.lt.s32.totalorder %s33, 3
      %p593 = pnand %p591, %p592
      %p594 = pneg %p593
      // Predicated region
      $region9: #{cptg_dec_forward.5} parent=5 // pred_check
        _
      $region10: #{cptg_dec_forward.5} parent=5 // pred_check_branch
        %596 = sbr.rel (%p593) target = $region12
      $region11: #{cptg_dec_forward.5} parent=5 // pred_region
        %s597 = ssub.s32 %s33, 1
        // Predicated region
        $region13: #{cptg_dec_forward.5} parent=11 // pred_check
          %p598 = pneg %p158
        $region14: #{cptg_dec_forward.5} parent=11 // pred_check_branch
          %600 = sbr.rel (%p598) target = $region16
        $region15: #{cptg_dec_forward.5} parent=11 // pred_region
          _
        $region16: #{cptg_dec_forward.5} parent=11 // pred_fallthru
          _
        // Predicated region
        $region17: #{cptg_dec_forward.5} parent=11 // pred_check
          %p601 = pneg %p179
        $region18: #{cptg_dec_forward.5} parent=11 // pred_check_branch
          %603 = sbr.rel (%p601) target = $region20
        $region19: #{cptg_dec_forward.5} parent=11 // pred_region
          _
        $region20: #{cptg_dec_forward.5} parent=11 // pred_fallthru
          _
        // Predicated region
        $region21: #{cptg_dec_forward.5} parent=11 // pred_check
          %p604 = pneg %p200
        $region22: #{cptg_dec_forward.5} parent=11 // pred_check_branch
          %606 = sbr.rel (%p604) target = $region24
        $region23: #{cptg_dec_forward.5} parent=11 // pred_region
          _
        $region24: #{cptg_dec_forward.5} parent=11 // pred_fallthru
          _
        // Predicated region
        $region25: #{cptg_dec_forward.5} parent=11 // pred_check
          %p607 = pneg %p221
        $region26: #{cptg_dec_forward.5} parent=11 // pred_check_branch
          %609 = sbr.rel (%p607) target = $region28
        $region27: #{cptg_dec_forward.5} parent=11 // pred_region
          _
        $region28: #{cptg_dec_forward.5} parent=11 // pred_fallthru
          _
        // Predicated region
        $region29: #{cptg_dec_forward.5} parent=11 // pred_check
          %p610 = pneg %p242
        $region30: #{cptg_dec_forward.5} parent=11 // pred_check_branch
          %612 = sbr.rel (%p610) target = $region32
        $region31: #{cptg_dec_forward.5} parent=11 // pred_region
          _
        $region32: #{cptg_dec_forward.5} parent=11 // pred_fallthru
          _
        // Predicated region
        $region33: #{cptg_dec_forward.5} parent=11 // pred_check
          %p613 = pneg %p263
        $region34: #{cptg_dec_forward.5} parent=11 // pred_check_branch
          %615 = sbr.rel (%p613) target = $region36
        $region35: #{cptg_dec_forward.5} parent=11 // pred_region
          _
        $region36: #{cptg_dec_forward.5} parent=11 // pred_fallthru
          _
        // Predicated region
        $region37: #{cptg_dec_forward.5} parent=11 // pred_check
          %p616 = pneg %p284
        $region38: #{cptg_dec_forward.5} parent=11 // pred_check_branch
          %618 = sbr.rel (%p616) target = $region40
        $region39: #{cptg_dec_forward.5} parent=11 // pred_region
          _
        $region40: #{cptg_dec_forward.5} parent=11 // pred_fallthru
          _
        // Predicated region
        $region41: #{cptg_dec_forward.5} parent=11 // pred_check
          %p619 = pneg %p305
        $region42: #{cptg_dec_forward.5} parent=11 // pred_check_branch
          %621 = sbr.rel (%p619) target = $region44
        $region43: #{cptg_dec_forward.5} parent=11 // pred_region
          _
        $region44: #{cptg_dec_forward.5} parent=11 // pred_fallthru
          _
        // Predicated region
        $region45: #{cptg_dec_forward.5} parent=11 // pred_check
          %p622 = pneg %p326
        $region46: #{cptg_dec_forward.5} parent=11 // pred_check_branch
          %624 = sbr.rel (%p622) target = $region48
        $region47: #{cptg_dec_forward.5} parent=11 // pred_region
          _
        $region48: #{cptg_dec_forward.5} parent=11 // pred_fallthru
          _
        // Predicated region
        $region49: #{cptg_dec_forward.5} parent=11 // pred_check
          %p625 = pneg %p347
        $region50: #{cptg_dec_forward.5} parent=11 // pred_check_branch
          %627 = sbr.rel (%p625) target = $region52
        $region51: #{cptg_dec_forward.5} parent=11 // pred_region
          _
        $region52: #{cptg_dec_forward.5} parent=11 // pred_fallthru
          _
        // Predicated region
        $region53: #{cptg_dec_forward.5} parent=11 // pred_check
          %p628 = pneg %p368
        $region54: #{cptg_dec_forward.5} parent=11 // pred_check_branch
          %630 = sbr.rel (%p628) target = $region56
        $region55: #{cptg_dec_forward.5} parent=11 // pred_region
          _
        $region56: #{cptg_dec_forward.5} parent=11 // pred_fallthru
          _
        // Predicated region
        $region57: #{cptg_dec_forward.5} parent=11 // pred_check
          %p631 = pneg %p389
        $region58: #{cptg_dec_forward.5} parent=11 // pred_check_branch
          %633 = sbr.rel (%p631) target = $region60
        $region59: #{cptg_dec_forward.5} parent=11 // pred_region
          _
        $region60: #{cptg_dec_forward.5} parent=11 // pred_fallthru
          _
        // Predicated region
        $region61: #{cptg_dec_forward.5} parent=11 // pred_check
          %p634 = pneg %p410
        $region62: #{cptg_dec_forward.5} parent=11 // pred_check_branch
          %636 = sbr.rel (%p634) target = $region64
        $region63: #{cptg_dec_forward.5} parent=11 // pred_region
          _
        $region64: #{cptg_dec_forward.5} parent=11 // pred_fallthru
          _
        // Predicated region
        $region65: #{cptg_dec_forward.5} parent=11 // pred_check
          %p637 = pneg %p431
        $region66: #{cptg_dec_forward.5} parent=11 // pred_check_branch
          %639 = sbr.rel (%p637) target = $region68
        $region67: #{cptg_dec_forward.5} parent=11 // pred_region
          _
        $region68: #{cptg_dec_forward.5} parent=11 // pred_fallthru
          _
        // Predicated region
        $region69: #{cptg_dec_forward.5} parent=11 // pred_check
          %p640 = pneg %p452
        $region70: #{cptg_dec_forward.5} parent=11 // pred_check_branch
          %642 = sbr.rel (%p640) target = $region72
        $region71: #{cptg_dec_forward.5} parent=11 // pred_region
          _
        $region72: #{cptg_dec_forward.5} parent=11 // pred_fallthru
          _
        // Predicated region
        $region73: #{cptg_dec_forward.5} parent=11 // pred_check
          %p643 = pneg %p473
        $region74: #{cptg_dec_forward.5} parent=11 // pred_check_branch
          %645 = sbr.rel (%p643) target = $region76
        $region75: #{cptg_dec_forward.5} parent=11 // pred_region
          _
        $region76: #{cptg_dec_forward.5} parent=11 // pred_fallthru
          _
        // Predicated region
        $region77: #{cptg_dec_forward.5} parent=11 // pred_check
          %p646 = pneg %p494
        $region78: #{cptg_dec_forward.5} parent=11 // pred_check_branch
          %648 = sbr.rel (%p646) target = $region80
        $region79: #{cptg_dec_forward.5} parent=11 // pred_region
          _
        $region80: #{cptg_dec_forward.5} parent=11 // pred_fallthru
          _
        // Predicated region
        $region81: #{cptg_dec_forward.5} parent=11 // pred_check
          %p649 = pneg %p515
        $region82: #{cptg_dec_forward.5} parent=11 // pred_check_branch
          %651 = sbr.rel (%p649) target = $region84
        $region83: #{cptg_dec_forward.5} parent=11 // pred_region
          _
        $region84: #{cptg_dec_forward.5} parent=11 // pred_fallthru
          _
        // Predicated region
        $region85: #{cptg_dec_forward.5} parent=11 // pred_check
          %p652 = pneg %p536
        $region86: #{cptg_dec_forward.5} parent=11 // pred_check_branch
          %654 = sbr.rel (%p652) target = $region88
        $region87: #{cptg_dec_forward.5} parent=11 // pred_region
          _
        $region88: #{cptg_dec_forward.5} parent=11 // pred_fallthru
          _
        // Predicated region
        $region89: #{cptg_dec_forward.5} parent=11 // pred_check
          %p655 = pneg %p557
        $region90: #{cptg_dec_forward.5} parent=11 // pred_check_branch
          %657 = sbr.rel (%p655) target = $region92
        $region91: #{cptg_dec_forward.5} parent=11 // pred_region
          _
        $region92: #{cptg_dec_forward.5} parent=11 // pred_fallthru
          _
      $region12: #{cptg_dec_forward.5} parent=5 // pred_fallthru
        _
      %p658 = scmp.lt.s32.totalorder %s33, 2
      // Predicated region
      $region93: #{cptg_dec_forward.5} parent=5 // pred_check
        %p659 = pneg %p658
      $region94: #{cptg_dec_forward.5} parent=5 // pred_check_branch
        %661 = sbr.rel (%p659) target = $region96
      $region95: #{cptg_dec_forward.5} parent=5 // pred_region
        // Predicated region
        $region97: #{cptg_dec_forward.5} parent=95 // pred_check
          %p662 = pneg %p53
        $region98: #{cptg_dec_forward.5} parent=95 // pred_check_branch
          %664 = sbr.rel (%p662) target = $region100
        $region99: #{cptg_dec_forward.5} parent=95 // pred_region
          %p665 = scmp.lt.s32.totalorder %s33, 1
          %s666 = scalar_select %p665, %s33, 1
          %s667 = smul.addr %s666, 8
          %s668 = scalar_lea.vmem %s0, %s667
        $region100: #{cptg_dec_forward.5} parent=95 // pred_fallthru
          _
        // Predicated region
        $region101: #{cptg_dec_forward.5} parent=95 // pred_check
          %p669 = pneg %p79
        $region102: #{cptg_dec_forward.5} parent=95 // pred_check_branch
          %671 = sbr.rel (%p669) target = $region104
        $region103: #{cptg_dec_forward.5} parent=95 // pred_region
          %p672 = scmp.lt.s32.totalorder %s33, 1
          %s673 = scalar_select %p672, %s33, 1
          %s674 = smul.addr %s673, 8
          %s675 = scalar_lea.vmem %s1, %s674
        $region104: #{cptg_dec_forward.5} parent=95 // pred_fallthru
          _
        // Predicated region
        $region105: #{cptg_dec_forward.5} parent=95 // pred_check
          %p676 = pneg %p105
        $region106: #{cptg_dec_forward.5} parent=95 // pred_check_branch
          %678 = sbr.rel (%p676) target = $region108
        $region107: #{cptg_dec_forward.5} parent=95 // pred_region
          %p679 = scmp.lt.s32.totalorder %s33, 1
          %s680 = scalar_select %p679, %s33, 1
          %s681 = scalar_lea.vmem %s2, %s680
        $region108: #{cptg_dec_forward.5} parent=95 // pred_fallthru
          _
        // Predicated region
        $region109: #{cptg_dec_forward.5} parent=95 // pred_check
          %p682 = pneg %p131
        $region110: #{cptg_dec_forward.5} parent=95 // pred_check_branch
          %684 = sbr.rel (%p682) target = $region112
        $region111: #{cptg_dec_forward.5} parent=95 // pred_region
          %p685 = scmp.lt.s32.totalorder %s33, 1
          %s686 = scalar_select %p685, %s33, 1
          %s687 = scalar_lea.vmem %s3, %s686
        $region112: #{cptg_dec_forward.5} parent=95 // pred_fallthru
          _
      $region96: #{cptg_dec_forward.5} parent=5 // pred_fallthru
        _
      %p688 = scmp.le.s32.totalorder 1, %s33
      %p689 = scmp.lt.s32.totalorder %s33, 3
      %p690 = pnand %p688, %p689
      %p691 = pneg %p690
      // Predicated region
      $region113: #{cptg_dec_forward.5} parent=5 // pred_check
        _
      $region114: #{cptg_dec_forward.5} parent=5 // pred_check_branch
        %693 = sbr.rel (%p690) target = $region116
      $region115: #{cptg_dec_forward.5} parent=5 // pred_region
        %s694 = ssub.s32 %s33, 1
        %p695 = scmp.lt.s32.totalorder %s38, 1
        %s696 = scalar_select %p695, %s38, 1
        %s697 = smul.addr %s696, 8
        %s698 = scalar_lea.vmem %s0, %s697
        %p699 = pneg %p59
        %p700 = pneg %p56
        %p701 = scmp.lt.s32.totalorder %s38, 1
        %s702 = scalar_select %p701, %s38, 1
        %s703 = smul.addr %s702, 8
        %s704 = scalar_lea.vmem %s1, %s703
        %p705 = pneg %p85
        %p706 = pneg %p82
        %p707 = scmp.lt.s32.totalorder %s38, 1
        %s708 = scalar_select %p707, %s38, 1
        %s709 = scalar_lea.vmem %s2, %s708
        %p710 = pneg %p111
        %p711 = pneg %p108
        %p712 = scmp.lt.s32.totalorder %s38, 1
        %s713 = scalar_select %p712, %s38, 1
        %s714 = scalar_lea.vmem %s3, %s713
        %p715 = pneg %p137
        %p716 = pneg %p134
        %p717 = pneg %p158
        %p718 = pneg %p155
        %p719 = pneg %p179
        %p720 = pneg %p176
        %p721 = pneg %p200
        %p722 = pneg %p197
        %p723 = pneg %p221
        %p724 = pneg %p218
        %p725 = pneg %p242
        %p726 = pneg %p239
        %p727 = pneg %p263
        %p728 = pneg %p260
        %p729 = pneg %p284
        %p730 = pneg %p281
        %p731 = pneg %p305
        %p732 = pneg %p302
        %p733 = pneg %p326
        %p734 = pneg %p323
        %p735 = pneg %p347
        %p736 = pneg %p344
        %p737 = pneg %p368
        %p738 = pneg %p365
        %p739 = pneg %p389
        %p740 = pneg %p386
        %p741 = pneg %p410
        %p742 = pneg %p407
        %p743 = pneg %p431
        %p744 = pneg %p428
        %p745 = pneg %p452
        %p746 = pneg %p449
        %p747 = pneg %p473
        %p748 = pneg %p470
        %p749 = pneg %p494
        %p750 = pneg %p491
        %p751 = pneg %p515
        %p752 = pneg %p512
        %p753 = pneg %p536
        %p754 = pneg %p533
        %p755 = pneg %p557
        %p756 = pneg %p554
        %p757 = pneg %p583
        %p758 = pneg %p580
        %s759 = sand.u32 %s570, 1
        %s760 = scalar_lea.sflag [#allocation3], %s759
        %s761 = sand.u32 %s570, 1
        %s762 = smul.addr %s761, 8
        %s763 = scalar_lea.vmem [#allocation2], %s762
        %p764 = scmp.lt.s32.totalorder %s38, 1
        %s765 = scalar_select %p764, %s38, 1
        %s766 = smul.addr %s765, 8
        %s767 = scalar_lea.vmem %s0, %s766
        %p768 = scmp.lt.s32.totalorder %s38, 1
        %s769 = scalar_select %p768, %s38, 1
        %s770 = smul.addr %s769, 8
        %s771 = scalar_lea.vmem %s1, %s770
        %p772 = scmp.lt.s32.totalorder %s38, 1
        %s773 = scalar_select %p772, %s38, 1
        %s774 = scalar_lea.vmem %s2, %s773
        %p775 = scmp.lt.s32.totalorder %s38, 1
        %s776 = scalar_select %p775, %s38, 1
        %s777 = scalar_lea.vmem %s3, %s776
        %v779 = vld [vmem:[%s767] sm:$0xff]
        %v780 = vld [vmem:[%s771] sm:$0xff]
        %v781 = vpack.c.bf16 %v779, %v779
        %v782 = vld [vmem:[%s4] sm:$0xf]
        %v783 = vld [vmem:[%s4 + $0x4] sm:$0xf]
        %v784 = vld [vmem:[%s4 + $0x8] sm:$0xf]
        %v785 = vld [vmem:[%s4 + $0xc] sm:$0xf]
        %v786 = vld [vmem:[%s5] sm:$0x1]
        %v788 = vlaneseq
        %v789 = vshrl.u32 %v788, 7
        %v790 = vsub.s32 0, %v789
        %v791 = vrot.slane %v786, %v790
        %v797 = vunpack.c.l.b16 %v782
        %v798 = vunpack.c.l.b16 %v783
        %v799 = vunpack.c.l.b16 %v784
        %v800 = vunpack.c.l.b16 %v785
        %v801 = vpack.c.b16 %v798, %v797
        %v802 = vpack.c.b16 %v800, %v799
        %vm805 = vcmask 261120
        %v807 = vsel %vm805, %v781, 0
        %809 = vmatprep.subr.bf16.mxu0 0
        %810 = vmatpush1.bf16.msra.mxu0 %v801
        %811 = vmatprep.subr.bf16.mxu0 0
        %812 = vmatpush1.bf16.msra.mxu0 %v802
        %813 = vmatprep.subr.bf16.mxu0 0
        %814 = vmatpush1.bf16.msra.mxu0 0
        %815 = vmatprep.subr.bf16.mxu0 0
        %816 = vmatpush1.bf16.msra.mxu0 0
        %817 = vmatprep.subr.bf16.mxu0 0
        %818 = vmatpush1.bf16.msra.mxu0 0
        %819 = vmatprep.subr.bf16.mxu0 0
        %820 = vmatpush1.bf16.msra.mxu0 0
        %821 = vmatprep.subr.bf16.mxu0 0
        %822 = vmatpush1.bf16.msra.mxu0 0
        %823 = vmatprep.subr.bf16.mxu0 0
        %824 = vmatpush1.bf16.msra.mxu0 0
        %825 = vmatprep.subr.bf16.mxu0 0
        %826 = vmatpush1.bf16.msra.mxu0 0
        %827 = vmatprep.subr.bf16.mxu0 0
        %828 = vmatpush1.bf16.msra.mxu0 0
        %829 = vmatprep.subr.bf16.mxu0 0
        %830 = vmatpush1.bf16.msra.mxu0 0
        %831 = vmatprep.subr.bf16.mxu0 0
        %832 = vmatpush1.bf16.msra.mxu0 0
        %833 = vmatprep.subr.bf16.mxu0 0
        %834 = vmatpush1.bf16.msra.mxu0 0
        %835 = vmatprep.subr.bf16.mxu0 0
        %836 = vmatpush1.bf16.msra.mxu0 0
        %837 = vmatprep.subr.bf16.mxu0 0
        %838 = vmatpush1.bf16.msra.mxu0 0
        %839 = vmatprep.subr.bf16.mxu0 0
        %840 = vmatpush1.bf16.msra.mxu0 0
        %841 = vmatprep.mubr.bf16.mxu0 0
        %842 = vmatmul.mubr.bf16.gmra.mrb[0].mxu0 %v807
        %v843 = vpop.f32.mrb[0].mxu0
        %v844 = vadd.f32 %v791, %v843
        %v845 = vpop.f32.mrb[0].mxu0
        %v846 = vpop.f32.mrb[0].mxu0
        %v847 = vpop.f32.mrb[0].mxu0
        %848 = vdwg.mxu0
        %v849 = vlaneseq
        %v850 = vshrl.u32 %v849, 7
        %v851 = vlaneseq
        %v852 = vand.u32 %v851, 127
        %vm853 = vcmp.ge.s32.totalorder %v850, %v852
        %v854 = vsel %vm853, 0.0, -1e+09
        %v855 = vld [vmem:[%s774] sm:$0x1]
        %v857 = vlaneseq
        %v858 = vshrl.u32 %v857, 7
        %v859 = vsub.s32 0, %v858
        %v860 = vrot.slane %v855, %v859
        %v862 = vadd.f32 %v854, %v860
        %v863 = vpack.c.bf16 %v844, %v844
        %865 = vrot.lane.b32.xlu0 %v863, 96
        %v866 = vpop.permute.xlu0 %865
        %vm867 = vcmask 64512
        %v869 = vsel %vm867, %v863, 0
        %v872 = vsel %vm867, %v866, 0
        %874 = vmatprep.subr.bf16.mxu0 0
        %875 = vmatpush1.bf16.xpose.msra.mxu0 %v872
        %876 = vmatprep.subr.bf16.mxu0 0
        %877 = vmatpush1.bf16.xpose.msra.mxu0 0
        %878 = vmatprep.subr.bf16.mxu0 0
        %879 = vmatpush1.bf16.xpose.msra.mxu0 0
        %880 = vmatprep.subr.bf16.mxu0 0
        %881 = vmatpush1.bf16.xpose.msra.mxu0 0
        %882 = vmatprep.subr.bf16.mxu0 0
        %883 = vmatpush1.bf16.xpose.msra.mxu0 0
        %884 = vmatprep.subr.bf16.mxu0 0
        %885 = vmatpush1.bf16.xpose.msra.mxu0 0
        %886 = vmatprep.subr.bf16.mxu0 0
        %887 = vmatpush1.bf16.xpose.msra.mxu0 0
        %888 = vmatprep.subr.bf16.mxu0 0
        %889 = vmatpush1.bf16.xpose.msra.mxu0 0
        %890 = vmatprep.subr.bf16.mxu0 0
        %891 = vmatpush1.bf16.xpose.msra.mxu0 0
        %892 = vmatprep.subr.bf16.mxu0 0
        %893 = vmatpush1.bf16.xpose.msra.mxu0 0
        %894 = vmatprep.subr.bf16.mxu0 0
        %895 = vmatpush1.bf16.xpose.msra.mxu0 0
        %896 = vmatprep.subr.bf16.mxu0 0
        %897 = vmatpush1.bf16.xpose.msra.mxu0 0
        %898 = vmatprep.subr.bf16.mxu0 0
        %899 = vmatpush1.bf16.xpose.msra.mxu0 0
        %900 = vmatprep.subr.bf16.mxu0 0
        %901 = vmatpush1.bf16.xpose.msra.mxu0 0
        %902 = vmatprep.subr.bf16.mxu0 0
        %903 = vmatpush1.bf16.xpose.msra.mxu0 0
        %904 = vmatprep.subr.bf16.mxu0 0
        %905 = vmatpush1.bf16.xpose.msra.mxu0 0
        %906 = vmatprep.mubr.bf16.mxu0 0
        %907 = vmatmul.mubr.bf16.gmra.mrb[0].mxu0 %v869
        %v908 = vpop.f32.mrb[0].mxu0
        %v909 = vadd.f32 %v862, %v908
        %v910 = vpop.f32.mrb[0].mxu0
        %v911 = vpop.f32.mrb[0].mxu0
        %v912 = vpop.f32.mrb[0].mxu0
        %913 = vdwg.mxu0
        %v914 = vsel %vm867, %v909, -inf
        %915 = vmax.xlane.f32.xlu0 %v914
        %v916 = vpop.xlane.xlu0 %915
        %v917 = vsub.f32 %v909, %v916
        %v918 = vmul.f32 %v917, 1.442695
        %v919 = vpow.pop %v918
        %v920 = vsel %vm867, %v919, 0.0
        %921 = vadd.xlane.f32.xlu0 %v920
        %v922 = vpop.xlane.xlu0 %921
        %v923 = vrcp.pop %v922
        %v924 = vmul.f32 %v919, %v923
        %v925 = vpack.c.bf16 %v924, %v924
        %926 = vrot.lane.b32.xlu0 %v863, 64
        %v927 = vpop.permute.xlu0 %926
        %v929 = vsel %vm867, %v925, 0
        %vm931 = vcmask 1043456
        %v933 = vsel %vm931, %v927, 0
        %935 = vmatprep.subr.bf16.mxu0 0
        %936 = vmatpush1.bf16.msra.mxu0 %v933
        %937 = vmatprep.subr.bf16.mxu0 0
        %938 = vmatpush1.bf16.msra.mxu0 0
        %939 = vmatprep.subr.bf16.mxu0 0
        %940 = vmatpush1.bf16.msra.mxu0 0
        %941 = vmatprep.subr.bf16.mxu0 0
        %942 = vmatpush1.bf16.msra.mxu0 0
        %943 = vmatprep.subr.bf16.mxu0 0
        %944 = vmatpush1.bf16.msra.mxu0 0
        %945 = vmatprep.subr.bf16.mxu0 0
        %946 = vmatpush1.bf16.msra.mxu0 0
        %947 = vmatprep.subr.bf16.mxu0 0
        %948 = vmatpush1.bf16.msra.mxu0 0
        %949 = vmatprep.subr.bf16.mxu0 0
        %950 = vmatpush1.bf16.msra.mxu0 0
        %951 = vmatprep.subr.bf16.mxu0 0
        %952 = vmatpush1.bf16.msra.mxu0 0
        %953 = vmatprep.subr.bf16.mxu0 0
        %954 = vmatpush1.bf16.msra.mxu0 0
        %955 = vmatprep.subr.bf16.mxu0 0
        %956 = vmatpush1.bf16.msra.mxu0 0
        %957 = vmatprep.subr.bf16.mxu0 0
        %958 = vmatpush1.bf16.msra.mxu0 0
        %959 = vmatprep.subr.bf16.mxu0 0
        %960 = vmatpush1.bf16.msra.mxu0 0
        %961 = vmatprep.subr.bf16.mxu0 0
        %962 = vmatpush1.bf16.msra.mxu0 0
        %963 = vmatprep.subr.bf16.mxu0 0
        %964 = vmatpush1.bf16.msra.mxu0 0
        %965 = vmatprep.subr.bf16.mxu0 0
        %966 = vmatpush1.bf16.msra.mxu0 0
        %967 = vmatprep.mubr.bf16.mxu0 0
        %968 = vmatmul.mubr.bf16.gmra.mrb[0].mxu0 %v929
        %v969 = vpop.f32.mrb[0].mxu0
        %v970 = vadd.f32 0.0, %v969
        %v971 = vpop.f32.mrb[0].mxu0
        %v972 = vpop.f32.mrb[0].mxu0
        %v973 = vpop.f32.mrb[0].mxu0
        %974 = vdwg.mxu0
        %975 = vrot.lane.b32.xlu0 %v863, 120
        %v976 = vpop.permute.xlu0 %975
        %977 = vrot.lane.b32.xlu0 %v863, 88
        %v978 = vpop.permute.xlu0 %977
        %v980 = vsel %vm867, %v976, 0
        %v983 = vsel %vm867, %v978, 0
        %985 = vmatprep.subr.bf16.mxu0 0
        %986 = vmatpush1.bf16.xpose.msra.mxu0 %v983
        %987 = vmatprep.subr.bf16.mxu0 0
        %988 = vmatpush1.bf16.xpose.msra.mxu0 0
        %989 = vmatprep.subr.bf16.mxu0 0
        %990 = vmatpush1.bf16.xpose.msra.mxu0 0
        %991 = vmatprep.subr.bf16.mxu0 0
        %992 = vmatpush1.bf16.xpose.msra.mxu0 0
        %993 = vmatprep.subr.bf16.mxu0 0
        %994 = vmatpush1.bf16.xpose.msra.mxu0 0
        %995 = vmatprep.subr.bf16.mxu0 0
        %996 = vmatpush1.bf16.xpose.msra.mxu0 0
        %997 = vmatprep.subr.bf16.mxu0 0
        %998 = vmatpush1.bf16.xpose.msra.mxu0 0
        %999 = vmatprep.subr.bf16.mxu0 0
        %1000 = vmatpush1.bf16.xpose.msra.mxu0 0
        %1001 = vmatprep.subr.bf16.mxu0 0
        %1002 = vmatpush1.bf16.xpose.msra.mxu0 0
        %1003 = vmatprep.subr.bf16.mxu0 0
        %1004 = vmatpush1.bf16.xpose.msra.mxu0 0
        %1005 = vmatprep.subr.bf16.mxu0 0
        %1006 = vmatpush1.bf16.xpose.msra.mxu0 0
        %1007 = vmatprep.subr.bf16.mxu0 0
        %1008 = vmatpush1.bf16.xpose.msra.mxu0 0
        %1009 = vmatprep.subr.bf16.mxu0 0
        %1010 = vmatpush1.bf16.xpose.msra.mxu0 0
        %1011 = vmatprep.subr.bf16.mxu0 0
        %1012 = vmatpush1.bf16.xpose.msra.mxu0 0
        %1013 = vmatprep.subr.bf16.mxu0 0
        %1014 = vmatpush1.bf16.xpose.msra.mxu0 0
        %1015 = vmatprep.subr.bf16.mxu0 0
        %1016 = vmatpush1.bf16.xpose.msra.mxu0 0
        %1017 = vmatprep.mubr.bf16.mxu0 0
        %1018 = vmatmul.mubr.bf16.gmra.mrb[0].mxu0 %v980
        %v1019 = vpop.f32.mrb[0].mxu0
        %v1020 = vadd.f32 %v862, %v1019
        %v1021 = vpop.f32.mrb[0].mxu0
        %v1022 = vpop.f32.mrb[0].mxu0
        %v1023 = vpop.f32.mrb[0].mxu0
        %1024 = vdwg.mxu0
        %v1025 = vsel %vm867, %v1020, -inf
        %1026 = vmax.xlane.f32.xlu0 %v1025
        %v1027 = vpop.xlane.xlu0 %1026
        %v1028 = vsub.f32 %v1020, %v1027
        %v1029 = vmul.f32 %v1028, 1.442695
        %v1030 = vpow.pop %v1029
        %v1031 = vsel %vm867, %v1030, 0.0
        %1032 = vadd.xlane.f32.xlu0 %v1031
        %v1033 = vpop.xlane.xlu0 %1032
        %v1034 = vrcp.pop %v1033
        %v1035 = vmul.f32 %v1030, %v1034
        %v1036 = vpack.c.bf16 %v1035, %v1035
        %1037 = vrot.lane.b32.xlu0 %v863, 56
        %v1038 = vpop.permute.xlu0 %1037
        %v1040 = vsel %vm867, %v1036, 0
        %v1043 = vsel %vm931, %v1038, 0
        %1045 = vmatprep.subr.bf16.mxu0 0
        %1046 = vmatpush1.bf16.msra.mxu0 %v1043
        %1047 = vmatprep.subr.bf16.mxu0 0
        %1048 = vmatpush1.bf16.msra.mxu0 0
        %1049 = vmatprep.subr.bf16.mxu0 0
        %1050 = vmatpush1.bf16.msra.mxu0 0
        %1051 = vmatprep.subr.bf16.mxu0 0
        %1052 = vmatpush1.bf16.msra.mxu0 0
        %1053 = vmatprep.subr.bf16.mxu0 0
        %1054 = vmatpush1.bf16.msra.mxu0 0
        %1055 = vmatprep.subr.bf16.mxu0 0
        %1056 = vmatpush1.bf16.msra.mxu0 0
        %1057 = vmatprep.subr.bf16.mxu0 0
        %1058 = vmatpush1.bf16.msra.mxu0 0
        %1059 = vmatprep.subr.bf16.mxu0 0
        %1060 = vmatpush1.bf16.msra.mxu0 0
        %1061 = vmatprep.subr.bf16.mxu0 0
        %1062 = vmatpush1.bf16.msra.mxu0 0
        %1063 = vmatprep.subr.bf16.mxu0 0
        %1064 = vmatpush1.bf16.msra.mxu0 0
        %1065 = vmatprep.subr.bf16.mxu0 0
        %1066 = vmatpush1.bf16.msra.mxu0 0
        %1067 = vmatprep.subr.bf16.mxu0 0
        %1068 = vmatpush1.bf16.msra.mxu0 0
        %1069 = vmatprep.subr.bf16.mxu0 0
        %1070 = vmatpush1.bf16.msra.mxu0 0
        %1071 = vmatprep.subr.bf16.mxu0 0
        %1072 = vmatpush1.bf16.msra.mxu0 0
        %1073 = vmatprep.subr.bf16.mxu0 0
        %1074 = vmatpush1.bf16.msra.mxu0 0
        %1075 = vmatprep.subr.bf16.mxu0 0
        %1076 = vmatpush1.bf16.msra.mxu0 0
        %1077 = vmatprep.mubr.bf16.mxu0 0
        %1078 = vmatmul.mubr.bf16.gmra.mrb[0].mxu0 %v1040
        %v1079 = vpop.f32.mrb[0].mxu0
        %v1080 = vadd.f32 0.0, %v1079
        %v1081 = vpop.f32.mrb[0].mxu0
        %v1082 = vpop.f32.mrb[0].mxu0
        %v1083 = vpop.f32.mrb[0].mxu0
        %1084 = vdwg.mxu0
        %1085 = vrot.lane.b32.xlu0 %v863, 112
        %v1086 = vpop.permute.xlu0 %1085
        %1087 = vrot.lane.b32.xlu0 %v863, 80
        %v1088 = vpop.permute.xlu0 %1087
        %v1090 = vsel %vm867, %v1086, 0
        %v1093 = vsel %vm867, %v1088, 0
        %1095 = vmatprep.subr.bf16.mxu0 0
        %1096 = vmatpush1.bf16.xpose.msra.mxu0 %v1093
        %1097 = vmatprep.subr.bf16.mxu0 0
        %1098 = vmatpush1.bf16.xpose.msra.mxu0 0
        %1099 = vmatprep.subr.bf16.mxu0 0
        %1100 = vmatpush1.bf16.xpose.msra.mxu0 0
        %1101 = vmatprep.subr.bf16.mxu0 0
        %1102 = vmatpush1.bf16.xpose.msra.mxu0 0
        %1103 = vmatprep.subr.bf16.mxu0 0
        %1104 = vmatpush1.bf16.xpose.msra.mxu0 0
        %1105 = vmatprep.subr.bf16.mxu0 0
        %1106 = vmatpush1.bf16.xpose.msra.mxu0 0
        %1107 = vmatprep.subr.bf16.mxu0 0
        %1108 = vmatpush1.bf16.xpose.msra.mxu0 0
        %1109 = vmatprep.subr.bf16.mxu0 0
        %1110 = vmatpush1.bf16.xpose.msra.mxu0 0
        %1111 = vmatprep.subr.bf16.mxu0 0
        %1112 = vmatpush1.bf16.xpose.msra.mxu0 0
        %1113 = vmatprep.subr.bf16.mxu0 0
        %1114 = vmatpush1.bf16.xpose.msra.mxu0 0
        %1115 = vmatprep.subr.bf16.mxu0 0
        %1116 = vmatpush1.bf16.xpose.msra.mxu0 0
        %1117 = vmatprep.subr.bf16.mxu0 0
        %1118 = vmatpush1.bf16.xpose.msra.mxu0 0
        %1119 = vmatprep.subr.bf16.mxu0 0
        %1120 = vmatpush1.bf16.xpose.msra.mxu0 0
        %1121 = vmatprep.subr.bf16.mxu0 0
        %1122 = vmatpush1.bf16.xpose.msra.mxu0 0
        %1123 = vmatprep.subr.bf16.mxu0 0
        %1124 = vmatpush1.bf16.xpose.msra.mxu0 0
        %1125 = vmatprep.subr.bf16.mxu0 0
        %1126 = vmatpush1.bf16.xpose.msra.mxu0 0
        %1127 = vmatprep.mubr.bf16.mxu0 0
        %1128 = vmatmul.mubr.bf16.gmra.mrb[0].mxu0 %v1090
        %v1129 = vpop.f32.mrb[0].mxu0
        %v1130 = vadd.f32 %v862, %v1129
        %v1131 = vpop.f32.mrb[0].mxu0
        %v1132 = vpop.f32.mrb[0].mxu0
        %v1133 = vpop.f32.mrb[0].mxu0
        %1134 = vdwg.mxu0
        %v1135 = vsel %vm867, %v1130, -inf
        %1136 = vmax.xlane.f32.xlu0 %v1135
        %v1137 = vpop.xlane.xlu0 %1136
        %v1138 = vsub.f32 %v1130, %v1137
        %v1139 = vmul.f32 %v1138, 1.442695
        %v1140 = vpow.pop %v1139
        %v1141 = vsel %vm867, %v1140, 0.0
        %1142 = vadd.xlane.f32.xlu0 %v1141
        %v1143 = vpop.xlane.xlu0 %1142
        %v1144 = vrcp.pop %v1143
        %v1145 = vmul.f32 %v1140, %v1144
        %v1146 = vpack.c.bf16 %v1145, %v1145
        %1147 = vrot.lane.b32.xlu0 %v863, 48
        %v1148 = vpop.permute.xlu0 %1147
        %v1150 = vsel %vm867, %v1146, 0
        %v1153 = vsel %vm931, %v1148, 0
        %1155 = vmatprep.subr.bf16.mxu0 0
        %1156 = vmatpush1.bf16.msra.mxu0 %v1153
        %1157 = vmatprep.subr.bf16.mxu0 0
        %1158 = vmatpush1.bf16.msra.mxu0 0
        %1159 = vmatprep.subr.bf16.mxu0 0
        %1160 = vmatpush1.bf16.msra.mxu0 0
        %1161 = vmatprep.subr.bf16.mxu0 0
        %1162 = vmatpush1.bf16.msra.mxu0 0
        %1163 = vmatprep.subr.bf16.mxu0 0
        %1164 = vmatpush1.bf16.msra.mxu0 0
        %1165 = vmatprep.subr.bf16.mxu0 0
        %1166 = vmatpush1.bf16.msra.mxu0 0
        %1167 = vmatprep.subr.bf16.mxu0 0
        %1168 = vmatpush1.bf16.msra.mxu0 0
        %1169 = vmatprep.subr.bf16.mxu0 0
        %1170 = vmatpush1.bf16.msra.mxu0 0
        %1171 = vmatprep.subr.bf16.mxu0 0
        %1172 = vmatpush1.bf16.msra.mxu0 0
        %1173 = vmatprep.subr.bf16.mxu0 0
        %1174 = vmatpush1.bf16.msra.mxu0 0
        %1175 = vmatprep.subr.bf16.mxu0 0
        %1176 = vmatpush1.bf16.msra.mxu0 0
        %1177 = vmatprep.subr.bf16.mxu0 0
        %1178 = vmatpush1.bf16.msra.mxu0 0
        %1179 = vmatprep.subr.bf16.mxu0 0
        %1180 = vmatpush1.bf16.msra.mxu0 0
        %1181 = vmatprep.subr.bf16.mxu0 0
        %1182 = vmatpush1.bf16.msra.mxu0 0
        %1183 = vmatprep.subr.bf16.mxu0 0
        %1184 = vmatpush1.bf16.msra.mxu0 0
        %1185 = vmatprep.subr.bf16.mxu0 0
        %1186 = vmatpush1.bf16.msra.mxu0 0
        %1187 = vmatprep.mubr.bf16.mxu0 0
        %1188 = vmatmul.mubr.bf16.gmra.mrb[0].mxu0 %v1150
        %v1189 = vpop.f32.mrb[0].mxu0
        %v1190 = vadd.f32 0.0, %v1189
        %v1191 = vpop.f32.mrb[0].mxu0
        %v1192 = vpop.f32.mrb[0].mxu0
        %v1193 = vpop.f32.mrb[0].mxu0
        %1194 = vdwg.mxu0
        %1195 = vrot.lane.b32.xlu0 %v863, 104
        %v1196 = vpop.permute.xlu0 %1195
        %1197 = vrot.lane.b32.xlu0 %v863, 72
        %v1198 = vpop.permute.xlu0 %1197
        %v1200 = vsel %vm867, %v1196, 0
        %v1203 = vsel %vm867, %v1198, 0
        %1205 = vmatprep.subr.bf16.mxu0 0
        %1206 = vmatpush1.bf16.xpose.msra.mxu0 %v1203
        %1207 = vmatprep.subr.bf16.mxu0 0
        %1208 = vmatpush1.bf16.xpose.msra.mxu0 0
        %1209 = vmatprep.subr.bf16.mxu0 0
        %1210 = vmatpush1.bf16.xpose.msra.mxu0 0
        %1211 = vmatprep.subr.bf16.mxu0 0
        %1212 = vmatpush1.bf16.xpose.msra.mxu0 0
        %1213 = vmatprep.subr.bf16.mxu0 0
        %1214 = vmatpush1.bf16.xpose.msra.mxu0 0
        %1215 = vmatprep.subr.bf16.mxu0 0
        %1216 = vmatpush1.bf16.xpose.msra.mxu0 0
        %1217 = vmatprep.subr.bf16.mxu0 0
        %1218 = vmatpush1.bf16.xpose.msra.mxu0 0
        %1219 = vmatprep.subr.bf16.mxu0 0
        %1220 = vmatpush1.bf16.xpose.msra.mxu0 0
        %1221 = vmatprep.subr.bf16.mxu0 0
        %1222 = vmatpush1.bf16.xpose.msra.mxu0 0
        %1223 = vmatprep.subr.bf16.mxu0 0
        %1224 = vmatpush1.bf16.xpose.msra.mxu0 0
        %1225 = vmatprep.subr.bf16.mxu0 0
        %1226 = vmatpush1.bf16.xpose.msra.mxu0 0
        %1227 = vmatprep.subr.bf16.mxu0 0
        %1228 = vmatpush1.bf16.xpose.msra.mxu0 0
        %1229 = vmatprep.subr.bf16.mxu0 0
        %1230 = vmatpush1.bf16.xpose.msra.mxu0 0
        %1231 = vmatprep.subr.bf16.mxu0 0
        %1232 = vmatpush1.bf16.xpose.msra.mxu0 0
        %1233 = vmatprep.subr.bf16.mxu0 0
        %1234 = vmatpush1.bf16.xpose.msra.mxu0 0
        %1235 = vmatprep.subr.bf16.mxu0 0
        %1236 = vmatpush1.bf16.xpose.msra.mxu0 0
        %1237 = vmatprep.mubr.bf16.mxu0 0
        %1238 = vmatmul.mubr.bf16.gmra.mrb[0].mxu0 %v1200
        %v1239 = vpop.f32.mrb[0].mxu0
        %v1240 = vadd.f32 %v862, %v1239
        %v1241 = vpop.f32.mrb[0].mxu0
        %v1242 = vpop.f32.mrb[0].mxu0
        %v1243 = vpop.f32.mrb[0].mxu0
        %1244 = vdwg.mxu0
        %v1245 = vsel %vm867, %v1240, -inf
        %1246 = vmax.xlane.f32.xlu0 %v1245
        %v1247 = vpop.xlane.xlu0 %1246
        %v1248 = vsub.f32 %v1240, %v1247
        %v1249 = vmul.f32 %v1248, 1.442695
        %v1250 = vpow.pop %v1249
        %v1251 = vsel %vm867, %v1250, 0.0
        %1252 = vadd.xlane.f32.xlu0 %v1251
        %v1253 = vpop.xlane.xlu0 %1252
        %v1254 = vrcp.pop %v1253
        %v1255 = vmul.f32 %v1250, %v1254
        %v1256 = vpack.c.bf16 %v1255, %v1255
        %1257 = vrot.lane.b32.xlu0 %v863, 40
        %v1258 = vpop.permute.xlu0 %1257
        %v1260 = vsel %vm867, %v1256, 0
        %v1263 = vsel %vm931, %v1258, 0
        %1265 = vmatprep.subr.bf16.mxu0 0
        %1266 = vmatpush1.bf16.msra.mxu0 %v1263
        %1267 = vmatprep.subr.bf16.mxu0 0
        %1268 = vmatpush1.bf16.msra.mxu0 0
        %1269 = vmatprep.subr.bf16.mxu0 0
        %1270 = vmatpush1.bf16.msra.mxu0 0
        %1271 = vmatprep.subr.bf16.mxu0 0
        %1272 = vmatpush1.bf16.msra.mxu0 0
        %1273 = vmatprep.subr.bf16.mxu0 0
        %1274 = vmatpush1.bf16.msra.mxu0 0
        %1275 = vmatprep.subr.bf16.mxu0 0
        %1276 = vmatpush1.bf16.msra.mxu0 0
        %1277 = vmatprep.subr.bf16.mxu0 0
        %1278 = vmatpush1.bf16.msra.mxu0 0
        %1279 = vmatprep.subr.bf16.mxu0 0
        %1280 = vmatpush1.bf16.msra.mxu0 0
        %1281 = vmatprep.subr.bf16.mxu0 0
        %1282 = vmatpush1.bf16.msra.mxu0 0
        %1283 = vmatprep.subr.bf16.mxu0 0
        %1284 = vmatpush1.bf16.msra.mxu0 0
        %1285 = vmatprep.subr.bf16.mxu0 0
        %1286 = vmatpush1.bf16.msra.mxu0 0
        %1287 = vmatprep.subr.bf16.mxu0 0
        %1288 = vmatpush1.bf16.msra.mxu0 0
        %1289 = vmatprep.subr.bf16.mxu0 0
        %1290 = vmatpush1.bf16.msra.mxu0 0
        %1291 = vmatprep.subr.bf16.mxu0 0
        %1292 = vmatpush1.bf16.msra.mxu0 0
        %1293 = vmatprep.subr.bf16.mxu0 0
        %1294 = vmatpush1.bf16.msra.mxu0 0
        %1295 = vmatprep.subr.bf16.mxu0 0
        %1296 = vmatpush1.bf16.msra.mxu0 0
        %1297 = vmatprep.mubr.bf16.mxu0 0
        %1298 = vmatmul.mubr.bf16.gmra.mrb[0].mxu0 %v1260
        %v1299 = vpop.f32.mrb[0].mxu0
        %v1300 = vadd.f32 0.0, %v1299
        %v1301 = vpop.f32.mrb[0].mxu0
        %v1302 = vpop.f32.mrb[0].mxu0
        %v1303 = vpop.f32.mrb[0].mxu0
        %1304 = vdwg.mxu0
        %1306 = vrot.lane.b32.xlu0 %v1080, 8
        %v1307 = vpop.permute.xlu0 %1306
        %1310 = vrot.lane.b32.xlu0 %v1190, 16
        %v1311 = vpop.permute.xlu0 %1310
        %1314 = vrot.lane.b32.xlu0 %v1300, 24
        %v1315 = vpop.permute.xlu0 %1314
        %v1317 = vsel %vm867, %v970, %v1307
        %vm1318 = vcmask 130048
        %v1319 = vsel %vm1318, %v1317, %v1311
        %vm1320 = vcmask 195584
        %v1321 = vsel %vm1320, %v1319, %v1315
        %v1322 = vpack.c.bf16 %v1321, %v1321
        %v1323 = vld [vmem:[%s6] sm:$0xf]
        %v1324 = vld [vmem:[%s6 + $0x4] sm:$0xf]
        %v1325 = vld [vmem:[%s6 + $0x8] sm:$0xf]
        %v1326 = vld [vmem:[%s6 + $0xc] sm:$0xf]
        %v1327 = vld [vmem:[%s7] sm:$0x1]
        %v1329 = vlaneseq
        %v1330 = vshrl.u32 %v1329, 7
        %v1331 = vsub.s32 0, %v1330
        %v1332 = vrot.slane %v1327, %v1331
        %v1338 = vunpack.c.l.b16 %v1323
        %v1339 = vunpack.c.l.b16 %v1324
        %v1340 = vunpack.c.l.b16 %v1325
        %v1341 = vunpack.c.l.b16 %v1326
        %v1342 = vpack.c.b16 %v1339, %v1338
        %v1343 = vpack.c.b16 %v1341, %v1340
        %v1347 = vsel %vm805, %v1322, 0
        %1349 = vmatprep.subr.bf16.mxu0 0
        %1350 = vmatpush1.bf16.msra.mxu0 %v1342
        %1351 = vmatprep.subr.bf16.mxu0 0
        %1352 = vmatpush1.bf16.msra.mxu0 %v1343
        %1353 = vmatprep.subr.bf16.mxu0 0
        %1354 = vmatpush1.bf16.msra.mxu0 0
        %1355 = vmatprep.subr.bf16.mxu0 0
        %1356 = vmatpush1.bf16.msra.mxu0 0
        %1357 = vmatprep.subr.bf16.mxu0 0
        %1358 = vmatpush1.bf16.msra.mxu0 0
        %1359 = vmatprep.subr.bf16.mxu0 0
        %1360 = vmatpush1.bf16.msra.mxu0 0
        %1361 = vmatprep.subr.bf16.mxu0 0
        %1362 = vmatpush1.bf16.msra.mxu0 0
        %1363 = vmatprep.subr.bf16.mxu0 0
        %1364 = vmatpush1.bf16.msra.mxu0 0
        %1365 = vmatprep.subr.bf16.mxu0 0
        %1366 = vmatpush1.bf16.msra.mxu0 0
        %1367 = vmatprep.subr.bf16.mxu0 0
        %1368 = vmatpush1.bf16.msra.mxu0 0
        %1369 = vmatprep.subr.bf16.mxu0 0
        %1370 = vmatpush1.bf16.msra.mxu0 0
        %1371 = vmatprep.subr.bf16.mxu0 0
        %1372 = vmatpush1.bf16.msra.mxu0 0
        %1373 = vmatprep.subr.bf16.mxu0 0
        %1374 = vmatpush1.bf16.msra.mxu0 0
        %1375 = vmatprep.subr.bf16.mxu0 0
        %1376 = vmatpush1.bf16.msra.mxu0 0
        %1377 = vmatprep.subr.bf16.mxu0 0
        %1378 = vmatpush1.bf16.msra.mxu0 0
        %1379 = vmatprep.subr.bf16.mxu0 0
        %1380 = vmatpush1.bf16.msra.mxu0 0
        %1381 = vmatprep.mubr.bf16.mxu0 0
        %1382 = vmatmul.mubr.bf16.gmra.mrb[0].mxu0 %v1347
        %v1383 = vpop.f32.mrb[0].mxu0
        %v1384 = vadd.f32 %v1332, %v1383
        %v1385 = vpop.f32.mrb[0].mxu0
        %v1386 = vpop.f32.mrb[0].mxu0
        %v1387 = vpop.f32.mrb[0].mxu0
        %1388 = vdwg.mxu0
        %v1389 = vadd.f32 %v779, %v1384
        %v1390 = vsel %vm805, %v1389, 0.0
        %1391 = vadd.xlane.f32.xlu0 %v1390
        %v1392 = vpop.xlane.xlu0 %1391
        %v1393 = vrcp.pop 32.0
        %v1394 = vmul.f32 %v1392, %v1393
        %v1395 = vsub.f32 %v1389, %v1394
        %v1396 = vmul.f32 %v1395, %v1395
        %v1397 = vsel %vm805, %v1396, 0.0
        %1398 = vadd.xlane.f32.xlu0 %v1397
        %v1399 = vpop.xlane.xlu0 %1398
        %v1400 = vmul.f32 %v1399, %v1393
        %v1401 = vadd.f32 %v1400, 1e-05
        %v1402 = vrsqrt.pop %v1401
        %v1403 = vmul.f32 %v1395, %v1402
        %v1404 = vld [vmem:[%s8] sm:$0x1]
        %v1406 = vlaneseq
        %v1407 = vshrl.u32 %v1406, 7
        %v1408 = vsub.s32 0, %v1407
        %v1409 = vrot.slane %v1404, %v1408
        %v1411 = vmul.f32 %v1403, %v1409
        %v1412 = vld [vmem:[%s9] sm:$0x1]
        %v1414 = vlaneseq
        %v1415 = vshrl.u32 %v1414, 7
        %v1416 = vsub.s32 0, %v1415
        %v1417 = vrot.slane %v1412, %v1416
        %v1419 = vadd.f32 %v1411, %v1417
        %v1420 = vpack.c.bf16 %v1419, %v1419
        %v1421 = vld [vmem:[%s10] sm:$0xf]
        %v1422 = vld [vmem:[%s10 + $0x4] sm:$0xf]
        %v1423 = vld [vmem:[%s10 + $0x8] sm:$0xf]
        %v1424 = vld [vmem:[%s10 + $0xc] sm:$0xf]
        %v1425 = vld [vmem:[%s11] sm:$0x1]
        %v1427 = vlaneseq
        %v1428 = vshrl.u32 %v1427, 7
        %v1429 = vsub.s32 0, %v1428
        %v1430 = vrot.slane %v1425, %v1429
        %v1436 = vunpack.c.l.b16 %v1421
        %v1437 = vunpack.c.l.b16 %v1422
        %v1438 = vunpack.c.l.b16 %v1423
        %v1439 = vunpack.c.l.b16 %v1424
        %v1440 = vpack.c.b16 %v1437, %v1436
        %v1441 = vpack.c.b16 %v1439, %v1438
        %v1445 = vsel %vm805, %v1420, 0
        %1447 = vmatprep.subr.bf16.mxu0 0
        %1448 = vmatpush1.bf16.msra.mxu0 %v1440
        %1449 = vmatprep.subr.bf16.mxu0 0
        %1450 = vmatpush1.bf16.msra.mxu0 %v1441
        %1451 = vmatprep.subr.bf16.mxu0 0
        %1452 = vmatpush1.bf16.msra.mxu0 0
        %1453 = vmatprep.subr.bf16.mxu0 0
        %1454 = vmatpush1.bf16.msra.mxu0 0
        %1455 = vmatprep.subr.bf16.mxu0 0
        %1456 = vmatpush1.bf16.msra.mxu0 0
        %1457 = vmatprep.subr.bf16.mxu0 0
        %1458 = vmatpush1.bf16.msra.mxu0 0
        %1459 = vmatprep.subr.bf16.mxu0 0
        %1460 = vmatpush1.bf16.msra.mxu0 0
        %1461 = vmatprep.subr.bf16.mxu0 0
        %1462 = vmatpush1.bf16.msra.mxu0 0
        %1463 = vmatprep.subr.bf16.mxu0 0
        %1464 = vmatpush1.bf16.msra.mxu0 0
        %1465 = vmatprep.subr.bf16.mxu0 0
        %1466 = vmatpush1.bf16.msra.mxu0 0
        %1467 = vmatprep.subr.bf16.mxu0 0
        %1468 = vmatpush1.bf16.msra.mxu0 0
        %1469 = vmatprep.subr.bf16.mxu0 0
        %1470 = vmatpush1.bf16.msra.mxu0 0
        %1471 = vmatprep.subr.bf16.mxu0 0
        %1472 = vmatpush1.bf16.msra.mxu0 0
        %1473 = vmatprep.subr.bf16.mxu0 0
        %1474 = vmatpush1.bf16.msra.mxu0 0
        %1475 = vmatprep.subr.bf16.mxu0 0
        %1476 = vmatpush1.bf16.msra.mxu0 0
        %1477 = vmatprep.subr.bf16.mxu0 0
        %1478 = vmatpush1.bf16.msra.mxu0 0
        %1479 = vmatprep.mubr.bf16.mxu0 0
        %1480 = vmatmul.mubr.bf16.gmra.mrb[0].mxu0 %v1445
        %v1481 = vpop.f32.mrb[0].mxu0
        %v1482 = vadd.f32 %v1430, %v1481
        %v1483 = vpop.f32.mrb[0].mxu0
        %v1484 = vpop.f32.mrb[0].mxu0
        %v1485 = vpop.f32.mrb[0].mxu0
        %1486 = vdwg.mxu0
        %v1487 = vpack.c.bf16 %v780, %v780
        %v1488 = vld [vmem:[%s12] sm:$0xf]
        %v1489 = vld [vmem:[%s12 + $0x4] sm:$0xf]
        %v1490 = vld [vmem:[%s12 + $0x8] sm:$0xf]
        %v1491 = vld [vmem:[%s12 + $0xc] sm:$0xf]
        %v1492 = vld [vmem:[%s13] sm:$0x1]
        %v1494 = vlaneseq
        %v1495 = vshrl.u32 %v1494, 7
        %v1496 = vsub.s32 0, %v1495
        %v1497 = vrot.slane %v1492, %v1496
        %v1503 = vunpack.c.l.b16 %v1488
        %v1504 = vunpack.c.l.b16 %v1489
        %v1505 = vunpack.c.l.b16 %v1490
        %v1506 = vunpack.c.l.b16 %v1491
        %v1507 = vpack.c.b16 %v1504, %v1503
        %v1508 = vpack.c.b16 %v1506, %v1505
        %v1512 = vsel %vm805, %v1487, 0
        %1514 = vmatprep.subr.bf16.mxu0 0
        %1515 = vmatpush1.bf16.msra.mxu0 %v1507
        %1516 = vmatprep.subr.bf16.mxu0 0
        %1517 = vmatpush1.bf16.msra.mxu0 %v1508
        %1518 = vmatprep.subr.bf16.mxu0 0
        %1519 = vmatpush1.bf16.msra.mxu0 0
        %1520 = vmatprep.subr.bf16.mxu0 0
        %1521 = vmatpush1.bf16.msra.mxu0 0
        %1522 = vmatprep.subr.bf16.mxu0 0
        %1523 = vmatpush1.bf16.msra.mxu0 0
        %1524 = vmatprep.subr.bf16.mxu0 0
        %1525 = vmatpush1.bf16.msra.mxu0 0
        %1526 = vmatprep.subr.bf16.mxu0 0
        %1527 = vmatpush1.bf16.msra.mxu0 0
        %1528 = vmatprep.subr.bf16.mxu0 0
        %1529 = vmatpush1.bf16.msra.mxu0 0
        %1530 = vmatprep.subr.bf16.mxu0 0
        %1531 = vmatpush1.bf16.msra.mxu0 0
        %1532 = vmatprep.subr.bf16.mxu0 0
        %1533 = vmatpush1.bf16.msra.mxu0 0
        %1534 = vmatprep.subr.bf16.mxu0 0
        %1535 = vmatpush1.bf16.msra.mxu0 0
        %1536 = vmatprep.subr.bf16.mxu0 0
        %1537 = vmatpush1.bf16.msra.mxu0 0
        %1538 = vmatprep.subr.bf16.mxu0 0
        %1539 = vmatpush1.bf16.msra.mxu0 0
        %1540 = vmatprep.subr.bf16.mxu0 0
        %1541 = vmatpush1.bf16.msra.mxu0 0
        %1542 = vmatprep.subr.bf16.mxu0 0
        %1543 = vmatpush1.bf16.msra.mxu0 0
        %1544 = vmatprep.subr.bf16.mxu0 0
        %1545 = vmatpush1.bf16.msra.mxu0 0
        %1546 = vmatprep.mubr.bf16.mxu0 0
        %1547 = vmatmul.mubr.bf16.gmra.mrb[0].mxu0 %v1512
        %v1548 = vpop.f32.mrb[0].mxu0
        %v1549 = vadd.f32 %v1497, %v1548
        %v1550 = vpop.f32.mrb[0].mxu0
        %v1551 = vpop.f32.mrb[0].mxu0
        %v1552 = vpop.f32.mrb[0].mxu0
        %1553 = vdwg.mxu0
        %v1554 = vld [vmem:[%s777] sm:$0x1]
        %v1555 = vpack.c.bf16 %v1482, %v1482
        %v1556 = vpack.c.bf16 %v1549, %v1549
        %v1558 = vlaneseq
        %v1559 = vshrl.u32 %v1558, 7
        %v1560 = vsub.s32 0, %v1559
        %v1561 = vrot.slane %v1554, %v1560
        %v1564 = vsel %vm867, %v1555, 0
        %v1567 = vsel %vm867, %v1556, 0
        %1569 = vmatprep.subr.bf16.mxu0 0
        %1570 = vmatpush1.bf16.xpose.msra.mxu0 %v1567
        %1571 = vmatprep.subr.bf16.mxu0 0
        %1572 = vmatpush1.bf16.xpose.msra.mxu0 0
        %1573 = vmatprep.subr.bf16.mxu0 0
        %1574 = vmatpush1.bf16.xpose.msra.mxu0 0
        %1575 = vmatprep.subr.bf16.mxu0 0
        %1576 = vmatpush1.bf16.xpose.msra.mxu0 0
        %1577 = vmatprep.subr.bf16.mxu0 0
        %1578 = vmatpush1.bf16.xpose.msra.mxu0 0
        %1579 = vmatprep.subr.bf16.mxu0 0
        %1580 = vmatpush1.bf16.xpose.msra.mxu0 0
        %1581 = vmatprep.subr.bf16.mxu0 0
        %1582 = vmatpush1.bf16.xpose.msra.mxu0 0
        %1583 = vmatprep.subr.bf16.mxu0 0
        %1584 = vmatpush1.bf16.xpose.msra.mxu0 0
        %1585 = vmatprep.subr.bf16.mxu0 0
        %1586 = vmatpush1.bf16.xpose.msra.mxu0 0
        %1587 = vmatprep.subr.bf16.mxu0 0
        %1588 = vmatpush1.bf16.xpose.msra.mxu0 0
        %1589 = vmatprep.subr.bf16.mxu0 0
        %1590 = vmatpush1.bf16.xpose.msra.mxu0 0
        %1591 = vmatprep.subr.bf16.mxu0 0
        %1592 = vmatpush1.bf16.xpose.msra.mxu0 0
        %1593 = vmatprep.subr.bf16.mxu0 0
        %1594 = vmatpush1.bf16.xpose.msra.mxu0 0
        %1595 = vmatprep.subr.bf16.mxu0 0
        %1596 = vmatpush1.bf16.xpose.msra.mxu0 0
        %1597 = vmatprep.subr.bf16.mxu0 0
        %1598 = vmatpush1.bf16.xpose.msra.mxu0 0
        %1599 = vmatprep.subr.bf16.mxu0 0
        %1600 = vmatpush1.bf16.xpose.msra.mxu0 0
        %1601 = vmatprep.mubr.bf16.mxu0 0
        %1602 = vmatmul.mubr.bf16.gmra.mrb[0].mxu0 %v1564
        %v1603 = vpop.f32.mrb[0].mxu0
        %v1604 = vadd.f32 %v1561, %v1603
        %v1605 = vpop.f32.mrb[0].mxu0
        %v1606 = vpop.f32.mrb[0].mxu0
        %v1607 = vpop.f32.mrb[0].mxu0
        %1608 = vdwg.mxu0
        %v1609 = vsel %vm867, %v1604, -inf
        %1610 = vmax.xlane.f32.xlu0 %v1609
        %v1611 = vpop.xlane.xlu0 %1610
        %v1612 = vsub.f32 %v1604, %v1611
        %v1613 = vmul.f32 %v1612, 1.442695
        %v1614 = vpow.pop %v1613
        %v1615 = vsel %vm867, %v1614, 0.0
        %1616 = vadd.xlane.f32.xlu0 %v1615
        %v1617 = vpop.xlane.xlu0 %1616
        %v1618 = vrcp.pop %v1617
        %v1619 = vmul.f32 %v1614, %v1618
        %v1620 = vpack.c.bf16 %v1619, %v1619
        %1622 = vrot.lane.b32.xlu0 %v1556, 96
        %v1623 = vpop.permute.xlu0 %1622
        %v1625 = vsel %vm867, %v1620, 0
        %v1628 = vsel %vm931, %v1623, 0
        %1630 = vmatprep.subr.bf16.mxu0 0
        %1631 = vmatpush1.bf16.msra.mxu0 %v1628
        %1632 = vmatprep.subr.bf16.mxu0 0
        %1633 = vmatpush1.bf16.msra.mxu0 0
        %1634 = vmatprep.subr.bf16.mxu0 0
        %1635 = vmatpush1.bf16.msra.mxu0 0
        %1636 = vmatprep.subr.bf16.mxu0 0
        %1637 = vmatpush1.bf16.msra.mxu0 0
        %1638 = vmatprep.subr.bf16.mxu0 0
        %1639 = vmatpush1.bf16.msra.mxu0 0
        %1640 = vmatprep.subr.bf16.mxu0 0
        %1641 = vmatpush1.bf16.msra.mxu0 0
        %1642 = vmatprep.subr.bf16.mxu0 0
        %1643 = vmatpush1.bf16.msra.mxu0 0
        %1644 = vmatprep.subr.bf16.mxu0 0
        %1645 = vmatpush1.bf16.msra.mxu0 0
        %1646 = vmatprep.subr.bf16.mxu0 0
        %1647 = vmatpush1.bf16.msra.mxu0 0
        %1648 = vmatprep.subr.bf16.mxu0 0
        %1649 = vmatpush1.bf16.msra.mxu0 0
        %1650 = vmatprep.subr.bf16.mxu0 0
        %1651 = vmatpush1.bf16.msra.mxu0 0
        %1652 = vmatprep.subr.bf16.mxu0 0
        %1653 = vmatpush1.bf16.msra.mxu0 0
        %1654 = vmatprep.subr.bf16.mxu0 0
        %1655 = vmatpush1.bf16.msra.mxu0 0
        %1656 = vmatprep.subr.bf16.mxu0 0
        %1657 = vmatpush1.bf16.msra.mxu0 0
        %1658 = vmatprep.subr.bf16.mxu0 0
        %1659 = vmatpush1.bf16.msra.mxu0 0
        %1660 = vmatprep.subr.bf16.mxu0 0
        %1661 = vmatpush1.bf16.msra.mxu0 0
        %1662 = vmatprep.mubr.bf16.mxu0 0
        %1663 = vmatmul.mubr.bf16.gmra.mrb[0].mxu0 %v1625
        %v1664 = vpop.f32.mrb[0].mxu0
        %v1665 = vadd.f32 0.0, %v1664
        %v1666 = vpop.f32.mrb[0].mxu0
        %v1667 = vpop.f32.mrb[0].mxu0
        %v1668 = vpop.f32.mrb[0].mxu0
        %1669 = vdwg.mxu0
        %1671 = vrot.lane.b32.xlu0 %v1555, 120
        %v1672 = vpop.permute.xlu0 %1671
        %1673 = vrot.lane.b32.xlu0 %v1556, 120
        %v1674 = vpop.permute.xlu0 %1673
        %v1676 = vsel %vm867, %v1672, 0
        %v1679 = vsel %vm867, %v1674, 0
        %1681 = vmatprep.subr.bf16.mxu0 0
        %1682 = vmatpush1.bf16.xpose.msra.mxu0 %v1679
        %1683 = vmatprep.subr.bf16.mxu0 0
        %1684 = vmatpush1.bf16.xpose.msra.mxu0 0
        %1685 = vmatprep.subr.bf16.mxu0 0
        %1686 = vmatpush1.bf16.xpose.msra.mxu0 0
        %1687 = vmatprep.subr.bf16.mxu0 0
        %1688 = vmatpush1.bf16.xpose.msra.mxu0 0
        %1689 = vmatprep.subr.bf16.mxu0 0
        %1690 = vmatpush1.bf16.xpose.msra.mxu0 0
        %1691 = vmatprep.subr.bf16.mxu0 0
        %1692 = vmatpush1.bf16.xpose.msra.mxu0 0
        %1693 = vmatprep.subr.bf16.mxu0 0
        %1694 = vmatpush1.bf16.xpose.msra.mxu0 0
        %1695 = vmatprep.subr.bf16.mxu0 0
        %1696 = vmatpush1.bf16.xpose.msra.mxu0 0
        %1697 = vmatprep.subr.bf16.mxu0 0
        %1698 = vmatpush1.bf16.xpose.msra.mxu0 0
        %1699 = vmatprep.subr.bf16.mxu0 0
        %1700 = vmatpush1.bf16.xpose.msra.mxu0 0
        %1701 = vmatprep.subr.bf16.mxu0 0
        %1702 = vmatpush1.bf16.xpose.msra.mxu0 0
        %1703 = vmatprep.subr.bf16.mxu0 0
        %1704 = vmatpush1.bf16.xpose.msra.mxu0 0
        %1705 = vmatprep.subr.bf16.mxu0 0
        %1706 = vmatpush1.bf16.xpose.msra.mxu0 0
        %1707 = vmatprep.subr.bf16.mxu0 0
        %1708 = vmatpush1.bf16.xpose.msra.mxu0 0
        %1709 = vmatprep.subr.bf16.mxu0 0
        %1710 = vmatpush1.bf16.xpose.msra.mxu0 0
        %1711 = vmatprep.subr.bf16.mxu0 0
        %1712 = vmatpush1.bf16.xpose.msra.mxu0 0
        %1713 = vmatprep.mubr.bf16.mxu0 0
        %1714 = vmatmul.mubr.bf16.gmra.mrb[0].mxu0 %v1676
        %v1715 = vpop.f32.mrb[0].mxu0
        %v1716 = vadd.f32 %v1561, %v1715
        %v1717 = vpop.f32.mrb[0].mxu0
        %v1718 = vpop.f32.mrb[0].mxu0
        %v1719 = vpop.f32.mrb[0].mxu0
        %1720 = vdwg.mxu0
        %v1721 = vsel %vm867, %v1716, -inf
        %1722 = vmax.xlane.f32.xlu0 %v1721
        %v1723 = vpop.xlane.xlu0 %1722
        %v1724 = vsub.f32 %v1716, %v1723
        %v1725 = vmul.f32 %v1724, 1.442695
        %v1726 = vpow.pop %v1725
        %v1727 = vsel %vm867, %v1726, 0.0
        %1728 = vadd.xlane.f32.xlu0 %v1727
        %v1729 = vpop.xlane.xlu0 %1728
        %v1730 = vrcp.pop %v1729
        %v1731 = vmul.f32 %v1726, %v1730
        %v1732 = vpack.c.bf16 %v1731, %v1731
        %1733 = vrot.lane.b32.xlu0 %v1556, 88
        %v1734 = vpop.permute.xlu0 %1733
        %v1736 = vsel %vm867, %v1732, 0
        %v1739 = vsel %vm931, %v1734, 0
        %1741 = vmatprep.subr.bf16.mxu0 0
        %1742 = vmatpush1.bf16.msra.mxu0 %v1739
        %1743 = vmatprep.subr.bf16.mxu0 0
        %1744 = vmatpush1.bf16.msra.mxu0 0
        %1745 = vmatprep.subr.bf16.mxu0 0
        %1746 = vmatpush1.bf16.msra.mxu0 0
        %1747 = vmatprep.subr.bf16.mxu0 0
        %1748 = vmatpush1.bf16.msra.mxu0 0
        %1749 = vmatprep.subr.bf16.mxu0 0
        %1750 = vmatpush1.bf16.msra.mxu0 0
        %1751 = vmatprep.subr.bf16.mxu0 0
        %1752 = vmatpush1.bf16.msra.mxu0 0
        %1753 = vmatprep.subr.bf16.mxu0 0
        %1754 = vmatpush1.bf16.msra.mxu0 0
        %1755 = vmatprep.subr.bf16.mxu0 0
        %1756 = vmatpush1.bf16.msra.mxu0 0
        %1757 = vmatprep.subr.bf16.mxu0 0
        %1758 = vmatpush1.bf16.msra.mxu0 0
        %1759 = vmatprep.subr.bf16.mxu0 0
        %1760 = vmatpush1.bf16.msra.mxu0 0
        %1761 = vmatprep.subr.bf16.mxu0 0
        %1762 = vmatpush1.bf16.msra.mxu0 0
        %1763 = vmatprep.subr.bf16.mxu0 0
        %1764 = vmatpush1.bf16.msra.mxu0 0
        %1765 = vmatprep.subr.bf16.mxu0 0
        %1766 = vmatpush1.bf16.msra.mxu0 0
        %1767 = vmatprep.subr.bf16.mxu0 0
        %1768 = vmatpush1.bf16.msra.mxu0 0
        %1769 = vmatprep.subr.bf16.mxu0 0
        %1770 = vmatpush1.bf16.msra.mxu0 0
        %1771 = vmatprep.subr.bf16.mxu0 0
        %1772 = vmatpush1.bf16.msra.mxu0 0
        %1773 = vmatprep.mubr.bf16.mxu0 0
        %1774 = vmatmul.mubr.bf16.gmra.mrb[0].mxu0 %v1736
        %v1775 = vpop.f32.mrb[0].mxu0
        %v1776 = vadd.f32 0.0, %v1775
        %v1777 = vpop.f32.mrb[0].mxu0
        %v1778 = vpop.f32.mrb[0].mxu0
        %v1779 = vpop.f32.mrb[0].mxu0
        %1780 = vdwg.mxu0
        %1781 = vrot.lane.b32.xlu0 %v1555, 112
        %v1782 = vpop.permute.xlu0 %1781
        %1783 = vrot.lane.b32.xlu0 %v1556, 112
        %v1784 = vpop.permute.xlu0 %1783
        %v1786 = vsel %vm867, %v1782, 0
        %v1789 = vsel %vm867, %v1784, 0
        %1791 = vmatprep.subr.bf16.mxu0 0
        %1792 = vmatpush1.bf16.xpose.msra.mxu0 %v1789
        %1793 = vmatprep.subr.bf16.mxu0 0
        %1794 = vmatpush1.bf16.xpose.msra.mxu0 0
        %1795 = vmatprep.subr.bf16.mxu0 0
        %1796 = vmatpush1.bf16.xpose.msra.mxu0 0
        %1797 = vmatprep.subr.bf16.mxu0 0
        %1798 = vmatpush1.bf16.xpose.msra.mxu0 0
        %1799 = vmatprep.subr.bf16.mxu0 0
        %1800 = vmatpush1.bf16.xpose.msra.mxu0 0
        %1801 = vmatprep.subr.bf16.mxu0 0
        %1802 = vmatpush1.bf16.xpose.msra.mxu0 0
        %1803 = vmatprep.subr.bf16.mxu0 0
        %1804 = vmatpush1.bf16.xpose.msra.mxu0 0
        %1805 = vmatprep.subr.bf16.mxu0 0
        %1806 = vmatpush1.bf16.xpose.msra.mxu0 0
        %1807 = vmatprep.subr.bf16.mxu0 0
        %1808 = vmatpush1.bf16.xpose.msra.mxu0 0
        %1809 = vmatprep.subr.bf16.mxu0 0
        %1810 = vmatpush1.bf16.xpose.msra.mxu0 0
        %1811 = vmatprep.subr.bf16.mxu0 0
        %1812 = vmatpush1.bf16.xpose.msra.mxu0 0
        %1813 = vmatprep.subr.bf16.mxu0 0
        %1814 = vmatpush1.bf16.xpose.msra.mxu0 0
        %1815 = vmatprep.subr.bf16.mxu0 0
        %1816 = vmatpush1.bf16.xpose.msra.mxu0 0
        %1817 = vmatprep.subr.bf16.mxu0 0
        %1818 = vmatpush1.bf16.xpose.msra.mxu0 0
        %1819 = vmatprep.subr.bf16.mxu0 0
        %1820 = vmatpush1.bf16.xpose.msra.mxu0 0
        %1821 = vmatprep.subr.bf16.mxu0 0
        %1822 = vmatpush1.bf16.xpose.msra.mxu0 0
        %1823 = vmatprep.mubr.bf16.mxu0 0
        %1824 = vmatmul.mubr.bf16.gmra.mrb[0].mxu0 %v1786
        %v1825 = vpop.f32.mrb[0].mxu0
        %v1826 = vadd.f32 %v1561, %v1825
        %v1827 = vpop.f32.mrb[0].mxu0
        %v1828 = vpop.f32.mrb[0].mxu0
        %v1829 = vpop.f32.mrb[0].mxu0
        %1830 = vdwg.mxu0
        %v1831 = vsel %vm867, %v1826, -inf
        %1832 = vmax.xlane.f32.xlu0 %v1831
        %v1833 = vpop.xlane.xlu0 %1832
        %v1834 = vsub.f32 %v1826, %v1833
        %v1835 = vmul.f32 %v1834, 1.442695
        %v1836 = vpow.pop %v1835
        %v1837 = vsel %vm867, %v1836, 0.0
        %1838 = vadd.xlane.f32.xlu0 %v1837
        %v1839 = vpop.xlane.xlu0 %1838
        %v1840 = vrcp.pop %v1839
        %v1841 = vmul.f32 %v1836, %v1840
        %v1842 = vpack.c.bf16 %v1841, %v1841
        %1843 = vrot.lane.b32.xlu0 %v1556, 80
        %v1844 = vpop.permute.xlu0 %1843
        %v1846 = vsel %vm867, %v1842, 0
        %v1849 = vsel %vm931, %v1844, 0
        %1851 = vmatprep.subr.bf16.mxu0 0
        %1852 = vmatpush1.bf16.msra.mxu0 %v1849
        %1853 = vmatprep.subr.bf16.mxu0 0
        %1854 = vmatpush1.bf16.msra.mxu0 0
        %1855 = vmatprep.subr.bf16.mxu0 0
        %1856 = vmatpush1.bf16.msra.mxu0 0
        %1857 = vmatprep.subr.bf16.mxu0 0
        %1858 = vmatpush1.bf16.msra.mxu0 0
        %1859 = vmatprep.subr.bf16.mxu0 0
        %1860 = vmatpush1.bf16.msra.mxu0 0
        %1861 = vmatprep.subr.bf16.mxu0 0
        %1862 = vmatpush1.bf16.msra.mxu0 0
        %1863 = vmatprep.subr.bf16.mxu0 0
        %1864 = vmatpush1.bf16.msra.mxu0 0
        %1865 = vmatprep.subr.bf16.mxu0 0
        %1866 = vmatpush1.bf16.msra.mxu0 0
        %1867 = vmatprep.subr.bf16.mxu0 0
        %1868 = vmatpush1.bf16.msra.mxu0 0
        %1869 = vmatprep.subr.bf16.mxu0 0
        %1870 = vmatpush1.bf16.msra.mxu0 0
        %1871 = vmatprep.subr.bf16.mxu0 0
        %1872 = vmatpush1.bf16.msra.mxu0 0
        %1873 = vmatprep.subr.bf16.mxu0 0
        %1874 = vmatpush1.bf16.msra.mxu0 0
        %1875 = vmatprep.subr.bf16.mxu0 0
        %1876 = vmatpush1.bf16.msra.mxu0 0
        %1877 = vmatprep.subr.bf16.mxu0 0
        %1878 = vmatpush1.bf16.msra.mxu0 0
        %1879 = vmatprep.subr.bf16.mxu0 0
        %1880 = vmatpush1.bf16.msra.mxu0 0
        %1881 = vmatprep.subr.bf16.mxu0 0
        %1882 = vmatpush1.bf16.msra.mxu0 0
        %1883 = vmatprep.mubr.bf16.mxu0 0
        %1884 = vmatmul.mubr.bf16.gmra.mrb[0].mxu0 %v1846
        %v1885 = vpop.f32.mrb[0].mxu0
        %v1886 = vadd.f32 0.0, %v1885
        %v1887 = vpop.f32.mrb[0].mxu0
        %v1888 = vpop.f32.mrb[0].mxu0
        %v1889 = vpop.f32.mrb[0].mxu0
        %1890 = vdwg.mxu0
        %1891 = vrot.lane.b32.xlu0 %v1555, 104
        %v1892 = vpop.permute.xlu0 %1891
        %1893 = vrot.lane.b32.xlu0 %v1556, 104
        %v1894 = vpop.permute.xlu0 %1893
        %v1896 = vsel %vm867, %v1892, 0
        %v1899 = vsel %vm867, %v1894, 0
        %1901 = vmatprep.subr.bf16.mxu0 0
        %1902 = vmatpush1.bf16.xpose.msra.mxu0 %v1899
        %1903 = vmatprep.subr.bf16.mxu0 0
        %1904 = vmatpush1.bf16.xpose.msra.mxu0 0
        %1905 = vmatprep.subr.bf16.mxu0 0
        %1906 = vmatpush1.bf16.xpose.msra.mxu0 0
        %1907 = vmatprep.subr.bf16.mxu0 0
        %1908 = vmatpush1.bf16.xpose.msra.mxu0 0
        %1909 = vmatprep.subr.bf16.mxu0 0
        %1910 = vmatpush1.bf16.xpose.msra.mxu0 0
        %1911 = vmatprep.subr.bf16.mxu0 0
        %1912 = vmatpush1.bf16.xpose.msra.mxu0 0
        %1913 = vmatprep.subr.bf16.mxu0 0
        %1914 = vmatpush1.bf16.xpose.msra.mxu0 0
        %1915 = vmatprep.subr.bf16.mxu0 0
        %1916 = vmatpush1.bf16.xpose.msra.mxu0 0
        %1917 = vmatprep.subr.bf16.mxu0 0
        %1918 = vmatpush1.bf16.xpose.msra.mxu0 0
        %1919 = vmatprep.subr.bf16.mxu0 0
        %1920 = vmatpush1.bf16.xpose.msra.mxu0 0
        %1921 = vmatprep.subr.bf16.mxu0 0
        %1922 = vmatpush1.bf16.xpose.msra.mxu0 0
        %1923 = vmatprep.subr.bf16.mxu0 0
        %1924 = vmatpush1.bf16.xpose.msra.mxu0 0
        %1925 = vmatprep.subr.bf16.mxu0 0
        %1926 = vmatpush1.bf16.xpose.msra.mxu0 0
        %1927 = vmatprep.subr.bf16.mxu0 0
        %1928 = vmatpush1.bf16.xpose.msra.mxu0 0
        %1929 = vmatprep.subr.bf16.mxu0 0
        %1930 = vmatpush1.bf16.xpose.msra.mxu0 0
        %1931 = vmatprep.subr.bf16.mxu0 0
        %1932 = vmatpush1.bf16.xpose.msra.mxu0 0
        %1933 = vmatprep.mubr.bf16.mxu0 0
        %1934 = vmatmul.mubr.bf16.gmra.mrb[0].mxu0 %v1896
        %v1935 = vpop.f32.mrb[0].mxu0
        %v1936 = vadd.f32 %v1561, %v1935
        %v1937 = vpop.f32.mrb[0].mxu0
        %v1938 = vpop.f32.mrb[0].mxu0
        %v1939 = vpop.f32.mrb[0].mxu0
        %1940 = vdwg.mxu0
        %v1941 = vsel %vm867, %v1936, -inf
        %1942 = vmax.xlane.f32.xlu0 %v1941
        %v1943 = vpop.xlane.xlu0 %1942
        %v1944 = vsub.f32 %v1936, %v1943
        %v1945 = vmul.f32 %v1944, 1.442695
        %v1946 = vpow.pop %v1945
        %v1947 = vsel %vm867, %v1946, 0.0
        %1948 = vadd.xlane.f32.xlu0 %v1947
        %v1949 = vpop.xlane.xlu0 %1948
        %v1950 = vrcp.pop %v1949
        %v1951 = vmul.f32 %v1946, %v1950
        %v1952 = vpack.c.bf16 %v1951, %v1951
        %1953 = vrot.lane.b32.xlu0 %v1556, 72
        %v1954 = vpop.permute.xlu0 %1953
        %v1956 = vsel %vm867, %v1952, 0
        %v1959 = vsel %vm931, %v1954, 0
        %1961 = vmatprep.subr.bf16.mxu0 0
        %1962 = vmatpush1.bf16.msra.mxu0 %v1959
        %1963 = vmatprep.subr.bf16.mxu0 0
        %1964 = vmatpush1.bf16.msra.mxu0 0
        %1965 = vmatprep.subr.bf16.mxu0 0
        %1966 = vmatpush1.bf16.msra.mxu0 0
        %1967 = vmatprep.subr.bf16.mxu0 0
        %1968 = vmatpush1.bf16.msra.mxu0 0
        %1969 = vmatprep.subr.bf16.mxu0 0
        %1970 = vmatpush1.bf16.msra.mxu0 0
        %1971 = vmatprep.subr.bf16.mxu0 0
        %1972 = vmatpush1.bf16.msra.mxu0 0
        %1973 = vmatprep.subr.bf16.mxu0 0
        %1974 = vmatpush1.bf16.msra.mxu0 0
        %1975 = vmatprep.subr.bf16.mxu0 0
        %1976 = vmatpush1.bf16.msra.mxu0 0
        %1977 = vmatprep.subr.bf16.mxu0 0
        %1978 = vmatpush1.bf16.msra.mxu0 0
        %1979 = vmatprep.subr.bf16.mxu0 0
        %1980 = vmatpush1.bf16.msra.mxu0 0
        %1981 = vmatprep.subr.bf16.mxu0 0
        %1982 = vmatpush1.bf16.msra.mxu0 0
        %1983 = vmatprep.subr.bf16.mxu0 0
        %1984 = vmatpush1.bf16.msra.mxu0 0
        %1985 = vmatprep.subr.bf16.mxu0 0
        %1986 = vmatpush1.bf16.msra.mxu0 0
        %1987 = vmatprep.subr.bf16.mxu0 0
        %1988 = vmatpush1.bf16.msra.mxu0 0
        %1989 = vmatprep.subr.bf16.mxu0 0
        %1990 = vmatpush1.bf16.msra.mxu0 0
        %1991 = vmatprep.subr.bf16.mxu0 0
        %1992 = vmatpush1.bf16.msra.mxu0 0
        %1993 = vmatprep.mubr.bf16.mxu0 0
        %1994 = vmatmul.mubr.bf16.gmra.mrb[0].mxu0 %v1956
        %v1995 = vpop.f32.mrb[0].mxu0
        %v1996 = vadd.f32 0.0, %v1995
        %v1997 = vpop.f32.mrb[0].mxu0
        %v1998 = vpop.f32.mrb[0].mxu0
        %v1999 = vpop.f32.mrb[0].mxu0
        %2000 = vdwg.mxu0
        %2002 = vrot.lane.b32.xlu0 %v1776, 8
        %v2003 = vpop.permute.xlu0 %2002
        %2006 = vrot.lane.b32.xlu0 %v1886, 16
        %v2007 = vpop.permute.xlu0 %2006
        %2010 = vrot.lane.b32.xlu0 %v1996, 24
        %v2011 = vpop.permute.xlu0 %2010
        %v2013 = vsel %vm867, %v1665, %v2003
        %v2014 = vsel %vm1318, %v2013, %v2007
        %v2015 = vsel %vm1320, %v2014, %v2011
        %v2016 = vpack.c.bf16 %v2015, %v2015
        %v2017 = vld [vmem:[%s14] sm:$0xf]
        %v2018 = vld [vmem:[%s14 + $0x4] sm:$0xf]
        %v2019 = vld [vmem:[%s14 + $0x8] sm:$0xf]
        %v2020 = vld [vmem:[%s14 + $0xc] sm:$0xf]
        %v2021 = vld [vmem:[%s15] sm:$0x1]
        %v2023 = vlaneseq
        %v2024 = vshrl.u32 %v2023, 7
        %v2025 = vsub.s32 0, %v2024
        %v2026 = vrot.slane %v2021, %v2025
        %v2032 = vunpack.c.l.b16 %v2017
        %v2033 = vunpack.c.l.b16 %v2018
        %v2034 = vunpack.c.l.b16 %v2019
        %v2035 = vunpack.c.l.b16 %v2020
        %v2036 = vpack.c.b16 %v2033, %v2032
        %v2037 = vpack.c.b16 %v2035, %v2034
        %v2041 = vsel %vm805, %v2016, 0
        %2043 = vmatprep.subr.bf16.mxu0 0
        %2044 = vmatpush1.bf16.msra.mxu0 %v2036
        %2045 = vmatprep.subr.bf16.mxu0 0
        %2046 = vmatpush1.bf16.msra.mxu0 %v2037
        %2047 = vmatprep.subr.bf16.mxu0 0
        %2048 = vmatpush1.bf16.msra.mxu0 0
        %2049 = vmatprep.subr.bf16.mxu0 0
        %2050 = vmatpush1.bf16.msra.mxu0 0
        %2051 = vmatprep.subr.bf16.mxu0 0
        %2052 = vmatpush1.bf16.msra.mxu0 0
        %2053 = vmatprep.subr.bf16.mxu0 0
        %2054 = vmatpush1.bf16.msra.mxu0 0
        %2055 = vmatprep.subr.bf16.mxu0 0
        %2056 = vmatpush1.bf16.msra.mxu0 0
        %2057 = vmatprep.subr.bf16.mxu0 0
        %2058 = vmatpush1.bf16.msra.mxu0 0
        %2059 = vmatprep.subr.bf16.mxu0 0
        %2060 = vmatpush1.bf16.msra.mxu0 0
        %2061 = vmatprep.subr.bf16.mxu0 0
        %2062 = vmatpush1.bf16.msra.mxu0 0
        %2063 = vmatprep.subr.bf16.mxu0 0
        %2064 = vmatpush1.bf16.msra.mxu0 0
        %2065 = vmatprep.subr.bf16.mxu0 0
        %2066 = vmatpush1.bf16.msra.mxu0 0
        %2067 = vmatprep.subr.bf16.mxu0 0
        %2068 = vmatpush1.bf16.msra.mxu0 0
        %2069 = vmatprep.subr.bf16.mxu0 0
        %2070 = vmatpush1.bf16.msra.mxu0 0
        %2071 = vmatprep.subr.bf16.mxu0 0
        %2072 = vmatpush1.bf16.msra.mxu0 0
        %2073 = vmatprep.subr.bf16.mxu0 0
        %2074 = vmatpush1.bf16.msra.mxu0 0
        %2075 = vmatprep.mubr.bf16.mxu0 0
        %2076 = vmatmul.mubr.bf16.gmra.mrb[0].mxu0 %v2041
        %v2077 = vpop.f32.mrb[0].mxu0
        %v2078 = vadd.f32 %v2026, %v2077
        %v2079 = vpop.f32.mrb[0].mxu0
        %v2080 = vpop.f32.mrb[0].mxu0
        %v2081 = vpop.f32.mrb[0].mxu0
        %2082 = vdwg.mxu0
        %v2083 = vadd.f32 %v1419, %v2078
        %v2084 = vsel %vm805, %v2083, 0.0
        %2085 = vadd.xlane.f32.xlu0 %v2084
        %v2086 = vpop.xlane.xlu0 %2085
        %v2087 = vmul.f32 %v2086, %v1393
        %v2088 = vsub.f32 %v2083, %v2087
        %v2089 = vmul.f32 %v2088, %v2088
        %v2090 = vsel %vm805, %v2089, 0.0
        %2091 = vadd.xlane.f32.xlu0 %v2090
        %v2092 = vpop.xlane.xlu0 %2091
        %v2093 = vmul.f32 %v2092, %v1393
        %v2094 = vadd.f32 %v2093, 1e-05
        %v2095 = vrsqrt.pop %v2094
        %v2096 = vmul.f32 %v2088, %v2095
        %v2097 = vld [vmem:[%s16] sm:$0x1]
        %v2099 = vlaneseq
        %v2100 = vshrl.u32 %v2099, 7
        %v2101 = vsub.s32 0, %v2100
        %v2102 = vrot.slane %v2097, %v2101
        %v2104 = vmul.f32 %v2096, %v2102
        %v2105 = vld [vmem:[%s17] sm:$0x1]
        %v2107 = vlaneseq
        %v2108 = vshrl.u32 %v2107, 7
        %v2109 = vsub.s32 0, %v2108
        %v2110 = vrot.slane %v2105, %v2109
        %v2112 = vadd.f32 %v2104, %v2110
        %v2113 = vpack.c.bf16 %v2112, %v2112
        %v2114 = vld [vmem:[%s18] sm:$0xf]
        %v2115 = vld [vmem:[%s18 + $0x4] sm:$0xf]
        %v2116 = vld [vmem:[%s18 + $0x8] sm:$0xf]
        %v2117 = vld [vmem:[%s18 + $0xc] sm:$0xf]
        %v2118 = vld [vmem:[%s19] sm:$0x1]
        %v2120 = vlaneseq
        %v2121 = vshrl.u32 %v2120, 7
        %v2122 = vsub.s32 0, %v2121
        %v2123 = vrot.slane %v2118, %v2122
        %v2129 = vunpack.c.l.b16 %v2114
        %v2130 = vunpack.c.l.b16 %v2115
        %v2131 = vunpack.c.l.b16 %v2116
        %v2132 = vunpack.c.l.b16 %v2117
        %v2133 = vpack.c.b16 %v2130, %v2129
        %v2134 = vpack.c.b16 %v2132, %v2131
        %v2138 = vsel %vm805, %v2113, 0
        %2140 = vmatprep.subr.bf16.mxu0 0
        %2141 = vmatpush1.bf16.msra.mxu0 %v2133
        %2142 = vmatprep.subr.bf16.mxu0 0
        %2143 = vmatpush1.bf16.msra.mxu0 %v2134
        %2144 = vmatprep.subr.bf16.mxu0 0
        %2145 = vmatpush1.bf16.msra.mxu0 0
        %2146 = vmatprep.subr.bf16.mxu0 0
        %2147 = vmatpush1.bf16.msra.mxu0 0
        %2148 = vmatprep.subr.bf16.mxu0 0
        %2149 = vmatpush1.bf16.msra.mxu0 0
        %2150 = vmatprep.subr.bf16.mxu0 0
        %2151 = vmatpush1.bf16.msra.mxu0 0
        %2152 = vmatprep.subr.bf16.mxu0 0
        %2153 = vmatpush1.bf16.msra.mxu0 0
        %2154 = vmatprep.subr.bf16.mxu0 0
        %2155 = vmatpush1.bf16.msra.mxu0 0
        %2156 = vmatprep.subr.bf16.mxu0 0
        %2157 = vmatpush1.bf16.msra.mxu0 0
        %2158 = vmatprep.subr.bf16.mxu0 0
        %2159 = vmatpush1.bf16.msra.mxu0 0
        %2160 = vmatprep.subr.bf16.mxu0 0
        %2161 = vmatpush1.bf16.msra.mxu0 0
        %2162 = vmatprep.subr.bf16.mxu0 0
        %2163 = vmatpush1.bf16.msra.mxu0 0
        %2164 = vmatprep.subr.bf16.mxu0 0
        %2165 = vmatpush1.bf16.msra.mxu0 0
        %2166 = vmatprep.subr.bf16.mxu0 0
        %2167 = vmatpush1.bf16.msra.mxu0 0
        %2168 = vmatprep.subr.bf16.mxu0 0
        %2169 = vmatpush1.bf16.msra.mxu0 0
        %2170 = vmatprep.subr.bf16.mxu0 0
        %2171 = vmatpush1.bf16.msra.mxu0 0
        %2172 = vmatprep.mubr.bf16.mxu0 0
        %2173 = vmatmul.mubr.bf16.gmra.mrb[0].mxu0 %v2138
        %v2174 = vpop.f32.mrb[0].mxu0
        %v2175 = vadd.f32 %v2123, %v2174
        %v2176 = vpop.f32.mrb[0].mxu0
        %v2177 = vpop.f32.mrb[0].mxu0
        %v2178 = vpop.f32.mrb[0].mxu0
        %2179 = vdwg.mxu0
        %v2180 = vmul.f32 %v2175, 0.5
        %v2181 = vmul.f32 %v2175, 0.70710677
        %vm2182 = vcmp.ge.f32.partialorder %v2181, 0.0
        %v2183 = vsel %vm2182, 1.0, -1.0
        %v2184 = vand.u32 2147483647, %v2181
        %v2185 = vmul.f32 %v2184, 0.3275911
        %v2186 = vadd.f32 %v2185, 1.0
        %v2187 = vrcp.pop %v2186
        %v2188 = vmul.f32 1.0, %v2187
        %v2189 = vmul.f32 %v2188, 1.0614054
        %v2190 = vadd.f32 %v2189, -1.4531521
        %v2191 = vmul.f32 %v2190, %v2188
        %v2192 = vadd.f32 %v2191, 1.4214138
        %v2193 = vmul.f32 %v2192, %v2188
        %v2194 = vadd.f32 %v2193, -0.28449672
        %v2195 = vmul.f32 %v2194, %v2188
        %v2196 = vadd.f32 %v2195, 0.2548296
        %v2197 = vmul.f32 %v2196, %v2188
        %v2198 = vsub.f32 0.0, %v2184
        %v2199 = vmul.f32 %v2198, %v2184
        %v2200 = vmul.f32 %v2199, 1.442695
        %v2201 = vpow.pop %v2200
        %v2202 = vmul.f32 %v2197, %v2201
        %v2203 = vsub.f32 1.0, %v2202
        %v2204 = vmul.f32 %v2183, %v2203
        %v2205 = vadd.f32 %v2204, 1.0
        %v2206 = vmul.f32 %v2180, %v2205
        %v2207 = vpack.c.bf16 %v2206, %v2206
        %v2208 = vld [vmem:[%s20] sm:$0xf]
        %v2209 = vld [vmem:[%s20 + $0x4] sm:$0xf]
        %v2210 = vld [vmem:[%s20 + $0x8] sm:$0xf]
        %v2211 = vld [vmem:[%s20 + $0xc] sm:$0xf]
        %v2212 = vld [vmem:[%s20 + $0x10] sm:$0xf]
        %v2213 = vld [vmem:[%s20 + $0x14] sm:$0xf]
        %v2214 = vld [vmem:[%s20 + $0x18] sm:$0xf]
        %v2215 = vld [vmem:[%s20 + $0x1c] sm:$0xf]
        %v2216 = vld [vmem:[%s21] sm:$0x1]
        %v2218 = vlaneseq
        %v2219 = vshrl.u32 %v2218, 7
        %v2220 = vsub.s32 0, %v2219
        %v2221 = vrot.slane %v2216, %v2220
        %v2231 = vunpack.c.l.b16 %v2208
        %v2232 = vunpack.c.l.b16 %v2209
        %v2233 = vunpack.c.l.b16 %v2210
        %v2234 = vunpack.c.l.b16 %v2211
        %v2235 = vunpack.c.l.b16 %v2212
        %v2236 = vunpack.c.l.b16 %v2213
        %v2237 = vunpack.c.l.b16 %v2214
        %v2238 = vunpack.c.l.b16 %v2215
        %v2239 = vpack.c.b16 %v2232, %v2231
        %v2240 = vpack.c.b16 %v2234, %v2233
        %v2241 = vpack.c.b16 %v2236, %v2235
        %v2242 = vpack.c.b16 %v2238, %v2237
        %vm2247 = vcmask 523264
        %v2249 = vsel %vm2247, %v2207, 0
        %2251 = vmatprep.subr.bf16.mxu0 0
        %2252 = vmatpush1.bf16.msra.mxu0 %v2239
        %2253 = vmatprep.subr.bf16.mxu0 0
        %2254 = vmatpush1.bf16.msra.mxu0 %v2240
        %2255 = vmatprep.subr.bf16.mxu0 0
        %2256 = vmatpush1.bf16.msra.mxu0 %v2241
        %2257 = vmatprep.subr.bf16.mxu0 0
        %2258 = vmatpush1.bf16.msra.mxu0 %v2242
        %2259 = vmatprep.subr.bf16.mxu0 0
        %2260 = vmatpush1.bf16.msra.mxu0 0
        %2261 = vmatprep.subr.bf16.mxu0 0
        %2262 = vmatpush1.bf16.msra.mxu0 0
        %2263 = vmatprep.subr.bf16.mxu0 0
        %2264 = vmatpush1.bf16.msra.mxu0 0
        %2265 = vmatprep.subr.bf16.mxu0 0
        %2266 = vmatpush1.bf16.msra.mxu0 0
        %2267 = vmatprep.subr.bf16.mxu0 0
        %2268 = vmatpush1.bf16.msra.mxu0 0
        %2269 = vmatprep.subr.bf16.mxu0 0
        %2270 = vmatpush1.bf16.msra.mxu0 0
        %2271 = vmatprep.subr.bf16.mxu0 0
        %2272 = vmatpush1.bf16.msra.mxu0 0
        %2273 = vmatprep.subr.bf16.mxu0 0
        %2274 = vmatpush1.bf16.msra.mxu0 0
        %2275 = vmatprep.subr.bf16.mxu0 0
        %2276 = vmatpush1.bf16.msra.mxu0 0
        %2277 = vmatprep.subr.bf16.mxu0 0
        %2278 = vmatpush1.bf16.msra.mxu0 0
        %2279 = vmatprep.subr.bf16.mxu0 0
        %2280 = vmatpush1.bf16.msra.mxu0 0
        %2281 = vmatprep.subr.bf16.mxu0 0
        %2282 = vmatpush1.bf16.msra.mxu0 0
        %2283 = vmatprep.mubr.bf16.mxu0 0
        %2284 = vmatmul.mubr.bf16.gmra.mrb[0].mxu0 %v2249
        %v2285 = vpop.f32.mrb[0].mxu0
        %v2286 = vadd.f32 %v2221, %v2285
        %v2287 = vpop.f32.mrb[0].mxu0
        %v2288 = vpop.f32.mrb[0].mxu0
        %v2289 = vpop.f32.mrb[0].mxu0
        %2290 = vdwg.mxu0
        %v2291 = vadd.f32 %v2112, %v2286
        %v2292 = vsel %vm805, %v2291, 0.0
        %2293 = vadd.xlane.f32.xlu0 %v2292
        %v2294 = vpop.xlane.xlu0 %2293
        %v2295 = vmul.f32 %v2294, %v1393
        %v2296 = vsub.f32 %v2291, %v2295
        %v2297 = vmul.f32 %v2296, %v2296
        %v2298 = vsel %vm805, %v2297, 0.0
        %2299 = vadd.xlane.f32.xlu0 %v2298
        %v2300 = vpop.xlane.xlu0 %2299
        %v2301 = vmul.f32 %v2300, %v1393
        %v2302 = vadd.f32 %v2301, 1e-05
        %v2303 = vrsqrt.pop %v2302
        %v2304 = vmul.f32 %v2296, %v2303
        %v2305 = vld [vmem:[%s22] sm:$0x1]
        %v2307 = vlaneseq
        %v2308 = vshrl.u32 %v2307, 7
        %v2309 = vsub.s32 0, %v2308
        %v2310 = vrot.slane %v2305, %v2309
        %v2312 = vmul.f32 %v2304, %v2310
        %v2313 = vld [vmem:[%s23] sm:$0x1]
        %v2315 = vlaneseq
        %v2316 = vshrl.u32 %v2315, 7
        %v2317 = vsub.s32 0, %v2316
        %v2318 = vrot.slane %v2313, %v2317
        %v2320 = vadd.f32 %v2312, %v2318
        %2321 = vst.msk [vmem:[%s763] sm:$0xff] %vm805, %v2320
        %s2322 = sand.u32 %s570, 1
        %s2323 = scalar_lea.sflag [#allocation3], %s2322
        %s2324 = sand.u32 %s570, 1
        %s2325 = smul.addr %s2324, 8
        %s2326 = scalar_lea.vmem [#allocation2], %s2325
        // Predicated region
        $region117: #{cptg_dec_forward.5} parent=115 // pred_check
          %p2327 = pneg %p580
        $region118: #{cptg_dec_forward.5} parent=115 // pred_check_branch
          %2329 = sbr.rel (%p2327) target = $region120
        $region119: #{cptg_dec_forward.5} parent=115 // pred_region
          %s2331 = ssub.s32 128, 128
          %2332 = vsyncadd %s2323, %s2331
          %s2333 = smul.addr %s38, 128
          %s2334 = scalar_lea.hbm %s24, %s2333
          %s2336 = sshll.u32 %s2326, 4
          %s2337 = int_to_ptr.vmem [resolvable:$true] %s2336
          %2339 = dma.vmem_to_hbm [thread:$0]  %s2337, 128, %s2334, %s2323
        $region120: #{cptg_dec_forward.5} parent=115 // pred_fallthru
          _
      $region116: #{cptg_dec_forward.5} parent=5 // pred_fallthru
        _
      %p2340 = scmp.le.s32.totalorder 2, %s33
      // Predicated region
      $region121: #{cptg_dec_forward.5} parent=5 // pred_check
        %p2341 = pneg %p2340
      $region122: #{cptg_dec_forward.5} parent=5 // pred_check_branch
        %2343 = sbr.rel (%p2341) target = $region124
      $region123: #{cptg_dec_forward.5} parent=5 // pred_region
        %s2344 = ssub.s32 %s33, 2
        // Predicated region
        $region125: #{cptg_dec_forward.5} parent=123 // pred_check
          %p2345 = pneg %p586
        $region126: #{cptg_dec_forward.5} parent=123 // pred_check_branch
          %2347 = sbr.rel (%p2345) target = $region128
        $region127: #{cptg_dec_forward.5} parent=123 // pred_region
          %s2348 = sand.u32 %s571, 1
          %s2349 = scalar_lea.sflag [#allocation3], %s2348
          %s2350 = sand.u32 %s571, 1
          %s2351 = smul.addr %s2350, 8
          %s2352 = scalar_lea.vmem [#allocation2], %s2351
          %2353 = dma.done %s2349, 128
        $region128: #{cptg_dec_forward.5} parent=123 // pred_fallthru
          _
      $region124: #{cptg_dec_forward.5} parent=5 // pred_fallthru
        _
    $region6: #{cptg_dec_forward.5} parent=1 // loop_footer
      %s37 = sadd.s32 1, %s33
    $region7: #{cptg_dec_forward.5} parent=1 // loop_footer_branch
      %32 = sbr.rel target = $region3
    $region8: #{cptg_dec_forward.5} parent=1 // loop_exit
      _
    %2354 = vsyncpa [#allocation3], 1
    %s2355 = scalar_lea.sflag [#allocation3], 1
    %2356 = vsyncpa %s2355, 1

// kernel: cptg_dec_forward.4
$region0: #{cptg_dec_forward.4}
  #allocation0 [shape = 'u32[]', space=smem, size = 0x4, offset = 0x4, fixed_abs, tag = 'smem constant byte address 0x4 - core index']
  #allocation1 [shape = 'u32[144,128]{1,0:T(1,128)}', space=vmem, size = 0x12000, scoped, tag = 'internal scratch']
  %s0 = inlined_call_operand.vmem [shape: f32[2,8,32], index: 0, kind: input, shape index: {}]
  %s1 = inlined_call_operand.vmem [shape: f32[2,8,32], index: 1, kind: input, shape index: {}]
  %s2 = inlined_call_operand.vmem [shape: f32[2,1,8], index: 2, kind: input, shape index: {}]
  %s3 = inlined_call_operand.vmem [shape: f32[2,1,8], index: 3, kind: input, shape index: {}]
  %s4 = inlined_call_operand.vmem [shape: bf16[32,96], index: 4, kind: input, shape index: {}]
  %s5 = inlined_call_operand.vmem [shape: f32[1,96], index: 5, kind: input, shape index: {}]
  %s6 = inlined_call_operand.vmem [shape: bf16[32,32], index: 6, kind: input, shape index: {}]
  %s7 = inlined_call_operand.vmem [shape: f32[1,32], index: 7, kind: input, shape index: {}, may-alias: {7,9,11,15,17,21,23}]
  %s8 = inlined_call_operand.vmem [shape: f32[1,32], index: 8, kind: input, shape index: {}, may-alias: {8,16,22}]
  %s9 = inlined_call_operand.vmem [shape: f32[1,32], index: 9, kind: input, shape index: {}, may-alias: {7,9,11,15,17,21,23}]
  %s10 = inlined_call_operand.vmem [shape: bf16[32,32], index: 10, kind: input, shape index: {}]
  %s11 = inlined_call_operand.vmem [shape: f32[1,32], index: 11, kind: input, shape index: {}, may-alias: {7,9,11,15,17,21,23}]
  %s12 = inlined_call_operand.vmem [shape: bf16[32,64], index: 12, kind: input, shape index: {}]
  %s13 = inlined_call_operand.vmem [shape: f32[1,64], index: 13, kind: input, shape index: {}, may-alias: {13,19}]
  %s14 = inlined_call_operand.vmem [shape: bf16[32,32], index: 14, kind: input, shape index: {}]
  %s15 = inlined_call_operand.vmem [shape: f32[1,32], index: 15, kind: input, shape index: {}, may-alias: {7,9,11,15,17,21,23}]
  %s16 = inlined_call_operand.vmem [shape: f32[1,32], index: 16, kind: input, shape index: {}, may-alias: {8,16,22}]
  %s17 = inlined_call_operand.vmem [shape: f32[1,32], index: 17, kind: input, shape index: {}, may-alias: {7,9,11,15,17,21,23}]
  %s18 = inlined_call_operand.vmem [shape: bf16[32,64], index: 18, kind: input, shape index: {}]
  %s19 = inlined_call_operand.vmem [shape: f32[1,64], index: 19, kind: input, shape index: {}, may-alias: {13,19}]
  %s20 = inlined_call_operand.vmem [shape: bf16[64,32], index: 20, kind: input, shape index: {}]
  %s21 = inlined_call_operand.vmem [shape: f32[1,32], index: 21, kind: input, shape index: {}, may-alias: {7,9,11,15,17,21,23}]
  %s22 = inlined_call_operand.vmem [shape: f32[1,32], index: 22, kind: input, shape index: {}, may-alias: {8,16,22}]
  %s23 = inlined_call_operand.vmem [shape: f32[1,32], index: 23, kind: input, shape index: {}, may-alias: {7,9,11,15,17,21,23}]
  %s24 = inlined_call_operand.vmem [shape: f32[2,8,32], index: 24, kind: output, shape index: {}]
  %s25 = sld [smem:[#allocation0]]
  $region129: #{cptg_dec_forward.4} parent=0
    _
  %s27 = ssub.s32 1, %s25
  %s28 = scalar_select 0, %s27, %s25
  loop: start=0, step=1, limit=4
  $region2: #{cptg_dec_forward.4} parent=0 // loop_pre_header
    _
  $region3: #{cptg_dec_forward.4} parent=0 // loop_header
    %s30 = sphi 0, %s34
    %p31 = scmp.ge.s32.totalorder %s30, 4
    %s40 = sphi 0, %s42
    %s43 = sphi 0, %s40
    %s44 = sphi 0, %s43
    %s60 = sphi 0, %s44
    %s66 = sphi 0, %s68
    %s69 = sphi 0, %s66
    %s70 = sphi 0, %s69
    %s86 = sphi 0, %s70
    %s92 = sphi 0, %s94
    %s95 = sphi 0, %s92
    %s96 = sphi 0, %s95
    %s112 = sphi 0, %s96
    %s118 = sphi 0, %s120
    %s121 = sphi 0, %s118
    %s122 = sphi 0, %s121
    %s138 = sphi 0, %s122
    %s142 = sphi 0, %s142
    %s144 = sphi 0, %s142
    %s145 = sphi 0, %s144
    %s159 = sphi 0, %s145
    %s163 = sphi 0, %s163
    %s165 = sphi 0, %s163
    %s166 = sphi 0, %s165
    %s180 = sphi 0, %s166
    %s184 = sphi 0, %s184
    %s186 = sphi 0, %s184
    %s187 = sphi 0, %s186
    %s201 = sphi 0, %s187
    %s205 = sphi 0, %s205
    %s207 = sphi 0, %s205
    %s208 = sphi 0, %s207
    %s222 = sphi 0, %s208
    %s226 = sphi 0, %s226
    %s228 = sphi 0, %s226
    %s229 = sphi 0, %s228
    %s243 = sphi 0, %s229
    %s247 = sphi 0, %s247
    %s249 = sphi 0, %s247
    %s250 = sphi 0, %s249
    %s264 = sphi 0, %s250
    %s268 = sphi 0, %s268
    %s270 = sphi 0, %s268
    %s271 = sphi 0, %s270
    %s285 = sphi 0, %s271
    %s289 = sphi 0, %s289
    %s291 = sphi 0, %s289
    %s292 = sphi 0, %s291
    %s306 = sphi 0, %s292
    %s310 = sphi 0, %s310
    %s312 = sphi 0, %s310
    %s313 = sphi 0, %s312
    %s327 = sphi 0, %s313
    %s331 = sphi 0, %s331
    %s333 = sphi 0, %s331
    %s334 = sphi 0, %s333
    %s348 = sphi 0, %s334
    %s352 = sphi 0, %s352
    %s354 = sphi 0, %s352
    %s355 = sphi 0, %s354
    %s369 = sphi 0, %s355
    %s373 = sphi 0, %s373
    %s375 = sphi 0, %s373
    %s376 = sphi 0, %s375
    %s390 = sphi 0, %s376
    %s394 = sphi 0, %s394
    %s396 = sphi 0, %s394
    %s397 = sphi 0, %s396
    %s411 = sphi 0, %s397
    %s415 = sphi 0, %s415
    %s417 = sphi 0, %s415
    %s418 = sphi 0, %s417
    %s432 = sphi 0, %s418
    %s436 = sphi 0, %s436
    %s438 = sphi 0, %s436
    %s439 = sphi 0, %s438
    %s453 = sphi 0, %s439
    %s457 = sphi 0, %s457
    %s459 = sphi 0, %s457
    %s460 = sphi 0, %s459
    %s474 = sphi 0, %s460
    %s478 = sphi 0, %s478
    %s480 = sphi 0, %s478
    %s481 = sphi 0, %s480
    %s495 = sphi 0, %s481
    %s499 = sphi 0, %s499
    %s501 = sphi 0, %s499
    %s502 = sphi 0, %s501
    %s516 = sphi 0, %s502
    %s520 = sphi 0, %s520
    %s522 = sphi 0, %s520
    %s523 = sphi 0, %s522
    %s537 = sphi 0, %s523
    %s541 = sphi 0, %s541
    %s543 = sphi 0, %s541
    %s544 = sphi 0, %s543
    %s558 = sphi 0, %s544
    %s564 = sphi 0, %s566
    %s567 = sphi 0, %s564
    %s568 = sphi 0, %s567
    %s584 = sphi 0, %s568
  $region4: #{cptg_dec_forward.4} parent=0 // loop_header_branch
    %33 = sbr.rel (%p31) target = $region8
  $region5: #{cptg_dec_forward.4} parent=0 // loop_body
    %s35 = ssub.s32 %s30, 1
    %s36 = ssub.s32 %s30, 2
    %s37 = sadd.s32 %s30, 1
    %s38 = ssub.s32 %s30, %s37
    %p39 = scmp.eq.s32.totalorder %s38, 0
    %s41 = sadd.s32 %s40, 1
    %s42 = scalar_select %p39, %s40, %s41
    %p45 = pneg %p39
    %p46 = scmp.eq.s32.totalorder %s30, 1
    %p47 = por %p45, %p46
    %p48 = scmp.ne.s32.totalorder %s40, %s43
    %p49 = scmp.eq.s32.totalorder %s30, 0
    %p50 = por %p48, %p49
    %p51 = scmp.ne.s32.totalorder %s40, %s43
    %p52 = scmp.eq.s32.totalorder %s35, 1
    %p53 = por %p51, %p52
    %p54 = scmp.ne.s32.totalorder %s43, %s44
    %p55 = scmp.eq.s32.totalorder %s35, 0
    %p56 = por %p54, %p55
    %p57 = scmp.ne.s32.totalorder %s43, %s44
    %p58 = scmp.eq.s32.totalorder %s36, 1
    %p59 = por %p57, %p58
    %p61 = scmp.ne.s32.totalorder %s44, %s60
    %p62 = scmp.eq.s32.totalorder %s36, 0
    %p63 = por %p61, %p62
    %s64 = ssub.s32 %s30, %s37
    %p65 = scmp.eq.s32.totalorder %s64, 0
    %s67 = sadd.s32 %s66, 1
    %s68 = scalar_select %p65, %s66, %s67
    %p71 = pneg %p65
    %p72 = scmp.eq.s32.totalorder %s30, 1
    %p73 = por %p71, %p72
    %p74 = scmp.ne.s32.totalorder %s66, %s69
    %p75 = scmp.eq.s32.totalorder %s30, 0
    %p76 = por %p74, %p75
    %p77 = scmp.ne.s32.totalorder %s66, %s69
    %p78 = scmp.eq.s32.totalorder %s35, 1
    %p79 = por %p77, %p78
    %p80 = scmp.ne.s32.totalorder %s69, %s70
    %p81 = scmp.eq.s32.totalorder %s35, 0
    %p82 = por %p80, %p81
    %p83 = scmp.ne.s32.totalorder %s69, %s70
    %p84 = scmp.eq.s32.totalorder %s36, 1
    %p85 = por %p83, %p84
    %p87 = scmp.ne.s32.totalorder %s70, %s86
    %p88 = scmp.eq.s32.totalorder %s36, 0
    %p89 = por %p87, %p88
    %s90 = ssub.s32 %s30, %s37
    %p91 = scmp.eq.s32.totalorder %s90, 0
    %s93 = sadd.s32 %s92, 1
    %s94 = scalar_select %p91, %s92, %s93
    %p97 = pneg %p91
    %p98 = scmp.eq.s32.totalorder %s30, 1
    %p99 = por %p97, %p98
    %p100 = scmp.ne.s32.totalorder %s92, %s95
    %p101 = scmp.eq.s32.totalorder %s30, 0
    %p102 = por %p100, %p101
    %p103 = scmp.ne.s32.totalorder %s92, %s95
    %p104 = scmp.eq.s32.totalorder %s35, 1
    %p105 = por %p103, %p104
    %p106 = scmp.ne.s32.totalorder %s95, %s96
    %p107 = scmp.eq.s32.totalorder %s35, 0
    %p108 = por %p106, %p107
    %p109 = scmp.ne.s32.totalorder %s95, %s96
    %p110 = scmp.eq.s32.totalorder %s36, 1
    %p111 = por %p109, %p110
    %p113 = scmp.ne.s32.totalorder %s96, %s112
    %p114 = scmp.eq.s32.totalorder %s36, 0
    %p115 = por %p113, %p114
    %s116 = ssub.s32 %s30, %s37
    %p117 = scmp.eq.s32.totalorder %s116, 0
    %s119 = sadd.s32 %s118, 1
    %s120 = scalar_select %p117, %s118, %s119
    %p123 = pneg %p117
    %p124 = scmp.eq.s32.totalorder %s30, 1
    %p125 = por %p123, %p124
    %p126 = scmp.ne.s32.totalorder %s118, %s121
    %p127 = scmp.eq.s32.totalorder %s30, 0
    %p128 = por %p126, %p127
    %p129 = scmp.ne.s32.totalorder %s118, %s121
    %p130 = scmp.eq.s32.totalorder %s35, 1
    %p131 = por %p129, %p130
    %p132 = scmp.ne.s32.totalorder %s121, %s122
    %p133 = scmp.eq.s32.totalorder %s35, 0
    %p134 = por %p132, %p133
    %p135 = scmp.ne.s32.totalorder %s121, %s122
    %p136 = scmp.eq.s32.totalorder %s36, 1
    %p137 = por %p135, %p136
    %p139 = scmp.ne.s32.totalorder %s122, %s138
    %p140 = scmp.eq.s32.totalorder %s36, 0
    %p141 = por %p139, %p140
    %s143 = sadd.s32 %s142, 1
    %p146 = scmp.eq.s32.totalorder %s30, 1
    %p147 = scmp.ne.s32.totalorder %s142, %s144
    %p148 = scmp.eq.s32.totalorder %s30, 0
    %p149 = por %p147, %p148
    %p150 = scmp.ne.s32.totalorder %s142, %s144
    %p151 = scmp.eq.s32.totalorder %s35, 1
    %p152 = por %p150, %p151
    %p153 = scmp.ne.s32.totalorder %s144, %s145
    %p154 = scmp.eq.s32.totalorder %s35, 0
    %p155 = por %p153, %p154
    %p156 = scmp.ne.s32.totalorder %s144, %s145
    %p157 = scmp.eq.s32.totalorder %s36, 1
    %p158 = por %p156, %p157
    %p160 = scmp.ne.s32.totalorder %s145, %s159
    %p161 = scmp.eq.s32.totalorder %s36, 0
    %p162 = por %p160, %p161
    %s164 = sadd.s32 %s163, 1
    %p167 = scmp.eq.s32.totalorder %s30, 1
    %p168 = scmp.ne.s32.totalorder %s163, %s165
    %p169 = scmp.eq.s32.totalorder %s30, 0
    %p170 = por %p168, %p169
    %p171 = scmp.ne.s32.totalorder %s163, %s165
    %p172 = scmp.eq.s32.totalorder %s35, 1
    %p173 = por %p171, %p172
    %p174 = scmp.ne.s32.totalorder %s165, %s166
    %p175 = scmp.eq.s32.totalorder %s35, 0
    %p176 = por %p174, %p175
    %p177 = scmp.ne.s32.totalorder %s165, %s166
    %p178 = scmp.eq.s32.totalorder %s36, 1
    %p179 = por %p177, %p178
    %p181 = scmp.ne.s32.totalorder %s166, %s180
    %p182 = scmp.eq.s32.totalorder %s36, 0
    %p183 = por %p181, %p182
    %s185 = sadd.s32 %s184, 1
    %p188 = scmp.eq.s32.totalorder %s30, 1
    %p189 = scmp.ne.s32.totalorder %s184, %s186
    %p190 = scmp.eq.s32.totalorder %s30, 0
    %p191 = por %p189, %p190
    %p192 = scmp.ne.s32.totalorder %s184, %s186
    %p193 = scmp.eq.s32.totalorder %s35, 1
    %p194 = por %p192, %p193
    %p195 = scmp.ne.s32.totalorder %s186, %s187
    %p196 = scmp.eq.s32.totalorder %s35, 0
    %p197 = por %p195, %p196
    %p198 = scmp.ne.s32.totalorder %s186, %s187
    %p199 = scmp.eq.s32.totalorder %s36, 1
    %p200 = por %p198, %p199
    %p202 = scmp.ne.s32.totalorder %s187, %s201
    %p203 = scmp.eq.s32.totalorder %s36, 0
    %p204 = por %p202, %p203
    %s206 = sadd.s32 %s205, 1
    %p209 = scmp.eq.s32.totalorder %s30, 1
    %p210 = scmp.ne.s32.totalorder %s205, %s207
    %p211 = scmp.eq.s32.totalorder %s30, 0
    %p212 = por %p210, %p211
    %p213 = scmp.ne.s32.totalorder %s205, %s207
    %p214 = scmp.eq.s32.totalorder %s35, 1
    %p215 = por %p213, %p214
    %p216 = scmp.ne.s32.totalorder %s207, %s208
    %p217 = scmp.eq.s32.totalorder %s35, 0
    %p218 = por %p216, %p217
    %p219 = scmp.ne.s32.totalorder %s207, %s208
    %p220 = scmp.eq.s32.totalorder %s36, 1
    %p221 = por %p219, %p220
    %p223 = scmp.ne.s32.totalorder %s208, %s222
    %p224 = scmp.eq.s32.totalorder %s36, 0
    %p225 = por %p223, %p224
    %s227 = sadd.s32 %s226, 1
    %p230 = scmp.eq.s32.totalorder %s30, 1
    %p231 = scmp.ne.s32.totalorder %s226, %s228
    %p232 = scmp.eq.s32.totalorder %s30, 0
    %p233 = por %p231, %p232
    %p234 = scmp.ne.s32.totalorder %s226, %s228
    %p235 = scmp.eq.s32.totalorder %s35, 1
    %p236 = por %p234, %p235
    %p237 = scmp.ne.s32.totalorder %s228, %s229
    %p238 = scmp.eq.s32.totalorder %s35, 0
    %p239 = por %p237, %p238
    %p240 = scmp.ne.s32.totalorder %s228, %s229
    %p241 = scmp.eq.s32.totalorder %s36, 1
    %p242 = por %p240, %p241
    %p244 = scmp.ne.s32.totalorder %s229, %s243
    %p245 = scmp.eq.s32.totalorder %s36, 0
    %p246 = por %p244, %p245
    %s248 = sadd.s32 %s247, 1
    %p251 = scmp.eq.s32.totalorder %s30, 1
    %p252 = scmp.ne.s32.totalorder %s247, %s249
    %p253 = scmp.eq.s32.totalorder %s30, 0
    %p254 = por %p252, %p253
    %p255 = scmp.ne.s32.totalorder %s247, %s249
    %p256 = scmp.eq.s32.totalorder %s35, 1
    %p257 = por %p255, %p256
    %p258 = scmp.ne.s32.totalorder %s249, %s250
    %p259 = scmp.eq.s32.totalorder %s35, 0
    %p260 = por %p258, %p259
    %p261 = scmp.ne.s32.totalorder %s249, %s250
    %p262 = scmp.eq.s32.totalorder %s36, 1
    %p263 = por %p261, %p262
    %p265 = scmp.ne.s32.totalorder %s250, %s264
    %p266 = scmp.eq.s32.totalorder %s36, 0
    %p267 = por %p265, %p266
    %s269 = sadd.s32 %s268, 1
    %p272 = scmp.eq.s32.totalorder %s30, 1
    %p273 = scmp.ne.s32.totalorder %s268, %s270
    %p274 = scmp.eq.s32.totalorder %s30, 0
    %p275 = por %p273, %p274
    %p276 = scmp.ne.s32.totalorder %s268, %s270
    %p277 = scmp.eq.s32.totalorder %s35, 1
    %p278 = por %p276, %p277
    %p279 = scmp.ne.s32.totalorder %s270, %s271
    %p280 = scmp.eq.s32.totalorder %s35, 0
    %p281 = por %p279, %p280
    %p282 = scmp.ne.s32.totalorder %s270, %s271
    %p283 = scmp.eq.s32.totalorder %s36, 1
    %p284 = por %p282, %p283
    %p286 = scmp.ne.s32.totalorder %s271, %s285
    %p287 = scmp.eq.s32.totalorder %s36, 0
    %p288 = por %p286, %p287
    %s290 = sadd.s32 %s289, 1
    %p293 = scmp.eq.s32.totalorder %s30, 1
    %p294 = scmp.ne.s32.totalorder %s289, %s291
    %p295 = scmp.eq.s32.totalorder %s30, 0
    %p296 = por %p294, %p295
    %p297 = scmp.ne.s32.totalorder %s289, %s291
    %p298 = scmp.eq.s32.totalorder %s35, 1
    %p299 = por %p297, %p298
    %p300 = scmp.ne.s32.totalorder %s291, %s292
    %p301 = scmp.eq.s32.totalorder %s35, 0
    %p302 = por %p300, %p301
    %p303 = scmp.ne.s32.totalorder %s291, %s292
    %p304 = scmp.eq.s32.totalorder %s36, 1
    %p305 = por %p303, %p304
    %p307 = scmp.ne.s32.totalorder %s292, %s306
    %p308 = scmp.eq.s32.totalorder %s36, 0
    %p309 = por %p307, %p308
    %s311 = sadd.s32 %s310, 1
    %p314 = scmp.eq.s32.totalorder %s30, 1
    %p315 = scmp.ne.s32.totalorder %s310, %s312
    %p316 = scmp.eq.s32.totalorder %s30, 0
    %p317 = por %p315, %p316
    %p318 = scmp.ne.s32.totalorder %s310, %s312
    %p319 = scmp.eq.s32.totalorder %s35, 1
    %p320 = por %p318, %p319
    %p321 = scmp.ne.s32.totalorder %s312, %s313
    %p322 = scmp.eq.s32.totalorder %s35, 0
    %p323 = por %p321, %p322
    %p324 = scmp.ne.s32.totalorder %s312, %s313
    %p325 = scmp.eq.s32.totalorder %s36, 1
    %p326 = por %p324, %p325
    %p328 = scmp.ne.s32.totalorder %s313, %s327
    %p329 = scmp.eq.s32.totalorder %s36, 0
    %p330 = por %p328, %p329
    %s332 = sadd.s32 %s331, 1
    %p335 = scmp.eq.s32.totalorder %s30, 1
    %p336 = scmp.ne.s32.totalorder %s331, %s333
    %p337 = scmp.eq.s32.totalorder %s30, 0
    %p338 = por %p336, %p337
    %p339 = scmp.ne.s32.totalorder %s331, %s333
    %p340 = scmp.eq.s32.totalorder %s35, 1
    %p341 = por %p339, %p340
    %p342 = scmp.ne.s32.totalorder %s333, %s334
    %p343 = scmp.eq.s32.totalorder %s35, 0
    %p344 = por %p342, %p343
    %p345 = scmp.ne.s32.totalorder %s333, %s334
    %p346 = scmp.eq.s32.totalorder %s36, 1
    %p347 = por %p345, %p346
    %p349 = scmp.ne.s32.totalorder %s334, %s348
    %p350 = scmp.eq.s32.totalorder %s36, 0
    %p351 = por %p349, %p350
    %s353 = sadd.s32 %s352, 1
    %p356 = scmp.eq.s32.totalorder %s30, 1
    %p357 = scmp.ne.s32.totalorder %s352, %s354
    %p358 = scmp.eq.s32.totalorder %s30, 0
    %p359 = por %p357, %p358
    %p360 = scmp.ne.s32.totalorder %s352, %s354
    %p361 = scmp.eq.s32.totalorder %s35, 1
    %p362 = por %p360, %p361
    %p363 = scmp.ne.s32.totalorder %s354, %s355
    %p364 = scmp.eq.s32.totalorder %s35, 0
    %p365 = por %p363, %p364
    %p366 = scmp.ne.s32.totalorder %s354, %s355
    %p367 = scmp.eq.s32.totalorder %s36, 1
    %p368 = por %p366, %p367
    %p370 = scmp.ne.s32.totalorder %s355, %s369
    %p371 = scmp.eq.s32.totalorder %s36, 0
    %p372 = por %p370, %p371
    %s374 = sadd.s32 %s373, 1
    %p377 = scmp.eq.s32.totalorder %s30, 1
    %p378 = scmp.ne.s32.totalorder %s373, %s375
    %p379 = scmp.eq.s32.totalorder %s30, 0
    %p380 = por %p378, %p379
    %p381 = scmp.ne.s32.totalorder %s373, %s375
    %p382 = scmp.eq.s32.totalorder %s35, 1
    %p383 = por %p381, %p382
    %p384 = scmp.ne.s32.totalorder %s375, %s376
    %p385 = scmp.eq.s32.totalorder %s35, 0
    %p386 = por %p384, %p385
    %p387 = scmp.ne.s32.totalorder %s375, %s376
    %p388 = scmp.eq.s32.totalorder %s36, 1
    %p389 = por %p387, %p388
    %p391 = scmp.ne.s32.totalorder %s376, %s390
    %p392 = scmp.eq.s32.totalorder %s36, 0
    %p393 = por %p391, %p392
    %s395 = sadd.s32 %s394, 1
    %p398 = scmp.eq.s32.totalorder %s30, 1
    %p399 = scmp.ne.s32.totalorder %s394, %s396
    %p400 = scmp.eq.s32.totalorder %s30, 0
    %p401 = por %p399, %p400
    %p402 = scmp.ne.s32.totalorder %s394, %s396
    %p403 = scmp.eq.s32.totalorder %s35, 1
    %p404 = por %p402, %p403
    %p405 = scmp.ne.s32.totalorder %s396, %s397
    %p406 = scmp.eq.s32.totalorder %s35, 0
    %p407 = por %p405, %p406
    %p408 = scmp.ne.s32.totalorder %s396, %s397
    %p409 = scmp.eq.s32.totalorder %s36, 1
    %p410 = por %p408, %p409
    %p412 = scmp.ne.s32.totalorder %s397, %s411
    %p413 = scmp.eq.s32.totalorder %s36, 0
    %p414 = por %p412, %p413
    %s416 = sadd.s32 %s415, 1
    %p419 = scmp.eq.s32.totalorder %s30, 1
    %p420 = scmp.ne.s32.totalorder %s415, %s417
    %p421 = scmp.eq.s32.totalorder %s30, 0
    %p422 = por %p420, %p421
    %p423 = scmp.ne.s32.totalorder %s415, %s417
    %p424 = scmp.eq.s32.totalorder %s35, 1
    %p425 = por %p423, %p424
    %p426 = scmp.ne.s32.totalorder %s417, %s418
    %p427 = scmp.eq.s32.totalorder %s35, 0
    %p428 = por %p426, %p427
    %p429 = scmp.ne.s32.totalorder %s417, %s418
    %p430 = scmp.eq.s32.totalorder %s36, 1
    %p431 = por %p429, %p430
    %p433 = scmp.ne.s32.totalorder %s418, %s432
    %p434 = scmp.eq.s32.totalorder %s36, 0
    %p435 = por %p433, %p434
    %s437 = sadd.s32 %s436, 1
    %p440 = scmp.eq.s32.totalorder %s30, 1
    %p441 = scmp.ne.s32.totalorder %s436, %s438
    %p442 = scmp.eq.s32.totalorder %s30, 0
    %p443 = por %p441, %p442
    %p444 = scmp.ne.s32.totalorder %s436, %s438
    %p445 = scmp.eq.s32.totalorder %s35, 1
    %p446 = por %p444, %p445
    %p447 = scmp.ne.s32.totalorder %s438, %s439
    %p448 = scmp.eq.s32.totalorder %s35, 0
    %p449 = por %p447, %p448
    %p450 = scmp.ne.s32.totalorder %s438, %s439
    %p451 = scmp.eq.s32.totalorder %s36, 1
    %p452 = por %p450, %p451
    %p454 = scmp.ne.s32.totalorder %s439, %s453
    %p455 = scmp.eq.s32.totalorder %s36, 0
    %p456 = por %p454, %p455
    %s458 = sadd.s32 %s457, 1
    %p461 = scmp.eq.s32.totalorder %s30, 1
    %p462 = scmp.ne.s32.totalorder %s457, %s459
    %p463 = scmp.eq.s32.totalorder %s30, 0
    %p464 = por %p462, %p463
    %p465 = scmp.ne.s32.totalorder %s457, %s459
    %p466 = scmp.eq.s32.totalorder %s35, 1
    %p467 = por %p465, %p466
    %p468 = scmp.ne.s32.totalorder %s459, %s460
    %p469 = scmp.eq.s32.totalorder %s35, 0
    %p470 = por %p468, %p469
    %p471 = scmp.ne.s32.totalorder %s459, %s460
    %p472 = scmp.eq.s32.totalorder %s36, 1
    %p473 = por %p471, %p472
    %p475 = scmp.ne.s32.totalorder %s460, %s474
    %p476 = scmp.eq.s32.totalorder %s36, 0
    %p477 = por %p475, %p476
    %s479 = sadd.s32 %s478, 1
    %p482 = scmp.eq.s32.totalorder %s30, 1
    %p483 = scmp.ne.s32.totalorder %s478, %s480
    %p484 = scmp.eq.s32.totalorder %s30, 0
    %p485 = por %p483, %p484
    %p486 = scmp.ne.s32.totalorder %s478, %s480
    %p487 = scmp.eq.s32.totalorder %s35, 1
    %p488 = por %p486, %p487
    %p489 = scmp.ne.s32.totalorder %s480, %s481
    %p490 = scmp.eq.s32.totalorder %s35, 0
    %p491 = por %p489, %p490
    %p492 = scmp.ne.s32.totalorder %s480, %s481
    %p493 = scmp.eq.s32.totalorder %s36, 1
    %p494 = por %p492, %p493
    %p496 = scmp.ne.s32.totalorder %s481, %s495
    %p497 = scmp.eq.s32.totalorder %s36, 0
    %p498 = por %p496, %p497
    %s500 = sadd.s32 %s499, 1
    %p503 = scmp.eq.s32.totalorder %s30, 1
    %p504 = scmp.ne.s32.totalorder %s499, %s501
    %p505 = scmp.eq.s32.totalorder %s30, 0
    %p506 = por %p504, %p505
    %p507 = scmp.ne.s32.totalorder %s499, %s501
    %p508 = scmp.eq.s32.totalorder %s35, 1
    %p509 = por %p507, %p508
    %p510 = scmp.ne.s32.totalorder %s501, %s502
    %p511 = scmp.eq.s32.totalorder %s35, 0
    %p512 = por %p510, %p511
    %p513 = scmp.ne.s32.totalorder %s501, %s502
    %p514 = scmp.eq.s32.totalorder %s36, 1
    %p515 = por %p513, %p514
    %p517 = scmp.ne.s32.totalorder %s502, %s516
    %p518 = scmp.eq.s32.totalorder %s36, 0
    %p519 = por %p517, %p518
    %s521 = sadd.s32 %s520, 1
    %p524 = scmp.eq.s32.totalorder %s30, 1
    %p525 = scmp.ne.s32.totalorder %s520, %s522
    %p526 = scmp.eq.s32.totalorder %s30, 0
    %p527 = por %p525, %p526
    %p528 = scmp.ne.s32.totalorder %s520, %s522
    %p529 = scmp.eq.s32.totalorder %s35, 1
    %p530 = por %p528, %p529
    %p531 = scmp.ne.s32.totalorder %s522, %s523
    %p532 = scmp.eq.s32.totalorder %s35, 0
    %p533 = por %p531, %p532
    %p534 = scmp.ne.s32.totalorder %s522, %s523
    %p535 = scmp.eq.s32.totalorder %s36, 1
    %p536 = por %p534, %p535
    %p538 = scmp.ne.s32.totalorder %s523, %s537
    %p539 = scmp.eq.s32.totalorder %s36, 0
    %p540 = por %p538, %p539
    %s542 = sadd.s32 %s541, 1
    %p545 = scmp.eq.s32.totalorder %s30, 1
    %p546 = scmp.ne.s32.totalorder %s541, %s543
    %p547 = scmp.eq.s32.totalorder %s30, 0
    %p548 = por %p546, %p547
    %p549 = scmp.ne.s32.totalorder %s541, %s543
    %p550 = scmp.eq.s32.totalorder %s35, 1
    %p551 = por %p549, %p550
    %p552 = scmp.ne.s32.totalorder %s543, %s544
    %p553 = scmp.eq.s32.totalorder %s35, 0
    %p554 = por %p552, %p553
    %p555 = scmp.ne.s32.totalorder %s543, %s544
    %p556 = scmp.eq.s32.totalorder %s36, 1
    %p557 = por %p555, %p556
    %p559 = scmp.ne.s32.totalorder %s544, %s558
    %p560 = scmp.eq.s32.totalorder %s36, 0
    %p561 = por %p559, %p560
    %s562 = ssub.s32 %s30, %s37
    %p563 = scmp.eq.s32.totalorder %s562, 0
    %s565 = sadd.s32 %s564, 1
    %s566 = scalar_select %p563, %s564, %s565
    %p569 = pneg %p563
    %p570 = scmp.eq.s32.totalorder %s30, 1
    %p571 = por %p569, %p570
    %p572 = scmp.ne.s32.totalorder %s564, %s567
    %p573 = scmp.eq.s32.totalorder %s30, 0
    %p574 = por %p572, %p573
    %p575 = scmp.ne.s32.totalorder %s564, %s567
    %p576 = scmp.eq.s32.totalorder %s35, 1
    %p577 = por %p575, %p576
    %p578 = scmp.ne.s32.totalorder %s567, %s568
    %p579 = scmp.eq.s32.totalorder %s35, 0
    %p580 = por %p578, %p579
    %p581 = scmp.ne.s32.totalorder %s567, %s568
    %p582 = scmp.eq.s32.totalorder %s36, 1
    %p583 = por %p581, %p582
    %p585 = scmp.ne.s32.totalorder %s568, %s584
    %p586 = scmp.eq.s32.totalorder %s36, 0
    %p587 = por %p585, %p586
    %p588 = scmp.le.s32.totalorder 1, %s30
    %p589 = scmp.lt.s32.totalorder %s30, 3
    %p590 = pnand %p588, %p589
    %p591 = pneg %p590
    // Predicated region
    $region9: #{cptg_dec_forward.4} parent=5 // pred_check
      _
    $region10: #{cptg_dec_forward.4} parent=5 // pred_check_branch
      %593 = sbr.rel (%p590) target = $region12
    $region11: #{cptg_dec_forward.4} parent=5 // pred_region
      %s594 = ssub.s32 %s30, 1
      // Predicated region
      $region13: #{cptg_dec_forward.4} parent=11 // pred_check
        %p595 = pneg %p155
      $region14: #{cptg_dec_forward.4} parent=11 // pred_check_branch
        %597 = sbr.rel (%p595) target = $region16
      $region15: #{cptg_dec_forward.4} parent=11 // pred_region
        _
      $region16: #{cptg_dec_forward.4} parent=11 // pred_fallthru
        _
      // Predicated region
      $region17: #{cptg_dec_forward.4} parent=11 // pred_check
        %p598 = pneg %p176
      $region18: #{cptg_dec_forward.4} parent=11 // pred_check_branch
        %600 = sbr.rel (%p598) target = $region20
      $region19: #{cptg_dec_forward.4} parent=11 // pred_region
        _
      $region20: #{cptg_dec_forward.4} parent=11 // pred_fallthru
        _
      // Predicated region
      $region21: #{cptg_dec_forward.4} parent=11 // pred_check
        %p601 = pneg %p197
      $region22: #{cptg_dec_forward.4} parent=11 // pred_check_branch
        %603 = sbr.rel (%p601) target = $region24
      $region23: #{cptg_dec_forward.4} parent=11 // pred_region
        _
      $region24: #{cptg_dec_forward.4} parent=11 // pred_fallthru
        _
      // Predicated region
      $region25: #{cptg_dec_forward.4} parent=11 // pred_check
        %p604 = pneg %p218
      $region26: #{cptg_dec_forward.4} parent=11 // pred_check_branch
        %606 = sbr.rel (%p604) target = $region28
      $region27: #{cptg_dec_forward.4} parent=11 // pred_region
        _
      $region28: #{cptg_dec_forward.4} parent=11 // pred_fallthru
        _
      // Predicated region
      $region29: #{cptg_dec_forward.4} parent=11 // pred_check
        %p607 = pneg %p239
      $region30: #{cptg_dec_forward.4} parent=11 // pred_check_branch
        %609 = sbr.rel (%p607) target = $region32
      $region31: #{cptg_dec_forward.4} parent=11 // pred_region
        _
      $region32: #{cptg_dec_forward.4} parent=11 // pred_fallthru
        _
      // Predicated region
      $region33: #{cptg_dec_forward.4} parent=11 // pred_check
        %p610 = pneg %p260
      $region34: #{cptg_dec_forward.4} parent=11 // pred_check_branch
        %612 = sbr.rel (%p610) target = $region36
      $region35: #{cptg_dec_forward.4} parent=11 // pred_region
        _
      $region36: #{cptg_dec_forward.4} parent=11 // pred_fallthru
        _
      // Predicated region
      $region37: #{cptg_dec_forward.4} parent=11 // pred_check
        %p613 = pneg %p281
      $region38: #{cptg_dec_forward.4} parent=11 // pred_check_branch
        %615 = sbr.rel (%p613) target = $region40
      $region39: #{cptg_dec_forward.4} parent=11 // pred_region
        _
      $region40: #{cptg_dec_forward.4} parent=11 // pred_fallthru
        _
      // Predicated region
      $region41: #{cptg_dec_forward.4} parent=11 // pred_check
        %p616 = pneg %p302
      $region42: #{cptg_dec_forward.4} parent=11 // pred_check_branch
        %618 = sbr.rel (%p616) target = $region44
      $region43: #{cptg_dec_forward.4} parent=11 // pred_region
        _
      $region44: #{cptg_dec_forward.4} parent=11 // pred_fallthru
        _
      // Predicated region
      $region45: #{cptg_dec_forward.4} parent=11 // pred_check
        %p619 = pneg %p323
      $region46: #{cptg_dec_forward.4} parent=11 // pred_check_branch
        %621 = sbr.rel (%p619) target = $region48
      $region47: #{cptg_dec_forward.4} parent=11 // pred_region
        _
      $region48: #{cptg_dec_forward.4} parent=11 // pred_fallthru
        _
      // Predicated region
      $region49: #{cptg_dec_forward.4} parent=11 // pred_check
        %p622 = pneg %p344
      $region50: #{cptg_dec_forward.4} parent=11 // pred_check_branch
        %624 = sbr.rel (%p622) target = $region52
      $region51: #{cptg_dec_forward.4} parent=11 // pred_region
        _
      $region52: #{cptg_dec_forward.4} parent=11 // pred_fallthru
        _
      // Predicated region
      $region53: #{cptg_dec_forward.4} parent=11 // pred_check
        %p625 = pneg %p365
      $region54: #{cptg_dec_forward.4} parent=11 // pred_check_branch
        %627 = sbr.rel (%p625) target = $region56
      $region55: #{cptg_dec_forward.4} parent=11 // pred_region
        _
      $region56: #{cptg_dec_forward.4} parent=11 // pred_fallthru
        _
      // Predicated region
      $region57: #{cptg_dec_forward.4} parent=11 // pred_check
        %p628 = pneg %p386
      $region58: #{cptg_dec_forward.4} parent=11 // pred_check_branch
        %630 = sbr.rel (%p628) target = $region60
      $region59: #{cptg_dec_forward.4} parent=11 // pred_region
        _
      $region60: #{cptg_dec_forward.4} parent=11 // pred_fallthru
        _
      // Predicated region
      $region61: #{cptg_dec_forward.4} parent=11 // pred_check
        %p631 = pneg %p407
      $region62: #{cptg_dec_forward.4} parent=11 // pred_check_branch
        %633 = sbr.rel (%p631) target = $region64
      $region63: #{cptg_dec_forward.4} parent=11 // pred_region
        _
      $region64: #{cptg_dec_forward.4} parent=11 // pred_fallthru
        _
      // Predicated region
      $region65: #{cptg_dec_forward.4} parent=11 // pred_check
        %p634 = pneg %p428
      $region66: #{cptg_dec_forward.4} parent=11 // pred_check_branch
        %636 = sbr.rel (%p634) target = $region68
      $region67: #{cptg_dec_forward.4} parent=11 // pred_region
        _
      $region68: #{cptg_dec_forward.4} parent=11 // pred_fallthru
        _
      // Predicated region
      $region69: #{cptg_dec_forward.4} parent=11 // pred_check
        %p637 = pneg %p449
      $region70: #{cptg_dec_forward.4} parent=11 // pred_check_branch
        %639 = sbr.rel (%p637) target = $region72
      $region71: #{cptg_dec_forward.4} parent=11 // pred_region
        _
      $region72: #{cptg_dec_forward.4} parent=11 // pred_fallthru
        _
      // Predicated region
      $region73: #{cptg_dec_forward.4} parent=11 // pred_check
        %p640 = pneg %p470
      $region74: #{cptg_dec_forward.4} parent=11 // pred_check_branch
        %642 = sbr.rel (%p640) target = $region76
      $region75: #{cptg_dec_forward.4} parent=11 // pred_region
        _
      $region76: #{cptg_dec_forward.4} parent=11 // pred_fallthru
        _
      // Predicated region
      $region77: #{cptg_dec_forward.4} parent=11 // pred_check
        %p643 = pneg %p491
      $region78: #{cptg_dec_forward.4} parent=11 // pred_check_branch
        %645 = sbr.rel (%p643) target = $region80
      $region79: #{cptg_dec_forward.4} parent=11 // pred_region
        _
      $region80: #{cptg_dec_forward.4} parent=11 // pred_fallthru
        _
      // Predicated region
      $region81: #{cptg_dec_forward.4} parent=11 // pred_check
        %p646 = pneg %p512
      $region82: #{cptg_dec_forward.4} parent=11 // pred_check_branch
        %648 = sbr.rel (%p646) target = $region84
      $region83: #{cptg_dec_forward.4} parent=11 // pred_region
        _
      $region84: #{cptg_dec_forward.4} parent=11 // pred_fallthru
        _
      // Predicated region
      $region85: #{cptg_dec_forward.4} parent=11 // pred_check
        %p649 = pneg %p533
      $region86: #{cptg_dec_forward.4} parent=11 // pred_check_branch
        %651 = sbr.rel (%p649) target = $region88
      $region87: #{cptg_dec_forward.4} parent=11 // pred_region
        _
      $region88: #{cptg_dec_forward.4} parent=11 // pred_fallthru
        _
      // Predicated region
      $region89: #{cptg_dec_forward.4} parent=11 // pred_check
        %p652 = pneg %p554
      $region90: #{cptg_dec_forward.4} parent=11 // pred_check_branch
        %654 = sbr.rel (%p652) target = $region92
      $region91: #{cptg_dec_forward.4} parent=11 // pred_region
        _
      $region92: #{cptg_dec_forward.4} parent=11 // pred_fallthru
        _
    $region12: #{cptg_dec_forward.4} parent=5 // pred_fallthru
      _
    %p655 = scmp.lt.s32.totalorder %s30, 2
    // Predicated region
    $region93: #{cptg_dec_forward.4} parent=5 // pred_check
      %p656 = pneg %p655
    $region94: #{cptg_dec_forward.4} parent=5 // pred_check_branch
      %658 = sbr.rel (%p656) target = $region96
    $region95: #{cptg_dec_forward.4} parent=5 // pred_region
      // Predicated region
      $region97: #{cptg_dec_forward.4} parent=95 // pred_check
        %p659 = pneg %p50
      $region98: #{cptg_dec_forward.4} parent=95 // pred_check_branch
        %661 = sbr.rel (%p659) target = $region100
      $region99: #{cptg_dec_forward.4} parent=95 // pred_region
        %p662 = scmp.lt.s32.totalorder %s30, 1
        %s663 = scalar_select %p662, %s30, 1
        %s664 = smul.addr %s663, 8
        %s665 = scalar_lea.vmem %s0, %s664
      $region100: #{cptg_dec_forward.4} parent=95 // pred_fallthru
        _
      // Predicated region
      $region101: #{cptg_dec_forward.4} parent=95 // pred_check
        %p666 = pneg %p76
      $region102: #{cptg_dec_forward.4} parent=95 // pred_check_branch
        %668 = sbr.rel (%p666) target = $region104
      $region103: #{cptg_dec_forward.4} parent=95 // pred_region
        %p669 = scmp.lt.s32.totalorder %s30, 1
        %s670 = scalar_select %p669, %s30, 1
        %s671 = smul.addr %s670, 8
        %s672 = scalar_lea.vmem %s1, %s671
      $region104: #{cptg_dec_forward.4} parent=95 // pred_fallthru
        _
      // Predicated region
      $region105: #{cptg_dec_forward.4} parent=95 // pred_check
        %p673 = pneg %p102
      $region106: #{cptg_dec_forward.4} parent=95 // pred_check_branch
        %675 = sbr.rel (%p673) target = $region108
      $region107: #{cptg_dec_forward.4} parent=95 // pred_region
        %p676 = scmp.lt.s32.totalorder %s30, 1
        %s677 = scalar_select %p676, %s30, 1
        %s678 = scalar_lea.vmem %s2, %s677
      $region108: #{cptg_dec_forward.4} parent=95 // pred_fallthru
        _
      // Predicated region
      $region109: #{cptg_dec_forward.4} parent=95 // pred_check
        %p679 = pneg %p128
      $region110: #{cptg_dec_forward.4} parent=95 // pred_check_branch
        %681 = sbr.rel (%p679) target = $region112
      $region111: #{cptg_dec_forward.4} parent=95 // pred_region
        %p682 = scmp.lt.s32.totalorder %s30, 1
        %s683 = scalar_select %p682, %s30, 1
        %s684 = scalar_lea.vmem %s3, %s683
      $region112: #{cptg_dec_forward.4} parent=95 // pred_fallthru
        _
    $region96: #{cptg_dec_forward.4} parent=5 // pred_fallthru
      _
    %p685 = scmp.le.s32.totalorder 1, %s30
    %p686 = scmp.lt.s32.totalorder %s30, 3
    %p687 = pnand %p685, %p686
    %p688 = pneg %p687
    // Predicated region
    $region113: #{cptg_dec_forward.4} parent=5 // pred_check
      _
    $region114: #{cptg_dec_forward.4} parent=5 // pred_check_branch
      %690 = sbr.rel (%p687) target = $region116
    $region115: #{cptg_dec_forward.4} parent=5 // pred_region
      %s691 = ssub.s32 %s30, 1
      %p692 = scmp.lt.s32.totalorder %s35, 1
      %s693 = scalar_select %p692, %s35, 1
      %s694 = smul.addr %s693, 8
      %s695 = scalar_lea.vmem %s0, %s694
      %p696 = pneg %p56
      %p697 = pneg %p53
      %p698 = scmp.lt.s32.totalorder %s35, 1
      %s699 = scalar_select %p698, %s35, 1
      %s700 = smul.addr %s699, 8
      %s701 = scalar_lea.vmem %s1, %s700
      %p702 = pneg %p82
      %p703 = pneg %p79
      %p704 = scmp.lt.s32.totalorder %s35, 1
      %s705 = scalar_select %p704, %s35, 1
      %s706 = scalar_lea.vmem %s2, %s705
      %p707 = pneg %p108
      %p708 = pneg %p105
      %p709 = scmp.lt.s32.totalorder %s35, 1
      %s710 = scalar_select %p709, %s35, 1
      %s711 = scalar_lea.vmem %s3, %s710
      %p712 = pneg %p134
      %p713 = pneg %p131
      %p714 = pneg %p155
      %p715 = pneg %p152
      %p716 = pneg %p176
      %p717 = pneg %p173
      %p718 = pneg %p197
      %p719 = pneg %p194
      %p720 = pneg %p218
      %p721 = pneg %p215
      %p722 = pneg %p239
      %p723 = pneg %p236
      %p724 = pneg %p260
      %p725 = pneg %p257
      %p726 = pneg %p281
      %p727 = pneg %p278
      %p728 = pneg %p302
      %p729 = pneg %p299
      %p730 = pneg %p323
      %p731 = pneg %p320
      %p732 = pneg %p344
      %p733 = pneg %p341
      %p734 = pneg %p365
      %p735 = pneg %p362
      %p736 = pneg %p386
      %p737 = pneg %p383
      %p738 = pneg %p407
      %p739 = pneg %p404
      %p740 = pneg %p428
      %p741 = pneg %p425
      %p742 = pneg %p449
      %p743 = pneg %p446
      %p744 = pneg %p470
      %p745 = pneg %p467
      %p746 = pneg %p491
      %p747 = pneg %p488
      %p748 = pneg %p512
      %p749 = pneg %p509
      %p750 = pneg %p533
      %p751 = pneg %p530
      %p752 = pneg %p554
      %p753 = pneg %p551
      %p754 = pneg %p580
      %p755 = pneg %p577
      %p756 = scmp.lt.s32.totalorder %s35, 1
      %s757 = scalar_select %p756, %s35, 1
      %s758 = smul.addr %s757, 8
      %s759 = scalar_lea.vmem %s24, %s758
      %p760 = scmp.lt.s32.totalorder %s35, 1
      %s761 = scalar_select %p760, %s35, 1
      %s762 = smul.addr %s761, 8
      %s763 = scalar_lea.vmem %s0, %s762
      %p764 = scmp.lt.s32.totalorder %s35, 1
      %s765 = scalar_select %p764, %s35, 1
      %s766 = smul.addr %s765, 8
      %s767 = scalar_lea.vmem %s1, %s766
      %p768 = scmp.lt.s32.totalorder %s35, 1
      %s769 = scalar_select %p768, %s35, 1
      %s770 = scalar_lea.vmem %s2, %s769
      %p771 = scmp.lt.s32.totalorder %s35, 1
      %s772 = scalar_select %p771, %s35, 1
      %s773 = scalar_lea.vmem %s3, %s772
      %p774 = scmp.lt.s32.totalorder %s35, 1
      %s775 = scalar_select %p774, %s35, 1
      %s776 = smul.addr %s775, 8
      %s777 = scalar_lea.vmem %s24, %s776
      %v779 = vld [vmem:[%s763] sm:$0xff]
      %v780 = vld [vmem:[%s767] sm:$0xff]
      %v781 = vpack.c.bf16 %v779, %v779
      %v782 = vld [vmem:[%s4] sm:$0xf]
      %v783 = vld [vmem:[%s4 + $0x4] sm:$0xf]
      %v784 = vld [vmem:[%s4 + $0x8] sm:$0xf]
      %v785 = vld [vmem:[%s4 + $0xc] sm:$0xf]
      %v786 = vld [vmem:[%s5] sm:$0x1]
      %v788 = vlaneseq
      %v789 = vshrl.u32 %v788, 7
      %v790 = vsub.s32 0, %v789
      %v791 = vrot.slane %v786, %v790
      %v797 = vunpack.c.l.b16 %v782
      %v798 = vunpack.c.l.b16 %v783
      %v799 = vunpack.c.l.b16 %v784
      %v800 = vunpack.c.l.b16 %v785
      %v801 = vpack.c.b16 %v798, %v797
      %v802 = vpack.c.b16 %v800, %v799
      %vm805 = vcmask 261120
      %v807 = vsel %vm805, %v781, 0
      %809 = vmatprep.subr.bf16.mxu0 0
      %810 = vmatpush1.bf16.msra.mxu0 %v801
      %811 = vmatprep.subr.bf16.mxu0 0
      %812 = vmatpush1.bf16.msra.mxu0 %v802
      %813 = vmatprep.subr.bf16.mxu0 0
      %814 = vmatpush1.bf16.msra.mxu0 0
      %815 = vmatprep.subr.bf16.mxu0 0
      %816 = vmatpush1.bf16.msra.mxu0 0
      %817 = vmatprep.subr.bf16.mxu0 0
      %818 = vmatpush1.bf16.msra.mxu0 0
      %819 = vmatprep.subr.bf16.mxu0 0
      %820 = vmatpush1.bf16.msra.mxu0 0
      %821 = vmatprep.subr.bf16.mxu0 0
      %822 = vmatpush1.bf16.msra.mxu0 0
      %823 = vmatprep.subr.bf16.mxu0 0
      %824 = vmatpush1.bf16.msra.mxu0 0
      %825 = vmatprep.subr.bf16.mxu0 0
      %826 = vmatpush1.bf16.msra.mxu0 0
      %827 = vmatprep.subr.bf16.mxu0 0
      %828 = vmatpush1.bf16.msra.mxu0 0
      %829 = vmatprep.subr.bf16.mxu0 0
      %830 = vmatpush1.bf16.msra.mxu0 0
      %831 = vmatprep.subr.bf16.mxu0 0
      %832 = vmatpush1.bf16.msra.mxu0 0
      %833 = vmatprep.subr.bf16.mxu0 0
      %834 = vmatpush1.bf16.msra.mxu0 0
      %835 = vmatprep.subr.bf16.mxu0 0
      %836 = vmatpush1.bf16.msra.mxu0 0
      %837 = vmatprep.subr.bf16.mxu0 0
      %838 = vmatpush1.bf16.msra.mxu0 0
      %839 = vmatprep.subr.bf16.mxu0 0
      %840 = vmatpush1.bf16.msra.mxu0 0
      %841 = vmatprep.mubr.bf16.mxu0 0
      %842 = vmatmul.mubr.bf16.gmra.mrb[0].mxu0 %v807
      %v843 = vpop.f32.mrb[0].mxu0
      %v844 = vadd.f32 %v791, %v843
      %v845 = vpop.f32.mrb[0].mxu0
      %v846 = vpop.f32.mrb[0].mxu0
      %v847 = vpop.f32.mrb[0].mxu0
      %848 = vdwg.mxu0
      %v849 = vlaneseq
      %v850 = vshrl.u32 %v849, 7
      %v851 = vlaneseq
      %v852 = vand.u32 %v851, 127
      %vm853 = vcmp.ge.s32.totalorder %v850, %v852
      %v854 = vsel %vm853, 0.0, -1e+09
      %v855 = vld [vmem:[%s770] sm:$0x1]
      %v857 = vlaneseq
      %v858 = vshrl.u32 %v857, 7
      %v859 = vsub.s32 0, %v858
      %v860 = vrot.slane %v855, %v859
      %v862 = vadd.f32 %v854, %v860
      %v863 = vpack.c.bf16 %v844, %v844
      %865 = vrot.lane.b32.xlu0 %v863, 96
      %v866 = vpop.permute.xlu0 %865
      %vm867 = vcmask 64512
      %v869 = vsel %vm867, %v863, 0
      %v872 = vsel %vm867, %v866, 0
      %874 = vmatprep.subr.bf16.mxu0 0
      %875 = vmatpush1.bf16.xpose.msra.mxu0 %v872
      %876 = vmatprep.subr.bf16.mxu0 0
      %877 = vmatpush1.bf16.xpose.msra.mxu0 0
      %878 = vmatprep.subr.bf16.mxu0 0
      %879 = vmatpush1.bf16.xpose.msra.mxu0 0
      %880 = vmatprep.subr.bf16.mxu0 0
      %881 = vmatpush1.bf16.xpose.msra.mxu0 0
      %882 = vmatprep.subr.bf16.mxu0 0
      %883 = vmatpush1.bf16.xpose.msra.mxu0 0
      %884 = vmatprep.subr.bf16.mxu0 0
      %885 = vmatpush1.bf16.xpose.msra.mxu0 0
      %886 = vmatprep.subr.bf16.mxu0 0
      %887 = vmatpush1.bf16.xpose.msra.mxu0 0
      %888 = vmatprep.subr.bf16.mxu0 0
      %889 = vmatpush1.bf16.xpose.msra.mxu0 0
      %890 = vmatprep.subr.bf16.mxu0 0
      %891 = vmatpush1.bf16.xpose.msra.mxu0 0
      %892 = vmatprep.subr.bf16.mxu0 0
      %893 = vmatpush1.bf16.xpose.msra.mxu0 0
      %894 = vmatprep.subr.bf16.mxu0 0
      %895 = vmatpush1.bf16.xpose.msra.mxu0 0
      %896 = vmatprep.subr.bf16.mxu0 0
      %897 = vmatpush1.bf16.xpose.msra.mxu0 0
      %898 = vmatprep.subr.bf16.mxu0 0
      %899 = vmatpush1.bf16.xpose.msra.mxu0 0
      %900 = vmatprep.subr.bf16.mxu0 0
      %901 = vmatpush1.bf16.xpose.msra.mxu0 0
      %902 = vmatprep.subr.bf16.mxu0 0
      %903 = vmatpush1.bf16.xpose.msra.mxu0 0
      %904 = vmatprep.subr.bf16.mxu0 0
      %905 = vmatpush1.bf16.xpose.msra.mxu0 0
      %906 = vmatprep.mubr.bf16.mxu0 0
      %907 = vmatmul.mubr.bf16.gmra.mrb[0].mxu0 %v869
      %v908 = vpop.f32.mrb[0].mxu0
      %v909 = vadd.f32 %v862, %v908
      %v910 = vpop.f32.mrb[0].mxu0
      %v911 = vpop.f32.mrb[0].mxu0
      %v912 = vpop.f32.mrb[0].mxu0
      %913 = vdwg.mxu0
      %v914 = vsel %vm867, %v909, -inf
      %915 = vmax.xlane.f32.xlu0 %v914
      %v916 = vpop.xlane.xlu0 %915
      %v917 = vsub.f32 %v909, %v916
      %v918 = vmul.f32 %v917, 1.442695
      %v919 = vpow.pop %v918
      %v920 = vsel %vm867, %v919, 0.0
      %921 = vadd.xlane.f32.xlu0 %v920
      %v922 = vpop.xlane.xlu0 %921
      %v923 = vrcp.pop %v922
      %v924 = vmul.f32 %v919, %v923
      %v925 = vpack.c.bf16 %v924, %v924
      %926 = vrot.lane.b32.xlu0 %v863, 64
      %v927 = vpop.permute.xlu0 %926
      %v929 = vsel %vm867, %v925, 0
      %vm931 = vcmask 1043456
      %v933 = vsel %vm931, %v927, 0
      %935 = vmatprep.subr.bf16.mxu0 0
      %936 = vmatpush1.bf16.msra.mxu0 %v933
      %937 = vmatprep.subr.bf16.mxu0 0
      %938 = vmatpush1.bf16.msra.mxu0 0
      %939 = vmatprep.subr.bf16.mxu0 0
      %940 = vmatpush1.bf16.msra.mxu0 0
      %941 = vmatprep.subr.bf16.mxu0 0
      %942 = vmatpush1.bf16.msra.mxu0 0
      %943 = vmatprep.subr.bf16.mxu0 0
      %944 = vmatpush1.bf16.msra.mxu0 0
      %945 = vmatprep.subr.bf16.mxu0 0
      %946 = vmatpush1.bf16.msra.mxu0 0
      %947 = vmatprep.subr.bf16.mxu0 0
      %948 = vmatpush1.bf16.msra.mxu0 0
      %949 = vmatprep.subr.bf16.mxu0 0
      %950 = vmatpush1.bf16.msra.mxu0 0
      %951 = vmatprep.subr.bf16.mxu0 0
      %952 = vmatpush1.bf16.msra.mxu0 0
      %953 = vmatprep.subr.bf16.mxu0 0
      %954 = vmatpush1.bf16.msra.mxu0 0
      %955 = vmatprep.subr.bf16.mxu0 0
      %956 = vmatpush1.bf16.msra.mxu0 0
      %957 = vmatprep.subr.bf16.mxu0 0
      %958 = vmatpush1.bf16.msra.mxu0 0
      %959 = vmatprep.subr.bf16.mxu0 0
      %960 = vmatpush1.bf16.msra.mxu0 0
      %961 = vmatprep.subr.bf16.mxu0 0
      %962 = vmatpush1.bf16.msra.mxu0 0
      %963 = vmatprep.subr.bf16.mxu0 0
      %964 = vmatpush1.bf16.msra.mxu0 0
      %965 = vmatprep.subr.bf16.mxu0 0
      %966 = vmatpush1.bf16.msra.mxu0 0
      %967 = vmatprep.mubr.bf16.mxu0 0
      %968 = vmatmul.mubr.bf16.gmra.mrb[0].mxu0 %v929
      %v969 = vpop.f32.mrb[0].mxu0
      %v970 = vadd.f32 0.0, %v969
      %v971 = vpop.f32.mrb[0].mxu0
      %v972 = vpop.f32.mrb[0].mxu0
      %v973 = vpop.f32.mrb[0].mxu0
      %974 = vdwg.mxu0
      %975 = vrot.lane.b32.xlu0 %v863, 120
      %v976 = vpop.permute.xlu0 %975
      %977 = vrot.lane.b32.xlu0 %v863, 88
      %v978 = vpop.permute.xlu0 %977
      %v980 = vsel %vm867, %v976, 0
      %v983 = vsel %vm867, %v978, 0
      %985 = vmatprep.subr.bf16.mxu0 0
      %986 = vmatpush1.bf16.xpose.msra.mxu0 %v983
      %987 = vmatprep.subr.bf16.mxu0 0
      %988 = vmatpush1.bf16.xpose.msra.mxu0 0
      %989 = vmatprep.subr.bf16.mxu0 0
      %990 = vmatpush1.bf16.xpose.msra.mxu0 0
      %991 = vmatprep.subr.bf16.mxu0 0
      %992 = vmatpush1.bf16.xpose.msra.mxu0 0
      %993 = vmatprep.subr.bf16.mxu0 0
      %994 = vmatpush1.bf16.xpose.msra.mxu0 0
      %995 = vmatprep.subr.bf16.mxu0 0
      %996 = vmatpush1.bf16.xpose.msra.mxu0 0
      %997 = vmatprep.subr.bf16.mxu0 0
      %998 = vmatpush1.bf16.xpose.msra.mxu0 0
      %999 = vmatprep.subr.bf16.mxu0 0
      %1000 = vmatpush1.bf16.xpose.msra.mxu0 0
      %1001 = vmatprep.subr.bf16.mxu0 0
      %1002 = vmatpush1.bf16.xpose.msra.mxu0 0
      %1003 = vmatprep.subr.bf16.mxu0 0
      %1004 = vmatpush1.bf16.xpose.msra.mxu0 0
      %1005 = vmatprep.subr.bf16.mxu0 0
      %1006 = vmatpush1.bf16.xpose.msra.mxu0 0
      %1007 = vmatprep.subr.bf16.mxu0 0
      %1008 = vmatpush1.bf16.xpose.msra.mxu0 0
      %1009 = vmatprep.subr.bf16.mxu0 0
      %1010 = vmatpush1.bf16.xpose.msra.mxu0 0
      %1011 = vmatprep.subr.bf16.mxu0 0
      %1012 = vmatpush1.bf16.xpose.msra.mxu0 0
      %1013 = vmatprep.subr.bf16.mxu0 0
      %1014 = vmatpush1.bf16.xpose.msra.mxu0 0
      %1015 = vmatprep.subr.bf16.mxu0 0
      %1016 = vmatpush1.bf16.xpose.msra.mxu0 0
      %1017 = vmatprep.mubr.bf16.mxu0 0
      %1018 = vmatmul.mubr.bf16.gmra.mrb[0].mxu0 %v980
      %v1019 = vpop.f32.mrb[0].mxu0
      %v1020 = vadd.f32 %v862, %v1019
      %v1021 = vpop.f32.mrb[0].mxu0
      %v1022 = vpop.f32.mrb[0].mxu0
      %v1023 = vpop.f32.mrb[0].mxu0
      %1024 = vdwg.mxu0
      %v1025 = vsel %vm867, %v1020, -inf
      %1026 = vmax.xlane.f32.xlu0 %v1025
      %v1027 = vpop.xlane.xlu0 %1026
      %v1028 = vsub.f32 %v1020, %v1027
      %v1029 = vmul.f32 %v1028, 1.442695
      %v1030 = vpow.pop %v1029
      %v1031 = vsel %vm867, %v1030, 0.0
      %1032 = vadd.xlane.f32.xlu0 %v1031
      %v1033 = vpop.xlane.xlu0 %1032
      %v1034 = vrcp.pop %v1033
      %v1035 = vmul.f32 %v1030, %v1034
      %v1036 = vpack.c.bf16 %v1035, %v1035
      %1037 = vrot.lane.b32.xlu0 %v863, 56
      %v1038 = vpop.permute.xlu0 %1037
      %v1040 = vsel %vm867, %v1036, 0
      %v1043 = vsel %vm931, %v1038, 0
      %1045 = vmatprep.subr.bf16.mxu0 0
      %1046 = vmatpush1.bf16.msra.mxu0 %v1043
      %1047 = vmatprep.subr.bf16.mxu0 0
      %1048 = vmatpush1.bf16.msra.mxu0 0
      %1049 = vmatprep.subr.bf16.mxu0 0
      %1050 = vmatpush1.bf16.msra.mxu0 0
      %1051 = vmatprep.subr.bf16.mxu0 0
      %1052 = vmatpush1.bf16.msra.mxu0 0
      %1053 = vmatprep.subr.bf16.mxu0 0
      %1054 = vmatpush1.bf16.msra.mxu0 0
      %1055 = vmatprep.subr.bf16.mxu0 0
      %1056 = vmatpush1.bf16.msra.mxu0 0
      %1057 = vmatprep.subr.bf16.mxu0 0
      %1058 = vmatpush1.bf16.msra.mxu0 0
      %1059 = vmatprep.subr.bf16.mxu0 0
      %1060 = vmatpush1.bf16.msra.mxu0 0
      %1061 = vmatprep.subr.bf16.mxu0 0
      %1062 = vmatpush1.bf16.msra.mxu0 0
      %1063 = vmatprep.subr.bf16.mxu0 0
      %1064 = vmatpush1.bf16.msra.mxu0 0
      %1065 = vmatprep.subr.bf16.mxu0 0
      %1066 = vmatpush1.bf16.msra.mxu0 0
      %1067 = vmatprep.subr.bf16.mxu0 0
      %1068 = vmatpush1.bf16.msra.mxu0 0
      %1069 = vmatprep.subr.bf16.mxu0 0
      %1070 = vmatpush1.bf16.msra.mxu0 0
      %1071 = vmatprep.subr.bf16.mxu0 0
      %1072 = vmatpush1.bf16.msra.mxu0 0
      %1073 = vmatprep.subr.bf16.mxu0 0
      %1074 = vmatpush1.bf16.msra.mxu0 0
      %1075 = vmatprep.subr.bf16.mxu0 0
      %1076 = vmatpush1.bf16.msra.mxu0 0
      %1077 = vmatprep.mubr.bf16.mxu0 0
      %1078 = vmatmul.mubr.bf16.gmra.mrb[0].mxu0 %v1040
      %v1079 = vpop.f32.mrb[0].mxu0
      %v1080 = vadd.f32 0.0, %v1079
      %v1081 = vpop.f32.mrb[0].mxu0
      %v1082 = vpop.f32.mrb[0].mxu0
      %v1083 = vpop.f32.mrb[0].mxu0
      %1084 = vdwg.mxu0
      %1085 = vrot.lane.b32.xlu0 %v863, 112
      %v1086 = vpop.permute.xlu0 %1085
      %1087 = vrot.lane.b32.xlu0 %v863, 80
      %v1088 = vpop.permute.xlu0 %1087
      %v1090 = vsel %vm867, %v1086, 0
      %v1093 = vsel %vm867, %v1088, 0
      %1095 = vmatprep.subr.bf16.mxu0 0
      %1096 = vmatpush1.bf16.xpose.msra.mxu0 %v1093
      %1097 = vmatprep.subr.bf16.mxu0 0
      %1098 = vmatpush1.bf16.xpose.msra.mxu0 0
      %1099 = vmatprep.subr.bf16.mxu0 0
      %1100 = vmatpush1.bf16.xpose.msra.mxu0 0
      %1101 = vmatprep.subr.bf16.mxu0 0
      %1102 = vmatpush1.bf16.xpose.msra.mxu0 0
      %1103 = vmatprep.subr.bf16.mxu0 0
      %1104 = vmatpush1.bf16.xpose.msra.mxu0 0
      %1105 = vmatprep.subr.bf16.mxu0 0
      %1106 = vmatpush1.bf16.xpose.msra.mxu0 0
      %1107 = vmatprep.subr.bf16.mxu0 0
      %1108 = vmatpush1.bf16.xpose.msra.mxu0 0
      %1109 = vmatprep.subr.bf16.mxu0 0
      %1110 = vmatpush1.bf16.xpose.msra.mxu0 0
      %1111 = vmatprep.subr.bf16.mxu0 0
      %1112 = vmatpush1.bf16.xpose.msra.mxu0 0
      %1113 = vmatprep.subr.bf16.mxu0 0
      %1114 = vmatpush1.bf16.xpose.msra.mxu0 0
      %1115 = vmatprep.subr.bf16.mxu0 0
      %1116 = vmatpush1.bf16.xpose.msra.mxu0 0
      %1117 = vmatprep.subr.bf16.mxu0 0
      %1118 = vmatpush1.bf16.xpose.msra.mxu0 0
      %1119 = vmatprep.subr.bf16.mxu0 0
      %1120 = vmatpush1.bf16.xpose.msra.mxu0 0
      %1121 = vmatprep.subr.bf16.mxu0 0
      %1122 = vmatpush1.bf16.xpose.msra.mxu0 0
      %1123 = vmatprep.subr.bf16.mxu0 0
      %1124 = vmatpush1.bf16.xpose.msra.mxu0 0
      %1125 = vmatprep.subr.bf16.mxu0 0
      %1126 = vmatpush1.bf16.xpose.msra.mxu0 0
      %1127 = vmatprep.mubr.bf16.mxu0 0
      %1128 = vmatmul.mubr.bf16.gmra.mrb[0].mxu0 %v1090
      %v1129 = vpop.f32.mrb[0].mxu0
      %v1130 = vadd.f32 %v862, %v1129
      %v1131 = vpop.f32.mrb[0].mxu0
      %v1132 = vpop.f32.mrb[0].mxu0
      %v1133 = vpop.f32.mrb[0].mxu0
      %1134 = vdwg.mxu0
      %v1135 = vsel %vm867, %v1130, -inf
      %1136 = vmax.xlane.f32.xlu0 %v1135
      %v1137 = vpop.xlane.xlu0 %1136
      %v1138 = vsub.f32 %v1130, %v1137
      %v1139 = vmul.f32 %v1138, 1.442695
      %v1140 = vpow.pop %v1139
      %v1141 = vsel %vm867, %v1140, 0.0
      %1142 = vadd.xlane.f32.xlu0 %v1141
      %v1143 = vpop.xlane.xlu0 %1142
      %v1144 = vrcp.pop %v1143
      %v1145 = vmul.f32 %v1140, %v1144
      %v1146 = vpack.c.bf16 %v1145, %v1145
      %1147 = vrot.lane.b32.xlu0 %v863, 48
      %v1148 = vpop.permute.xlu0 %1147
      %v1150 = vsel %vm867, %v1146, 0
      %v1153 = vsel %vm931, %v1148, 0
      %1155 = vmatprep.subr.bf16.mxu0 0
      %1156 = vmatpush1.bf16.msra.mxu0 %v1153
      %1157 = vmatprep.subr.bf16.mxu0 0
      %1158 = vmatpush1.bf16.msra.mxu0 0
      %1159 = vmatprep.subr.bf16.mxu0 0
      %1160 = vmatpush1.bf16.msra.mxu0 0
      %1161 = vmatprep.subr.bf16.mxu0 0
      %1162 = vmatpush1.bf16.msra.mxu0 0
      %1163 = vmatprep.subr.bf16.mxu0 0
      %1164 = vmatpush1.bf16.msra.mxu0 0
      %1165 = vmatprep.subr.bf16.mxu0 0
      %1166 = vmatpush1.bf16.msra.mxu0 0
      %1167 = vmatprep.subr.bf16.mxu0 0
      %1168 = vmatpush1.bf16.msra.mxu0 0
      %1169 = vmatprep.subr.bf16.mxu0 0
      %1170 = vmatpush1.bf16.msra.mxu0 0
      %1171 = vmatprep.subr.bf16.mxu0 0
      %1172 = vmatpush1.bf16.msra.mxu0 0
      %1173 = vmatprep.subr.bf16.mxu0 0
      %1174 = vmatpush1.bf16.msra.mxu0 0
      %1175 = vmatprep.subr.bf16.mxu0 0
      %1176 = vmatpush1.bf16.msra.mxu0 0
      %1177 = vmatprep.subr.bf16.mxu0 0
      %1178 = vmatpush1.bf16.msra.mxu0 0
      %1179 = vmatprep.subr.bf16.mxu0 0
      %1180 = vmatpush1.bf16.msra.mxu0 0
      %1181 = vmatprep.subr.bf16.mxu0 0
      %1182 = vmatpush1.bf16.msra.mxu0 0
      %1183 = vmatprep.subr.bf16.mxu0 0
      %1184 = vmatpush1.bf16.msra.mxu0 0
      %1185 = vmatprep.subr.bf16.mxu0 0
      %1186 = vmatpush1.bf16.msra.mxu0 0
      %1187 = vmatprep.mubr.bf16.mxu0 0
      %1188 = vmatmul.mubr.bf16.gmra.mrb[0].mxu0 %v1150
      %v1189 = vpop.f32.mrb[0].mxu0
      %v1190 = vadd.f32 0.0, %v1189
      %v1191 = vpop.f32.mrb[0].mxu0
      %v1192 = vpop.f32.mrb[0].mxu0
      %v1193 = vpop.f32.mrb[0].mxu0
      %1194 = vdwg.mxu0
      %1195 = vrot.lane.b32.xlu0 %v863, 104
      %v1196 = vpop.permute.xlu0 %1195
      %1197 = vrot.lane.b32.xlu0 %v863, 72
      %v1198 = vpop.permute.xlu0 %1197
      %v1200 = vsel %vm867, %v1196, 0
      %v1203 = vsel %vm867, %v1198, 0
      %1205 = vmatprep.subr.bf16.mxu0 0
      %1206 = vmatpush1.bf16.xpose.msra.mxu0 %v1203
      %1207 = vmatprep.subr.bf16.mxu0 0
      %1208 = vmatpush1.bf16.xpose.msra.mxu0 0
      %1209 = vmatprep.subr.bf16.mxu0 0
      %1210 = vmatpush1.bf16.xpose.msra.mxu0 0
      %1211 = vmatprep.subr.bf16.mxu0 0
      %1212 = vmatpush1.bf16.xpose.msra.mxu0 0
      %1213 = vmatprep.subr.bf16.mxu0 0
      %1214 = vmatpush1.bf16.xpose.msra.mxu0 0
      %1215 = vmatprep.subr.bf16.mxu0 0
      %1216 = vmatpush1.bf16.xpose.msra.mxu0 0
      %1217 = vmatprep.subr.bf16.mxu0 0
      %1218 = vmatpush1.bf16.xpose.msra.mxu0 0
      %1219 = vmatprep.subr.bf16.mxu0 0
      %1220 = vmatpush1.bf16.xpose.msra.mxu0 0
      %1221 = vmatprep.subr.bf16.mxu0 0
      %1222 = vmatpush1.bf16.xpose.msra.mxu0 0
      %1223 = vmatprep.subr.bf16.mxu0 0
      %1224 = vmatpush1.bf16.xpose.msra.mxu0 0
      %1225 = vmatprep.subr.bf16.mxu0 0
      %1226 = vmatpush1.bf16.xpose.msra.mxu0 0
      %1227 = vmatprep.subr.bf16.mxu0 0
      %1228 = vmatpush1.bf16.xpose.msra.mxu0 0
      %1229 = vmatprep.subr.bf16.mxu0 0
      %1230 = vmatpush1.bf16.xpose.msra.mxu0 0
      %1231 = vmatprep.subr.bf16.mxu0 0
      %1232 = vmatpush1.bf16.xpose.msra.mxu0 0
      %1233 = vmatprep.subr.bf16.mxu0 0
      %1234 = vmatpush1.bf16.xpose.msra.mxu0 0
      %1235 = vmatprep.subr.bf16.mxu0 0
      %1236 = vmatpush1.bf16.xpose.msra.mxu0 0
      %1237 = vmatprep.mubr.bf16.mxu0 0
      %1238 = vmatmul.mubr.bf16.gmra.mrb[0].mxu0 %v1200
      %v1239 = vpop.f32.mrb[0].mxu0
      %v1240 = vadd.f32 %v862, %v1239
      %v1241 = vpop.f32.mrb[0].mxu0
      %v1242 = vpop.f32.mrb[0].mxu0
      %v1243 = vpop.f32.mrb[0].mxu0
      %1244 = vdwg.mxu0
      %v1245 = vsel %vm867, %v1240, -inf
      %1246 = vmax.xlane.f32.xlu0 %v1245
      %v1247 = vpop.xlane.xlu0 %1246
      %v1248 = vsub.f32 %v1240, %v1247
      %v1249 = vmul.f32 %v1248, 1.442695
      %v1250 = vpow.pop %v1249
      %v1251 = vsel %vm867, %v1250, 0.0
      %1252 = vadd.xlane.f32.xlu0 %v1251
      %v1253 = vpop.xlane.xlu0 %1252
      %v1254 = vrcp.pop %v1253
      %v1255 = vmul.f32 %v1250, %v1254
      %v1256 = vpack.c.bf16 %v1255, %v1255
      %1257 = vrot.lane.b32.xlu0 %v863, 40
      %v1258 = vpop.permute.xlu0 %1257
      %v1260 = vsel %vm867, %v1256, 0
      %v1263 = vsel %vm931, %v1258, 0
      %1265 = vmatprep.subr.bf16.mxu0 0
      %1266 = vmatpush1.bf16.msra.mxu0 %v1263
      %1267 = vmatprep.subr.bf16.mxu0 0
      %1268 = vmatpush1.bf16.msra.mxu0 0
      %1269 = vmatprep.subr.bf16.mxu0 0
      %1270 = vmatpush1.bf16.msra.mxu0 0
      %1271 = vmatprep.subr.bf16.mxu0 0
      %1272 = vmatpush1.bf16.msra.mxu0 0
      %1273 = vmatprep.subr.bf16.mxu0 0
      %1274 = vmatpush1.bf16.msra.mxu0 0
      %1275 = vmatprep.subr.bf16.mxu0 0
      %1276 = vmatpush1.bf16.msra.mxu0 0
      %1277 = vmatprep.subr.bf16.mxu0 0
      %1278 = vmatpush1.bf16.msra.mxu0 0
      %1279 = vmatprep.subr.bf16.mxu0 0
      %1280 = vmatpush1.bf16.msra.mxu0 0
      %1281 = vmatprep.subr.bf16.mxu0 0
      %1282 = vmatpush1.bf16.msra.mxu0 0
      %1283 = vmatprep.subr.bf16.mxu0 0
      %1284 = vmatpush1.bf16.msra.mxu0 0
      %1285 = vmatprep.subr.bf16.mxu0 0
      %1286 = vmatpush1.bf16.msra.mxu0 0
      %1287 = vmatprep.subr.bf16.mxu0 0
      %1288 = vmatpush1.bf16.msra.mxu0 0
      %1289 = vmatprep.subr.bf16.mxu0 0
      %1290 = vmatpush1.bf16.msra.mxu0 0
      %1291 = vmatprep.subr.bf16.mxu0 0
      %1292 = vmatpush1.bf16.msra.mxu0 0
      %1293 = vmatprep.subr.bf16.mxu0 0
      %1294 = vmatpush1.bf16.msra.mxu0 0
      %1295 = vmatprep.subr.bf16.mxu0 0
      %1296 = vmatpush1.bf16.msra.mxu0 0
      %1297 = vmatprep.mubr.bf16.mxu0 0
      %1298 = vmatmul.mubr.bf16.gmra.mrb[0].mxu0 %v1260
      %v1299 = vpop.f32.mrb[0].mxu0
      %v1300 = vadd.f32 0.0, %v1299
      %v1301 = vpop.f32.mrb[0].mxu0
      %v1302 = vpop.f32.mrb[0].mxu0
      %v1303 = vpop.f32.mrb[0].mxu0
      %1304 = vdwg.mxu0
      %1306 = vrot.lane.b32.xlu0 %v1080, 8
      %v1307 = vpop.permute.xlu0 %1306
      %1310 = vrot.lane.b32.xlu0 %v1190, 16
      %v1311 = vpop.permute.xlu0 %1310
      %1314 = vrot.lane.b32.xlu0 %v1300, 24
      %v1315 = vpop.permute.xlu0 %1314
      %v1317 = vsel %vm867, %v970, %v1307
      %vm1318 = vcmask 130048
      %v1319 = vsel %vm1318, %v1317, %v1311
      %vm1320 = vcmask 195584
      %v1321 = vsel %vm1320, %v1319, %v1315
      %v1322 = vpack.c.bf16 %v1321, %v1321
      %v1323 = vld [vmem:[%s6] sm:$0xf]
      %v1324 = vld [vmem:[%s6 + $0x4] sm:$0xf]
      %v1325 = vld [vmem:[%s6 + $0x8] sm:$0xf]
      %v1326 = vld [vmem:[%s6 + $0xc] sm:$0xf]
      %v1327 = vld [vmem:[%s7] sm:$0x1]
      %v1329 = vlaneseq
      %v1330 = vshrl.u32 %v1329, 7
      %v1331 = vsub.s32 0, %v1330
      %v1332 = vrot.slane %v1327, %v1331
      %v1338 = vunpack.c.l.b16 %v1323
      %v1339 = vunpack.c.l.b16 %v1324
      %v1340 = vunpack.c.l.b16 %v1325
      %v1341 = vunpack.c.l.b16 %v1326
      %v1342 = vpack.c.b16 %v1339, %v1338
      %v1343 = vpack.c.b16 %v1341, %v1340
      %v1347 = vsel %vm805, %v1322, 0
      %1349 = vmatprep.subr.bf16.mxu0 0
      %1350 = vmatpush1.bf16.msra.mxu0 %v1342
      %1351 = vmatprep.subr.bf16.mxu0 0
      %1352 = vmatpush1.bf16.msra.mxu0 %v1343
      %1353 = vmatprep.subr.bf16.mxu0 0
      %1354 = vmatpush1.bf16.msra.mxu0 0
      %1355 = vmatprep.subr.bf16.mxu0 0
      %1356 = vmatpush1.bf16.msra.mxu0 0
      %1357 = vmatprep.subr.bf16.mxu0 0
      %1358 = vmatpush1.bf16.msra.mxu0 0
      %1359 = vmatprep.subr.bf16.mxu0 0
      %1360 = vmatpush1.bf16.msra.mxu0 0
      %1361 = vmatprep.subr.bf16.mxu0 0
      %1362 = vmatpush1.bf16.msra.mxu0 0
      %1363 = vmatprep.subr.bf16.mxu0 0
      %1364 = vmatpush1.bf16.msra.mxu0 0
      %1365 = vmatprep.subr.bf16.mxu0 0
      %1366 = vmatpush1.bf16.msra.mxu0 0
      %1367 = vmatprep.subr.bf16.mxu0 0
      %1368 = vmatpush1.bf16.msra.mxu0 0
      %1369 = vmatprep.subr.bf16.mxu0 0
      %1370 = vmatpush1.bf16.msra.mxu0 0
      %1371 = vmatprep.subr.bf16.mxu0 0
      %1372 = vmatpush1.bf16.msra.mxu0 0
      %1373 = vmatprep.subr.bf16.mxu0 0
      %1374 = vmatpush1.bf16.msra.mxu0 0
      %1375 = vmatprep.subr.bf16.mxu0 0
      %1376 = vmatpush1.bf16.msra.mxu0 0
      %1377 = vmatprep.subr.bf16.mxu0 0
      %1378 = vmatpush1.bf16.msra.mxu0 0
      %1379 = vmatprep.subr.bf16.mxu0 0
      %1380 = vmatpush1.bf16.msra.mxu0 0
      %1381 = vmatprep.mubr.bf16.mxu0 0
      %1382 = vmatmul.mubr.bf16.gmra.mrb[0].mxu0 %v1347
      %v1383 = vpop.f32.mrb[0].mxu0
      %v1384 = vadd.f32 %v1332, %v1383
      %v1385 = vpop.f32.mrb[0].mxu0
      %v1386 = vpop.f32.mrb[0].mxu0
      %v1387 = vpop.f32.mrb[0].mxu0
      %1388 = vdwg.mxu0
      %v1389 = vadd.f32 %v779, %v1384
      %v1390 = vsel %vm805, %v1389, 0.0
      %1391 = vadd.xlane.f32.xlu0 %v1390
      %v1392 = vpop.xlane.xlu0 %1391
      %v1393 = vrcp.pop 32.0
      %v1394 = vmul.f32 %v1392, %v1393
      %v1395 = vsub.f32 %v1389, %v1394
      %v1396 = vmul.f32 %v1395, %v1395
      %v1397 = vsel %vm805, %v1396, 0.0
      %1398 = vadd.xlane.f32.xlu0 %v1397
      %v1399 = vpop.xlane.xlu0 %1398
      %v1400 = vmul.f32 %v1399, %v1393
      %v1401 = vadd.f32 %v1400, 1e-05
      %v1402 = vrsqrt.pop %v1401
      %v1403 = vmul.f32 %v1395, %v1402
      %v1404 = vld [vmem:[%s8] sm:$0x1]
      %v1406 = vlaneseq
      %v1407 = vshrl.u32 %v1406, 7
      %v1408 = vsub.s32 0, %v1407
      %v1409 = vrot.slane %v1404, %v1408
      %v1411 = vmul.f32 %v1403, %v1409
      %v1412 = vld [vmem:[%s9] sm:$0x1]
      %v1414 = vlaneseq
      %v1415 = vshrl.u32 %v1414, 7
      %v1416 = vsub.s32 0, %v1415
      %v1417 = vrot.slane %v1412, %v1416
      %v1419 = vadd.f32 %v1411, %v1417
      %v1420 = vpack.c.bf16 %v1419, %v1419
      %v1421 = vld [vmem:[%s10] sm:$0xf]
      %v1422 = vld [vmem:[%s10 + $0x4] sm:$0xf]
      %v1423 = vld [vmem:[%s10 + $0x8] sm:$0xf]
      %v1424 = vld [vmem:[%s10 + $0xc] sm:$0xf]
      %v1425 = vld [vmem:[%s11] sm:$0x1]
      %v1427 = vlaneseq
      %v1428 = vshrl.u32 %v1427, 7
      %v1429 = vsub.s32 0, %v1428
      %v1430 = vrot.slane %v1425, %v1429
      %v1436 = vunpack.c.l.b16 %v1421
      %v1437 = vunpack.c.l.b16 %v1422
      %v1438 = vunpack.c.l.b16 %v1423
      %v1439 = vunpack.c.l.b16 %v1424
      %v1440 = vpack.c.b16 %v1437, %v1436
      %v1441 = vpack.c.b16 %v1439, %v1438
      %v1445 = vsel %vm805, %v1420, 0
      %1447 = vmatprep.subr.bf16.mxu0 0
      %1448 = vmatpush1.bf16.msra.mxu0 %v1440
      %1449 = vmatprep.subr.bf16.mxu0 0
      %1450 = vmatpush1.bf16.msra.mxu0 %v1441
      %1451 = vmatprep.subr.bf16.mxu0 0
      %1452 = vmatpush1.bf16.msra.mxu0 0
      %1453 = vmatprep.subr.bf16.mxu0 0
      %1454 = vmatpush1.bf16.msra.mxu0 0
      %1455 = vmatprep.subr.bf16.mxu0 0
      %1456 = vmatpush1.bf16.msra.mxu0 0
      %1457 = vmatprep.subr.bf16.mxu0 0
      %1458 = vmatpush1.bf16.msra.mxu0 0
      %1459 = vmatprep.subr.bf16.mxu0 0
      %1460 = vmatpush1.bf16.msra.mxu0 0
      %1461 = vmatprep.subr.bf16.mxu0 0
      %1462 = vmatpush1.bf16.msra.mxu0 0
      %1463 = vmatprep.subr.bf16.mxu0 0
      %1464 = vmatpush1.bf16.msra.mxu0 0
      %1465 = vmatprep.subr.bf16.mxu0 0
      %1466 = vmatpush1.bf16.msra.mxu0 0
      %1467 = vmatprep.subr.bf16.mxu0 0
      %1468 = vmatpush1.bf16.msra.mxu0 0
      %1469 = vmatprep.subr.bf16.mxu0 0
      %1470 = vmatpush1.bf16.msra.mxu0 0
      %1471 = vmatprep.subr.bf16.mxu0 0
      %1472 = vmatpush1.bf16.msra.mxu0 0
      %1473 = vmatprep.subr.bf16.mxu0 0
      %1474 = vmatpush1.bf16.msra.mxu0 0
      %1475 = vmatprep.subr.bf16.mxu0 0
      %1476 = vmatpush1.bf16.msra.mxu0 0
      %1477 = vmatprep.subr.bf16.mxu0 0
      %1478 = vmatpush1.bf16.msra.mxu0 0
      %1479 = vmatprep.mubr.bf16.mxu0 0
      %1480 = vmatmul.mubr.bf16.gmra.mrb[0].mxu0 %v1445
      %v1481 = vpop.f32.mrb[0].mxu0
      %v1482 = vadd.f32 %v1430, %v1481
      %v1483 = vpop.f32.mrb[0].mxu0
      %v1484 = vpop.f32.mrb[0].mxu0
      %v1485 = vpop.f32.mrb[0].mxu0
      %1486 = vdwg.mxu0
      %v1487 = vpack.c.bf16 %v780, %v780
      %v1488 = vld [vmem:[%s12] sm:$0xf]
      %v1489 = vld [vmem:[%s12 + $0x4] sm:$0xf]
      %v1490 = vld [vmem:[%s12 + $0x8] sm:$0xf]
      %v1491 = vld [vmem:[%s12 + $0xc] sm:$0xf]
      %v1492 = vld [vmem:[%s13] sm:$0x1]
      %v1494 = vlaneseq
      %v1495 = vshrl.u32 %v1494, 7
      %v1496 = vsub.s32 0, %v1495
      %v1497 = vrot.slane %v1492, %v1496
      %v1503 = vunpack.c.l.b16 %v1488
      %v1504 = vunpack.c.l.b16 %v1489
      %v1505 = vunpack.c.l.b16 %v1490
      %v1506 = vunpack.c.l.b16 %v1491
      %v1507 = vpack.c.b16 %v1504, %v1503
      %v1508 = vpack.c.b16 %v1506, %v1505
      %v1512 = vsel %vm805, %v1487, 0
      %1514 = vmatprep.subr.bf16.mxu0 0
      %1515 = vmatpush1.bf16.msra.mxu0 %v1507
      %1516 = vmatprep.subr.bf16.mxu0 0
      %1517 = vmatpush1.bf16.msra.mxu0 %v1508
      %1518 = vmatprep.subr.bf16.mxu0 0
      %1519 = vmatpush1.bf16.msra.mxu0 0
      %1520 = vmatprep.subr.bf16.mxu0 0
      %1521 = vmatpush1.bf16.msra.mxu0 0
      %1522 = vmatprep.subr.bf16.mxu0 0
      %1523 = vmatpush1.bf16.msra.mxu0 0
      %1524 = vmatprep.subr.bf16.mxu0 0
      %1525 = vmatpush1.bf16.msra.mxu0 0
      %1526 = vmatprep.subr.bf16.mxu0 0
      %1527 = vmatpush1.bf16.msra.mxu0 0
      %1528 = vmatprep.subr.bf16.mxu0 0
      %1529 = vmatpush1.bf16.msra.mxu0 0
      %1530 = vmatprep.subr.bf16.mxu0 0
      %1531 = vmatpush1.bf16.msra.mxu0 0
      %1532 = vmatprep.subr.bf16.mxu0 0
      %1533 = vmatpush1.bf16.msra.mxu0 0
      %1534 = vmatprep.subr.bf16.mxu0 0
      %1535 = vmatpush1.bf16.msra.mxu0 0
      %1536 = vmatprep.subr.bf16.mxu0 0
      %1537 = vmatpush1.bf16.msra.mxu0 0
      %1538 = vmatprep.subr.bf16.mxu0 0
      %1539 = vmatpush1.bf16.msra.mxu0 0
      %1540 = vmatprep.subr.bf16.mxu0 0
      %1541 = vmatpush1.bf16.msra.mxu0 0
      %1542 = vmatprep.subr.bf16.mxu0 0
      %1543 = vmatpush1.bf16.msra.mxu0 0
      %1544 = vmatprep.subr.bf16.mxu0 0
      %1545 = vmatpush1.bf16.msra.mxu0 0
      %1546 = vmatprep.mubr.bf16.mxu0 0
      %1547 = vmatmul.mubr.bf16.gmra.mrb[0].mxu0 %v1512
      %v1548 = vpop.f32.mrb[0].mxu0
      %v1549 = vadd.f32 %v1497, %v1548
      %v1550 = vpop.f32.mrb[0].mxu0
      %v1551 = vpop.f32.mrb[0].mxu0
      %v1552 = vpop.f32.mrb[0].mxu0
      %1553 = vdwg.mxu0
      %v1554 = vld [vmem:[%s773] sm:$0x1]
      %v1555 = vpack.c.bf16 %v1482, %v1482
      %v1556 = vpack.c.bf16 %v1549, %v1549
      %v1558 = vlaneseq
      %v1559 = vshrl.u32 %v1558, 7
      %v1560 = vsub.s32 0, %v1559
      %v1561 = vrot.slane %v1554, %v1560
      %v1564 = vsel %vm867, %v1555, 0
      %v1567 = vsel %vm867, %v1556, 0
      %1569 = vmatprep.subr.bf16.mxu0 0
      %1570 = vmatpush1.bf16.xpose.msra.mxu0 %v1567
      %1571 = vmatprep.subr.bf16.mxu0 0
      %1572 = vmatpush1.bf16.xpose.msra.mxu0 0
      %1573 = vmatprep.subr.bf16.mxu0 0
      %1574 = vmatpush1.bf16.xpose.msra.mxu0 0
      %1575 = vmatprep.subr.bf16.mxu0 0
      %1576 = vmatpush1.bf16.xpose.msra.mxu0 0
      %1577 = vmatprep.subr.bf16.mxu0 0
      %1578 = vmatpush1.bf16.xpose.msra.mxu0 0
      %1579 = vmatprep.subr.bf16.mxu0 0
      %1580 = vmatpush1.bf16.xpose.msra.mxu0 0
      %1581 = vmatprep.subr.bf16.mxu0 0
      %1582 = vmatpush1.bf16.xpose.msra.mxu0 0
      %1583 = vmatprep.subr.bf16.mxu0 0
      %1584 = vmatpush1.bf16.xpose.msra.mxu0 0
      %1585 = vmatprep.subr.bf16.mxu0 0
      %1586 = vmatpush1.bf16.xpose.msra.mxu0 0
      %1587 = vmatprep.subr.bf16.mxu0 0
      %1588 = vmatpush1.bf16.xpose.msra.mxu0 0
      %1589 = vmatprep.subr.bf16.mxu0 0
      %1590 = vmatpush1.bf16.xpose.msra.mxu0 0
      %1591 = vmatprep.subr.bf16.mxu0 0
      %1592 = vmatpush1.bf16.xpose.msra.mxu0 0
      %1593 = vmatprep.subr.bf16.mxu0 0
      %1594 = vmatpush1.bf16.xpose.msra.mxu0 0
      %1595 = vmatprep.subr.bf16.mxu0 0
      %1596 = vmatpush1.bf16.xpose.msra.mxu0 0
      %1597 = vmatprep.subr.bf16.mxu0 0
      %1598 = vmatpush1.bf16.xpose.msra.mxu0 0
      %1599 = vmatprep.subr.bf16.mxu0 0
      %1600 = vmatpush1.bf16.xpose.msra.mxu0 0
      %1601 = vmatprep.mubr.bf16.mxu0 0
      %1602 = vmatmul.mubr.bf16.gmra.mrb[0].mxu0 %v1564
      %v1603 = vpop.f32.mrb[0].mxu0
      %v1604 = vadd.f32 %v1561, %v1603
      %v1605 = vpop.f32.mrb[0].mxu0
      %v1606 = vpop.f32.mrb[0].mxu0
      %v1607 = vpop.f32.mrb[0].mxu0
      %1608 = vdwg.mxu0
      %v1609 = vsel %vm867, %v1604, -inf
      %1610 = vmax.xlane.f32.xlu0 %v1609
      %v1611 = vpop.xlane.xlu0 %1610
      %v1612 = vsub.f32 %v1604, %v1611
      %v1613 = vmul.f32 %v1612, 1.442695
      %v1614 = vpow.pop %v1613
      %v1615 = vsel %vm867, %v1614, 0.0
      %1616 = vadd.xlane.f32.xlu0 %v1615
      %v1617 = vpop.xlane.xlu0 %1616
      %v1618 = vrcp.pop %v1617
      %v1619 = vmul.f32 %v1614, %v1618
      %v1620 = vpack.c.bf16 %v1619, %v1619
      %1622 = vrot.lane.b32.xlu0 %v1556, 96
      %v1623 = vpop.permute.xlu0 %1622
      %v1625 = vsel %vm867, %v1620, 0
      %v1628 = vsel %vm931, %v1623, 0
      %1630 = vmatprep.subr.bf16.mxu0 0
      %1631 = vmatpush1.bf16.msra.mxu0 %v1628
      %1632 = vmatprep.subr.bf16.mxu0 0
      %1633 = vmatpush1.bf16.msra.mxu0 0
      %1634 = vmatprep.subr.bf16.mxu0 0
      %1635 = vmatpush1.bf16.msra.mxu0 0
      %1636 = vmatprep.subr.bf16.mxu0 0
      %1637 = vmatpush1.bf16.msra.mxu0 0
      %1638 = vmatprep.subr.bf16.mxu0 0
      %1639 = vmatpush1.bf16.msra.mxu0 0
      %1640 = vmatprep.subr.bf16.mxu0 0
      %1641 = vmatpush1.bf16.msra.mxu0 0
      %1642 = vmatprep.subr.bf16.mxu0 0
      %1643 = vmatpush1.bf16.msra.mxu0 0
      %1644 = vmatprep.subr.bf16.mxu0 0
      %1645 = vmatpush1.bf16.msra.mxu0 0
      %1646 = vmatprep.subr.bf16.mxu0 0
      %1647 = vmatpush1.bf16.msra.mxu0 0
      %1648 = vmatprep.subr.bf16.mxu0 0
      %1649 = vmatpush1.bf16.msra.mxu0 0
      %1650 = vmatprep.subr.bf16.mxu0 0
      %1651 = vmatpush1.bf16.msra.mxu0 0
      %1652 = vmatprep.subr.bf16.mxu0 0
      %1653 = vmatpush1.bf16.msra.mxu0 0
      %1654 = vmatprep.subr.bf16.mxu0 0
      %1655 = vmatpush1.bf16.msra.mxu0 0
      %1656 = vmatprep.subr.bf16.mxu0 0
      %1657 = vmatpush1.bf16.msra.mxu0 0
      %1658 = vmatprep.subr.bf16.mxu0 0
      %1659 = vmatpush1.bf16.msra.mxu0 0
      %1660 = vmatprep.subr.bf16.mxu0 0
      %1661 = vmatpush1.bf16.msra.mxu0 0
      %1662 = vmatprep.mubr.bf16.mxu0 0
      %1663 = vmatmul.mubr.bf16.gmra.mrb[0].mxu0 %v1625
      %v1664 = vpop.f32.mrb[0].mxu0
      %v1665 = vadd.f32 0.0, %v1664
      %v1666 = vpop.f32.mrb[0].mxu0
      %v1667 = vpop.f32.mrb[0].mxu0
      %v1668 = vpop.f32.mrb[0].mxu0
      %1669 = vdwg.mxu0
      %1671 = vrot.lane.b32.xlu0 %v1555, 120
      %v1672 = vpop.permute.xlu0 %1671
      %1673 = vrot.lane.b32.xlu0 %v1556, 120
      %v1674 = vpop.permute.xlu0 %1673
      %v1676 = vsel %vm867, %v1672, 0
      %v1679 = vsel %vm867, %v1674, 0
      %1681 = vmatprep.subr.bf16.mxu0 0
      %1682 = vmatpush1.bf16.xpose.msra.mxu0 %v1679
      %1683 = vmatprep.subr.bf16.mxu0 0
      %1684 = vmatpush1.bf16.xpose.msra.mxu0 0
      %1685 = vmatprep.subr.bf16.mxu0 0
      %1686 = vmatpush1.bf16.xpose.msra.mxu0 0
      %1687 = vmatprep.subr.bf16.mxu0 0
      %1688 = vmatpush1.bf16.xpose.msra.mxu0 0
      %1689 = vmatprep.subr.bf16.mxu0 0
      %1690 = vmatpush1.bf16.xpose.msra.mxu0 0
      %1691 = vmatprep.subr.bf16.mxu0 0
      %1692 = vmatpush1.bf16.xpose.msra.mxu0 0
      %1693 = vmatprep.subr.bf16.mxu0 0
      %1694 = vmatpush1.bf16.xpose.msra.mxu0 0
      %1695 = vmatprep.subr.bf16.mxu0 0
      %1696 = vmatpush1.bf16.xpose.msra.mxu0 0
      %1697 = vmatprep.subr.bf16.mxu0 0
      %1698 = vmatpush1.bf16.xpose.msra.mxu0 0
      %1699 = vmatprep.subr.bf16.mxu0 0
      %1700 = vmatpush1.bf16.xpose.msra.mxu0 0
      %1701 = vmatprep.subr.bf16.mxu0 0
      %1702 = vmatpush1.bf16.xpose.msra.mxu0 0
      %1703 = vmatprep.subr.bf16.mxu0 0
      %1704 = vmatpush1.bf16.xpose.msra.mxu0 0
      %1705 = vmatprep.subr.bf16.mxu0 0
      %1706 = vmatpush1.bf16.xpose.msra.mxu0 0
      %1707 = vmatprep.subr.bf16.mxu0 0
      %1708 = vmatpush1.bf16.xpose.msra.mxu0 0
      %1709 = vmatprep.subr.bf16.mxu0 0
      %1710 = vmatpush1.bf16.xpose.msra.mxu0 0
      %1711 = vmatprep.subr.bf16.mxu0 0
      %1712 = vmatpush1.bf16.xpose.msra.mxu0 0
      %1713 = vmatprep.mubr.bf16.mxu0 0
      %1714 = vmatmul.mubr.bf16.gmra.mrb[0].mxu0 %v1676
      %v1715 = vpop.f32.mrb[0].mxu0
      %v1716 = vadd.f32 %v1561, %v1715
      %v1717 = vpop.f32.mrb[0].mxu0
      %v1718 = vpop.f32.mrb[0].mxu0
      %v1719 = vpop.f32.mrb[0].mxu0
      %1720 = vdwg.mxu0
      %v1721 = vsel %vm867, %v1716, -inf
      %1722 = vmax.xlane.f32.xlu0 %v1721
      %v1723 = vpop.xlane.xlu0 %1722
      %v1724 = vsub.f32 %v1716, %v1723
      %v1725 = vmul.f32 %v1724, 1.442695
      %v1726 = vpow.pop %v1725
      %v1727 = vsel %vm867, %v1726, 0.0
      %1728 = vadd.xlane.f32.xlu0 %v1727
      %v1729 = vpop.xlane.xlu0 %1728
      %v1730 = vrcp.pop %v1729
      %v1731 = vmul.f32 %v1726, %v1730
      %v1732 = vpack.c.bf16 %v1731, %v1731
      %1733 = vrot.lane.b32.xlu0 %v1556, 88
      %v1734 = vpop.permute.xlu0 %1733
      %v1736 = vsel %vm867, %v1732, 0
      %v1739 = vsel %vm931, %v1734, 0
      %1741 = vmatprep.subr.bf16.mxu0 0
      %1742 = vmatpush1.bf16.msra.mxu0 %v1739
      %1743 = vmatprep.subr.bf16.mxu0 0
      %1744 = vmatpush1.bf16.msra.mxu0 0
      %1745 = vmatprep.subr.bf16.mxu0 0
      %1746 = vmatpush1.bf16.msra.mxu0 0
      %1747 = vmatprep.subr.bf16.mxu0 0
      %1748 = vmatpush1.bf16.msra.mxu0 0
      %1749 = vmatprep.subr.bf16.mxu0 0
      %1750 = vmatpush1.bf16.msra.mxu0 0
      %1751 = vmatprep.subr.bf16.mxu0 0
      %1752 = vmatpush1.bf16.msra.mxu0 0
      %1753 = vmatprep.subr.bf16.mxu0 0
      %1754 = vmatpush1.bf16.msra.mxu0 0
      %1755 = vmatprep.subr.bf16.mxu0 0
      %1756 = vmatpush1.bf16.msra.mxu0 0
      %1757 = vmatprep.subr.bf16.mxu0 0
      %1758 = vmatpush1.bf16.msra.mxu0 0
      %1759 = vmatprep.subr.bf16.mxu0 0
      %1760 = vmatpush1.bf16.msra.mxu0 0
      %1761 = vmatprep.subr.bf16.mxu0 0
      %1762 = vmatpush1.bf16.msra.mxu0 0
      %1763 = vmatprep.subr.bf16.mxu0 0
      %1764 = vmatpush1.bf16.msra.mxu0 0
      %1765 = vmatprep.subr.bf16.mxu0 0
      %1766 = vmatpush1.bf16.msra.mxu0 0
      %1767 = vmatprep.subr.bf16.mxu0 0
      %1768 = vmatpush1.bf16.msra.mxu0 0
      %1769 = vmatprep.subr.bf16.mxu0 0
      %1770 = vmatpush1.bf16.msra.mxu0 0
      %1771 = vmatprep.subr.bf16.mxu0 0
      %1772 = vmatpush1.bf16.msra.mxu0 0
      %1773 = vmatprep.mubr.bf16.mxu0 0
      %1774 = vmatmul.mubr.bf16.gmra.mrb[0].mxu0 %v1736
      %v1775 = vpop.f32.mrb[0].mxu0
      %v1776 = vadd.f32 0.0, %v1775
      %v1777 = vpop.f32.mrb[0].mxu0
      %v1778 = vpop.f32.mrb[0].mxu0
      %v1779 = vpop.f32.mrb[0].mxu0
      %1780 = vdwg.mxu0
      %1781 = vrot.lane.b32.xlu0 %v1555, 112
      %v1782 = vpop.permute.xlu0 %1781
      %1783 = vrot.lane.b32.xlu0 %v1556, 112
      %v1784 = vpop.permute.xlu0 %1783
      %v1786 = vsel %vm867, %v1782, 0
      %v1789 = vsel %vm867, %v1784, 0
      %1791 = vmatprep.subr.bf16.mxu0 0
      %1792 = vmatpush1.bf16.xpose.msra.mxu0 %v1789
      %1793 = vmatprep.subr.bf16.mxu0 0
      %1794 = vmatpush1.bf16.xpose.msra.mxu0 0
      %1795 = vmatprep.subr.bf16.mxu0 0
      %1796 = vmatpush1.bf16.xpose.msra.mxu0 0
      %1797 = vmatprep.subr.bf16.mxu0 0
      %1798 = vmatpush1.bf16.xpose.msra.mxu0 0
      %1799 = vmatprep.subr.bf16.mxu0 0
      %1800 = vmatpush1.bf16.xpose.msra.mxu0 0
      %1801 = vmatprep.subr.bf16.mxu0 0
      %1802 = vmatpush1.bf16.xpose.msra.mxu0 0
      %1803 = vmatprep.subr.bf16.mxu0 0
      %1804 = vmatpush1.bf16.xpose.msra.mxu0 0
      %1805 = vmatprep.subr.bf16.mxu0 0
      %1806 = vmatpush1.bf16.xpose.msra.mxu0 0
      %1807 = vmatprep.subr.bf16.mxu0 0
      %1808 = vmatpush1.bf16.xpose.msra.mxu0 0
      %1809 = vmatprep.subr.bf16.mxu0 0
      %1810 = vmatpush1.bf16.xpose.msra.mxu0 0
      %1811 = vmatprep.subr.bf16.mxu0 0
      %1812 = vmatpush1.bf16.xpose.msra.mxu0 0
      %1813 = vmatprep.subr.bf16.mxu0 0
      %1814 = vmatpush1.bf16.xpose.msra.mxu0 0
      %1815 = vmatprep.subr.bf16.mxu0 0
      %1816 = vmatpush1.bf16.xpose.msra.mxu0 0
      %1817 = vmatprep.subr.bf16.mxu0 0
      %1818 = vmatpush1.bf16.xpose.msra.mxu0 0
      %1819 = vmatprep.subr.bf16.mxu0 0
      %1820 = vmatpush1.bf16.xpose.msra.mxu0 0
      %1821 = vmatprep.subr.bf16.mxu0 0
      %1822 = vmatpush1.bf16.xpose.msra.mxu0 0
      %1823 = vmatprep.mubr.bf16.mxu0 0
      %1824 = vmatmul.mubr.bf16.gmra.mrb[0].mxu0 %v1786
      %v1825 = vpop.f32.mrb[0].mxu0
      %v1826 = vadd.f32 %v1561, %v1825
      %v1827 = vpop.f32.mrb[0].mxu0
      %v1828 = vpop.f32.mrb[0].mxu0
      %v1829 = vpop.f32.mrb[0].mxu0
      %1830 = vdwg.mxu0
      %v1831 = vsel %vm867, %v1826, -inf
      %1832 = vmax.xlane.f32.xlu0 %v1831
      %v1833 = vpop.xlane.xlu0 %1832
      %v1834 = vsub.f32 %v1826, %v1833
      %v1835 = vmul.f32 %v1834, 1.442695
      %v1836 = vpow.pop %v1835
      %v1837 = vsel %vm867, %v1836, 0.0
      %1838 = vadd.xlane.f32.xlu0 %v1837
      %v1839 = vpop.xlane.xlu0 %1838
      %v1840 = vrcp.pop %v1839
      %v1841 = vmul.f32 %v1836, %v1840
      %v1842 = vpack.c.bf16 %v1841, %v1841
      %1843 = vrot.lane.b32.xlu0 %v1556, 80
      %v1844 = vpop.permute.xlu0 %1843
      %v1846 = vsel %vm867, %v1842, 0
      %v1849 = vsel %vm931, %v1844, 0
      %1851 = vmatprep.subr.bf16.mxu0 0
      %1852 = vmatpush1.bf16.msra.mxu0 %v1849
      %1853 = vmatprep.subr.bf16.mxu0 0
      %1854 = vmatpush1.bf16.msra.mxu0 0
      %1855 = vmatprep.subr.bf16.mxu0 0
      %1856 = vmatpush1.bf16.msra.mxu0 0
      %1857 = vmatprep.subr.bf16.mxu0 0
      %1858 = vmatpush1.bf16.msra.mxu0 0
      %1859 = vmatprep.subr.bf16.mxu0 0
      %1860 = vmatpush1.bf16.msra.mxu0 0
      %1861 = vmatprep.subr.bf16.mxu0 0
      %1862 = vmatpush1.bf16.msra.mxu0 0
      %1863 = vmatprep.subr.bf16.mxu0 0
      %1864 = vmatpush1.bf16.msra.mxu0 0
      %1865 = vmatprep.subr.bf16.mxu0 0
      %1866 = vmatpush1.bf16.msra.mxu0 0
      %1867 = vmatprep.subr.bf16.mxu0 0
      %1868 = vmatpush1.bf16.msra.mxu0 0
      %1869 = vmatprep.subr.bf16.mxu0 0
      %1870 = vmatpush1.bf16.msra.mxu0 0
      %1871 = vmatprep.subr.bf16.mxu0 0
      %1872 = vmatpush1.bf16.msra.mxu0 0
      %1873 = vmatprep.subr.bf16.mxu0 0
      %1874 = vmatpush1.bf16.msra.mxu0 0
      %1875 = vmatprep.subr.bf16.mxu0 0
      %1876 = vmatpush1.bf16.msra.mxu0 0
      %1877 = vmatprep.subr.bf16.mxu0 0
      %1878 = vmatpush1.bf16.msra.mxu0 0
      %1879 = vmatprep.subr.bf16.mxu0 0
      %1880 = vmatpush1.bf16.msra.mxu0 0
      %1881 = vmatprep.subr.bf16.mxu0 0
      %1882 = vmatpush1.bf16.msra.mxu0 0
      %1883 = vmatprep.mubr.bf16.mxu0 0
      %1884 = vmatmul.mubr.bf16.gmra.mrb[0].mxu0 %v1846
      %v1885 = vpop.f32.mrb[0].mxu0
      %v1886 = vadd.f32 0.0, %v1885
      %v1887 = vpop.f32.mrb[0].mxu0
      %v1888 = vpop.f32.mrb[0].mxu0
      %v1889 = vpop.f32.mrb[0].mxu0
      %1890 = vdwg.mxu0
      %1891 = vrot.lane.b32.xlu0 %v1555, 104
      %v1892 = vpop.permute.xlu0 %1891
      %1893 = vrot.lane.b32.xlu0 %v1556, 104
      %v1894 = vpop.permute.xlu0 %1893
      %v1896 = vsel %vm867, %v1892, 0
      %v1899 = vsel %vm867, %v1894, 0
      %1901 = vmatprep.subr.bf16.mxu0 0
      %1902 = vmatpush1.bf16.xpose.msra.mxu0 %v1899
      %1903 = vmatprep.subr.bf16.mxu0 0
      %1904 = vmatpush1.bf16.xpose.msra.mxu0 0
      %1905 = vmatprep.subr.bf16.mxu0 0
      %1906 = vmatpush1.bf16.xpose.msra.mxu0 0
      %1907 = vmatprep.subr.bf16.mxu0 0
      %1908 = vmatpush1.bf16.xpose.msra.mxu0 0
      %1909 = vmatprep.subr.bf16.mxu0 0
      %1910 = vmatpush1.bf16.xpose.msra.mxu0 0
      %1911 = vmatprep.subr.bf16.mxu0 0
      %1912 = vmatpush1.bf16.xpose.msra.mxu0 0
      %1913 = vmatprep.subr.bf16.mxu0 0
      %1914 = vmatpush1.bf16.xpose.msra.mxu0 0
      %1915 = vmatprep.subr.bf16.mxu0 0
      %1916 = vmatpush1.bf16.xpose.msra.mxu0 0
      %1917 = vmatprep.subr.bf16.mxu0 0
      %1918 = vmatpush1.bf16.xpose.msra.mxu0 0
      %1919 = vmatprep.subr.bf16.mxu0 0
      %1920 = vmatpush1.bf16.xpose.msra.mxu0 0
      %1921 = vmatprep.subr.bf16.mxu0 0
      %1922 = vmatpush1.bf16.xpose.msra.mxu0 0
      %1923 = vmatprep.subr.bf16.mxu0 0
      %1924 = vmatpush1.bf16.xpose.msra.mxu0 0
      %1925 = vmatprep.subr.bf16.mxu0 0
      %1926 = vmatpush1.bf16.xpose.msra.mxu0 0
      %1927 = vmatprep.subr.bf16.mxu0 0
      %1928 = vmatpush1.bf16.xpose.msra.mxu0 0
      %1929 = vmatprep.subr.bf16.mxu0 0
      %1930 = vmatpush1.bf16.xpose.msra.mxu0 0
      %1931 = vmatprep.subr.bf16.mxu0 0
      %1932 = vmatpush1.bf16.xpose.msra.mxu0 0
      %1933 = vmatprep.mubr.bf16.mxu0 0
      %1934 = vmatmul.mubr.bf16.gmra.mrb[0].mxu0 %v1896
      %v1935 = vpop.f32.mrb[0].mxu0
      %v1936 = vadd.f32 %v1561, %v1935
      %v1937 = vpop.f32.mrb[0].mxu0
      %v1938 = vpop.f32.mrb[0].mxu0
      %v1939 = vpop.f32.mrb[0].mxu0
      %1940 = vdwg.mxu0
      %v1941 = vsel %vm867, %v1936, -inf
      %1942 = vmax.xlane.f32.xlu0 %v1941
      %v1943 = vpop.xlane.xlu0 %1942
      %v1944 = vsub.f32 %v1936, %v1943
      %v1945 = vmul.f32 %v1944, 1.442695
      %v1946 = vpow.pop %v1945
      %v1947 = vsel %vm867, %v1946, 0.0
      %1948 = vadd.xlane.f32.xlu0 %v1947
      %v1949 = vpop.xlane.xlu0 %1948
      %v1950 = vrcp.pop %v1949
      %v1951 = vmul.f32 %v1946, %v1950
      %v1952 = vpack.c.bf16 %v1951, %v1951
      %1953 = vrot.lane.b32.xlu0 %v1556, 72
      %v1954 = vpop.permute.xlu0 %1953
      %v1956 = vsel %vm867, %v1952, 0
      %v1959 = vsel %vm931, %v1954, 0
      %1961 = vmatprep.subr.bf16.mxu0 0
      %1962 = vmatpush1.bf16.msra.mxu0 %v1959
      %1963 = vmatprep.subr.bf16.mxu0 0
      %1964 = vmatpush1.bf16.msra.mxu0 0
      %1965 = vmatprep.subr.bf16.mxu0 0
      %1966 = vmatpush1.bf16.msra.mxu0 0
      %1967 = vmatprep.subr.bf16.mxu0 0
      %1968 = vmatpush1.bf16.msra.mxu0 0
      %1969 = vmatprep.subr.bf16.mxu0 0
      %1970 = vmatpush1.bf16.msra.mxu0 0
      %1971 = vmatprep.subr.bf16.mxu0 0
      %1972 = vmatpush1.bf16.msra.mxu0 0
      %1973 = vmatprep.subr.bf16.mxu0 0
      %1974 = vmatpush1.bf16.msra.mxu0 0
      %1975 = vmatprep.subr.bf16.mxu0 0
      %1976 = vmatpush1.bf16.msra.mxu0 0
      %1977 = vmatprep.subr.bf16.mxu0 0
      %1978 = vmatpush1.bf16.msra.mxu0 0
      %1979 = vmatprep.subr.bf16.mxu0 0
      %1980 = vmatpush1.bf16.msra.mxu0 0
      %1981 = vmatprep.subr.bf16.mxu0 0
      %1982 = vmatpush1.bf16.msra.mxu0 0
      %1983 = vmatprep.subr.bf16.mxu0 0
      %1984 = vmatpush1.bf16.msra.mxu0 0
      %1985 = vmatprep.subr.bf16.mxu0 0
      %1986 = vmatpush1.bf16.msra.mxu0 0
      %1987 = vmatprep.subr.bf16.mxu0 0
      %1988 = vmatpush1.bf16.msra.mxu0 0
      %1989 = vmatprep.subr.bf16.mxu0 0
      %1990 = vmatpush1.bf16.msra.mxu0 0
      %1991 = vmatprep.subr.bf16.mxu0 0
      %1992 = vmatpush1.bf16.msra.mxu0 0
      %1993 = vmatprep.mubr.bf16.mxu0 0
      %1994 = vmatmul.mubr.bf16.gmra.mrb[0].mxu0 %v1956
      %v1995 = vpop.f32.mrb[0].mxu0
      %v1996 = vadd.f32 0.0, %v1995
      %v1997 = vpop.f32.mrb[0].mxu0
      %v1998 = vpop.f32.mrb[0].mxu0
      %v1999 = vpop.f32.mrb[0].mxu0
      %2000 = vdwg.mxu0
      %2002 = vrot.lane.b32.xlu0 %v1776, 8
      %v2003 = vpop.permute.xlu0 %2002
      %2006 = vrot.lane.b32.xlu0 %v1886, 16
      %v2007 = vpop.permute.xlu0 %2006
      %2010 = vrot.lane.b32.xlu0 %v1996, 24
      %v2011 = vpop.permute.xlu0 %2010
      %v2013 = vsel %vm867, %v1665, %v2003
      %v2014 = vsel %vm1318, %v2013, %v2007
      %v2015 = vsel %vm1320, %v2014, %v2011
      %v2016 = vpack.c.bf16 %v2015, %v2015
      %v2017 = vld [vmem:[%s14] sm:$0xf]
      %v2018 = vld [vmem:[%s14 + $0x4] sm:$0xf]
      %v2019 = vld [vmem:[%s14 + $0x8] sm:$0xf]
      %v2020 = vld [vmem:[%s14 + $0xc] sm:$0xf]
      %v2021 = vld [vmem:[%s15] sm:$0x1]
      %v2023 = vlaneseq
      %v2024 = vshrl.u32 %v2023, 7
      %v2025 = vsub.s32 0, %v2024
      %v2026 = vrot.slane %v2021, %v2025
      %v2032 = vunpack.c.l.b16 %v2017
      %v2033 = vunpack.c.l.b16 %v2018
      %v2034 = vunpack.c.l.b16 %v2019
      %v2035 = vunpack.c.l.b16 %v2020
      %v2036 = vpack.c.b16 %v2033, %v2032
      %v2037 = vpack.c.b16 %v2035, %v2034
      %v2041 = vsel %vm805, %v2016, 0
      %2043 = vmatprep.subr.bf16.mxu0 0
      %2044 = vmatpush1.bf16.msra.mxu0 %v2036
      %2045 = vmatprep.subr.bf16.mxu0 0
      %2046 = vmatpush1.bf16.msra.mxu0 %v2037
      %2047 = vmatprep.subr.bf16.mxu0 0
      %2048 = vmatpush1.bf16.msra.mxu0 0
      %2049 = vmatprep.subr.bf16.mxu0 0
      %2050 = vmatpush1.bf16.msra.mxu0 0
      %2051 = vmatprep.subr.bf16.mxu0 0
      %2052 = vmatpush1.bf16.msra.mxu0 0
      %2053 = vmatprep.subr.bf16.mxu0 0
      %2054 = vmatpush1.bf16.msra.mxu0 0
      %2055 = vmatprep.subr.bf16.mxu0 0
      %2056 = vmatpush1.bf16.msra.mxu0 0
      %2057 = vmatprep.subr.bf16.mxu0 0
      %2058 = vmatpush1.bf16.msra.mxu0 0
      %2059 = vmatprep.subr.bf16.mxu0 0
      %2060 = vmatpush1.bf16.msra.mxu0 0
      %2061 = vmatprep.subr.bf16.mxu0 0
      %2062 = vmatpush1.bf16.msra.mxu0 0
      %2063 = vmatprep.subr.bf16.mxu0 0
      %2064 = vmatpush1.bf16.msra.mxu0 0
      %2065 = vmatprep.subr.bf16.mxu0 0
      %2066 = vmatpush1.bf16.msra.mxu0 0
      %2067 = vmatprep.subr.bf16.mxu0 0
      %2068 = vmatpush1.bf16.msra.mxu0 0
      %2069 = vmatprep.subr.bf16.mxu0 0
      %2070 = vmatpush1.bf16.msra.mxu0 0
      %2071 = vmatprep.subr.bf16.mxu0 0
      %2072 = vmatpush1.bf16.msra.mxu0 0
      %2073 = vmatprep.subr.bf16.mxu0 0
      %2074 = vmatpush1.bf16.msra.mxu0 0
      %2075 = vmatprep.mubr.bf16.mxu0 0
      %2076 = vmatmul.mubr.bf16.gmra.mrb[0].mxu0 %v2041
      %v2077 = vpop.f32.mrb[0].mxu0
      %v2078 = vadd.f32 %v2026, %v2077
      %v2079 = vpop.f32.mrb[0].mxu0
      %v2080 = vpop.f32.mrb[0].mxu0
      %v2081 = vpop.f32.mrb[0].mxu0
      %2082 = vdwg.mxu0
      %v2083 = vadd.f32 %v1419, %v2078
      %v2084 = vsel %vm805, %v2083, 0.0
      %2085 = vadd.xlane.f32.xlu0 %v2084
      %v2086 = vpop.xlane.xlu0 %2085
      %v2087 = vmul.f32 %v2086, %v1393
      %v2088 = vsub.f32 %v2083, %v2087
      %v2089 = vmul.f32 %v2088, %v2088
      %v2090 = vsel %vm805, %v2089, 0.0
      %2091 = vadd.xlane.f32.xlu0 %v2090
      %v2092 = vpop.xlane.xlu0 %2091
      %v2093 = vmul.f32 %v2092, %v1393
      %v2094 = vadd.f32 %v2093, 1e-05
      %v2095 = vrsqrt.pop %v2094
      %v2096 = vmul.f32 %v2088, %v2095
      %v2097 = vld [vmem:[%s16] sm:$0x1]
      %v2099 = vlaneseq
      %v2100 = vshrl.u32 %v2099, 7
      %v2101 = vsub.s32 0, %v2100
      %v2102 = vrot.slane %v2097, %v2101
      %v2104 = vmul.f32 %v2096, %v2102
      %v2105 = vld [vmem:[%s17] sm:$0x1]
      %v2107 = vlaneseq
      %v2108 = vshrl.u32 %v2107, 7
      %v2109 = vsub.s32 0, %v2108
      %v2110 = vrot.slane %v2105, %v2109
      %v2112 = vadd.f32 %v2104, %v2110
      %v2113 = vpack.c.bf16 %v2112, %v2112
      %v2114 = vld [vmem:[%s18] sm:$0xf]
      %v2115 = vld [vmem:[%s18 + $0x4] sm:$0xf]
      %v2116 = vld [vmem:[%s18 + $0x8] sm:$0xf]
      %v2117 = vld [vmem:[%s18 + $0xc] sm:$0xf]
      %v2118 = vld [vmem:[%s19] sm:$0x1]
      %v2120 = vlaneseq
      %v2121 = vshrl.u32 %v2120, 7
      %v2122 = vsub.s32 0, %v2121
      %v2123 = vrot.slane %v2118, %v2122
      %v2129 = vunpack.c.l.b16 %v2114
      %v2130 = vunpack.c.l.b16 %v2115
      %v2131 = vunpack.c.l.b16 %v2116
      %v2132 = vunpack.c.l.b16 %v2117
      %v2133 = vpack.c.b16 %v2130, %v2129
      %v2134 = vpack.c.b16 %v2132, %v2131
      %v2138 = vsel %vm805, %v2113, 0
      %2140 = vmatprep.subr.bf16.mxu0 0
      %2141 = vmatpush1.bf16.msra.mxu0 %v2133
      %2142 = vmatprep.subr.bf16.mxu0 0
      %2143 = vmatpush1.bf16.msra.mxu0 %v2134
      %2144 = vmatprep.subr.bf16.mxu0 0
      %2145 = vmatpush1.bf16.msra.mxu0 0
      %2146 = vmatprep.subr.bf16.mxu0 0
      %2147 = vmatpush1.bf16.msra.mxu0 0
      %2148 = vmatprep.subr.bf16.mxu0 0
      %2149 = vmatpush1.bf16.msra.mxu0 0
      %2150 = vmatprep.subr.bf16.mxu0 0
      %2151 = vmatpush1.bf16.msra.mxu0 0
      %2152 = vmatprep.subr.bf16.mxu0 0
      %2153 = vmatpush1.bf16.msra.mxu0 0
      %2154 = vmatprep.subr.bf16.mxu0 0
      %2155 = vmatpush1.bf16.msra.mxu0 0
      %2156 = vmatprep.subr.bf16.mxu0 0
      %2157 = vmatpush1.bf16.msra.mxu0 0
      %2158 = vmatprep.subr.bf16.mxu0 0
      %2159 = vmatpush1.bf16.msra.mxu0 0
      %2160 = vmatprep.subr.bf16.mxu0 0
      %2161 = vmatpush1.bf16.msra.mxu0 0
      %2162 = vmatprep.subr.bf16.mxu0 0
      %2163 = vmatpush1.bf16.msra.mxu0 0
      %2164 = vmatprep.subr.bf16.mxu0 0
      %2165 = vmatpush1.bf16.msra.mxu0 0
      %2166 = vmatprep.subr.bf16.mxu0 0
      %2167 = vmatpush1.bf16.msra.mxu0 0
      %2168 = vmatprep.subr.bf16.mxu0 0
      %2169 = vmatpush1.bf16.msra.mxu0 0
      %2170 = vmatprep.subr.bf16.mxu0 0
      %2171 = vmatpush1.bf16.msra.mxu0 0
      %2172 = vmatprep.mubr.bf16.mxu0 0
      %2173 = vmatmul.mubr.bf16.gmra.mrb[0].mxu0 %v2138
      %v2174 = vpop.f32.mrb[0].mxu0
      %v2175 = vadd.f32 %v2123, %v2174
      %v2176 = vpop.f32.mrb[0].mxu0
      %v2177 = vpop.f32.mrb[0].mxu0
      %v2178 = vpop.f32.mrb[0].mxu0
      %2179 = vdwg.mxu0
      %v2180 = vmul.f32 %v2175, 0.5
      %v2181 = vmul.f32 %v2175, 0.70710677
      %vm2182 = vcmp.ge.f32.partialorder %v2181, 0.0
      %v2183 = vsel %vm2182, 1.0, -1.0
      %v2184 = vand.u32 2147483647, %v2181
      %v2185 = vmul.f32 %v2184, 0.3275911
      %v2186 = vadd.f32 %v2185, 1.0
      %v2187 = vrcp.pop %v2186
      %v2188 = vmul.f32 1.0, %v2187
      %v2189 = vmul.f32 %v2188, 1.0614054
      %v2190 = vadd.f32 %v2189, -1.4531521
      %v2191 = vmul.f32 %v2190, %v2188
      %v2192 = vadd.f32 %v2191, 1.4214138
      %v2193 = vmul.f32 %v2192, %v2188
      %v2194 = vadd.f32 %v2193, -0.28449672
      %v2195 = vmul.f32 %v2194, %v2188
      %v2196 = vadd.f32 %v2195, 0.2548296
      %v2197 = vmul.f32 %v2196, %v2188
      %v2198 = vsub.f32 0.0, %v2184
      %v2199 = vmul.f32 %v2198, %v2184
      %v2200 = vmul.f32 %v2199, 1.442695
      %v2201 = vpow.pop %v2200
      %v2202 = vmul.f32 %v2197, %v2201
      %v2203 = vsub.f32 1.0, %v2202
      %v2204 = vmul.f32 %v2183, %v2203
      %v2205 = vadd.f32 %v2204, 1.0
      %v2206 = vmul.f32 %v2180, %v2205
      %v2207 = vpack.c.bf16 %v2206, %v2206
      %v2208 = vld [vmem:[%s20] sm:$0xf]
      %v2209 = vld [vmem:[%s20 + $0x4] sm:$0xf]
      %v2210 = vld [vmem:[%s20 + $0x8] sm:$0xf]
      %v2211 = vld [vmem:[%s20 + $0xc] sm:$0xf]
      %v2212 = vld [vmem:[%s20 + $0x10] sm:$0xf]
      %v2213 = vld [vmem:[%s20 + $0x14] sm:$0xf]
      %v2214 = vld [vmem:[%s20 + $0x18] sm:$0xf]
      %v2215 = vld [vmem:[%s20 + $0x1c] sm:$0xf]
      %v2216 = vld [vmem:[%s21] sm:$0x1]
      %v2218 = vlaneseq
      %v2219 = vshrl.u32 %v2218, 7
      %v2220 = vsub.s32 0, %v2219
      %v2221 = vrot.slane %v2216, %v2220
      %v2231 = vunpack.c.l.b16 %v2208
      %v2232 = vunpack.c.l.b16 %v2209
      %v2233 = vunpack.c.l.b16 %v2210
      %v2234 = vunpack.c.l.b16 %v2211
      %v2235 = vunpack.c.l.b16 %v2212
      %v2236 = vunpack.c.l.b16 %v2213
      %v2237 = vunpack.c.l.b16 %v2214
      %v2238 = vunpack.c.l.b16 %v2215
      %v2239 = vpack.c.b16 %v2232, %v2231
      %v2240 = vpack.c.b16 %v2234, %v2233
      %v2241 = vpack.c.b16 %v2236, %v2235
      %v2242 = vpack.c.b16 %v2238, %v2237
      %vm2247 = vcmask 523264
      %v2249 = vsel %vm2247, %v2207, 0
      %2251 = vmatprep.subr.bf16.mxu0 0
      %2252 = vmatpush1.bf16.msra.mxu0 %v2239
      %2253 = vmatprep.subr.bf16.mxu0 0
      %2254 = vmatpush1.bf16.msra.mxu0 %v2240
      %2255 = vmatprep.subr.bf16.mxu0 0
      %2256 = vmatpush1.bf16.msra.mxu0 %v2241
      %2257 = vmatprep.subr.bf16.mxu0 0
      %2258 = vmatpush1.bf16.msra.mxu0 %v2242
      %2259 = vmatprep.subr.bf16.mxu0 0
      %2260 = vmatpush1.bf16.msra.mxu0 0
      %2261 = vmatprep.subr.bf16.mxu0 0
      %2262 = vmatpush1.bf16.msra.mxu0 0
      %2263 = vmatprep.subr.bf16.mxu0 0
      %2264 = vmatpush1.bf16.msra.mxu0 0
      %2265 = vmatprep.subr.bf16.mxu0 0
      %2266 = vmatpush1.bf16.msra.mxu0 0
      %2267 = vmatprep.subr.bf16.mxu0 0
      %2268 = vmatpush1.bf16.msra.mxu0 0
      %2269 = vmatprep.subr.bf16.mxu0 0
      %2270 = vmatpush1.bf16.msra.mxu0 0
      %2271 = vmatprep.subr.bf16.mxu0 0
      %2272 = vmatpush1.bf16.msra.mxu0 0
      %2273 = vmatprep.subr.bf16.mxu0 0
      %2274 = vmatpush1.bf16.msra.mxu0 0
      %2275 = vmatprep.subr.bf16.mxu0 0
      %2276 = vmatpush1.bf16.msra.mxu0 0
      %2277 = vmatprep.subr.bf16.mxu0 0
      %2278 = vmatpush1.bf16.msra.mxu0 0
      %2279 = vmatprep.subr.bf16.mxu0 0
      %2280 = vmatpush1.bf16.msra.mxu0 0
      %2281 = vmatprep.subr.bf16.mxu0 0
      %2282 = vmatpush1.bf16.msra.mxu0 0
      %2283 = vmatprep.mubr.bf16.mxu0 0
      %2284 = vmatmul.mubr.bf16.gmra.mrb[0].mxu0 %v2249
      %v2285 = vpop.f32.mrb[0].mxu0
      %v2286 = vadd.f32 %v2221, %v2285
      %v2287 = vpop.f32.mrb[0].mxu0
      %v2288 = vpop.f32.mrb[0].mxu0
      %v2289 = vpop.f32.mrb[0].mxu0
      %2290 = vdwg.mxu0
      %v2291 = vadd.f32 %v2112, %v2286
      %v2292 = vsel %vm805, %v2291, 0.0
      %2293 = vadd.xlane.f32.xlu0 %v2292
      %v2294 = vpop.xlane.xlu0 %2293
      %v2295 = vmul.f32 %v2294, %v1393
      %v2296 = vsub.f32 %v2291, %v2295
      %v2297 = vmul.f32 %v2296, %v2296
      %v2298 = vsel %vm805, %v2297, 0.0
      %2299 = vadd.xlane.f32.xlu0 %v2298
      %v2300 = vpop.xlane.xlu0 %2299
      %v2301 = vmul.f32 %v2300, %v1393
      %v2302 = vadd.f32 %v2301, 1e-05
      %v2303 = vrsqrt.pop %v2302
      %v2304 = vmul.f32 %v2296, %v2303
      %v2305 = vld [vmem:[%s22] sm:$0x1]
      %v2307 = vlaneseq
      %v2308 = vshrl.u32 %v2307, 7
      %v2309 = vsub.s32 0, %v2308
      %v2310 = vrot.slane %v2305, %v2309
      %v2312 = vmul.f32 %v2304, %v2310
      %v2313 = vld [vmem:[%s23] sm:$0x1]
      %v2315 = vlaneseq
      %v2316 = vshrl.u32 %v2315, 7
      %v2317 = vsub.s32 0, %v2316
      %v2318 = vrot.slane %v2313, %v2317
      %v2320 = vadd.f32 %v2312, %v2318
      %2321 = vst.msk [vmem:[%s777] sm:$0xff] %vm805, %v2320
      %p2322 = scmp.lt.s32.totalorder %s35, 1
      %s2323 = scalar_select %p2322, %s35, 1
      %s2324 = smul.addr %s2323, 8
      %s2325 = scalar_lea.vmem %s24, %s2324
      // Predicated region
      $region117: #{cptg_dec_forward.4} parent=115 // pred_check
        %p2326 = pneg %p577
      $region118: #{cptg_dec_forward.4} parent=115 // pred_check_branch
        %2328 = sbr.rel (%p2326) target = $region120
      $region119: #{cptg_dec_forward.4} parent=115 // pred_region
        _
      $region120: #{cptg_dec_forward.4} parent=115 // pred_fallthru
        _
    $region116: #{cptg_dec_forward.4} parent=5 // pred_fallthru
      _
    %p2329 = scmp.le.s32.totalorder 2, %s30
    // Predicated region
    $region121: #{cptg_dec_forward.4} parent=5 // pred_check
      %p2330 = pneg %p2329
    $region122: #{cptg_dec_forward.4} parent=5 // pred_check_branch
      %2332 = sbr.rel (%p2330) target = $region124
    $region123: #{cptg_dec_forward.4} parent=5 // pred_region
      %s2333 = ssub.s32 %s30, 2
      // Predicated region
      $region125: #{cptg_dec_forward.4} parent=123 // pred_check
        %p2334 = pneg %p583
      $region126: #{cptg_dec_forward.4} parent=123 // pred_check_branch
        %2336 = sbr.rel (%p2334) target = $region128
      $region127: #{cptg_dec_forward.4} parent=123 // pred_region
        %p2337 = scmp.lt.s32.totalorder %s36, 1
        %s2338 = scalar_select %p2337, %s36, 1
        %s2339 = smul.addr %s2338, 8
        %s2340 = scalar_lea.vmem %s24, %s2339
      $region128: #{cptg_dec_forward.4} parent=123 // pred_fallthru
        _
    $region124: #{cptg_dec_forward.4} parent=5 // pred_fallthru
      _
  $region6: #{cptg_dec_forward.4} parent=0 // loop_footer
    %s34 = sadd.s32 1, %s30
  $region7: #{cptg_dec_forward.4} parent=0 // loop_footer_branch
    %29 = sbr.rel target = $region3
  $region8: #{cptg_dec_forward.4} parent=0 // loop_exit
    _

</llo_original>
